<compile_context>
chip_gen: v7x
topology: tpu7x:2x2x1
jax: 0.10.0
libtpu: 0.0.40
codegen_flags: <defaults>
</compile_context>

<pallas_src>
import functools

import jax
import jax.numpy as jnp
from jax import lax
from jax.experimental import pallas as pl
from jax.experimental.pallas import tpu as pltpu


def _round_up(x, m):
    return (x + m - 1) // m * m


@functools.lru_cache(maxsize=None)
def _vmem_limit_bytes():
    """~3/4 of physical VMEM: 96 MiB on v5e/v6e (128 MiB), 48 MiB on v7x (64 MiB)."""
    try:
        cap = int(pltpu.get_tpu_info().vmem_capacity_bytes)
    except Exception:
        cap = 64 * 1024 * 1024
    return int(min(cap * 3 // 4, 96 * 1024 * 1024))


# ------------------------------ Pallas kernel ------------------------------

def _make_conv_kernel(tap_specs, apply_act, add_residual, out_rows):
    """out = [LReLU0.1]( sum_t x[phase_t, off_t:off_t+out_rows] @ W_t * scale + shift )
             [+ residual]                 — one grid step == one image.

    tap_specs: static tuple of (phase_index, flat_row_offset) per conv tap.
    """

    def kernel(*refs):
        if add_residual:
            x_ref, w_ref, aff_ref, res_ref, o_ref = refs
        else:
            x_ref, w_ref, aff_ref, o_ref = refs
            res_ref = None

        acc = None
        # Unrolled tap loop: KH*KW small matmuls, f32 MXU accumulation.
        for t, (phase, off) in enumerate(tap_specs):
            lhs = x_ref[phase, pl.ds(off, out_rows), :]          # (out_rows, Cin) bf16
            part = jnp.dot(lhs, w_ref[t], preferred_element_type=jnp.float32)
            acc = part if acc is None else acc + part

        aff = aff_ref[...]                                       # (2, Cpad) f32
        y = acc * aff[0:1, :] + aff[1:2, :]                      # folded bias + BN
        if apply_act:
            y = jnp.where(y > 0.0, y, 0.1 * y)                   # LeakyReLU(0.1)
        if add_residual:
            y = y + res_ref[...].astype(jnp.float32)
        o_ref[...] = y.astype(o_ref.dtype)

    return kernel


# ------------------------------ stage wrapper -------------------------------

def conv_bn_lrelu(x, w, bias, bn=None, *, stride, dilation, padding,
                  apply_act=True, residual=None, eps=1e-5,
                  out_dtype=jnp.bfloat16):
    """Fused Conv2d (+BN inference) (+LeakyReLU 0.1) (+residual).

    x: (N, H, W, Cin) float (consumed as bf16), w: (KH, KW, Cin, Cout) HWIO,
    bias: (Cout,), bn: None or (gamma, beta, running_mean, running_var).
    residual: None or (N, Ho, Wo, Cout), added after the activation.
    Returns (N, Ho, Wo, Cout) in out_dtype.
    """
    N, H, W, Cin = x.shape
    KH, KW, _, Cout = w.shape
    s, d = stride, dilation
    Ho = (H + 2 * padding - d * (KH - 1) - 1) // s + 1
    Wo = (W + 2 * padding - d * (KW - 1) - 1) // s + 1

    # --- glue (bf16, ~1x activation bytes): spatial zero-pad + stride-phase
    # decomposition.  Each conv tap then reads a *contiguous* row slice of one
    # phase plane, so no im2col patch tensor is ever materialized.
    Hp, Wp = H + 2 * padding, W + 2 * padding
    Hps, Wps = -(-Hp // s), -(-Wp // s)                 # ceil-div
    Cin_p = _round_up(Cin, 8)
    xb = jnp.pad(x.astype(jnp.bfloat16),
                 ((0, 0),
                  (padding, padding + Hps * s - Hp),
                  (padding, padding + Wps * s - Wp),
                  (0, Cin_p - Cin)))
    P = s * s
    if s == 1:
        phases = xb.reshape(N, 1, Hp * Wp, Cin_p)
    else:
        phases = (xb.reshape(N, Hps, s, Wps, s, Cin_p)
                    .transpose(0, 2, 4, 1, 3, 5)
                    .reshape(N, P, Hps * Wps, Cin_p))

    # Static per-tap (phase index, flat row offset).  Output rows are
    # ho*Wps + c with c in [0, Wps); columns c >= Wo are junk, sliced away.
    tap_specs = []
    for kh in range(KH):
        for kw in range(KW):
            h0, w0 = kh * d, kw * d
            tap_specs.append(((h0 % s) * s + (w0 % s),
                              (h0 // s) * Wps + (w0 // s)))
    T = KH * KW

    Mrows = _round_up(Ho * Wps, 16)                     # per-image output rows (padded)
    max_off = max(off for _, off in tap_specs)
    Lp = _round_up(max(Hps * Wps, max_off + Mrows), 8)  # phase plane length (+ slack)
    phases = jnp.pad(phases, ((0, 0), (0, 0), (0, Lp - Hps * Wps), (0, 0)))

    # Weights as (T, Cin_p, Cpad) bf16; lane-dense (128-padded) output channels.
    # NOTE: keep 128 padding (HBM-bound); bump to 256 on v6e/v7x only once
    # Cout > 128 and the stages become MXU-limited.
    Cpad = _round_up(Cout, 128)
    wk = jnp.pad(w.reshape(T, Cin, Cout).astype(jnp.bfloat16),
                 ((0, 0), (0, Cin_p - Cin), (0, Cpad - Cout)))

    # Fold conv bias + eval-mode BN into a per-channel affine (f32).  The BN
    # scale stays in the kernel epilogue (VPU has slack) rather than being
    # folded into the bf16 weights, avoiding an extra weight rounding step.
    if bn is not None:
        gamma, beta, mean, var = bn
        scale = gamma / jnp.sqrt(var + eps)
        shift = beta + scale * (bias - mean)
    else:
        scale = jnp.ones((Cout,), jnp.float32)
        shift = bias.astype(jnp.float32)
    affine = jnp.pad(jnp.stack([scale, shift]).astype(jnp.float32),
                     ((0, 0), (0, Cpad - Cout)))

    add_res = residual is not None
    inputs = [phases, wk, affine]
    # NOTE: wk / affine are grid-invariant; at production channel counts mark
    # them pipeline_mode=pl.Buffered(1) to reclaim the double-buffer VMEM.
    in_specs = [
        pl.BlockSpec((None, P, Lp, Cin_p), lambda n: (n, 0, 0, 0)),
        pl.BlockSpec((T, Cin_p, Cpad), lambda n: (0, 0, 0)),
        pl.BlockSpec((2, Cpad), lambda n: (0, 0)),
    ]
    if add_res:
        res = jnp.pad(residual.astype(jnp.bfloat16),
                      ((0, 0), (0, 0), (0, Wps - Wo), (0, Cpad - Cout)))
        res = res.reshape(N, Ho * Wps, Cpad)
        res = jnp.pad(res, ((0, 0), (0, Mrows - Ho * Wps), (0, 0)))
        inputs.append(res)
        in_specs.append(pl.BlockSpec((None, Mrows, Cpad), lambda n: (n, 0, 0)))

    out_bytes = jnp.dtype(out_dtype).itemsize
    bytes_accessed = (phases.size * 2 + wk.size * 2 + affine.size * 4
                      + N * Mrows * Cpad * out_bytes
                      + (inputs[-1].size * 2 if add_res else 0))

    # TODO(synk): at production H*W a full phase-decomposed image may exceed
    # VMEM; split Mrows into row tiles with an explicit halo DMA (manual
    # double buffering) instead of one block per image.
    out = pl.pallas_call(
        _make_conv_kernel(tuple(tap_specs), apply_act, add_res, Mrows),
        out_shape=jax.ShapeDtypeStruct((N, Mrows, Cpad), out_dtype),
        grid=(N,),
        in_specs=in_specs,
        out_specs=pl.BlockSpec((None, Mrows, Cpad), lambda n: (n, 0, 0)),
        compiler_params=pltpu.CompilerParams(
            dimension_semantics=("parallel",),
            vmem_limit_bytes=_vmem_limit_bytes()),
        cost_estimate=pl.CostEstimate(
            flops=2 * N * Mrows * Cin_p * Cpad * T,
            transcendentals=0,
            bytes_accessed=bytes_accessed),
    )(*inputs)

    # Drop padded rows / junk columns / padded channels (small bf16 relayout).
    out = out[:, :Ho * Wps, :Cout].reshape(N, Ho, Wps, Cout)[:, :, :Wo, :]
    return out


# ----------------------------- parameters ---------------------------------

def init_params(key, in_ch, out_ch):
    keys = jax.random.split(key, 32)
    ki = iter(keys)

    def conv(kh, kw, cin, cout):
        fan_in = kh * kw * cin
        w = jax.random.normal(next(ki), (kh, kw, cin, cout), jnp.float32) / jnp.sqrt(fan_in)
        b = 0.05 * jax.random.normal(next(ki), (cout,), jnp.float32)
        return w, b

    def bn(c):
        gamma = 1.0 + 0.1 * jax.random.normal(next(ki), (c,), jnp.float32)
        beta = 0.1 * jax.random.normal(next(ki), (c,), jnp.float32)
        mean = 0.1 * jax.random.normal(next(ki), (c,), jnp.float32)
        var = 1.0 + 0.1 * jnp.abs(jax.random.normal(next(ki), (c,), jnp.float32))
        return gamma, beta, mean, var

    p = {}
    p['d1c1'] = conv(3, 3, in_ch, out_ch);  p['d1bn1'] = bn(out_ch)
    p['d1c2'] = conv(3, 3, out_ch, out_ch); p['d1bn2'] = bn(out_ch)
    p['d2c1'] = conv(3, 3, out_ch, out_ch); p['d2bn1'] = bn(out_ch)
    p['d2c2'] = conv(3, 3, out_ch, out_ch); p['d2bn2'] = bn(out_ch)
    p['s1'] = conv(1, 1, in_ch, out_ch);    p['sbn1'] = bn(out_ch)
    p['s2'] = conv(3, 3, out_ch, out_ch)    # no BN / no activation after this one
    return p


# ------------------------------ forward ------------------------------------

def block_forward(params, x_nhwc, dilation_rate):
    p = params
    # skip branch: Conv1x1 -> BN -> LReLU -> Conv3x3 stride 4 (no BN/act)
    ident = conv_bn_lrelu(x_nhwc, *p['s1'], bn=p['sbn1'],
                          stride=1, dilation=1, padding=0)
    ident = conv_bn_lrelu(ident, *p['s2'], bn=None,
                          stride=4, dilation=1, padding=1, apply_act=False)
    # downsample1
    h = conv_bn_lrelu(x_nhwc, *p['d1c1'], bn=p['d1bn1'],
                      stride=2, dilation=1, padding=1)
    h = conv_bn_lrelu(h, *p['d1c2'], bn=p['d1bn2'],
                      stride=1, dilation=dilation_rate, padding=dilation_rate)
    # downsample2 (+ residual add fused into the last kernel; final stage f32)
    h = conv_bn_lrelu(h, *p['d2c1'], bn=p['d2bn1'],
                      stride=2, dilation=1, padding=1)
    h = conv_bn_lrelu(h, *p['d2c2'], bn=p['d2bn2'],
                      stride=1, dilation=dilation_rate, padding=dilation_rate,
                      residual=ident, out_dtype=jnp.float32)
    return h


# ------------------------- pure-JAX reference -------------------------------
# Matches the kernel pipeline's precision staging (bf16 conv operands, bf16
# inter-stage activations/residual, f32 accumulation, f32 BN/LReLU) so the
# comparison checks structure (tap indexing, strides/dilations, BN fold,
# residual), not the MXU precision choice.

def _ref_conv(x, w, b, stride, dilation, padding):
    y = lax.conv_general_dilated(
        x.astype(jnp.bfloat16), w.astype(jnp.bfloat16),
        (stride, stride), [(padding, padding), (padding, padding)],
        rhs_dilation=(dilation, dilation),
        dimension_numbers=('NHWC', 'HWIO', 'NHWC'),
        preferred_element_type=jnp.float32)
    return y + b


def _ref_bn(x, bn, eps=1e-5):
    gamma, beta, mean, var = bn
    return gamma * (x - mean) / jnp.sqrt(var + eps) + beta


def _ref_lrelu(x):
    return jnp.where(x > 0, x, 0.1 * x)


def _bf(x):  # mirror the kernel pipeline's bf16 inter-stage stores
    return x.astype(jnp.bfloat16).astype(jnp.float32)


def ref_forward(params, x, d):
    p = params
    ident = _bf(_ref_lrelu(_ref_bn(_ref_conv(x, *p['s1'], 1, 1, 0), p['sbn1'])))
    ident = _bf(_ref_conv(ident, *p['s2'], 4, 1, 1))
    h = _bf(_ref_lrelu(_ref_bn(_ref_conv(x, *p['d1c1'], 2, 1, 1), p['d1bn1'])))
    h = _bf(_ref_lrelu(_ref_bn(_ref_conv(h, *p['d1c2'], 1, d, d), p['d1bn2'])))
    h = _bf(_ref_lrelu(_ref_bn(_ref_conv(h, *p['d2c1'], 2, 1, 1), p['d2bn1'])))
    h = _ref_lrelu(_ref_bn(_ref_conv(h, *p['d2c2'], 1, d, d), p['d2bn2'])) + ident
    return h


# -------------------------------- main --------------------------------------

if __name__ == "__main__":
    key = jax.random.PRNGKey(0)
    kx, kp = jax.random.split(key)

    N, Cin, H, W = 2, 4, 16, 16        # PyTorch-style NCHW input shape
    Cout = 8
    dilation_rate = 2

    x_nchw = jax.random.normal(kx, (N, Cin, H, W), jnp.float32)
    x_nhwc = jnp.transpose(x_nchw, (0, 2, 3, 1))
    params = init_params(kp, Cin, Cout)

    fwd = jax.jit(functools.partial(block_forward, dilation_rate=dilation_rate))
    out_nhwc = fwd(params, x_nhwc)
    out_nchw = jnp.transpose(out_nhwc, (0, 3, 1, 2))
    jax.block_until_ready(out_nchw)

    assert out_nchw.shape == (N, Cout, H // 4, W // 4), out_nchw.shape

    ref_nchw = jnp.transpose(ref_forward(params, x_nhwc, dilation_rate), (0, 3, 1, 2))
    max_err = float(jnp.max(jnp.abs(out_nchw - ref_nchw)))
    # Reference mirrors the bf16/f32 staging, so the residual error is only
    # accumulation-order noise; structural bugs would be orders larger.
    if not max_err < 1e-2:
        raise AssertionError(f"Pallas result mismatch vs reference: max abs err = {max_err}")

    print("KERNEL_OK")
</pallas_src>

<mosaic_0001>
module attributes {stable_mosaic.version = 11 : i64} {
  func.func @kernel(%arg0: i32, %arg1: memref<1x4x96x8xbf16, #tpu.memory_space<vmem>>, %arg2: memref<9x8x128xbf16, #tpu.memory_space<vmem>>, %arg3: memref<2x128xf32, #tpu.memory_space<vmem>>, %arg4: memref<1x80x128xbf16, #tpu.memory_space<vmem>>) attributes {dimension_semantics = [#tpu.dimension_semantics<parallel>], iteration_bounds = array<i64: 2>, scalar_prefetch = 0 : i64, scratch_operands = 0 : i64, tpu.core_type = #tpu.core_type<tc>, window_params = [{transform_indices = @transform_0, window_bounds = array<i64: 1, 4, 96, 8>}, {pipeline_mode = #tpu.pipeline_mode<synchronous>, transform_indices = @transform_1, window_bounds = array<i64: 9, 8, 128>}, {pipeline_mode = #tpu.pipeline_mode<synchronous>, transform_indices = @transform_2, window_bounds = array<i64: 2, 128>}, {transform_indices = @transform_3, window_bounds = array<i64: 1, 80, 128>}]} {
    %c0 = arith.constant 0 : index
    %c0_0 = arith.constant 0 : index
    %c0_1 = arith.constant 0 : index
    %c0_2 = arith.constant 0 : index
    %0 = vector.load %arg1[%c0, %c0_0, %c0_1, %c0_2] : memref<1x4x96x8xbf16, #tpu.memory_space<vmem>>, vector<1x1x80x8xbf16>
    %1 = vector.shape_cast %0 : vector<1x1x80x8xbf16> to vector<80x8xbf16>
    %c0_3 = arith.constant 0 : index
    %c0_4 = arith.constant 0 : index
    %c0_5 = arith.constant 0 : index
    %2 = vector.load %arg2[%c0_3, %c0_4, %c0_5] : memref<9x8x128xbf16, #tpu.memory_space<vmem>>, vector<1x8x128xbf16>
    %3 = vector.shape_cast %2 : vector<1x8x128xbf16> to vector<8x128xbf16>
    %cst = arith.constant dense<0.000000e+00> : vector<80x128xf32>
    %4 = tpu.matmul %1, %3, %cst {dimension_numbers = #tpu.dot_dimension_numbers<[1], [0], [0], [1], [0, 0, 1, 1], [], []>} : vector<80x8xbf16>, vector<8x128xbf16>, vector<80x128xf32> -> vector<80x128xf32>
    %c0_6 = arith.constant 0 : index
    %c1 = arith.constant 1 : index
    %c0_7 = arith.constant 0 : index
    %c0_8 = arith.constant 0 : index
    %5 = vector.load %arg1[%c0_6, %c1, %c0_7, %c0_8] : memref<1x4x96x8xbf16, #tpu.memory_space<vmem>>, vector<1x1x80x8xbf16>
    %6 = vector.shape_cast %5 : vector<1x1x80x8xbf16> to vector<80x8xbf16>
    %c1_9 = arith.constant 1 : index
    %c0_10 = arith.constant 0 : index
    %c0_11 = arith.constant 0 : index
    %7 = vector.load %arg2[%c1_9, %c0_10, %c0_11] : memref<9x8x128xbf16, #tpu.memory_space<vmem>>, vector<1x8x128xbf16>
    %8 = vector.shape_cast %7 : vector<1x8x128xbf16> to vector<8x128xbf16>
    %cst_12 = arith.constant dense<0.000000e+00> : vector<80x128xf32>
    %9 = tpu.matmul %6, %8, %cst_12 {dimension_numbers = #tpu.dot_dimension_numbers<[1], [0], [0], [1], [0, 0, 1, 1], [], []>} : vector<80x8xbf16>, vector<8x128xbf16>, vector<80x128xf32> -> vector<80x128xf32>
    %10 = arith.addf %4, %9 : vector<80x128xf32>
    %c0_13 = arith.constant 0 : index
    %c0_14 = arith.constant 0 : index
    %c1_15 = arith.constant 1 : index
    %c0_16 = arith.constant 0 : index
    %11 = vector.load %arg1[%c0_13, %c0_14, %c1_15, %c0_16] : memref<1x4x96x8xbf16, #tpu.memory_space<vmem>>, vector<1x1x80x8xbf16>
    %12 = vector.shape_cast %11 : vector<1x1x80x8xbf16> to vector<80x8xbf16>
    %c2 = arith.constant 2 : index
    %c0_17 = arith.constant 0 : index
    %c0_18 = arith.constant 0 : index
    %13 = vector.load %arg2[%c2, %c0_17, %c0_18] : memref<9x8x128xbf16, #tpu.memory_space<vmem>>, vector<1x8x128xbf16>
    %14 = vector.shape_cast %13 : vector<1x8x128xbf16> to vector<8x128xbf16>
    %cst_19 = arith.constant dense<0.000000e+00> : vector<80x128xf32>
    %15 = tpu.matmul %12, %14, %cst_19 {dimension_numbers = #tpu.dot_dimension_numbers<[1], [0], [0], [1], [0, 0, 1, 1], [], []>} : vector<80x8xbf16>, vector<8x128xbf16>, vector<80x128xf32> -> vector<80x128xf32>
    %16 = arith.addf %10, %15 : vector<80x128xf32>
    %c0_20 = arith.constant 0 : index
    %c2_21 = arith.constant 2 : index
    %c0_22 = arith.constant 0 : index
    %c0_23 = arith.constant 0 : index
    %17 = vector.load %arg1[%c0_20, %c2_21, %c0_22, %c0_23] : memref<1x4x96x8xbf16, #tpu.memory_space<vmem>>, vector<1x1x80x8xbf16>
    %18 = vector.shape_cast %17 : vector<1x1x80x8xbf16> to vector<80x8xbf16>
    %c3 = arith.constant 3 : index
    %c0_24 = arith.constant 0 : index
    %c0_25 = arith.constant 0 : index
    %19 = vector.load %arg2[%c3, %c0_24, %c0_25] : memref<9x8x128xbf16, #tpu.memory_space<vmem>>, vector<1x8x128xbf16>
    %20 = vector.shape_cast %19 : vector<1x8x128xbf16> to vector<8x128xbf16>
    %cst_26 = arith.constant dense<0.000000e+00> : vector<80x128xf32>
    %21 = tpu.matmul %18, %20, %cst_26 {dimension_numbers = #tpu.dot_dimension_numbers<[1], [0], [0], [1], [0, 0, 1, 1], [], []>} : vector<80x8xbf16>, vector<8x128xbf16>, vector<80x128xf32> -> vector<80x128xf32>
    %22 = arith.addf %16, %21 : vector<80x128xf32>
    %c0_27 = arith.constant 0 : index
    %c3_28 = arith.constant 3 : index
    %c0_29 = arith.constant 0 : index
    %c0_30 = arith.constant 0 : index
    %23 = vector.load %arg1[%c0_27, %c3_28, %c0_29, %c0_30] : memref<1x4x96x8xbf16, #tpu.memory_space<vmem>>, vector<1x1x80x8xbf16>
    %24 = vector.shape_cast %23 : vector<1x1x80x8xbf16> to vector<80x8xbf16>
    %c4 = arith.constant 4 : index
    %c0_31 = arith.constant 0 : index
    %c0_32 = arith.constant 0 : index
    %25 = vector.load %arg2[%c4, %c0_31, %c0_32] : memref<9x8x128xbf16, #tpu.memory_space<vmem>>, vector<1x8x128xbf16>
    %26 = vector.shape_cast %25 : vector<1x8x128xbf16> to vector<8x128xbf16>
    %cst_33 = arith.constant dense<0.000000e+00> : vector<80x128xf32>
    %27 = tpu.matmul %24, %26, %cst_33 {dimension_numbers = #tpu.dot_dimension_numbers<[1], [0], [0], [1], [0, 0, 1, 1], [], []>} : vector<80x8xbf16>, vector<8x128xbf16>, vector<80x128xf32> -> vector<80x128xf32>
    %28 = arith.addf %22, %27 : vector<80x128xf32>
    %c0_34 = arith.constant 0 : index
    %c2_35 = arith.constant 2 : index
    %c1_36 = arith.constant 1 : index
    %c0_37 = arith.constant 0 : index
    %29 = vector.load %arg1[%c0_34, %c2_35, %c1_36, %c0_37] : memref<1x4x96x8xbf16, #tpu.memory_space<vmem>>, vector<1x1x80x8xbf16>
    %30 = vector.shape_cast %29 : vector<1x1x80x8xbf16> to vector<80x8xbf16>
    %c5 = arith.constant 5 : index
    %c0_38 = arith.constant 0 : index
    %c0_39 = arith.constant 0 : index
    %31 = vector.load %arg2[%c5, %c0_38, %c0_39] : memref<9x8x128xbf16, #tpu.memory_space<vmem>>, vector<1x8x128xbf16>
    %32 = vector.shape_cast %31 : vector<1x8x128xbf16> to vector<8x128xbf16>
    %cst_40 = arith.constant dense<0.000000e+00> : vector<80x128xf32>
    %33 = tpu.matmul %30, %32, %cst_40 {dimension_numbers = #tpu.dot_dimension_numbers<[1], [0], [0], [1], [0, 0, 1, 1], [], []>} : vector<80x8xbf16>, vector<8x128xbf16>, vector<80x128xf32> -> vector<80x128xf32>
    %34 = arith.addf %28, %33 : vector<80x128xf32>
    %c0_41 = arith.constant 0 : index
    %c0_42 = arith.constant 0 : index
    %c9 = arith.constant 9 : index
    %c0_43 = arith.constant 0 : index
    %35 = vector.load %arg1[%c0_41, %c0_42, %c9, %c0_43] : memref<1x4x96x8xbf16, #tpu.memory_space<vmem>>, vector<1x1x80x8xbf16>
    %36 = vector.shape_cast %35 : vector<1x1x80x8xbf16> to vector<80x8xbf16>
    %c6 = arith.constant 6 : index
    %c0_44 = arith.constant 0 : index
    %c0_45 = arith.constant 0 : index
    %37 = vector.load %arg2[%c6, %c0_44, %c0_45] : memref<9x8x128xbf16, #tpu.memory_space<vmem>>, vector<1x8x128xbf16>
    %38 = vector.shape_cast %37 : vector<1x8x128xbf16> to vector<8x128xbf16>
    %cst_46 = arith.constant dense<0.000000e+00> : vector<80x128xf32>
    %39 = tpu.matmul %36, %38, %cst_46 {dimension_numbers = #tpu.dot_dimension_numbers<[1], [0], [0], [1], [0, 0, 1, 1], [], []>} : vector<80x8xbf16>, vector<8x128xbf16>, vector<80x128xf32> -> vector<80x128xf32>
    %40 = arith.addf %34, %39 : vector<80x128xf32>
    %c0_47 = arith.constant 0 : index
    %c1_48 = arith.constant 1 : index
    %c9_49 = arith.constant 9 : index
    %c0_50 = arith.constant 0 : index
    %41 = vector.load %arg1[%c0_47, %c1_48, %c9_49, %c0_50] : memref<1x4x96x8xbf16, #tpu.memory_space<vmem>>, vector<1x1x80x8xbf16>
    %42 = vector.shape_cast %41 : vector<1x1x80x8xbf16> to vector<80x8xbf16>
    %c7 = arith.constant 7 : index
    %c0_51 = arith.constant 0 : index
    %c0_52 = arith.constant 0 : index
    %43 = vector.load %arg2[%c7, %c0_51, %c0_52] : memref<9x8x128xbf16, #tpu.memory_space<vmem>>, vector<1x8x128xbf16>
    %44 = vector.shape_cast %43 : vector<1x8x128xbf16> to vector<8x128xbf16>
    %cst_53 = arith.constant dense<0.000000e+00> : vector<80x128xf32>
    %45 = tpu.matmul %42, %44, %cst_53 {dimension_numbers = #tpu.dot_dimension_numbers<[1], [0], [0], [1], [0, 0, 1, 1], [], []>} : vector<80x8xbf16>, vector<8x128xbf16>, vector<80x128xf32> -> vector<80x128xf32>
    %46 = arith.addf %40, %45 : vector<80x128xf32>
    %c0_54 = arith.constant 0 : index
    %c0_55 = arith.constant 0 : index
    %c10 = arith.constant 10 : index
    %c0_56 = arith.constant 0 : index
    %47 = vector.load %arg1[%c0_54, %c0_55, %c10, %c0_56] : memref<1x4x96x8xbf16, #tpu.memory_space<vmem>>, vector<1x1x80x8xbf16>
    %48 = vector.shape_cast %47 : vector<1x1x80x8xbf16> to vector<80x8xbf16>
    %c8 = arith.constant 8 : index
    %c0_57 = arith.constant 0 : index
    %c0_58 = arith.constant 0 : index
    %49 = vector.load %arg2[%c8, %c0_57, %c0_58] : memref<9x8x128xbf16, #tpu.memory_space<vmem>>, vector<1x8x128xbf16>
    %50 = vector.shape_cast %49 : vector<1x8x128xbf16> to vector<8x128xbf16>
    %cst_59 = arith.constant dense<0.000000e+00> : vector<80x128xf32>
    %51 = tpu.matmul %48, %50, %cst_59 {dimension_numbers = #tpu.dot_dimension_numbers<[1], [0], [0], [1], [0, 0, 1, 1], [], []>} : vector<80x8xbf16>, vector<8x128xbf16>, vector<80x128xf32> -> vector<80x128xf32>
    %52 = arith.addf %46, %51 : vector<80x128xf32>
    %c0_60 = arith.constant 0 : index
    %c0_61 = arith.constant 0 : index
    %53 = vector.load %arg3[%c0_60, %c0_61] : memref<2x128xf32, #tpu.memory_space<vmem>>, vector<2x128xf32>
    %54 = vector.extract_strided_slice %53 {offsets = [0, 0], sizes = [1, 128], strides = [1, 1]} : vector<2x128xf32> to vector<1x128xf32>
    %55 = vector.broadcast %54 : vector<1x128xf32> to vector<80x128xf32>
    %56 = arith.mulf %52, %55 : vector<80x128xf32>
    %57 = vector.extract_strided_slice %53 {offsets = [1, 0], sizes = [1, 128], strides = [1, 1]} : vector<2x128xf32> to vector<1x128xf32>
    %58 = vector.broadcast %57 : vector<1x128xf32> to vector<80x128xf32>
    %59 = arith.addf %56, %58 : vector<80x128xf32>
    %cst_62 = arith.constant 0.000000e+00 : f32
    %60 = vector.broadcast %cst_62 : f32 to vector<80x128xf32>
    %61 = arith.cmpf ogt, %59, %60 : vector<80x128xf32>
    %cst_63 = arith.constant 1.000000e-01 : f32
    %62 = vector.broadcast %cst_63 : f32 to vector<80x128xf32>
    %63 = arith.mulf %62, %59 : vector<80x128xf32>
    %64 = arith.select %61, %59, %63 : vector<80x128xi1>, vector<80x128xf32>
    %65 = arith.truncf %64 : vector<80x128xf32> to vector<80x128xbf16>
    %c0_64 = arith.constant 0 : index
    %c0_65 = arith.constant 0 : index
    %c0_66 = arith.constant 0 : index
    %66 = vector.load %arg4[%c0_64, %c0_65, %c0_66] : memref<1x80x128xbf16, #tpu.memory_space<vmem>>, vector<1x80x128xbf16>
    %67 = vector.shape_cast %66 : vector<1x80x128xbf16> to vector<80x128xbf16>
    %68 = vector.shape_cast %65 : vector<80x128xbf16> to vector<1x80x128xbf16>
    tpu.vector_store %arg4[%c0_64, %c0_65, %c0_66], %68 {strides = array<i32>} : memref<1x80x128xbf16, #tpu.memory_space<vmem>>, vector<1x80x128xbf16>,
    return
  }
  func.func @transform_0(%arg0: i32) -> (i32, i32, i32, i32) {
    %c0_i32 = arith.constant 0 : i32
    %c0_i32_0 = arith.constant 0 : i32
    %c0_i32_1 = arith.constant 0 : i32
    %c0_i32_2 = arith.constant 0 : i32
    return %arg0, %c0_i32, %c0_i32_0, %c0_i32_1 : i32, i32, i32, i32
  }
  func.func @transform_1(%arg0: i32) -> (i32, i32, i32) {
    %c0_i32 = arith.constant 0 : i32
    %c0_i32_0 = arith.constant 0 : i32
    %c0_i32_1 = arith.constant 0 : i32
    %c0_i32_2 = arith.constant 0 : i32
    return %c0_i32, %c0_i32_0, %c0_i32_1 : i32, i32, i32
  }
  func.func @transform_2(%arg0: i32) -> (i32, i32) {
    %c0_i32 = arith.constant 0 : i32
    %c0_i32_0 = arith.constant 0 : i32
    %c0_i32_1 = arith.constant 0 : i32
    return %c0_i32, %c0_i32_0 : i32, i32
  }
  func.func @transform_3(%arg0: i32) -> (i32, i32, i32) {
    %c0_i32 = arith.constant 0 : i32
    %c0_i32_0 = arith.constant 0 : i32
    %c0_i32_1 = arith.constant 0 : i32
    return %arg0, %c0_i32, %c0_i32_0 : i32, i32, i32
  }
}

module attributes {stable_mosaic.version = 11 : i64} {
  func.func @kernel(%arg0: i32, %arg1: memref<1x1x152x8xbf16, #tpu.memory_space<vmem>>, %arg2: memref<9x8x128xbf16, #tpu.memory_space<vmem>>, %arg3: memref<2x128xf32, #tpu.memory_space<vmem>>, %arg4: memref<1x96x128xbf16, #tpu.memory_space<vmem>>) attributes {dimension_semantics = [#tpu.dimension_semantics<parallel>], iteration_bounds = array<i64: 2>, scalar_prefetch = 0 : i64, scratch_operands = 0 : i64, tpu.core_type = #tpu.core_type<tc>, window_params = [{transform_indices = @transform_0, window_bounds = array<i64: 1, 1, 152, 8>}, {pipeline_mode = #tpu.pipeline_mode<synchronous>, transform_indices = @transform_1, window_bounds = array<i64: 9, 8, 128>}, {pipeline_mode = #tpu.pipeline_mode<synchronous>, transform_indices = @transform_2, window_bounds = array<i64: 2, 128>}, {transform_indices = @transform_3, window_bounds = array<i64: 1, 96, 128>}]} {
    %c0 = arith.constant 0 : index
    %c0_0 = arith.constant 0 : index
    %c0_1 = arith.constant 0 : index
    %c0_2 = arith.constant 0 : index
    %0 = vector.load %arg1[%c0, %c0_0, %c0_1, %c0_2] : memref<1x1x152x8xbf16, #tpu.memory_space<vmem>>, vector<1x1x96x8xbf16>
    %1 = vector.shape_cast %0 : vector<1x1x96x8xbf16> to vector<96x8xbf16>
    %c0_3 = arith.constant 0 : index
    %c0_4 = arith.constant 0 : index
    %c0_5 = arith.constant 0 : index
    %2 = vector.load %arg2[%c0_3, %c0_4, %c0_5] : memref<9x8x128xbf16, #tpu.memory_space<vmem>>, vector<1x8x128xbf16>
    %3 = vector.shape_cast %2 : vector<1x8x128xbf16> to vector<8x128xbf16>
    %cst = arith.constant dense<0.000000e+00> : vector<96x128xf32>
    %4 = tpu.matmul %1, %3, %cst {dimension_numbers = #tpu.dot_dimension_numbers<[1], [0], [0], [1], [0, 0, 1, 1], [], []>} : vector<96x8xbf16>, vector<8x128xbf16>, vector<96x128xf32> -> vector<96x128xf32>
    %c0_6 = arith.constant 0 : index
    %c0_7 = arith.constant 0 : index
    %c2 = arith.constant 2 : index
    %c0_8 = arith.constant 0 : index
    %5 = vector.load %arg1[%c0_6, %c0_7, %c2, %c0_8] : memref<1x1x152x8xbf16, #tpu.memory_space<vmem>>, vector<1x1x96x8xbf16>
    %6 = vector.shape_cast %5 : vector<1x1x96x8xbf16> to vector<96x8xbf16>
    %c1 = arith.constant 1 : index
    %c0_9 = arith.constant 0 : index
    %c0_10 = arith.constant 0 : index
    %7 = vector.load %arg2[%c1, %c0_9, %c0_10] : memref<9x8x128xbf16, #tpu.memory_space<vmem>>, vector<1x8x128xbf16>
    %8 = vector.shape_cast %7 : vector<1x8x128xbf16> to vector<8x128xbf16>
    %cst_11 = arith.constant dense<0.000000e+00> : vector<96x128xf32>
    %9 = tpu.matmul %6, %8, %cst_11 {dimension_numbers = #tpu.dot_dimension_numbers<[1], [0], [0], [1], [0, 0, 1, 1], [], []>} : vector<96x8xbf16>, vector<8x128xbf16>, vector<96x128xf32> -> vector<96x128xf32>
    %10 = arith.addf %4, %9 : vector<96x128xf32>
    %c0_12 = arith.constant 0 : index
    %c0_13 = arith.constant 0 : index
    %c4 = arith.constant 4 : index
    %c0_14 = arith.constant 0 : index
    %11 = vector.load %arg1[%c0_12, %c0_13, %c4, %c0_14] : memref<1x1x152x8xbf16, #tpu.memory_space<vmem>>, vector<1x1x96x8xbf16>
    %12 = vector.shape_cast %11 : vector<1x1x96x8xbf16> to vector<96x8xbf16>
    %c2_15 = arith.constant 2 : index
    %c0_16 = arith.constant 0 : index
    %c0_17 = arith.constant 0 : index
    %13 = vector.load %arg2[%c2_15, %c0_16, %c0_17] : memref<9x8x128xbf16, #tpu.memory_space<vmem>>, vector<1x8x128xbf16>
    %14 = vector.shape_cast %13 : vector<1x8x128xbf16> to vector<8x128xbf16>
    %cst_18 = arith.constant dense<0.000000e+00> : vector<96x128xf32>
    %15 = tpu.matmul %12, %14, %cst_18 {dimension_numbers = #tpu.dot_dimension_numbers<[1], [0], [0], [1], [0, 0, 1, 1], [], []>} : vector<96x8xbf16>, vector<8x128xbf16>, vector<96x128xf32> -> vector<96x128xf32>
    %16 = arith.addf %10, %15 : vector<96x128xf32>
    %c0_19 = arith.constant 0 : index
    %c0_20 = arith.constant 0 : index
    %c24 = arith.constant 24 : index
    %c0_21 = arith.constant 0 : index
    %17 = vector.load %arg1[%c0_19, %c0_20, %c24, %c0_21] : memref<1x1x152x8xbf16, #tpu.memory_space<vmem>>, vector<1x1x96x8xbf16>
    %18 = vector.shape_cast %17 : vector<1x1x96x8xbf16> to vector<96x8xbf16>
    %c3 = arith.constant 3 : index
    %c0_22 = arith.constant 0 : index
    %c0_23 = arith.constant 0 : index
    %19 = vector.load %arg2[%c3, %c0_22, %c0_23] : memref<9x8x128xbf16, #tpu.memory_space<vmem>>, vector<1x8x128xbf16>
    %20 = vector.shape_cast %19 : vector<1x8x128xbf16> to vector<8x128xbf16>
    %cst_24 = arith.constant dense<0.000000e+00> : vector<96x128xf32>
    %21 = tpu.matmul %18, %20, %cst_24 {dimension_numbers = #tpu.dot_dimension_numbers<[1], [0], [0], [1], [0, 0, 1, 1], [], []>} : vector<96x8xbf16>, vector<8x128xbf16>, vector<96x128xf32> -> vector<96x128xf32>
    %22 = arith.addf %16, %21 : vector<96x128xf32>
    %c0_25 = arith.constant 0 : index
    %c0_26 = arith.constant 0 : index
    %c26 = arith.constant 26 : index
    %c0_27 = arith.constant 0 : index
    %23 = vector.load %arg1[%c0_25, %c0_26, %c26, %c0_27] : memref<1x1x152x8xbf16, #tpu.memory_space<vmem>>, vector<1x1x96x8xbf16>
    %24 = vector.shape_cast %23 : vector<1x1x96x8xbf16> to vector<96x8xbf16>
    %c4_28 = arith.constant 4 : index
    %c0_29 = arith.constant 0 : index
    %c0_30 = arith.constant 0 : index
    %25 = vector.load %arg2[%c4_28, %c0_29, %c0_30] : memref<9x8x128xbf16, #tpu.memory_space<vmem>>, vector<1x8x128xbf16>
    %26 = vector.shape_cast %25 : vector<1x8x128xbf16> to vector<8x128xbf16>
    %cst_31 = arith.constant dense<0.000000e+00> : vector<96x128xf32>
    %27 = tpu.matmul %24, %26, %cst_31 {dimension_numbers = #tpu.dot_dimension_numbers<[1], [0], [0], [1], [0, 0, 1, 1], [], []>} : vector<96x8xbf16>, vector<8x128xbf16>, vector<96x128xf32> -> vector<96x128xf32>
    %28 = arith.addf %22, %27 : vector<96x128xf32>
    %c0_32 = arith.constant 0 : index
    %c0_33 = arith.constant 0 : index
    %c28 = arith.constant 28 : index
    %c0_34 = arith.constant 0 : index
    %29 = vector.load %arg1[%c0_32, %c0_33, %c28, %c0_34] : memref<1x1x152x8xbf16, #tpu.memory_space<vmem>>, vector<1x1x96x8xbf16>
    %30 = vector.shape_cast %29 : vector<1x1x96x8xbf16> to vector<96x8xbf16>
    %c5 = arith.constant 5 : index
    %c0_35 = arith.constant 0 : index
    %c0_36 = arith.constant 0 : index
    %31 = vector.load %arg2[%c5, %c0_35, %c0_36] : memref<9x8x128xbf16, #tpu.memory_space<vmem>>, vector<1x8x128xbf16>
    %32 = vector.shape_cast %31 : vector<1x8x128xbf16> to vector<8x128xbf16>
    %cst_37 = arith.constant dense<0.000000e+00> : vector<96x128xf32>
    %33 = tpu.matmul %30, %32, %cst_37 {dimension_numbers = #tpu.dot_dimension_numbers<[1], [0], [0], [1], [0, 0, 1, 1], [], []>} : vector<96x8xbf16>, vector<8x128xbf16>, vector<96x128xf32> -> vector<96x128xf32>
    %34 = arith.addf %28, %33 : vector<96x128xf32>
    %c0_38 = arith.constant 0 : index
    %c0_39 = arith.constant 0 : index
    %c48 = arith.constant 48 : index
    %c0_40 = arith.constant 0 : index
    %35 = vector.load %arg1[%c0_38, %c0_39, %c48, %c0_40] : memref<1x1x152x8xbf16, #tpu.memory_space<vmem>>, vector<1x1x96x8xbf16>
    %36 = vector.shape_cast %35 : vector<1x1x96x8xbf16> to vector<96x8xbf16>
    %c6 = arith.constant 6 : index
    %c0_41 = arith.constant 0 : index
    %c0_42 = arith.constant 0 : index
    %37 = vector.load %arg2[%c6, %c0_41, %c0_42] : memref<9x8x128xbf16, #tpu.memory_space<vmem>>, vector<1x8x128xbf16>
    %38 = vector.shape_cast %37 : vector<1x8x128xbf16> to vector<8x128xbf16>
    %cst_43 = arith.constant dense<0.000000e+00> : vector<96x128xf32>
    %39 = tpu.matmul %36, %38, %cst_43 {dimension_numbers = #tpu.dot_dimension_numbers<[1], [0], [0], [1], [0, 0, 1, 1], [], []>} : vector<96x8xbf16>, vector<8x128xbf16>, vector<96x128xf32> -> vector<96x128xf32>
    %40 = arith.addf %34, %39 : vector<96x128xf32>
    %c0_44 = arith.constant 0 : index
    %c0_45 = arith.constant 0 : index
    %c50 = arith.constant 50 : index
    %c0_46 = arith.constant 0 : index
    %41 = vector.load %arg1[%c0_44, %c0_45, %c50, %c0_46] : memref<1x1x152x8xbf16, #tpu.memory_space<vmem>>, vector<1x1x96x8xbf16>
    %42 = vector.shape_cast %41 : vector<1x1x96x8xbf16> to vector<96x8xbf16>
    %c7 = arith.constant 7 : index
    %c0_47 = arith.constant 0 : index
    %c0_48 = arith.constant 0 : index
    %43 = vector.load %arg2[%c7, %c0_47, %c0_48] : memref<9x8x128xbf16, #tpu.memory_space<vmem>>, vector<1x8x128xbf16>
    %44 = vector.shape_cast %43 : vector<1x8x128xbf16> to vector<8x128xbf16>
    %cst_49 = arith.constant dense<0.000000e+00> : vector<96x128xf32>
    %45 = tpu.matmul %42, %44, %cst_49 {dimension_numbers = #tpu.dot_dimension_numbers<[1], [0], [0], [1], [0, 0, 1, 1], [], []>} : vector<96x8xbf16>, vector<8x128xbf16>, vector<96x128xf32> -> vector<96x128xf32>
    %46 = arith.addf %40, %45 : vector<96x128xf32>
    %c0_50 = arith.constant 0 : index
    %c0_51 = arith.constant 0 : index
    %c52 = arith.constant 52 : index
    %c0_52 = arith.constant 0 : index
    %47 = vector.load %arg1[%c0_50, %c0_51, %c52, %c0_52] : memref<1x1x152x8xbf16, #tpu.memory_space<vmem>>, vector<1x1x96x8xbf16>
    %48 = vector.shape_cast %47 : vector<1x1x96x8xbf16> to vector<96x8xbf16>
    %c8 = arith.constant 8 : index
    %c0_53 = arith.constant 0 : index
    %c0_54 = arith.constant 0 : index
    %49 = vector.load %arg2[%c8, %c0_53, %c0_54] : memref<9x8x128xbf16, #tpu.memory_space<vmem>>, vector<1x8x128xbf16>
    %50 = vector.shape_cast %49 : vector<1x8x128xbf16> to vector<8x128xbf16>
    %cst_55 = arith.constant dense<0.000000e+00> : vector<96x128xf32>
    %51 = tpu.matmul %48, %50, %cst_55 {dimension_numbers = #tpu.dot_dimension_numbers<[1], [0], [0], [1], [0, 0, 1, 1], [], []>} : vector<96x8xbf16>, vector<8x128xbf16>, vector<96x128xf32> -> vector<96x128xf32>
    %52 = arith.addf %46, %51 : vector<96x128xf32>
    %c0_56 = arith.constant 0 : index
    %c0_57 = arith.constant 0 : index
    %53 = vector.load %arg3[%c0_56, %c0_57] : memref<2x128xf32, #tpu.memory_space<vmem>>, vector<2x128xf32>
    %54 = vector.extract_strided_slice %53 {offsets = [0, 0], sizes = [1, 128], strides = [1, 1]} : vector<2x128xf32> to vector<1x128xf32>
    %55 = vector.broadcast %54 : vector<1x128xf32> to vector<96x128xf32>
    %56 = arith.mulf %52, %55 : vector<96x128xf32>
    %57 = vector.extract_strided_slice %53 {offsets = [1, 0], sizes = [1, 128], strides = [1, 1]} : vector<2x128xf32> to vector<1x128xf32>
    %58 = vector.broadcast %57 : vector<1x128xf32> to vector<96x128xf32>
    %59 = arith.addf %56, %58 : vector<96x128xf32>
    %cst_58 = arith.constant 0.000000e+00 : f32
    %60 = vector.broadcast %cst_58 : f32 to vector<96x128xf32>
    %61 = arith.cmpf ogt, %59, %60 : vector<96x128xf32>
    %cst_59 = arith.constant 1.000000e-01 : f32
    %62 = vector.broadcast %cst_59 : f32 to vector<96x128xf32>
    %63 = arith.mulf %62, %59 : vector<96x128xf32>
    %64 = arith.select %61, %59, %63 : vector<96x128xi1>, vector<96x128xf32>
    %65 = arith.truncf %64 : vector<96x128xf32> to vector<96x128xbf16>
    %c0_60 = arith.constant 0 : index
    %c0_61 = arith.constant 0 : index
    %c0_62 = arith.constant 0 : index
    %66 = vector.load %arg4[%c0_60, %c0_61, %c0_62] : memref<1x96x128xbf16, #tpu.memory_space<vmem>>, vector<1x96x128xbf16>
    %67 = vector.shape_cast %66 : vector<1x96x128xbf16> to vector<96x128xbf16>
    %68 = vector.shape_cast %65 : vector<96x128xbf16> to vector<1x96x128xbf16>
    tpu.vector_store %arg4[%c0_60, %c0_61, %c0_62], %68 {strides = array<i32>} : memref<1x96x128xbf16, #tpu.memory_space<vmem>>, vector<1x96x128xbf16>,
    return
  }
  func.func @transform_0(%arg0: i32) -> (i32, i32, i32, i32) {
    %c0_i32 = arith.constant 0 : i32
    %c0_i32_0 = arith.constant 0 : i32
    %c0_i32_1 = arith.constant 0 : i32
    %c0_i32_2 = arith.constant 0 : i32
    return %arg0, %c0_i32, %c0_i32_0, %c0_i32_1 : i32, i32, i32, i32
  }
  func.func @transform_1(%arg0: i32) -> (i32, i32, i32) {
    %c0_i32 = arith.constant 0 : i32
    %c0_i32_0 = arith.constant 0 : i32
    %c0_i32_1 = arith.constant 0 : i32
    %c0_i32_2 = arith.constant 0 : i32
    return %c0_i32, %c0_i32_0, %c0_i32_1 : i32, i32, i32
  }
  func.func @transform_2(%arg0: i32) -> (i32, i32) {
    %c0_i32 = arith.constant 0 : i32
    %c0_i32_0 = arith.constant 0 : i32
    %c0_i32_1 = arith.constant 0 : i32
    return %c0_i32, %c0_i32_0 : i32, i32
  }
  func.func @transform_3(%arg0: i32) -> (i32, i32, i32) {
    %c0_i32 = arith.constant 0 : i32
    %c0_i32_0 = arith.constant 0 : i32
    %c0_i32_1 = arith.constant 0 : i32
    return %arg0, %c0_i32, %c0_i32_0 : i32, i32, i32
  }
}

module attributes {stable_mosaic.version = 11 : i64} {
  func.func @kernel(%arg0: i32, %arg1: memref<1x4x40x8xbf16, #tpu.memory_space<vmem>>, %arg2: memref<9x8x128xbf16, #tpu.memory_space<vmem>>, %arg3: memref<2x128xf32, #tpu.memory_space<vmem>>, %arg4: memref<1x32x128xbf16, #tpu.memory_space<vmem>>) attributes {dimension_semantics = [#tpu.dimension_semantics<parallel>], iteration_bounds = array<i64: 2>, scalar_prefetch = 0 : i64, scratch_operands = 0 : i64, tpu.core_type = #tpu.core_type<tc>, window_params = [{transform_indices = @transform_0, window_bounds = array<i64: 1, 4, 40, 8>}, {pipeline_mode = #tpu.pipeline_mode<synchronous>, transform_indices = @transform_1, window_bounds = array<i64: 9, 8, 128>}, {pipeline_mode = #tpu.pipeline_mode<synchronous>, transform_indices = @transform_2, window_bounds = array<i64: 2, 128>}, {transform_indices = @transform_3, window_bounds = array<i64: 1, 32, 128>}]} {
    %c0 = arith.constant 0 : index
    %c0_0 = arith.constant 0 : index
    %c0_1 = arith.constant 0 : index
    %c0_2 = arith.constant 0 : index
    %0 = vector.load %arg1[%c0, %c0_0, %c0_1, %c0_2] : memref<1x4x40x8xbf16, #tpu.memory_space<vmem>>, vector<1x1x32x8xbf16>
    %1 = vector.shape_cast %0 : vector<1x1x32x8xbf16> to vector<32x8xbf16>
    %c0_3 = arith.constant 0 : index
    %c0_4 = arith.constant 0 : index
    %c0_5 = arith.constant 0 : index
    %2 = vector.load %arg2[%c0_3, %c0_4, %c0_5] : memref<9x8x128xbf16, #tpu.memory_space<vmem>>, vector<1x8x128xbf16>
    %3 = vector.shape_cast %2 : vector<1x8x128xbf16> to vector<8x128xbf16>
    %cst = arith.constant dense<0.000000e+00> : vector<32x128xf32>
    %4 = tpu.matmul %1, %3, %cst {dimension_numbers = #tpu.dot_dimension_numbers<[1], [0], [0], [1], [0, 0, 1, 1], [], []>} : vector<32x8xbf16>, vector<8x128xbf16>, vector<32x128xf32> -> vector<32x128xf32>
    %c0_6 = arith.constant 0 : index
    %c1 = arith.constant 1 : index
    %c0_7 = arith.constant 0 : index
    %c0_8 = arith.constant 0 : index
    %5 = vector.load %arg1[%c0_6, %c1, %c0_7, %c0_8] : memref<1x4x40x8xbf16, #tpu.memory_space<vmem>>, vector<1x1x32x8xbf16>
    %6 = vector.shape_cast %5 : vector<1x1x32x8xbf16> to vector<32x8xbf16>
    %c1_9 = arith.constant 1 : index
    %c0_10 = arith.constant 0 : index
    %c0_11 = arith.constant 0 : index
    %7 = vector.load %arg2[%c1_9, %c0_10, %c0_11] : memref<9x8x128xbf16, #tpu.memory_space<vmem>>, vector<1x8x128xbf16>
    %8 = vector.shape_cast %7 : vector<1x8x128xbf16> to vector<8x128xbf16>
    %cst_12 = arith.constant dense<0.000000e+00> : vector<32x128xf32>
    %9 = tpu.matmul %6, %8, %cst_12 {dimension_numbers = #tpu.dot_dimension_numbers<[1], [0], [0], [1], [0, 0, 1, 1], [], []>} : vector<32x8xbf16>, vector<8x128xbf16>, vector<32x128xf32> -> vector<32x128xf32>
    %10 = arith.addf %4, %9 : vector<32x128xf32>
    %c0_13 = arith.constant 0 : index
    %c0_14 = arith.constant 0 : index
    %c1_15 = arith.constant 1 : index
    %c0_16 = arith.constant 0 : index
    %11 = vector.load %arg1[%c0_13, %c0_14, %c1_15, %c0_16] : memref<1x4x40x8xbf16, #tpu.memory_space<vmem>>, vector<1x1x32x8xbf16>
    %12 = vector.shape_cast %11 : vector<1x1x32x8xbf16> to vector<32x8xbf16>
    %c2 = arith.constant 2 : index
    %c0_17 = arith.constant 0 : index
    %c0_18 = arith.constant 0 : index
    %13 = vector.load %arg2[%c2, %c0_17, %c0_18] : memref<9x8x128xbf16, #tpu.memory_space<vmem>>, vector<1x8x128xbf16>
    %14 = vector.shape_cast %13 : vector<1x8x128xbf16> to vector<8x128xbf16>
    %cst_19 = arith.constant dense<0.000000e+00> : vector<32x128xf32>
    %15 = tpu.matmul %12, %14, %cst_19 {dimension_numbers = #tpu.dot_dimension_numbers<[1], [0], [0], [1], [0, 0, 1, 1], [], []>} : vector<32x8xbf16>, vector<8x128xbf16>, vector<32x128xf32> -> vector<32x128xf32>
    %16 = arith.addf %10, %15 : vector<32x128xf32>
    %c0_20 = arith.constant 0 : index
    %c2_21 = arith.constant 2 : index
    %c0_22 = arith.constant 0 : index
    %c0_23 = arith.constant 0 : index
    %17 = vector.load %arg1[%c0_20, %c2_21, %c0_22, %c0_23] : memref<1x4x40x8xbf16, #tpu.memory_space<vmem>>, vector<1x1x32x8xbf16>
    %18 = vector.shape_cast %17 : vector<1x1x32x8xbf16> to vector<32x8xbf16>
    %c3 = arith.constant 3 : index
    %c0_24 = arith.constant 0 : index
    %c0_25 = arith.constant 0 : index
    %19 = vector.load %arg2[%c3, %c0_24, %c0_25] : memref<9x8x128xbf16, #tpu.memory_space<vmem>>, vector<1x8x128xbf16>
    %20 = vector.shape_cast %19 : vector<1x8x128xbf16> to vector<8x128xbf16>
    %cst_26 = arith.constant dense<0.000000e+00> : vector<32x128xf32>
    %21 = tpu.matmul %18, %20, %cst_26 {dimension_numbers = #tpu.dot_dimension_numbers<[1], [0], [0], [1], [0, 0, 1, 1], [], []>} : vector<32x8xbf16>, vector<8x128xbf16>, vector<32x128xf32> -> vector<32x128xf32>
    %22 = arith.addf %16, %21 : vector<32x128xf32>
    %c0_27 = arith.constant 0 : index
    %c3_28 = arith.constant 3 : index
    %c0_29 = arith.constant 0 : index
    %c0_30 = arith.constant 0 : index
    %23 = vector.load %arg1[%c0_27, %c3_28, %c0_29, %c0_30] : memref<1x4x40x8xbf16, #tpu.memory_space<vmem>>, vector<1x1x32x8xbf16>
    %24 = vector.shape_cast %23 : vector<1x1x32x8xbf16> to vector<32x8xbf16>
    %c4 = arith.constant 4 : index
    %c0_31 = arith.constant 0 : index
    %c0_32 = arith.constant 0 : index
    %25 = vector.load %arg2[%c4, %c0_31, %c0_32] : memref<9x8x128xbf16, #tpu.memory_space<vmem>>, vector<1x8x128xbf16>
    %26 = vector.shape_cast %25 : vector<1x8x128xbf16> to vector<8x128xbf16>
    %cst_33 = arith.constant dense<0.000000e+00> : vector<32x128xf32>
    %27 = tpu.matmul %24, %26, %cst_33 {dimension_numbers = #tpu.dot_dimension_numbers<[1], [0], [0], [1], [0, 0, 1, 1], [], []>} : vector<32x8xbf16>, vector<8x128xbf16>, vector<32x128xf32> -> vector<32x128xf32>
    %28 = arith.addf %22, %27 : vector<32x128xf32>
    %c0_34 = arith.constant 0 : index
    %c2_35 = arith.constant 2 : index
    %c1_36 = arith.constant 1 : index
    %c0_37 = arith.constant 0 : index
    %29 = vector.load %arg1[%c0_34, %c2_35, %c1_36, %c0_37] : memref<1x4x40x8xbf16, #tpu.memory_space<vmem>>, vector<1x1x32x8xbf16>
    %30 = vector.shape_cast %29 : vector<1x1x32x8xbf16> to vector<32x8xbf16>
    %c5 = arith.constant 5 : index
    %c0_38 = arith.constant 0 : index
    %c0_39 = arith.constant 0 : index
    %31 = vector.load %arg2[%c5, %c0_38, %c0_39] : memref<9x8x128xbf16, #tpu.memory_space<vmem>>, vector<1x8x128xbf16>
    %32 = vector.shape_cast %31 : vector<1x8x128xbf16> to vector<8x128xbf16>
    %cst_40 = arith.constant dense<0.000000e+00> : vector<32x128xf32>
    %33 = tpu.matmul %30, %32, %cst_40 {dimension_numbers = #tpu.dot_dimension_numbers<[1], [0], [0], [1], [0, 0, 1, 1], [], []>} : vector<32x8xbf16>, vector<8x128xbf16>, vector<32x128xf32> -> vector<32x128xf32>
    %34 = arith.addf %28, %33 : vector<32x128xf32>
    %c0_41 = arith.constant 0 : index
    %c0_42 = arith.constant 0 : index
    %c5_43 = arith.constant 5 : index
    %c0_44 = arith.constant 0 : index
    %35 = vector.load %arg1[%c0_41, %c0_42, %c5_43, %c0_44] : memref<1x4x40x8xbf16, #tpu.memory_space<vmem>>, vector<1x1x32x8xbf16>
    %36 = vector.shape_cast %35 : vector<1x1x32x8xbf16> to vector<32x8xbf16>
    %c6 = arith.constant 6 : index
    %c0_45 = arith.constant 0 : index
    %c0_46 = arith.constant 0 : index
    %37 = vector.load %arg2[%c6, %c0_45, %c0_46] : memref<9x8x128xbf16, #tpu.memory_space<vmem>>, vector<1x8x128xbf16>
    %38 = vector.shape_cast %37 : vector<1x8x128xbf16> to vector<8x128xbf16>
    %cst_47 = arith.constant dense<0.000000e+00> : vector<32x128xf32>
    %39 = tpu.matmul %36, %38, %cst_47 {dimension_numbers = #tpu.dot_dimension_numbers<[1], [0], [0], [1], [0, 0, 1, 1], [], []>} : vector<32x8xbf16>, vector<8x128xbf16>, vector<32x128xf32> -> vector<32x128xf32>
    %40 = arith.addf %34, %39 : vector<32x128xf32>
    %c0_48 = arith.constant 0 : index
    %c1_49 = arith.constant 1 : index
    %c5_50 = arith.constant 5 : index
    %c0_51 = arith.constant 0 : index
    %41 = vector.load %arg1[%c0_48, %c1_49, %c5_50, %c0_51] : memref<1x4x40x8xbf16, #tpu.memory_space<vmem>>, vector<1x1x32x8xbf16>
    %42 = vector.shape_cast %41 : vector<1x1x32x8xbf16> to vector<32x8xbf16>
    %c7 = arith.constant 7 : index
    %c0_52 = arith.constant 0 : index
    %c0_53 = arith.constant 0 : index
    %43 = vector.load %arg2[%c7, %c0_52, %c0_53] : memref<9x8x128xbf16, #tpu.memory_space<vmem>>, vector<1x8x128xbf16>
    %44 = vector.shape_cast %43 : vector<1x8x128xbf16> to vector<8x128xbf16>
    %cst_54 = arith.constant dense<0.000000e+00> : vector<32x128xf32>
    %45 = tpu.matmul %42, %44, %cst_54 {dimension_numbers = #tpu.dot_dimension_numbers<[1], [0], [0], [1], [0, 0, 1, 1], [], []>} : vector<32x8xbf16>, vector<8x128xbf16>, vector<32x128xf32> -> vector<32x128xf32>
    %46 = arith.addf %40, %45 : vector<32x128xf32>
    %c0_55 = arith.constant 0 : index
    %c0_56 = arith.constant 0 : index
    %c6_57 = arith.constant 6 : index
    %c0_58 = arith.constant 0 : index
    %47 = vector.load %arg1[%c0_55, %c0_56, %c6_57, %c0_58] : memref<1x4x40x8xbf16, #tpu.memory_space<vmem>>, vector<1x1x32x8xbf16>
    %48 = vector.shape_cast %47 : vector<1x1x32x8xbf16> to vector<32x8xbf16>
    %c8 = arith.constant 8 : index
    %c0_59 = arith.constant 0 : index
    %c0_60 = arith.constant 0 : index
    %49 = vector.load %arg2[%c8, %c0_59, %c0_60] : memref<9x8x128xbf16, #tpu.memory_space<vmem>>, vector<1x8x128xbf16>
    %50 = vector.shape_cast %49 : vector<1x8x128xbf16> to vector<8x128xbf16>
    %cst_61 = arith.constant dense<0.000000e+00> : vector<32x128xf32>
    %51 = tpu.matmul %48, %50, %cst_61 {dimension_numbers = #tpu.dot_dimension_numbers<[1], [0], [0], [1], [0, 0, 1, 1], [], []>} : vector<32x8xbf16>, vector<8x128xbf16>, vector<32x128xf32> -> vector<32x128xf32>
    %52 = arith.addf %46, %51 : vector<32x128xf32>
    %c0_62 = arith.constant 0 : index
    %c0_63 = arith.constant 0 : index
    %53 = vector.load %arg3[%c0_62, %c0_63] : memref<2x128xf32, #tpu.memory_space<vmem>>, vector<2x128xf32>
    %54 = vector.extract_strided_slice %53 {offsets = [0, 0], sizes = [1, 128], strides = [1, 1]} : vector<2x128xf32> to vector<1x128xf32>
    %55 = vector.broadcast %54 : vector<1x128xf32> to vector<32x128xf32>
    %56 = arith.mulf %52, %55 : vector<32x128xf32>
    %57 = vector.extract_strided_slice %53 {offsets = [1, 0], sizes = [1, 128], strides = [1, 1]} : vector<2x128xf32> to vector<1x128xf32>
    %58 = vector.broadcast %57 : vector<1x128xf32> to vector<32x128xf32>
    %59 = arith.addf %56, %58 : vector<32x128xf32>
    %cst_64 = arith.constant 0.000000e+00 : f32
    %60 = vector.broadcast %cst_64 : f32 to vector<32x128xf32>
    %61 = arith.cmpf ogt, %59, %60 : vector<32x128xf32>
    %cst_65 = arith.constant 1.000000e-01 : f32
    %62 = vector.broadcast %cst_65 : f32 to vector<32x128xf32>
    %63 = arith.mulf %62, %59 : vector<32x128xf32>
    %64 = arith.select %61, %59, %63 : vector<32x128xi1>, vector<32x128xf32>
    %65 = arith.truncf %64 : vector<32x128xf32> to vector<32x128xbf16>
    %c0_66 = arith.constant 0 : index
    %c0_67 = arith.constant 0 : index
    %c0_68 = arith.constant 0 : index
    %66 = vector.load %arg4[%c0_66, %c0_67, %c0_68] : memref<1x32x128xbf16, #tpu.memory_space<vmem>>, vector<1x32x128xbf16>
    %67 = vector.shape_cast %66 : vector<1x32x128xbf16> to vector<32x128xbf16>
    %68 = vector.shape_cast %65 : vector<32x128xbf16> to vector<1x32x128xbf16>
    tpu.vector_store %arg4[%c0_66, %c0_67, %c0_68], %68 {strides = array<i32>} : memref<1x32x128xbf16, #tpu.memory_space<vmem>>, vector<1x32x128xbf16>,
    return
  }
  func.func @transform_0(%arg0: i32) -> (i32, i32, i32, i32) {
    %c0_i32 = arith.constant 0 : i32
    %c0_i32_0 = arith.constant 0 : i32
    %c0_i32_1 = arith.constant 0 : i32
    %c0_i32_2 = arith.constant 0 : i32
    return %arg0, %c0_i32, %c0_i32_0, %c0_i32_1 : i32, i32, i32, i32
  }
  func.func @transform_1(%arg0: i32) -> (i32, i32, i32) {
    %c0_i32 = arith.constant 0 : i32
    %c0_i32_0 = arith.constant 0 : i32
    %c0_i32_1 = arith.constant 0 : i32
    %c0_i32_2 = arith.constant 0 : i32
    return %c0_i32, %c0_i32_0, %c0_i32_1 : i32, i32, i32
  }
  func.func @transform_2(%arg0: i32) -> (i32, i32) {
    %c0_i32 = arith.constant 0 : i32
    %c0_i32_0 = arith.constant 0 : i32
    %c0_i32_1 = arith.constant 0 : i32
    return %c0_i32, %c0_i32_0 : i32, i32
  }
  func.func @transform_3(%arg0: i32) -> (i32, i32, i32) {
    %c0_i32 = arith.constant 0 : i32
    %c0_i32_0 = arith.constant 0 : i32
    %c0_i32_1 = arith.constant 0 : i32
    return %arg0, %c0_i32, %c0_i32_0 : i32, i32, i32
  }
}

module attributes {stable_mosaic.version = 11 : i64} {
  func.func @kernel(%arg0: i32, %arg1: memref<1x1x256x8xbf16, #tpu.memory_space<vmem>>, %arg2: memref<1x8x128xbf16, #tpu.memory_space<vmem>>, %arg3: memref<2x128xf32, #tpu.memory_space<vmem>>, %arg4: memref<1x256x128xbf16, #tpu.memory_space<vmem>>) attributes {dimension_semantics = [#tpu.dimension_semantics<parallel>], iteration_bounds = array<i64: 2>, scalar_prefetch = 0 : i64, scratch_operands = 0 : i64, tpu.core_type = #tpu.core_type<tc>, window_params = [{transform_indices = @transform_0, window_bounds = array<i64: 1, 1, 256, 8>}, {pipeline_mode = #tpu.pipeline_mode<synchronous>, transform_indices = @transform_1, window_bounds = array<i64: 1, 8, 128>}, {pipeline_mode = #tpu.pipeline_mode<synchronous>, transform_indices = @transform_2, window_bounds = array<i64: 2, 128>}, {transform_indices = @transform_3, window_bounds = array<i64: 1, 256, 128>}]} {
    %c0 = arith.constant 0 : index
    %c0_0 = arith.constant 0 : index
    %c0_1 = arith.constant 0 : index
    %c0_2 = arith.constant 0 : index
    %0 = vector.load %arg1[%c0, %c0_0, %c0_1, %c0_2] : memref<1x1x256x8xbf16, #tpu.memory_space<vmem>>, vector<1x1x256x8xbf16>
    %1 = vector.shape_cast %0 : vector<1x1x256x8xbf16> to vector<256x8xbf16>
    %c0_3 = arith.constant 0 : index
    %c0_4 = arith.constant 0 : index
    %c0_5 = arith.constant 0 : index
    %2 = vector.load %arg2[%c0_3, %c0_4, %c0_5] : memref<1x8x128xbf16, #tpu.memory_space<vmem>>, vector<1x8x128xbf16>
    %3 = vector.shape_cast %2 : vector<1x8x128xbf16> to vector<8x128xbf16>
    %cst = arith.constant dense<0.000000e+00> : vector<256x128xf32>
    %4 = tpu.matmul %1, %3, %cst {dimension_numbers = #tpu.dot_dimension_numbers<[1], [0], [0], [1], [0, 0, 1, 1], [], []>} : vector<256x8xbf16>, vector<8x128xbf16>, vector<256x128xf32> -> vector<256x128xf32>
    %c0_6 = arith.constant 0 : index
    %c0_7 = arith.constant 0 : index
    %5 = vector.load %arg3[%c0_6, %c0_7] : memref<2x128xf32, #tpu.memory_space<vmem>>, vector<2x128xf32>
    %6 = vector.extract_strided_slice %5 {offsets = [0, 0], sizes = [1, 128], strides = [1, 1]} : vector<2x128xf32> to vector<1x128xf32>
    %7 = vector.broadcast %6 : vector<1x128xf32> to vector<256x128xf32>
    %8 = arith.mulf %4, %7 : vector<256x128xf32>
    %9 = vector.extract_strided_slice %5 {offsets = [1, 0], sizes = [1, 128], strides = [1, 1]} : vector<2x128xf32> to vector<1x128xf32>
    %10 = vector.broadcast %9 : vector<1x128xf32> to vector<256x128xf32>
    %11 = arith.addf %8, %10 : vector<256x128xf32>
    %cst_8 = arith.constant 0.000000e+00 : f32
    %12 = vector.broadcast %cst_8 : f32 to vector<256x128xf32>
    %13 = arith.cmpf ogt, %11, %12 : vector<256x128xf32>
    %cst_9 = arith.constant 1.000000e-01 : f32
    %14 = vector.broadcast %cst_9 : f32 to vector<256x128xf32>
    %15 = arith.mulf %14, %11 : vector<256x128xf32>
    %16 = arith.select %13, %11, %15 : vector<256x128xi1>, vector<256x128xf32>
    %17 = arith.truncf %16 : vector<256x128xf32> to vector<256x128xbf16>
    %c0_10 = arith.constant 0 : index
    %c0_11 = arith.constant 0 : index
    %c0_12 = arith.constant 0 : index
    %18 = vector.load %arg4[%c0_10, %c0_11, %c0_12] : memref<1x256x128xbf16, #tpu.memory_space<vmem>>, vector<1x256x128xbf16>
    %19 = vector.shape_cast %18 : vector<1x256x128xbf16> to vector<256x128xbf16>
    %20 = vector.shape_cast %17 : vector<256x128xbf16> to vector<1x256x128xbf16>
    tpu.vector_store %arg4[%c0_10, %c0_11, %c0_12], %20 {strides = array<i32>} : memref<1x256x128xbf16, #tpu.memory_space<vmem>>, vector<1x256x128xbf16>,
    return
  }
  func.func @transform_0(%arg0: i32) -> (i32, i32, i32, i32) {
    %c0_i32 = arith.constant 0 : i32
    %c0_i32_0 = arith.constant 0 : i32
    %c0_i32_1 = arith.constant 0 : i32
    %c0_i32_2 = arith.constant 0 : i32
    return %arg0, %c0_i32, %c0_i32_0, %c0_i32_1 : i32, i32, i32, i32
  }
  func.func @transform_1(%arg0: i32) -> (i32, i32, i32) {
    %c0_i32 = arith.constant 0 : i32
    %c0_i32_0 = arith.constant 0 : i32
    %c0_i32_1 = arith.constant 0 : i32
    %c0_i32_2 = arith.constant 0 : i32
    return %c0_i32, %c0_i32_0, %c0_i32_1 : i32, i32, i32
  }
  func.func @transform_2(%arg0: i32) -> (i32, i32) {
    %c0_i32 = arith.constant 0 : i32
    %c0_i32_0 = arith.constant 0 : i32
    %c0_i32_1 = arith.constant 0 : i32
    return %c0_i32, %c0_i32_0 : i32, i32
  }
  func.func @transform_3(%arg0: i32) -> (i32, i32, i32) {
    %c0_i32 = arith.constant 0 : i32
    %c0_i32_0 = arith.constant 0 : i32
    %c0_i32_1 = arith.constant 0 : i32
    return %arg0, %c0_i32, %c0_i32_0 : i32, i32, i32
  }
}

module attributes {stable_mosaic.version = 11 : i64} {
  func.func @kernel(%arg0: i32, %arg1: memref<1x16x32x8xbf16, #tpu.memory_space<vmem>>, %arg2: memref<9x8x128xbf16, #tpu.memory_space<vmem>>, %arg3: memref<2x128xf32, #tpu.memory_space<vmem>>, %arg4: memref<1x32x128xbf16, #tpu.memory_space<vmem>>) attributes {dimension_semantics = [#tpu.dimension_semantics<parallel>], iteration_bounds = array<i64: 2>, scalar_prefetch = 0 : i64, scratch_operands = 0 : i64, tpu.core_type = #tpu.core_type<tc>, window_params = [{transform_indices = @transform_0, window_bounds = array<i64: 1, 16, 32, 8>}, {pipeline_mode = #tpu.pipeline_mode<synchronous>, transform_indices = @transform_1, window_bounds = array<i64: 9, 8, 128>}, {pipeline_mode = #tpu.pipeline_mode<synchronous>, transform_indices = @transform_2, window_bounds = array<i64: 2, 128>}, {transform_indices = @transform_3, window_bounds = array<i64: 1, 32, 128>}]} {
    %c0 = arith.constant 0 : index
    %c0_0 = arith.constant 0 : index
    %c0_1 = arith.constant 0 : index
    %c0_2 = arith.constant 0 : index
    %0 = vector.load %arg1[%c0, %c0_0, %c0_1, %c0_2] : memref<1x16x32x8xbf16, #tpu.memory_space<vmem>>, vector<1x1x32x8xbf16>
    %1 = vector.shape_cast %0 : vector<1x1x32x8xbf16> to vector<32x8xbf16>
    %c0_3 = arith.constant 0 : index
    %c0_4 = arith.constant 0 : index
    %c0_5 = arith.constant 0 : index
    %2 = vector.load %arg2[%c0_3, %c0_4, %c0_5] : memref<9x8x128xbf16, #tpu.memory_space<vmem>>, vector<1x8x128xbf16>
    %3 = vector.shape_cast %2 : vector<1x8x128xbf16> to vector<8x128xbf16>
    %cst = arith.constant dense<0.000000e+00> : vector<32x128xf32>
    %4 = tpu.matmul %1, %3, %cst {dimension_numbers = #tpu.dot_dimension_numbers<[1], [0], [0], [1], [0, 0, 1, 1], [], []>} : vector<32x8xbf16>, vector<8x128xbf16>, vector<32x128xf32> -> vector<32x128xf32>
    %c0_6 = arith.constant 0 : index
    %c1 = arith.constant 1 : index
    %c0_7 = arith.constant 0 : index
    %c0_8 = arith.constant 0 : index
    %5 = vector.load %arg1[%c0_6, %c1, %c0_7, %c0_8] : memref<1x16x32x8xbf16, #tpu.memory_space<vmem>>, vector<1x1x32x8xbf16>
    %6 = vector.shape_cast %5 : vector<1x1x32x8xbf16> to vector<32x8xbf16>
    %c1_9 = arith.constant 1 : index
    %c0_10 = arith.constant 0 : index
    %c0_11 = arith.constant 0 : index
    %7 = vector.load %arg2[%c1_9, %c0_10, %c0_11] : memref<9x8x128xbf16, #tpu.memory_space<vmem>>, vector<1x8x128xbf16>
    %8 = vector.shape_cast %7 : vector<1x8x128xbf16> to vector<8x128xbf16>
    %cst_12 = arith.constant dense<0.000000e+00> : vector<32x128xf32>
    %9 = tpu.matmul %6, %8, %cst_12 {dimension_numbers = #tpu.dot_dimension_numbers<[1], [0], [0], [1], [0, 0, 1, 1], [], []>} : vector<32x8xbf16>, vector<8x128xbf16>, vector<32x128xf32> -> vector<32x128xf32>
    %10 = arith.addf %4, %9 : vector<32x128xf32>
    %c0_13 = arith.constant 0 : index
    %c2 = arith.constant 2 : index
    %c0_14 = arith.constant 0 : index
    %c0_15 = arith.constant 0 : index
    %11 = vector.load %arg1[%c0_13, %c2, %c0_14, %c0_15] : memref<1x16x32x8xbf16, #tpu.memory_space<vmem>>, vector<1x1x32x8xbf16>
    %12 = vector.shape_cast %11 : vector<1x1x32x8xbf16> to vector<32x8xbf16>
    %c2_16 = arith.constant 2 : index
    %c0_17 = arith.constant 0 : index
    %c0_18 = arith.constant 0 : index
    %13 = vector.load %arg2[%c2_16, %c0_17, %c0_18] : memref<9x8x128xbf16, #tpu.memory_space<vmem>>, vector<1x8x128xbf16>
    %14 = vector.shape_cast %13 : vector<1x8x128xbf16> to vector<8x128xbf16>
    %cst_19 = arith.constant dense<0.000000e+00> : vector<32x128xf32>
    %15 = tpu.matmul %12, %14, %cst_19 {dimension_numbers = #tpu.dot_dimension_numbers<[1], [0], [0], [1], [0, 0, 1, 1], [], []>} : vector<32x8xbf16>, vector<8x128xbf16>, vector<32x128xf32> -> vector<32x128xf32>
    %16 = arith.addf %10, %15 : vector<32x128xf32>
    %c0_20 = arith.constant 0 : index
    %c4 = arith.constant 4 : index
    %c0_21 = arith.constant 0 : index
    %c0_22 = arith.constant 0 : index
    %17 = vector.load %arg1[%c0_20, %c4, %c0_21, %c0_22] : memref<1x16x32x8xbf16, #tpu.memory_space<vmem>>, vector<1x1x32x8xbf16>
    %18 = vector.shape_cast %17 : vector<1x1x32x8xbf16> to vector<32x8xbf16>
    %c3 = arith.constant 3 : index
    %c0_23 = arith.constant 0 : index
    %c0_24 = arith.constant 0 : index
    %19 = vector.load %arg2[%c3, %c0_23, %c0_24] : memref<9x8x128xbf16, #tpu.memory_space<vmem>>, vector<1x8x128xbf16>
    %20 = vector.shape_cast %19 : vector<1x8x128xbf16> to vector<8x128xbf16>
    %cst_25 = arith.constant dense<0.000000e+00> : vector<32x128xf32>
    %21 = tpu.matmul %18, %20, %cst_25 {dimension_numbers = #tpu.dot_dimension_numbers<[1], [0], [0], [1], [0, 0, 1, 1], [], []>} : vector<32x8xbf16>, vector<8x128xbf16>, vector<32x128xf32> -> vector<32x128xf32>
    %22 = arith.addf %16, %21 : vector<32x128xf32>
    %c0_26 = arith.constant 0 : index
    %c5 = arith.constant 5 : index
    %c0_27 = arith.constant 0 : index
    %c0_28 = arith.constant 0 : index
    %23 = vector.load %arg1[%c0_26, %c5, %c0_27, %c0_28] : memref<1x16x32x8xbf16, #tpu.memory_space<vmem>>, vector<1x1x32x8xbf16>
    %24 = vector.shape_cast %23 : vector<1x1x32x8xbf16> to vector<32x8xbf16>
    %c4_29 = arith.constant 4 : index
    %c0_30 = arith.constant 0 : index
    %c0_31 = arith.constant 0 : index
    %25 = vector.load %arg2[%c4_29, %c0_30, %c0_31] : memref<9x8x128xbf16, #tpu.memory_space<vmem>>, vector<1x8x128xbf16>
    %26 = vector.shape_cast %25 : vector<1x8x128xbf16> to vector<8x128xbf16>
    %cst_32 = arith.constant dense<0.000000e+00> : vector<32x128xf32>
    %27 = tpu.matmul %24, %26, %cst_32 {dimension_numbers = #tpu.dot_dimension_numbers<[1], [0], [0], [1], [0, 0, 1, 1], [], []>} : vector<32x8xbf16>, vector<8x128xbf16>, vector<32x128xf32> -> vector<32x128xf32>
    %28 = arith.addf %22, %27 : vector<32x128xf32>
    %c0_33 = arith.constant 0 : index
    %c6 = arith.constant 6 : index
    %c0_34 = arith.constant 0 : index
    %c0_35 = arith.constant 0 : index
    %29 = vector.load %arg1[%c0_33, %c6, %c0_34, %c0_35] : memref<1x16x32x8xbf16, #tpu.memory_space<vmem>>, vector<1x1x32x8xbf16>
    %30 = vector.shape_cast %29 : vector<1x1x32x8xbf16> to vector<32x8xbf16>
    %c5_36 = arith.constant 5 : index
    %c0_37 = arith.constant 0 : index
    %c0_38 = arith.constant 0 : index
    %31 = vector.load %arg2[%c5_36, %c0_37, %c0_38] : memref<9x8x128xbf16, #tpu.memory_space<vmem>>, vector<1x8x128xbf16>
    %32 = vector.shape_cast %31 : vector<1x8x128xbf16> to vector<8x128xbf16>
    %cst_39 = arith.constant dense<0.000000e+00> : vector<32x128xf32>
    %33 = tpu.matmul %30, %32, %cst_39 {dimension_numbers = #tpu.dot_dimension_numbers<[1], [0], [0], [1], [0, 0, 1, 1], [], []>} : vector<32x8xbf16>, vector<8x128xbf16>, vector<32x128xf32> -> vector<32x128xf32>
    %34 = arith.addf %28, %33 : vector<32x128xf32>
    %c0_40 = arith.constant 0 : index
    %c8 = arith.constant 8 : index
    %c0_41 = arith.constant 0 : index
    %c0_42 = arith.constant 0 : index
    %35 = vector.load %arg1[%c0_40, %c8, %c0_41, %c0_42] : memref<1x16x32x8xbf16, #tpu.memory_space<vmem>>, vector<1x1x32x8xbf16>
    %36 = vector.shape_cast %35 : vector<1x1x32x8xbf16> to vector<32x8xbf16>
    %c6_43 = arith.constant 6 : index
    %c0_44 = arith.constant 0 : index
    %c0_45 = arith.constant 0 : index
    %37 = vector.load %arg2[%c6_43, %c0_44, %c0_45] : memref<9x8x128xbf16, #tpu.memory_space<vmem>>, vector<1x8x128xbf16>
    %38 = vector.shape_cast %37 : vector<1x8x128xbf16> to vector<8x128xbf16>
    %cst_46 = arith.constant dense<0.000000e+00> : vector<32x128xf32>
    %39 = tpu.matmul %36, %38, %cst_46 {dimension_numbers = #tpu.dot_dimension_numbers<[1], [0], [0], [1], [0, 0, 1, 1], [], []>} : vector<32x8xbf16>, vector<8x128xbf16>, vector<32x128xf32> -> vector<32x128xf32>
    %40 = arith.addf %34, %39 : vector<32x128xf32>
    %c0_47 = arith.constant 0 : index
    %c9 = arith.constant 9 : index
    %c0_48 = arith.constant 0 : index
    %c0_49 = arith.constant 0 : index
    %41 = vector.load %arg1[%c0_47, %c9, %c0_48, %c0_49] : memref<1x16x32x8xbf16, #tpu.memory_space<vmem>>, vector<1x1x32x8xbf16>
    %42 = vector.shape_cast %41 : vector<1x1x32x8xbf16> to vector<32x8xbf16>
    %c7 = arith.constant 7 : index
    %c0_50 = arith.constant 0 : index
    %c0_51 = arith.constant 0 : index
    %43 = vector.load %arg2[%c7, %c0_50, %c0_51] : memref<9x8x128xbf16, #tpu.memory_space<vmem>>, vector<1x8x128xbf16>
    %44 = vector.shape_cast %43 : vector<1x8x128xbf16> to vector<8x128xbf16>
    %cst_52 = arith.constant dense<0.000000e+00> : vector<32x128xf32>
    %45 = tpu.matmul %42, %44, %cst_52 {dimension_numbers = #tpu.dot_dimension_numbers<[1], [0], [0], [1], [0, 0, 1, 1], [], []>} : vector<32x8xbf16>, vector<8x128xbf16>, vector<32x128xf32> -> vector<32x128xf32>
    %46 = arith.addf %40, %45 : vector<32x128xf32>
    %c0_53 = arith.constant 0 : index
    %c10 = arith.constant 10 : index
    %c0_54 = arith.constant 0 : index
    %c0_55 = arith.constant 0 : index
    %47 = vector.load %arg1[%c0_53, %c10, %c0_54, %c0_55] : memref<1x16x32x8xbf16, #tpu.memory_space<vmem>>, vector<1x1x32x8xbf16>
    %48 = vector.shape_cast %47 : vector<1x1x32x8xbf16> to vector<32x8xbf16>
    %c8_56 = arith.constant 8 : index
    %c0_57 = arith.constant 0 : index
    %c0_58 = arith.constant 0 : index
    %49 = vector.load %arg2[%c8_56, %c0_57, %c0_58] : memref<9x8x128xbf16, #tpu.memory_space<vmem>>, vector<1x8x128xbf16>
    %50 = vector.shape_cast %49 : vector<1x8x128xbf16> to vector<8x128xbf16>
    %cst_59 = arith.constant dense<0.000000e+00> : vector<32x128xf32>
    %51 = tpu.matmul %48, %50, %cst_59 {dimension_numbers = #tpu.dot_dimension_numbers<[1], [0], [0], [1], [0, 0, 1, 1], [], []>} : vector<32x8xbf16>, vector<8x128xbf16>, vector<32x128xf32> -> vector<32x128xf32>
    %52 = arith.addf %46, %51 : vector<32x128xf32>
    %c0_60 = arith.constant 0 : index
    %c0_61 = arith.constant 0 : index
    %53 = vector.load %arg3[%c0_60, %c0_61] : memref<2x128xf32, #tpu.memory_space<vmem>>, vector<2x128xf32>
    %54 = vector.extract_strided_slice %53 {offsets = [0, 0], sizes = [1, 128], strides = [1, 1]} : vector<2x128xf32> to vector<1x128xf32>
    %55 = vector.broadcast %54 : vector<1x128xf32> to vector<32x128xf32>
    %56 = arith.mulf %52, %55 : vector<32x128xf32>
    %57 = vector.extract_strided_slice %53 {offsets = [1, 0], sizes = [1, 128], strides = [1, 1]} : vector<2x128xf32> to vector<1x128xf32>
    %58 = vector.broadcast %57 : vector<1x128xf32> to vector<32x128xf32>
    %59 = arith.addf %56, %58 : vector<32x128xf32>
    %60 = arith.truncf %59 : vector<32x128xf32> to vector<32x128xbf16>
    %c0_62 = arith.constant 0 : index
    %c0_63 = arith.constant 0 : index
    %c0_64 = arith.constant 0 : index
    %61 = vector.load %arg4[%c0_62, %c0_63, %c0_64] : memref<1x32x128xbf16, #tpu.memory_space<vmem>>, vector<1x32x128xbf16>
    %62 = vector.shape_cast %61 : vector<1x32x128xbf16> to vector<32x128xbf16>
    %63 = vector.shape_cast %60 : vector<32x128xbf16> to vector<1x32x128xbf16>
    tpu.vector_store %arg4[%c0_62, %c0_63, %c0_64], %63 {strides = array<i32>} : memref<1x32x128xbf16, #tpu.memory_space<vmem>>, vector<1x32x128xbf16>,
    return
  }
  func.func @transform_0(%arg0: i32) -> (i32, i32, i32, i32) {
    %c0_i32 = arith.constant 0 : i32
    %c0_i32_0 = arith.constant 0 : i32
    %c0_i32_1 = arith.constant 0 : i32
    %c0_i32_2 = arith.constant 0 : i32
    return %arg0, %c0_i32, %c0_i32_0, %c0_i32_1 : i32, i32, i32, i32
  }
  func.func @transform_1(%arg0: i32) -> (i32, i32, i32) {
    %c0_i32 = arith.constant 0 : i32
    %c0_i32_0 = arith.constant 0 : i32
    %c0_i32_1 = arith.constant 0 : i32
    %c0_i32_2 = arith.constant 0 : i32
    return %c0_i32, %c0_i32_0, %c0_i32_1 : i32, i32, i32
  }
  func.func @transform_2(%arg0: i32) -> (i32, i32) {
    %c0_i32 = arith.constant 0 : i32
    %c0_i32_0 = arith.constant 0 : i32
    %c0_i32_1 = arith.constant 0 : i32
    return %c0_i32, %c0_i32_0 : i32, i32
  }
  func.func @transform_3(%arg0: i32) -> (i32, i32, i32) {
    %c0_i32 = arith.constant 0 : i32
    %c0_i32_0 = arith.constant 0 : i32
    %c0_i32_1 = arith.constant 0 : i32
    return %arg0, %c0_i32, %c0_i32_0 : i32, i32, i32
  }
}

module attributes {stable_mosaic.version = 11 : i64} {
  func.func @kernel(%arg0: i32, %arg1: memref<1x1x72x8xbf16, #tpu.memory_space<vmem>>, %arg2: memref<9x8x128xbf16, #tpu.memory_space<vmem>>, %arg3: memref<2x128xf32, #tpu.memory_space<vmem>>, %arg4: memref<1x32x128xbf16, #tpu.memory_space<vmem>>, %arg5: memref<1x32x128xf32, #tpu.memory_space<vmem>>) attributes {dimension_semantics = [#tpu.dimension_semantics<parallel>], iteration_bounds = array<i64: 2>, scalar_prefetch = 0 : i64, scratch_operands = 0 : i64, tpu.core_type = #tpu.core_type<tc>, window_params = [{transform_indices = @transform_0, window_bounds = array<i64: 1, 1, 72, 8>}, {pipeline_mode = #tpu.pipeline_mode<synchronous>, transform_indices = @transform_1, window_bounds = array<i64: 9, 8, 128>}, {pipeline_mode = #tpu.pipeline_mode<synchronous>, transform_indices = @transform_2, window_bounds = array<i64: 2, 128>}, {transform_indices = @transform_3, window_bounds = array<i64: 1, 32, 128>}, {transform_indices = @transform_4, window_bounds = array<i64: 1, 32, 128>}]} {
    %c0 = arith.constant 0 : index
    %c0_0 = arith.constant 0 : index
    %c0_1 = arith.constant 0 : index
    %c0_2 = arith.constant 0 : index
    %0 = vector.load %arg1[%c0, %c0_0, %c0_1, %c0_2] : memref<1x1x72x8xbf16, #tpu.memory_space<vmem>>, vector<1x1x32x8xbf16>
    %1 = vector.shape_cast %0 : vector<1x1x32x8xbf16> to vector<32x8xbf16>
    %c0_3 = arith.constant 0 : index
    %c0_4 = arith.constant 0 : index
    %c0_5 = arith.constant 0 : index
    %2 = vector.load %arg2[%c0_3, %c0_4, %c0_5] : memref<9x8x128xbf16, #tpu.memory_space<vmem>>, vector<1x8x128xbf16>
    %3 = vector.shape_cast %2 : vector<1x8x128xbf16> to vector<8x128xbf16>
    %cst = arith.constant dense<0.000000e+00> : vector<32x128xf32>
    %4 = tpu.matmul %1, %3, %cst {dimension_numbers = #tpu.dot_dimension_numbers<[1], [0], [0], [1], [0, 0, 1, 1], [], []>} : vector<32x8xbf16>, vector<8x128xbf16>, vector<32x128xf32> -> vector<32x128xf32>
    %c0_6 = arith.constant 0 : index
    %c0_7 = arith.constant 0 : index
    %c2 = arith.constant 2 : index
    %c0_8 = arith.constant 0 : index
    %5 = vector.load %arg1[%c0_6, %c0_7, %c2, %c0_8] : memref<1x1x72x8xbf16, #tpu.memory_space<vmem>>, vector<1x1x32x8xbf16>
    %6 = vector.shape_cast %5 : vector<1x1x32x8xbf16> to vector<32x8xbf16>
    %c1 = arith.constant 1 : index
    %c0_9 = arith.constant 0 : index
    %c0_10 = arith.constant 0 : index
    %7 = vector.load %arg2[%c1, %c0_9, %c0_10] : memref<9x8x128xbf16, #tpu.memory_space<vmem>>, vector<1x8x128xbf16>
    %8 = vector.shape_cast %7 : vector<1x8x128xbf16> to vector<8x128xbf16>
    %cst_11 = arith.constant dense<0.000000e+00> : vector<32x128xf32>
    %9 = tpu.matmul %6, %8, %cst_11 {dimension_numbers = #tpu.dot_dimension_numbers<[1], [0], [0], [1], [0, 0, 1, 1], [], []>} : vector<32x8xbf16>, vector<8x128xbf16>, vector<32x128xf32> -> vector<32x128xf32>
    %10 = arith.addf %4, %9 : vector<32x128xf32>
    %c0_12 = arith.constant 0 : index
    %c0_13 = arith.constant 0 : index
    %c4 = arith.constant 4 : index
    %c0_14 = arith.constant 0 : index
    %11 = vector.load %arg1[%c0_12, %c0_13, %c4, %c0_14] : memref<1x1x72x8xbf16, #tpu.memory_space<vmem>>, vector<1x1x32x8xbf16>
    %12 = vector.shape_cast %11 : vector<1x1x32x8xbf16> to vector<32x8xbf16>
    %c2_15 = arith.constant 2 : index
    %c0_16 = arith.constant 0 : index
    %c0_17 = arith.constant 0 : index
    %13 = vector.load %arg2[%c2_15, %c0_16, %c0_17] : memref<9x8x128xbf16, #tpu.memory_space<vmem>>, vector<1x8x128xbf16>
    %14 = vector.shape_cast %13 : vector<1x8x128xbf16> to vector<8x128xbf16>
    %cst_18 = arith.constant dense<0.000000e+00> : vector<32x128xf32>
    %15 = tpu.matmul %12, %14, %cst_18 {dimension_numbers = #tpu.dot_dimension_numbers<[1], [0], [0], [1], [0, 0, 1, 1], [], []>} : vector<32x8xbf16>, vector<8x128xbf16>, vector<32x128xf32> -> vector<32x128xf32>
    %16 = arith.addf %10, %15 : vector<32x128xf32>
    %c0_19 = arith.constant 0 : index
    %c0_20 = arith.constant 0 : index
    %c16 = arith.constant 16 : index
    %c0_21 = arith.constant 0 : index
    %17 = vector.load %arg1[%c0_19, %c0_20, %c16, %c0_21] : memref<1x1x72x8xbf16, #tpu.memory_space<vmem>>, vector<1x1x32x8xbf16>
    %18 = vector.shape_cast %17 : vector<1x1x32x8xbf16> to vector<32x8xbf16>
    %c3 = arith.constant 3 : index
    %c0_22 = arith.constant 0 : index
    %c0_23 = arith.constant 0 : index
    %19 = vector.load %arg2[%c3, %c0_22, %c0_23] : memref<9x8x128xbf16, #tpu.memory_space<vmem>>, vector<1x8x128xbf16>
    %20 = vector.shape_cast %19 : vector<1x8x128xbf16> to vector<8x128xbf16>
    %cst_24 = arith.constant dense<0.000000e+00> : vector<32x128xf32>
    %21 = tpu.matmul %18, %20, %cst_24 {dimension_numbers = #tpu.dot_dimension_numbers<[1], [0], [0], [1], [0, 0, 1, 1], [], []>} : vector<32x8xbf16>, vector<8x128xbf16>, vector<32x128xf32> -> vector<32x128xf32>
    %22 = arith.addf %16, %21 : vector<32x128xf32>
    %c0_25 = arith.constant 0 : index
    %c0_26 = arith.constant 0 : index
    %c18 = arith.constant 18 : index
    %c0_27 = arith.constant 0 : index
    %23 = vector.load %arg1[%c0_25, %c0_26, %c18, %c0_27] : memref<1x1x72x8xbf16, #tpu.memory_space<vmem>>, vector<1x1x32x8xbf16>
    %24 = vector.shape_cast %23 : vector<1x1x32x8xbf16> to vector<32x8xbf16>
    %c4_28 = arith.constant 4 : index
    %c0_29 = arith.constant 0 : index
    %c0_30 = arith.constant 0 : index
    %25 = vector.load %arg2[%c4_28, %c0_29, %c0_30] : memref<9x8x128xbf16, #tpu.memory_space<vmem>>, vector<1x8x128xbf16>
    %26 = vector.shape_cast %25 : vector<1x8x128xbf16> to vector<8x128xbf16>
    %cst_31 = arith.constant dense<0.000000e+00> : vector<32x128xf32>
    %27 = tpu.matmul %24, %26, %cst_31 {dimension_numbers = #tpu.dot_dimension_numbers<[1], [0], [0], [1], [0, 0, 1, 1], [], []>} : vector<32x8xbf16>, vector<8x128xbf16>, vector<32x128xf32> -> vector<32x128xf32>
    %28 = arith.addf %22, %27 : vector<32x128xf32>
    %c0_32 = arith.constant 0 : index
    %c0_33 = arith.constant 0 : index
    %c20 = arith.constant 20 : index
    %c0_34 = arith.constant 0 : index
    %29 = vector.load %arg1[%c0_32, %c0_33, %c20, %c0_34] : memref<1x1x72x8xbf16, #tpu.memory_space<vmem>>, vector<1x1x32x8xbf16>
    %30 = vector.shape_cast %29 : vector<1x1x32x8xbf16> to vector<32x8xbf16>
    %c5 = arith.constant 5 : index
    %c0_35 = arith.constant 0 : index
    %c0_36 = arith.constant 0 : index
    %31 = vector.load %arg2[%c5, %c0_35, %c0_36] : memref<9x8x128xbf16, #tpu.memory_space<vmem>>, vector<1x8x128xbf16>
    %32 = vector.shape_cast %31 : vector<1x8x128xbf16> to vector<8x128xbf16>
    %cst_37 = arith.constant dense<0.000000e+00> : vector<32x128xf32>
    %33 = tpu.matmul %30, %32, %cst_37 {dimension_numbers = #tpu.dot_dimension_numbers<[1], [0], [0], [1], [0, 0, 1, 1], [], []>} : vector<32x8xbf16>, vector<8x128xbf16>, vector<32x128xf32> -> vector<32x128xf32>
    %34 = arith.addf %28, %33 : vector<32x128xf32>
    %c0_38 = arith.constant 0 : index
    %c0_39 = arith.constant 0 : index
    %c32 = arith.constant 32 : index
    %c0_40 = arith.constant 0 : index
    %35 = vector.load %arg1[%c0_38, %c0_39, %c32, %c0_40] : memref<1x1x72x8xbf16, #tpu.memory_space<vmem>>, vector<1x1x32x8xbf16>
    %36 = vector.shape_cast %35 : vector<1x1x32x8xbf16> to vector<32x8xbf16>
    %c6 = arith.constant 6 : index
    %c0_41 = arith.constant 0 : index
    %c0_42 = arith.constant 0 : index
    %37 = vector.load %arg2[%c6, %c0_41, %c0_42] : memref<9x8x128xbf16, #tpu.memory_space<vmem>>, vector<1x8x128xbf16>
    %38 = vector.shape_cast %37 : vector<1x8x128xbf16> to vector<8x128xbf16>
    %cst_43 = arith.constant dense<0.000000e+00> : vector<32x128xf32>
    %39 = tpu.matmul %36, %38, %cst_43 {dimension_numbers = #tpu.dot_dimension_numbers<[1], [0], [0], [1], [0, 0, 1, 1], [], []>} : vector<32x8xbf16>, vector<8x128xbf16>, vector<32x128xf32> -> vector<32x128xf32>
    %40 = arith.addf %34, %39 : vector<32x128xf32>
    %c0_44 = arith.constant 0 : index
    %c0_45 = arith.constant 0 : index
    %c34 = arith.constant 34 : index
    %c0_46 = arith.constant 0 : index
    %41 = vector.load %arg1[%c0_44, %c0_45, %c34, %c0_46] : memref<1x1x72x8xbf16, #tpu.memory_space<vmem>>, vector<1x1x32x8xbf16>
    %42 = vector.shape_cast %41 : vector<1x1x32x8xbf16> to vector<32x8xbf16>
    %c7 = arith.constant 7 : index
    %c0_47 = arith.constant 0 : index
    %c0_48 = arith.constant 0 : index
    %43 = vector.load %arg2[%c7, %c0_47, %c0_48] : memref<9x8x128xbf16, #tpu.memory_space<vmem>>, vector<1x8x128xbf16>
    %44 = vector.shape_cast %43 : vector<1x8x128xbf16> to vector<8x128xbf16>
    %cst_49 = arith.constant dense<0.000000e+00> : vector<32x128xf32>
    %45 = tpu.matmul %42, %44, %cst_49 {dimension_numbers = #tpu.dot_dimension_numbers<[1], [0], [0], [1], [0, 0, 1, 1], [], []>} : vector<32x8xbf16>, vector<8x128xbf16>, vector<32x128xf32> -> vector<32x128xf32>
    %46 = arith.addf %40, %45 : vector<32x128xf32>
    %c0_50 = arith.constant 0 : index
    %c0_51 = arith.constant 0 : index
    %c36 = arith.constant 36 : index
    %c0_52 = arith.constant 0 : index
    %47 = vector.load %arg1[%c0_50, %c0_51, %c36, %c0_52] : memref<1x1x72x8xbf16, #tpu.memory_space<vmem>>, vector<1x1x32x8xbf16>
    %48 = vector.shape_cast %47 : vector<1x1x32x8xbf16> to vector<32x8xbf16>
    %c8 = arith.constant 8 : index
    %c0_53 = arith.constant 0 : index
    %c0_54 = arith.constant 0 : index
    %49 = vector.load %arg2[%c8, %c0_53, %c0_54] : memref<9x8x128xbf16, #tpu.memory_space<vmem>>, vector<1x8x128xbf16>
    %50 = vector.shape_cast %49 : vector<1x8x128xbf16> to vector<8x128xbf16>
    %cst_55 = arith.constant dense<0.000000e+00> : vector<32x128xf32>
    %51 = tpu.matmul %48, %50, %cst_55 {dimension_numbers = #tpu.dot_dimension_numbers<[1], [0], [0], [1], [0, 0, 1, 1], [], []>} : vector<32x8xbf16>, vector<8x128xbf16>, vector<32x128xf32> -> vector<32x128xf32>
    %52 = arith.addf %46, %51 : vector<32x128xf32>
    %c0_56 = arith.constant 0 : index
    %c0_57 = arith.constant 0 : index
    %53 = vector.load %arg3[%c0_56, %c0_57] : memref<2x128xf32, #tpu.memory_space<vmem>>, vector<2x128xf32>
    %54 = vector.extract_strided_slice %53 {offsets = [0, 0], sizes = [1, 128], strides = [1, 1]} : vector<2x128xf32> to vector<1x128xf32>
    %55 = vector.broadcast %54 : vector<1x128xf32> to vector<32x128xf32>
    %56 = arith.mulf %52, %55 : vector<32x128xf32>
    %57 = vector.extract_strided_slice %53 {offsets = [1, 0], sizes = [1, 128], strides = [1, 1]} : vector<2x128xf32> to vector<1x128xf32>
    %58 = vector.broadcast %57 : vector<1x128xf32> to vector<32x128xf32>
    %59 = arith.addf %56, %58 : vector<32x128xf32>
    %cst_58 = arith.constant 0.000000e+00 : f32
    %60 = vector.broadcast %cst_58 : f32 to vector<32x128xf32>
    %61 = arith.cmpf ogt, %59, %60 : vector<32x128xf32>
    %cst_59 = arith.constant 1.000000e-01 : f32
    %62 = vector.broadcast %cst_59 : f32 to vector<32x128xf32>
    %63 = arith.mulf %62, %59 : vector<32x128xf32>
    %64 = arith.select %61, %59, %63 : vector<32x128xi1>, vector<32x128xf32>
    %c0_60 = arith.constant 0 : index
    %c0_61 = arith.constant 0 : index
    %c0_62 = arith.constant 0 : index
    %65 = vector.load %arg4[%c0_60, %c0_61, %c0_62] : memref<1x32x128xbf16, #tpu.memory_space<vmem>>, vector<1x32x128xbf16>
    %66 = vector.shape_cast %65 : vector<1x32x128xbf16> to vector<32x128xbf16>
    %67 = arith.extf %66 : vector<32x128xbf16> to vector<32x128xf32>
    %68 = arith.addf %64, %67 : vector<32x128xf32>
    %c0_63 = arith.constant 0 : index
    %c0_64 = arith.constant 0 : index
    %c0_65 = arith.constant 0 : index
    %69 = vector.load %arg5[%c0_63, %c0_64, %c0_65] : memref<1x32x128xf32, #tpu.memory_space<vmem>>, vector<1x32x128xf32>
    %70 = vector.shape_cast %69 : vector<1x32x128xf32> to vector<32x128xf32>
    %71 = vector.shape_cast %68 : vector<32x128xf32> to vector<1x32x128xf32>
    tpu.vector_store %arg5[%c0_63, %c0_64, %c0_65], %71 {strides = array<i32>} : memref<1x32x128xf32, #tpu.memory_space<vmem>>, vector<1x32x128xf32>,
    return
  }
  func.func @transform_0(%arg0: i32) -> (i32, i32, i32, i32) {
    %c0_i32 = arith.constant 0 : i32
    %c0_i32_0 = arith.constant 0 : i32
    %c0_i32_1 = arith.constant 0 : i32
    %c0_i32_2 = arith.constant 0 : i32
    return %arg0, %c0_i32, %c0_i32_0, %c0_i32_1 : i32, i32, i32, i32
  }
  func.func @transform_1(%arg0: i32) -> (i32, i32, i32) {
    %c0_i32 = arith.constant 0 : i32
    %c0_i32_0 = arith.constant 0 : i32
    %c0_i32_1 = arith.constant 0 : i32
    %c0_i32_2 = arith.constant 0 : i32
    return %c0_i32, %c0_i32_0, %c0_i32_1 : i32, i32, i32
  }
  func.func @transform_2(%arg0: i32) -> (i32, i32) {
    %c0_i32 = arith.constant 0 : i32
    %c0_i32_0 = arith.constant 0 : i32
    %c0_i32_1 = arith.constant 0 : i32
    return %c0_i32, %c0_i32_0 : i32, i32
  }
  func.func @transform_3(%arg0: i32) -> (i32, i32, i32) {
    %c0_i32 = arith.constant 0 : i32
    %c0_i32_0 = arith.constant 0 : i32
    %c0_i32_1 = arith.constant 0 : i32
    return %arg0, %c0_i32, %c0_i32_0 : i32, i32, i32
  }
  func.func @transform_4(%arg0: i32) -> (i32, i32, i32) {
    %c0_i32 = arith.constant 0 : i32
    %c0_i32_0 = arith.constant 0 : i32
    %c0_i32_1 = arith.constant 0 : i32
    return %arg0, %c0_i32, %c0_i32_0 : i32, i32, i32
  }
}

</mosaic_0001>

<llo_original>
// kernel: block_forward.8
$region0: #{block_forward.8}
  #allocation0 [shape = 'u32[]', space=smem, size = 0x4, offset = 0x4, fixed_abs, tag = 'smem constant byte address 0x4 - core index']
  #allocation1 [shape = 'u32[144,128]{1,0:T(1,128)}', space=vmem, size = 0x12000, scoped, tag = 'internal scratch']
  %s0 = inlined_call_operand.vmem [shape: bf16[2,4,96,8], index: 0, kind: input, shape index: {}]
  %s1 = inlined_call_operand.vmem [shape: bf16[9,8,128], index: 1, kind: input, shape index: {}]
  %s2 = inlined_call_operand.vmem [shape: f32[2,128], index: 2, kind: input, shape index: {}]
  %s3 = inlined_call_operand.vmem [shape: bf16[2,80,128], index: 3, kind: output, shape index: {}]
  %s4 = sld [smem:[#allocation0]]
  $region45: #{block_forward.8} parent=0
    _
  %s6 = ssub.s32 1, %s4
  %s7 = scalar_select 0, %s6, %s4
  loop: start=0, step=1, limit=4
  $region2: #{block_forward.8} parent=0 // loop_pre_header
    _
  $region3: #{block_forward.8} parent=0 // loop_header
    %s9 = sphi 0, %s13
    %p10 = scmp.ge.s32.totalorder %s9, 4
    %s19 = sphi 0, %s21
    %s22 = sphi 0, %s19
    %s23 = sphi 0, %s22
    %s39 = sphi 0, %s23
    %s43 = sphi 0, %s43
    %s45 = sphi 0, %s43
    %s46 = sphi 0, %s45
    %s60 = sphi 0, %s46
    %s64 = sphi 0, %s64
    %s66 = sphi 0, %s64
    %s67 = sphi 0, %s66
    %s81 = sphi 0, %s67
    %s87 = sphi 0, %s89
    %s90 = sphi 0, %s87
    %s91 = sphi 0, %s90
    %s107 = sphi 0, %s91
  $region4: #{block_forward.8} parent=0 // loop_header_branch
    %12 = sbr.rel (%p10) target = $region8
  $region5: #{block_forward.8} parent=0 // loop_body
    %s14 = ssub.s32 %s9, 1
    %s15 = ssub.s32 %s9, 2
    %s16 = sadd.s32 %s9, 1
    %s17 = ssub.s32 %s9, %s16
    %p18 = scmp.eq.s32.totalorder %s17, 0
    %s20 = sadd.s32 %s19, 1
    %s21 = scalar_select %p18, %s19, %s20
    %p24 = pneg %p18
    %p25 = scmp.eq.s32.totalorder %s9, 1
    %p26 = por %p24, %p25
    %p27 = scmp.ne.s32.totalorder %s19, %s22
    %p28 = scmp.eq.s32.totalorder %s9, 0
    %p29 = por %p27, %p28
    %p30 = scmp.ne.s32.totalorder %s19, %s22
    %p31 = scmp.eq.s32.totalorder %s14, 1
    %p32 = por %p30, %p31
    %p33 = scmp.ne.s32.totalorder %s22, %s23
    %p34 = scmp.eq.s32.totalorder %s14, 0
    %p35 = por %p33, %p34
    %p36 = scmp.ne.s32.totalorder %s22, %s23
    %p37 = scmp.eq.s32.totalorder %s15, 1
    %p38 = por %p36, %p37
    %p40 = scmp.ne.s32.totalorder %s23, %s39
    %p41 = scmp.eq.s32.totalorder %s15, 0
    %p42 = por %p40, %p41
    %s44 = sadd.s32 %s43, 1
    %p47 = scmp.eq.s32.totalorder %s9, 1
    %p48 = scmp.ne.s32.totalorder %s43, %s45
    %p49 = scmp.eq.s32.totalorder %s9, 0
    %p50 = por %p48, %p49
    %p51 = scmp.ne.s32.totalorder %s43, %s45
    %p52 = scmp.eq.s32.totalorder %s14, 1
    %p53 = por %p51, %p52
    %p54 = scmp.ne.s32.totalorder %s45, %s46
    %p55 = scmp.eq.s32.totalorder %s14, 0
    %p56 = por %p54, %p55
    %p57 = scmp.ne.s32.totalorder %s45, %s46
    %p58 = scmp.eq.s32.totalorder %s15, 1
    %p59 = por %p57, %p58
    %p61 = scmp.ne.s32.totalorder %s46, %s60
    %p62 = scmp.eq.s32.totalorder %s15, 0
    %p63 = por %p61, %p62
    %s65 = sadd.s32 %s64, 1
    %p68 = scmp.eq.s32.totalorder %s9, 1
    %p69 = scmp.ne.s32.totalorder %s64, %s66
    %p70 = scmp.eq.s32.totalorder %s9, 0
    %p71 = por %p69, %p70
    %p72 = scmp.ne.s32.totalorder %s64, %s66
    %p73 = scmp.eq.s32.totalorder %s14, 1
    %p74 = por %p72, %p73
    %p75 = scmp.ne.s32.totalorder %s66, %s67
    %p76 = scmp.eq.s32.totalorder %s14, 0
    %p77 = por %p75, %p76
    %p78 = scmp.ne.s32.totalorder %s66, %s67
    %p79 = scmp.eq.s32.totalorder %s15, 1
    %p80 = por %p78, %p79
    %p82 = scmp.ne.s32.totalorder %s67, %s81
    %p83 = scmp.eq.s32.totalorder %s15, 0
    %p84 = por %p82, %p83
    %s85 = ssub.s32 %s9, %s16
    %p86 = scmp.eq.s32.totalorder %s85, 0
    %s88 = sadd.s32 %s87, 1
    %s89 = scalar_select %p86, %s87, %s88
    %p92 = pneg %p86
    %p93 = scmp.eq.s32.totalorder %s9, 1
    %p94 = por %p92, %p93
    %p95 = scmp.ne.s32.totalorder %s87, %s90
    %p96 = scmp.eq.s32.totalorder %s9, 0
    %p97 = por %p95, %p96
    %p98 = scmp.ne.s32.totalorder %s87, %s90
    %p99 = scmp.eq.s32.totalorder %s14, 1
    %p100 = por %p98, %p99
    %p101 = scmp.ne.s32.totalorder %s90, %s91
    %p102 = scmp.eq.s32.totalorder %s14, 0
    %p103 = por %p101, %p102
    %p104 = scmp.ne.s32.totalorder %s90, %s91
    %p105 = scmp.eq.s32.totalorder %s15, 1
    %p106 = por %p104, %p105
    %p108 = scmp.ne.s32.totalorder %s91, %s107
    %p109 = scmp.eq.s32.totalorder %s15, 0
    %p110 = por %p108, %p109
    %p111 = scmp.le.s32.totalorder 1, %s9
    %p112 = scmp.lt.s32.totalorder %s9, 3
    %p113 = pnand %p111, %p112
    %p114 = pneg %p113
    // Predicated region
    $region9: #{block_forward.8} parent=5 // pred_check
      _
    $region10: #{block_forward.8} parent=5 // pred_check_branch
      %116 = sbr.rel (%p113) target = $region12
    $region11: #{block_forward.8} parent=5 // pred_region
      %s117 = ssub.s32 %s9, 1
      // Predicated region
      $region13: #{block_forward.8} parent=11 // pred_check
        %p118 = pneg %p56
      $region14: #{block_forward.8} parent=11 // pred_check_branch
        %120 = sbr.rel (%p118) target = $region16
      $region15: #{block_forward.8} parent=11 // pred_region
        _
      $region16: #{block_forward.8} parent=11 // pred_fallthru
        _
      // Predicated region
      $region17: #{block_forward.8} parent=11 // pred_check
        %p121 = pneg %p77
      $region18: #{block_forward.8} parent=11 // pred_check_branch
        %123 = sbr.rel (%p121) target = $region20
      $region19: #{block_forward.8} parent=11 // pred_region
        _
      $region20: #{block_forward.8} parent=11 // pred_fallthru
        _
    $region12: #{block_forward.8} parent=5 // pred_fallthru
      _
    %p124 = scmp.lt.s32.totalorder %s9, 2
    // Predicated region
    $region21: #{block_forward.8} parent=5 // pred_check
      %p125 = pneg %p124
    $region22: #{block_forward.8} parent=5 // pred_check_branch
      %127 = sbr.rel (%p125) target = $region24
    $region23: #{block_forward.8} parent=5 // pred_region
      // Predicated region
      $region25: #{block_forward.8} parent=23 // pred_check
        %p128 = pneg %p29
      $region26: #{block_forward.8} parent=23 // pred_check_branch
        %130 = sbr.rel (%p128) target = $region28
      $region27: #{block_forward.8} parent=23 // pred_region
        %p131 = scmp.lt.s32.totalorder %s9, 1
        %s132 = scalar_select %p131, %s9, 1
        %s133 = smul.addr %s132, 48
        %s134 = smul.addr %s133, 4
        %s135 = scalar_lea.vmem %s0, %s134
      $region28: #{block_forward.8} parent=23 // pred_fallthru
        _
    $region24: #{block_forward.8} parent=5 // pred_fallthru
      _
    %p136 = scmp.le.s32.totalorder 1, %s9
    %p137 = scmp.lt.s32.totalorder %s9, 3
    %p138 = pnand %p136, %p137
    %p139 = pneg %p138
    // Predicated region
    $region29: #{block_forward.8} parent=5 // pred_check
      _
    $region30: #{block_forward.8} parent=5 // pred_check_branch
      %141 = sbr.rel (%p138) target = $region32
    $region31: #{block_forward.8} parent=5 // pred_region
      %s142 = ssub.s32 %s9, 1
      %p143 = scmp.lt.s32.totalorder %s14, 1
      %s144 = scalar_select %p143, %s14, 1
      %s145 = smul.addr %s144, 48
      %s146 = smul.addr %s145, 4
      %s147 = scalar_lea.vmem %s0, %s146
      %p148 = pneg %p35
      %p149 = pneg %p32
      %p150 = pneg %p56
      %p151 = pneg %p53
      %p152 = pneg %p77
      %p153 = pneg %p74
      %p154 = pneg %p103
      %p155 = pneg %p100
      %p156 = scmp.lt.s32.totalorder %s14, 1
      %s157 = scalar_select %p156, %s14, 1
      %s158 = smul.addr %s157, 10
      %s159 = smul.addr %s158, 4
      %s160 = scalar_lea.vmem %s3, %s159
      %p161 = scmp.lt.s32.totalorder %s14, 1
      %s162 = scalar_select %p161, %s14, 1
      %s163 = smul.addr %s162, 48
      %s164 = smul.addr %s163, 4
      %s165 = scalar_lea.vmem %s0, %s164
      %p166 = scmp.lt.s32.totalorder %s14, 1
      %s167 = scalar_select %p166, %s14, 1
      %s168 = smul.addr %s167, 10
      %s169 = smul.addr %s168, 4
      %s170 = scalar_lea.vmem %s3, %s169
      %v172 = vld [vmem:[%s165] sm:$0xf]
      %v173 = vld [vmem:[%s165 + $0x4] sm:$0xf]
      %v174 = vld [vmem:[%s165 + $0x8] sm:$0xf]
      %v175 = vld [vmem:[%s165 + $0xc] sm:$0xf]
      %v176 = vld [vmem:[%s165 + $0x10] sm:$0xf]
      %v177 = vld [vmem:[%s165 + $0x14] sm:$0xf]
      %v178 = vld [vmem:[%s165 + $0x18] sm:$0xf]
      %v179 = vld [vmem:[%s165 + $0x1c] sm:$0xf]
      %v180 = vld [vmem:[%s165 + $0x20] sm:$0xf]
      %v181 = vld [vmem:[%s165 + $0x24] sm:$0xf]
      %v182 = vld [vmem:[%s1] sm:$0xf]
      %s183 = scalar_lea.vmem %s165, 48
      %v184 = vld [vmem:[%s183] sm:$0xf]
      %v185 = vld [vmem:[%s183 + $0x4] sm:$0xf]
      %v186 = vld [vmem:[%s183 + $0x8] sm:$0xf]
      %v187 = vld [vmem:[%s183 + $0xc] sm:$0xf]
      %v188 = vld [vmem:[%s183 + $0x10] sm:$0xf]
      %v189 = vld [vmem:[%s183 + $0x14] sm:$0xf]
      %v190 = vld [vmem:[%s183 + $0x18] sm:$0xf]
      %v191 = vld [vmem:[%s183 + $0x1c] sm:$0xf]
      %v192 = vld [vmem:[%s183 + $0x20] sm:$0xf]
      %v193 = vld [vmem:[%s183 + $0x24] sm:$0xf]
      %s194 = scalar_lea.vmem %s1, 4
      %v195 = vld [vmem:[%s194] sm:$0xf]
      %v206 = vunpack.c.l.b16 %v184
      %v207 = vunpack.c.l.b16 %v185
      %v208 = vunpack.c.l.b16 %v186
      %v209 = vunpack.c.l.b16 %v187
      %v210 = vunpack.c.l.b16 %v188
      %v211 = vunpack.c.l.b16 %v189
      %v212 = vunpack.c.l.b16 %v190
      %v213 = vunpack.c.l.b16 %v191
      %v214 = vunpack.c.l.b16 %v192
      %v215 = vunpack.c.l.b16 %v193
      %v216 = vpack.c.b16 %v207, %v206
      %v217 = vpack.c.b16 %v209, %v208
      %v218 = vpack.c.b16 %v211, %v210
      %v219 = vpack.c.b16 %v213, %v212
      %v220 = vpack.c.b16 %v215, %v214
      %vm221 = vcmask 64512
      %v223 = vsel %vm221, %v216, 0
      %v226 = vsel %vm221, %v217, 0
      %v229 = vsel %vm221, %v218, 0
      %v232 = vsel %vm221, %v219, 0
      %v235 = vsel %vm221, %v220, 0
      %vm237 = vcmask 1043456
      %v239 = vsel %vm237, %v195, 0
      %241 = vmatprep.subr.bf16.mxu0 0
      %242 = vmatpush1.bf16.msra.mxu0 %v239
      %243 = vmatprep.subr.bf16.mxu0 0
      %244 = vmatpush1.bf16.msra.mxu0 0
      %245 = vmatprep.subr.bf16.mxu0 0
      %246 = vmatpush1.bf16.msra.mxu0 0
      %247 = vmatprep.subr.bf16.mxu0 0
      %248 = vmatpush1.bf16.msra.mxu0 0
      %249 = vmatprep.subr.bf16.mxu0 0
      %250 = vmatpush1.bf16.msra.mxu0 0
      %251 = vmatprep.subr.bf16.mxu0 0
      %252 = vmatpush1.bf16.msra.mxu0 0
      %253 = vmatprep.subr.bf16.mxu0 0
      %254 = vmatpush1.bf16.msra.mxu0 0
      %255 = vmatprep.subr.bf16.mxu0 0
      %256 = vmatpush1.bf16.msra.mxu0 0
      %257 = vmatprep.subr.bf16.mxu0 0
      %258 = vmatpush1.bf16.msra.mxu0 0
      %259 = vmatprep.subr.bf16.mxu0 0
      %260 = vmatpush1.bf16.msra.mxu0 0
      %261 = vmatprep.subr.bf16.mxu0 0
      %262 = vmatpush1.bf16.msra.mxu0 0
      %263 = vmatprep.subr.bf16.mxu0 0
      %264 = vmatpush1.bf16.msra.mxu0 0
      %265 = vmatprep.subr.bf16.mxu0 0
      %266 = vmatpush1.bf16.msra.mxu0 0
      %267 = vmatprep.subr.bf16.mxu0 0
      %268 = vmatpush1.bf16.msra.mxu0 0
      %269 = vmatprep.subr.bf16.mxu0 0
      %270 = vmatpush1.bf16.msra.mxu0 0
      %271 = vmatprep.subr.bf16.mxu0 0
      %272 = vmatpush1.bf16.msra.mxu0 0
      %273 = vmatprep.mubr.bf16.mxu0 0
      %274 = vmatmul.mubr.bf16.gmra.mrb[0].mxu0 %v223
      %v275 = vpop.f32.mrb[0].mxu0
      %v276 = vadd.f32 0.0, %v275
      %v277 = vpop.f32.mrb[0].mxu0
      %v278 = vpop.f32.mrb[0].mxu0
      %v279 = vadd.f32 0.0, %v278
      %v280 = vpop.f32.mrb[0].mxu0
      %281 = vmatprep.mubr.bf16.mxu0 0
      %282 = vmatmul.mubr.bf16.gmra.mrb[0].mxu0 %v226
      %v283 = vpop.f32.mrb[0].mxu0
      %v284 = vadd.f32 0.0, %v283
      %v285 = vpop.f32.mrb[0].mxu0
      %v286 = vpop.f32.mrb[0].mxu0
      %v287 = vadd.f32 0.0, %v286
      %v288 = vpop.f32.mrb[0].mxu0
      %289 = vmatprep.mubr.bf16.mxu0 0
      %290 = vmatmul.mubr.bf16.gmra.mrb[0].mxu0 %v229
      %v291 = vpop.f32.mrb[0].mxu0
      %v292 = vadd.f32 0.0, %v291
      %v293 = vpop.f32.mrb[0].mxu0
      %v294 = vpop.f32.mrb[0].mxu0
      %v295 = vadd.f32 0.0, %v294
      %v296 = vpop.f32.mrb[0].mxu0
      %297 = vmatprep.mubr.bf16.mxu0 0
      %298 = vmatmul.mubr.bf16.gmra.mrb[0].mxu0 %v232
      %v299 = vpop.f32.mrb[0].mxu0
      %v300 = vadd.f32 0.0, %v299
      %v301 = vpop.f32.mrb[0].mxu0
      %v302 = vpop.f32.mrb[0].mxu0
      %v303 = vadd.f32 0.0, %v302
      %v304 = vpop.f32.mrb[0].mxu0
      %305 = vmatprep.mubr.bf16.mxu0 0
      %306 = vmatmul.mubr.bf16.gmra.mrb[0].mxu0 %v235
      %v307 = vpop.f32.mrb[0].mxu0
      %v308 = vadd.f32 0.0, %v307
      %v309 = vpop.f32.mrb[0].mxu0
      %v310 = vpop.f32.mrb[0].mxu0
      %v311 = vadd.f32 0.0, %v310
      %v312 = vpop.f32.mrb[0].mxu0
      %313 = vdwg.mxu0
      %v324 = vunpack.c.l.b16 %v172
      %v325 = vunpack.c.l.b16 %v173
      %v326 = vunpack.c.l.b16 %v174
      %v327 = vunpack.c.l.b16 %v175
      %v328 = vunpack.c.l.b16 %v176
      %v329 = vunpack.c.l.b16 %v177
      %v330 = vunpack.c.l.b16 %v178
      %v331 = vunpack.c.l.b16 %v179
      %v332 = vunpack.c.l.b16 %v180
      %v333 = vunpack.c.l.b16 %v181
      %v334 = vpack.c.b16 %v325, %v324
      %v335 = vpack.c.b16 %v327, %v326
      %v336 = vpack.c.b16 %v329, %v328
      %v337 = vpack.c.b16 %v331, %v330
      %v338 = vpack.c.b16 %v333, %v332
      %v340 = vsel %vm221, %v334, 0
      %v343 = vsel %vm221, %v335, 0
      %v346 = vsel %vm221, %v336, 0
      %v349 = vsel %vm221, %v337, 0
      %v352 = vsel %vm221, %v338, 0
      %v355 = vsel %vm237, %v182, 0
      %357 = vmatprep.subr.bf16.mxu0 0
      %358 = vmatpush1.bf16.msra.mxu0 %v355
      %359 = vmatprep.subr.bf16.mxu0 0
      %360 = vmatpush1.bf16.msra.mxu0 0
      %361 = vmatprep.subr.bf16.mxu0 0
      %362 = vmatpush1.bf16.msra.mxu0 0
      %363 = vmatprep.subr.bf16.mxu0 0
      %364 = vmatpush1.bf16.msra.mxu0 0
      %365 = vmatprep.subr.bf16.mxu0 0
      %366 = vmatpush1.bf16.msra.mxu0 0
      %367 = vmatprep.subr.bf16.mxu0 0
      %368 = vmatpush1.bf16.msra.mxu0 0
      %369 = vmatprep.subr.bf16.mxu0 0
      %370 = vmatpush1.bf16.msra.mxu0 0
      %371 = vmatprep.subr.bf16.mxu0 0
      %372 = vmatpush1.bf16.msra.mxu0 0
      %373 = vmatprep.subr.bf16.mxu0 0
      %374 = vmatpush1.bf16.msra.mxu0 0
      %375 = vmatprep.subr.bf16.mxu0 0
      %376 = vmatpush1.bf16.msra.mxu0 0
      %377 = vmatprep.subr.bf16.mxu0 0
      %378 = vmatpush1.bf16.msra.mxu0 0
      %379 = vmatprep.subr.bf16.mxu0 0
      %380 = vmatpush1.bf16.msra.mxu0 0
      %381 = vmatprep.subr.bf16.mxu0 0
      %382 = vmatpush1.bf16.msra.mxu0 0
      %383 = vmatprep.subr.bf16.mxu0 0
      %384 = vmatpush1.bf16.msra.mxu0 0
      %385 = vmatprep.subr.bf16.mxu0 0
      %386 = vmatpush1.bf16.msra.mxu0 0
      %387 = vmatprep.subr.bf16.mxu0 0
      %388 = vmatpush1.bf16.msra.mxu0 0
      %389 = vmatprep.mubr.bf16.mxu0 0
      %390 = vmatmul.mubr.bf16.gmra.mrb[0].mxu0 %v340
      %v391 = vpop.f32.mrb[0].mxu0
      %v392 = vadd.f32 %v276, %v391
      %v393 = vpop.f32.mrb[0].mxu0
      %v394 = vpop.f32.mrb[0].mxu0
      %v395 = vadd.f32 %v279, %v394
      %v396 = vpop.f32.mrb[0].mxu0
      %397 = vmatprep.mubr.bf16.mxu0 0
      %398 = vmatmul.mubr.bf16.gmra.mrb[0].mxu0 %v343
      %v399 = vpop.f32.mrb[0].mxu0
      %v400 = vadd.f32 %v284, %v399
      %v401 = vpop.f32.mrb[0].mxu0
      %v402 = vpop.f32.mrb[0].mxu0
      %v403 = vadd.f32 %v287, %v402
      %v404 = vpop.f32.mrb[0].mxu0
      %405 = vmatprep.mubr.bf16.mxu0 0
      %406 = vmatmul.mubr.bf16.gmra.mrb[0].mxu0 %v346
      %v407 = vpop.f32.mrb[0].mxu0
      %v408 = vadd.f32 %v292, %v407
      %v409 = vpop.f32.mrb[0].mxu0
      %v410 = vpop.f32.mrb[0].mxu0
      %v411 = vadd.f32 %v295, %v410
      %v412 = vpop.f32.mrb[0].mxu0
      %413 = vmatprep.mubr.bf16.mxu0 0
      %414 = vmatmul.mubr.bf16.gmra.mrb[0].mxu0 %v349
      %v415 = vpop.f32.mrb[0].mxu0
      %v416 = vadd.f32 %v300, %v415
      %v417 = vpop.f32.mrb[0].mxu0
      %v418 = vpop.f32.mrb[0].mxu0
      %v419 = vadd.f32 %v303, %v418
      %v420 = vpop.f32.mrb[0].mxu0
      %421 = vmatprep.mubr.bf16.mxu0 0
      %422 = vmatmul.mubr.bf16.gmra.mrb[0].mxu0 %v352
      %v423 = vpop.f32.mrb[0].mxu0
      %v424 = vadd.f32 %v308, %v423
      %v425 = vpop.f32.mrb[0].mxu0
      %v426 = vpop.f32.mrb[0].mxu0
      %v427 = vadd.f32 %v311, %v426
      %v428 = vpop.f32.mrb[0].mxu0
      %429 = vdwg.mxu0
      %v430 = vld [vmem:[%s165] sm:$0xf]
      %v431 = vld [vmem:[%s165 + $0x4] sm:$0xf]
      %v432 = vld [vmem:[%s165 + $0x8] sm:$0xf]
      %v433 = vld [vmem:[%s165 + $0xc] sm:$0xf]
      %v434 = vld [vmem:[%s165 + $0x10] sm:$0xf]
      %v435 = vld [vmem:[%s165 + $0x14] sm:$0xf]
      %v436 = vld [vmem:[%s165 + $0x18] sm:$0xf]
      %v437 = vld [vmem:[%s165 + $0x1c] sm:$0xf]
      %v438 = vld [vmem:[%s165 + $0x20] sm:$0xf]
      %v439 = vld [vmem:[%s165 + $0x24] sm:$0xf]
      %v440 = vld [vmem:[%s165 + $0x28] sm:$0x1]
      %s441 = scalar_lea.vmem %s1, 8
      %v442 = vld [vmem:[%s441] sm:$0xf]
      %v454 = vunpack.c.l.b16 %v430
      %v455 = vunpack.c.l.b16 %v431
      %v456 = vunpack.c.l.b16 %v432
      %v457 = vunpack.c.l.b16 %v433
      %v458 = vunpack.c.l.b16 %v434
      %v459 = vunpack.c.l.b16 %v435
      %v460 = vunpack.c.l.b16 %v436
      %v461 = vunpack.c.l.b16 %v437
      %v462 = vunpack.c.l.b16 %v438
      %v463 = vunpack.c.l.b16 %v439
      %v464 = vunpack.c.l.b16 %v440
      %v465 = vpack.c.b16 %v455, %v454
      %v466 = vpack.c.b16 %v457, %v456
      %v467 = vpack.c.b16 %v459, %v458
      %v468 = vpack.c.b16 %v461, %v460
      %v469 = vpack.c.b16 %v463, %v462
      %v470 = vpack.c.b16 %v464, %v464
      %vm471 = vsmask.f32 7424
      %v473 = vshrl.u32 %v465, 16
      %v475 = vshll.u32 %v465, 16
      %v477 = vrot.slane %v475, 1
      %v478 = vor.u32 %v473, %v477
      %v480 = vshll.u32 %v466, 16
      %v482 = vrot.slane %v480, 1
      %v483 = vsel %vm471, %v478, %v482
      %v484 = vshrl.u32 %v466, 16
      %v486 = vor.u32 %v484, %v482
      %v488 = vshll.u32 %v467, 16
      %v490 = vrot.slane %v488, 1
      %v491 = vsel %vm471, %v486, %v490
      %v492 = vshrl.u32 %v467, 16
      %v494 = vor.u32 %v492, %v490
      %v496 = vshll.u32 %v468, 16
      %v498 = vrot.slane %v496, 1
      %v499 = vsel %vm471, %v494, %v498
      %v500 = vshrl.u32 %v468, 16
      %v502 = vor.u32 %v500, %v498
      %v504 = vshll.u32 %v469, 16
      %v506 = vrot.slane %v504, 1
      %v507 = vsel %vm471, %v502, %v506
      %v508 = vshrl.u32 %v469, 16
      %v510 = vor.u32 %v508, %v506
      %v512 = vshll.u32 %v470, 16
      %v514 = vrot.slane %v512, 1
      %v515 = vsel %vm471, %v510, %v514
      %v517 = vsel %vm221, %v483, 0
      %v520 = vsel %vm221, %v491, 0
      %v523 = vsel %vm221, %v499, 0
      %v526 = vsel %vm221, %v507, 0
      %v529 = vsel %vm221, %v515, 0
      %v532 = vsel %vm237, %v442, 0
      %534 = vmatprep.subr.bf16.mxu0 0
      %535 = vmatpush1.bf16.msra.mxu0 %v532
      %536 = vmatprep.subr.bf16.mxu0 0
      %537 = vmatpush1.bf16.msra.mxu0 0
      %538 = vmatprep.subr.bf16.mxu0 0
      %539 = vmatpush1.bf16.msra.mxu0 0
      %540 = vmatprep.subr.bf16.mxu0 0
      %541 = vmatpush1.bf16.msra.mxu0 0
      %542 = vmatprep.subr.bf16.mxu0 0
      %543 = vmatpush1.bf16.msra.mxu0 0
      %544 = vmatprep.subr.bf16.mxu0 0
      %545 = vmatpush1.bf16.msra.mxu0 0
      %546 = vmatprep.subr.bf16.mxu0 0
      %547 = vmatpush1.bf16.msra.mxu0 0
      %548 = vmatprep.subr.bf16.mxu0 0
      %549 = vmatpush1.bf16.msra.mxu0 0
      %550 = vmatprep.subr.bf16.mxu0 0
      %551 = vmatpush1.bf16.msra.mxu0 0
      %552 = vmatprep.subr.bf16.mxu0 0
      %553 = vmatpush1.bf16.msra.mxu0 0
      %554 = vmatprep.subr.bf16.mxu0 0
      %555 = vmatpush1.bf16.msra.mxu0 0
      %556 = vmatprep.subr.bf16.mxu0 0
      %557 = vmatpush1.bf16.msra.mxu0 0
      %558 = vmatprep.subr.bf16.mxu0 0
      %559 = vmatpush1.bf16.msra.mxu0 0
      %560 = vmatprep.subr.bf16.mxu0 0
      %561 = vmatpush1.bf16.msra.mxu0 0
      %562 = vmatprep.subr.bf16.mxu0 0
      %563 = vmatpush1.bf16.msra.mxu0 0
      %564 = vmatprep.subr.bf16.mxu0 0
      %565 = vmatpush1.bf16.msra.mxu0 0
      %566 = vmatprep.mubr.bf16.mxu0 0
      %567 = vmatmul.mubr.bf16.gmra.mrb[0].mxu0 %v517
      %v568 = vpop.f32.mrb[0].mxu0
      %v569 = vadd.f32 0.0, %v568
      %v570 = vpop.f32.mrb[0].mxu0
      %v571 = vpop.f32.mrb[0].mxu0
      %v572 = vadd.f32 0.0, %v571
      %v573 = vpop.f32.mrb[0].mxu0
      %574 = vmatprep.mubr.bf16.mxu0 0
      %575 = vmatmul.mubr.bf16.gmra.mrb[0].mxu0 %v520
      %v576 = vpop.f32.mrb[0].mxu0
      %v577 = vadd.f32 0.0, %v576
      %v578 = vpop.f32.mrb[0].mxu0
      %v579 = vpop.f32.mrb[0].mxu0
      %v580 = vadd.f32 0.0, %v579
      %v581 = vpop.f32.mrb[0].mxu0
      %582 = vmatprep.mubr.bf16.mxu0 0
      %583 = vmatmul.mubr.bf16.gmra.mrb[0].mxu0 %v523
      %v584 = vpop.f32.mrb[0].mxu0
      %v585 = vadd.f32 0.0, %v584
      %v586 = vpop.f32.mrb[0].mxu0
      %v587 = vpop.f32.mrb[0].mxu0
      %v588 = vadd.f32 0.0, %v587
      %v589 = vpop.f32.mrb[0].mxu0
      %590 = vmatprep.mubr.bf16.mxu0 0
      %591 = vmatmul.mubr.bf16.gmra.mrb[0].mxu0 %v526
      %v592 = vpop.f32.mrb[0].mxu0
      %v593 = vadd.f32 0.0, %v592
      %v594 = vpop.f32.mrb[0].mxu0
      %v595 = vpop.f32.mrb[0].mxu0
      %v596 = vadd.f32 0.0, %v595
      %v597 = vpop.f32.mrb[0].mxu0
      %598 = vmatprep.mubr.bf16.mxu0 0
      %599 = vmatmul.mubr.bf16.gmra.mrb[0].mxu0 %v529
      %v600 = vpop.f32.mrb[0].mxu0
      %v601 = vadd.f32 0.0, %v600
      %v602 = vpop.f32.mrb[0].mxu0
      %v603 = vpop.f32.mrb[0].mxu0
      %v604 = vadd.f32 0.0, %v603
      %v605 = vpop.f32.mrb[0].mxu0
      %606 = vdwg.mxu0
      %v607 = vadd.f32 %v392, %v569
      %v608 = vadd.f32 %v395, %v572
      %v609 = vadd.f32 %v400, %v577
      %v610 = vadd.f32 %v403, %v580
      %v611 = vadd.f32 %v408, %v585
      %v612 = vadd.f32 %v411, %v588
      %v613 = vadd.f32 %v416, %v593
      %v614 = vadd.f32 %v419, %v596
      %v615 = vadd.f32 %v424, %v601
      %v616 = vadd.f32 %v427, %v604
      %s617 = scalar_lea.vmem %s165, 96
      %v618 = vld [vmem:[%s617] sm:$0xf]
      %v619 = vld [vmem:[%s617 + $0x4] sm:$0xf]
      %v620 = vld [vmem:[%s617 + $0x8] sm:$0xf]
      %v621 = vld [vmem:[%s617 + $0xc] sm:$0xf]
      %v622 = vld [vmem:[%s617 + $0x10] sm:$0xf]
      %v623 = vld [vmem:[%s617 + $0x14] sm:$0xf]
      %v624 = vld [vmem:[%s617 + $0x18] sm:$0xf]
      %v625 = vld [vmem:[%s617 + $0x1c] sm:$0xf]
      %v626 = vld [vmem:[%s617 + $0x20] sm:$0xf]
      %v627 = vld [vmem:[%s617 + $0x24] sm:$0xf]
      %s628 = scalar_lea.vmem %s1, 12
      %v629 = vld [vmem:[%s628] sm:$0xf]
      %v640 = vunpack.c.l.b16 %v618
      %v641 = vunpack.c.l.b16 %v619
      %v642 = vunpack.c.l.b16 %v620
      %v643 = vunpack.c.l.b16 %v621
      %v644 = vunpack.c.l.b16 %v622
      %v645 = vunpack.c.l.b16 %v623
      %v646 = vunpack.c.l.b16 %v624
      %v647 = vunpack.c.l.b16 %v625
      %v648 = vunpack.c.l.b16 %v626
      %v649 = vunpack.c.l.b16 %v627
      %v650 = vpack.c.b16 %v641, %v640
      %v651 = vpack.c.b16 %v643, %v642
      %v652 = vpack.c.b16 %v645, %v644
      %v653 = vpack.c.b16 %v647, %v646
      %v654 = vpack.c.b16 %v649, %v648
      %v656 = vsel %vm221, %v650, 0
      %v659 = vsel %vm221, %v651, 0
      %v662 = vsel %vm221, %v652, 0
      %v665 = vsel %vm221, %v653, 0
      %v668 = vsel %vm221, %v654, 0
      %v671 = vsel %vm237, %v629, 0
      %673 = vmatprep.subr.bf16.mxu0 0
      %674 = vmatpush1.bf16.msra.mxu0 %v671
      %675 = vmatprep.subr.bf16.mxu0 0
      %676 = vmatpush1.bf16.msra.mxu0 0
      %677 = vmatprep.subr.bf16.mxu0 0
      %678 = vmatpush1.bf16.msra.mxu0 0
      %679 = vmatprep.subr.bf16.mxu0 0
      %680 = vmatpush1.bf16.msra.mxu0 0
      %681 = vmatprep.subr.bf16.mxu0 0
      %682 = vmatpush1.bf16.msra.mxu0 0
      %683 = vmatprep.subr.bf16.mxu0 0
      %684 = vmatpush1.bf16.msra.mxu0 0
      %685 = vmatprep.subr.bf16.mxu0 0
      %686 = vmatpush1.bf16.msra.mxu0 0
      %687 = vmatprep.subr.bf16.mxu0 0
      %688 = vmatpush1.bf16.msra.mxu0 0
      %689 = vmatprep.subr.bf16.mxu0 0
      %690 = vmatpush1.bf16.msra.mxu0 0
      %691 = vmatprep.subr.bf16.mxu0 0
      %692 = vmatpush1.bf16.msra.mxu0 0
      %693 = vmatprep.subr.bf16.mxu0 0
      %694 = vmatpush1.bf16.msra.mxu0 0
      %695 = vmatprep.subr.bf16.mxu0 0
      %696 = vmatpush1.bf16.msra.mxu0 0
      %697 = vmatprep.subr.bf16.mxu0 0
      %698 = vmatpush1.bf16.msra.mxu0 0
      %699 = vmatprep.subr.bf16.mxu0 0
      %700 = vmatpush1.bf16.msra.mxu0 0
      %701 = vmatprep.subr.bf16.mxu0 0
      %702 = vmatpush1.bf16.msra.mxu0 0
      %703 = vmatprep.subr.bf16.mxu0 0
      %704 = vmatpush1.bf16.msra.mxu0 0
      %705 = vmatprep.mubr.bf16.mxu0 0
      %706 = vmatmul.mubr.bf16.gmra.mrb[0].mxu0 %v656
      %v707 = vpop.f32.mrb[0].mxu0
      %v708 = vadd.f32 0.0, %v707
      %v709 = vpop.f32.mrb[0].mxu0
      %v710 = vpop.f32.mrb[0].mxu0
      %v711 = vadd.f32 0.0, %v710
      %v712 = vpop.f32.mrb[0].mxu0
      %713 = vmatprep.mubr.bf16.mxu0 0
      %714 = vmatmul.mubr.bf16.gmra.mrb[0].mxu0 %v659
      %v715 = vpop.f32.mrb[0].mxu0
      %v716 = vadd.f32 0.0, %v715
      %v717 = vpop.f32.mrb[0].mxu0
      %v718 = vpop.f32.mrb[0].mxu0
      %v719 = vadd.f32 0.0, %v718
      %v720 = vpop.f32.mrb[0].mxu0
      %721 = vmatprep.mubr.bf16.mxu0 0
      %722 = vmatmul.mubr.bf16.gmra.mrb[0].mxu0 %v662
      %v723 = vpop.f32.mrb[0].mxu0
      %v724 = vadd.f32 0.0, %v723
      %v725 = vpop.f32.mrb[0].mxu0
      %v726 = vpop.f32.mrb[0].mxu0
      %v727 = vadd.f32 0.0, %v726
      %v728 = vpop.f32.mrb[0].mxu0
      %729 = vmatprep.mubr.bf16.mxu0 0
      %730 = vmatmul.mubr.bf16.gmra.mrb[0].mxu0 %v665
      %v731 = vpop.f32.mrb[0].mxu0
      %v732 = vadd.f32 0.0, %v731
      %v733 = vpop.f32.mrb[0].mxu0
      %v734 = vpop.f32.mrb[0].mxu0
      %v735 = vadd.f32 0.0, %v734
      %v736 = vpop.f32.mrb[0].mxu0
      %737 = vmatprep.mubr.bf16.mxu0 0
      %738 = vmatmul.mubr.bf16.gmra.mrb[0].mxu0 %v668
      %v739 = vpop.f32.mrb[0].mxu0
      %v740 = vadd.f32 0.0, %v739
      %v741 = vpop.f32.mrb[0].mxu0
      %v742 = vpop.f32.mrb[0].mxu0
      %v743 = vadd.f32 0.0, %v742
      %v744 = vpop.f32.mrb[0].mxu0
      %745 = vdwg.mxu0
      %v746 = vadd.f32 %v607, %v708
      %v747 = vadd.f32 %v608, %v711
      %v748 = vadd.f32 %v609, %v716
      %v749 = vadd.f32 %v610, %v719
      %v750 = vadd.f32 %v611, %v724
      %v751 = vadd.f32 %v612, %v727
      %v752 = vadd.f32 %v613, %v732
      %v753 = vadd.f32 %v614, %v735
      %v754 = vadd.f32 %v615, %v740
      %v755 = vadd.f32 %v616, %v743
      %s756 = scalar_lea.vmem %s165, 144
      %v757 = vld [vmem:[%s756] sm:$0xf]
      %v758 = vld [vmem:[%s756 + $0x4] sm:$0xf]
      %v759 = vld [vmem:[%s756 + $0x8] sm:$0xf]
      %v760 = vld [vmem:[%s756 + $0xc] sm:$0xf]
      %v761 = vld [vmem:[%s756 + $0x10] sm:$0xf]
      %v762 = vld [vmem:[%s756 + $0x14] sm:$0xf]
      %v763 = vld [vmem:[%s756 + $0x18] sm:$0xf]
      %v764 = vld [vmem:[%s756 + $0x1c] sm:$0xf]
      %v765 = vld [vmem:[%s756 + $0x20] sm:$0xf]
      %v766 = vld [vmem:[%s756 + $0x24] sm:$0xf]
      %s767 = scalar_lea.vmem %s1, 16
      %v768 = vld [vmem:[%s767] sm:$0xf]
      %v779 = vunpack.c.l.b16 %v757
      %v780 = vunpack.c.l.b16 %v758
      %v781 = vunpack.c.l.b16 %v759
      %v782 = vunpack.c.l.b16 %v760
      %v783 = vunpack.c.l.b16 %v761
      %v784 = vunpack.c.l.b16 %v762
      %v785 = vunpack.c.l.b16 %v763
      %v786 = vunpack.c.l.b16 %v764
      %v787 = vunpack.c.l.b16 %v765
      %v788 = vunpack.c.l.b16 %v766
      %v789 = vpack.c.b16 %v780, %v779
      %v790 = vpack.c.b16 %v782, %v781
      %v791 = vpack.c.b16 %v784, %v783
      %v792 = vpack.c.b16 %v786, %v785
      %v793 = vpack.c.b16 %v788, %v787
      %v795 = vsel %vm221, %v789, 0
      %v798 = vsel %vm221, %v790, 0
      %v801 = vsel %vm221, %v791, 0
      %v804 = vsel %vm221, %v792, 0
      %v807 = vsel %vm221, %v793, 0
      %v810 = vsel %vm237, %v768, 0
      %812 = vmatprep.subr.bf16.mxu0 0
      %813 = vmatpush1.bf16.msra.mxu0 %v810
      %814 = vmatprep.subr.bf16.mxu0 0
      %815 = vmatpush1.bf16.msra.mxu0 0
      %816 = vmatprep.subr.bf16.mxu0 0
      %817 = vmatpush1.bf16.msra.mxu0 0
      %818 = vmatprep.subr.bf16.mxu0 0
      %819 = vmatpush1.bf16.msra.mxu0 0
      %820 = vmatprep.subr.bf16.mxu0 0
      %821 = vmatpush1.bf16.msra.mxu0 0
      %822 = vmatprep.subr.bf16.mxu0 0
      %823 = vmatpush1.bf16.msra.mxu0 0
      %824 = vmatprep.subr.bf16.mxu0 0
      %825 = vmatpush1.bf16.msra.mxu0 0
      %826 = vmatprep.subr.bf16.mxu0 0
      %827 = vmatpush1.bf16.msra.mxu0 0
      %828 = vmatprep.subr.bf16.mxu0 0
      %829 = vmatpush1.bf16.msra.mxu0 0
      %830 = vmatprep.subr.bf16.mxu0 0
      %831 = vmatpush1.bf16.msra.mxu0 0
      %832 = vmatprep.subr.bf16.mxu0 0
      %833 = vmatpush1.bf16.msra.mxu0 0
      %834 = vmatprep.subr.bf16.mxu0 0
      %835 = vmatpush1.bf16.msra.mxu0 0
      %836 = vmatprep.subr.bf16.mxu0 0
      %837 = vmatpush1.bf16.msra.mxu0 0
      %838 = vmatprep.subr.bf16.mxu0 0
      %839 = vmatpush1.bf16.msra.mxu0 0
      %840 = vmatprep.subr.bf16.mxu0 0
      %841 = vmatpush1.bf16.msra.mxu0 0
      %842 = vmatprep.subr.bf16.mxu0 0
      %843 = vmatpush1.bf16.msra.mxu0 0
      %844 = vmatprep.mubr.bf16.mxu0 0
      %845 = vmatmul.mubr.bf16.gmra.mrb[0].mxu0 %v795
      %v846 = vpop.f32.mrb[0].mxu0
      %v847 = vadd.f32 0.0, %v846
      %v848 = vpop.f32.mrb[0].mxu0
      %v849 = vpop.f32.mrb[0].mxu0
      %v850 = vadd.f32 0.0, %v849
      %v851 = vpop.f32.mrb[0].mxu0
      %852 = vmatprep.mubr.bf16.mxu0 0
      %853 = vmatmul.mubr.bf16.gmra.mrb[0].mxu0 %v798
      %v854 = vpop.f32.mrb[0].mxu0
      %v855 = vadd.f32 0.0, %v854
      %v856 = vpop.f32.mrb[0].mxu0
      %v857 = vpop.f32.mrb[0].mxu0
      %v858 = vadd.f32 0.0, %v857
      %v859 = vpop.f32.mrb[0].mxu0
      %860 = vmatprep.mubr.bf16.mxu0 0
      %861 = vmatmul.mubr.bf16.gmra.mrb[0].mxu0 %v801
      %v862 = vpop.f32.mrb[0].mxu0
      %v863 = vadd.f32 0.0, %v862
      %v864 = vpop.f32.mrb[0].mxu0
      %v865 = vpop.f32.mrb[0].mxu0
      %v866 = vadd.f32 0.0, %v865
      %v867 = vpop.f32.mrb[0].mxu0
      %868 = vmatprep.mubr.bf16.mxu0 0
      %869 = vmatmul.mubr.bf16.gmra.mrb[0].mxu0 %v804
      %v870 = vpop.f32.mrb[0].mxu0
      %v871 = vadd.f32 0.0, %v870
      %v872 = vpop.f32.mrb[0].mxu0
      %v873 = vpop.f32.mrb[0].mxu0
      %v874 = vadd.f32 0.0, %v873
      %v875 = vpop.f32.mrb[0].mxu0
      %876 = vmatprep.mubr.bf16.mxu0 0
      %877 = vmatmul.mubr.bf16.gmra.mrb[0].mxu0 %v807
      %v878 = vpop.f32.mrb[0].mxu0
      %v879 = vadd.f32 0.0, %v878
      %v880 = vpop.f32.mrb[0].mxu0
      %v881 = vpop.f32.mrb[0].mxu0
      %v882 = vadd.f32 0.0, %v881
      %v883 = vpop.f32.mrb[0].mxu0
      %884 = vdwg.mxu0
      %v885 = vadd.f32 %v746, %v847
      %v886 = vadd.f32 %v747, %v850
      %v887 = vadd.f32 %v748, %v855
      %v888 = vadd.f32 %v749, %v858
      %v889 = vadd.f32 %v750, %v863
      %v890 = vadd.f32 %v751, %v866
      %v891 = vadd.f32 %v752, %v871
      %v892 = vadd.f32 %v753, %v874
      %v893 = vadd.f32 %v754, %v879
      %v894 = vadd.f32 %v755, %v882
      %v895 = vld [vmem:[%s617] sm:$0xf]
      %v896 = vld [vmem:[%s617 + $0x4] sm:$0xf]
      %v897 = vld [vmem:[%s617 + $0x8] sm:$0xf]
      %v898 = vld [vmem:[%s617 + $0xc] sm:$0xf]
      %v899 = vld [vmem:[%s617 + $0x10] sm:$0xf]
      %v900 = vld [vmem:[%s617 + $0x14] sm:$0xf]
      %v901 = vld [vmem:[%s617 + $0x18] sm:$0xf]
      %v902 = vld [vmem:[%s617 + $0x1c] sm:$0xf]
      %v903 = vld [vmem:[%s617 + $0x20] sm:$0xf]
      %v904 = vld [vmem:[%s617 + $0x24] sm:$0xf]
      %v905 = vld [vmem:[%s617 + $0x28] sm:$0x1]
      %s906 = scalar_lea.vmem %s1, 20
      %v907 = vld [vmem:[%s906] sm:$0xf]
      %v919 = vunpack.c.l.b16 %v895
      %v920 = vunpack.c.l.b16 %v896
      %v921 = vunpack.c.l.b16 %v897
      %v922 = vunpack.c.l.b16 %v898
      %v923 = vunpack.c.l.b16 %v899
      %v924 = vunpack.c.l.b16 %v900
      %v925 = vunpack.c.l.b16 %v901
      %v926 = vunpack.c.l.b16 %v902
      %v927 = vunpack.c.l.b16 %v903
      %v928 = vunpack.c.l.b16 %v904
      %v929 = vunpack.c.l.b16 %v905
      %v930 = vpack.c.b16 %v920, %v919
      %v931 = vpack.c.b16 %v922, %v921
      %v932 = vpack.c.b16 %v924, %v923
      %v933 = vpack.c.b16 %v926, %v925
      %v934 = vpack.c.b16 %v928, %v927
      %v935 = vpack.c.b16 %v929, %v929
      %v937 = vshrl.u32 %v930, 16
      %v939 = vshll.u32 %v930, 16
      %v941 = vrot.slane %v939, 1
      %v942 = vor.u32 %v937, %v941
      %v944 = vshll.u32 %v931, 16
      %v946 = vrot.slane %v944, 1
      %v947 = vsel %vm471, %v942, %v946
      %v948 = vshrl.u32 %v931, 16
      %v950 = vor.u32 %v948, %v946
      %v952 = vshll.u32 %v932, 16
      %v954 = vrot.slane %v952, 1
      %v955 = vsel %vm471, %v950, %v954
      %v956 = vshrl.u32 %v932, 16
      %v958 = vor.u32 %v956, %v954
      %v960 = vshll.u32 %v933, 16
      %v962 = vrot.slane %v960, 1
      %v963 = vsel %vm471, %v958, %v962
      %v964 = vshrl.u32 %v933, 16
      %v966 = vor.u32 %v964, %v962
      %v968 = vshll.u32 %v934, 16
      %v970 = vrot.slane %v968, 1
      %v971 = vsel %vm471, %v966, %v970
      %v972 = vshrl.u32 %v934, 16
      %v974 = vor.u32 %v972, %v970
      %v976 = vshll.u32 %v935, 16
      %v978 = vrot.slane %v976, 1
      %v979 = vsel %vm471, %v974, %v978
      %v981 = vsel %vm221, %v947, 0
      %v984 = vsel %vm221, %v955, 0
      %v987 = vsel %vm221, %v963, 0
      %v990 = vsel %vm221, %v971, 0
      %v993 = vsel %vm221, %v979, 0
      %v996 = vsel %vm237, %v907, 0
      %998 = vmatprep.subr.bf16.mxu0 0
      %999 = vmatpush1.bf16.msra.mxu0 %v996
      %1000 = vmatprep.subr.bf16.mxu0 0
      %1001 = vmatpush1.bf16.msra.mxu0 0
      %1002 = vmatprep.subr.bf16.mxu0 0
      %1003 = vmatpush1.bf16.msra.mxu0 0
      %1004 = vmatprep.subr.bf16.mxu0 0
      %1005 = vmatpush1.bf16.msra.mxu0 0
      %1006 = vmatprep.subr.bf16.mxu0 0
      %1007 = vmatpush1.bf16.msra.mxu0 0
      %1008 = vmatprep.subr.bf16.mxu0 0
      %1009 = vmatpush1.bf16.msra.mxu0 0
      %1010 = vmatprep.subr.bf16.mxu0 0
      %1011 = vmatpush1.bf16.msra.mxu0 0
      %1012 = vmatprep.subr.bf16.mxu0 0
      %1013 = vmatpush1.bf16.msra.mxu0 0
      %1014 = vmatprep.subr.bf16.mxu0 0
      %1015 = vmatpush1.bf16.msra.mxu0 0
      %1016 = vmatprep.subr.bf16.mxu0 0
      %1017 = vmatpush1.bf16.msra.mxu0 0
      %1018 = vmatprep.subr.bf16.mxu0 0
      %1019 = vmatpush1.bf16.msra.mxu0 0
      %1020 = vmatprep.subr.bf16.mxu0 0
      %1021 = vmatpush1.bf16.msra.mxu0 0
      %1022 = vmatprep.subr.bf16.mxu0 0
      %1023 = vmatpush1.bf16.msra.mxu0 0
      %1024 = vmatprep.subr.bf16.mxu0 0
      %1025 = vmatpush1.bf16.msra.mxu0 0
      %1026 = vmatprep.subr.bf16.mxu0 0
      %1027 = vmatpush1.bf16.msra.mxu0 0
      %1028 = vmatprep.subr.bf16.mxu0 0
      %1029 = vmatpush1.bf16.msra.mxu0 0
      %1030 = vmatprep.mubr.bf16.mxu0 0
      %1031 = vmatmul.mubr.bf16.gmra.mrb[0].mxu0 %v981
      %v1032 = vpop.f32.mrb[0].mxu0
      %v1033 = vadd.f32 0.0, %v1032
      %v1034 = vpop.f32.mrb[0].mxu0
      %v1035 = vpop.f32.mrb[0].mxu0
      %v1036 = vadd.f32 0.0, %v1035
      %v1037 = vpop.f32.mrb[0].mxu0
      %1038 = vmatprep.mubr.bf16.mxu0 0
      %1039 = vmatmul.mubr.bf16.gmra.mrb[0].mxu0 %v984
      %v1040 = vpop.f32.mrb[0].mxu0
      %v1041 = vadd.f32 0.0, %v1040
      %v1042 = vpop.f32.mrb[0].mxu0
      %v1043 = vpop.f32.mrb[0].mxu0
      %v1044 = vadd.f32 0.0, %v1043
      %v1045 = vpop.f32.mrb[0].mxu0
      %1046 = vmatprep.mubr.bf16.mxu0 0
      %1047 = vmatmul.mubr.bf16.gmra.mrb[0].mxu0 %v987
      %v1048 = vpop.f32.mrb[0].mxu0
      %v1049 = vadd.f32 0.0, %v1048
      %v1050 = vpop.f32.mrb[0].mxu0
      %v1051 = vpop.f32.mrb[0].mxu0
      %v1052 = vadd.f32 0.0, %v1051
      %v1053 = vpop.f32.mrb[0].mxu0
      %1054 = vmatprep.mubr.bf16.mxu0 0
      %1055 = vmatmul.mubr.bf16.gmra.mrb[0].mxu0 %v990
      %v1056 = vpop.f32.mrb[0].mxu0
      %v1057 = vadd.f32 0.0, %v1056
      %v1058 = vpop.f32.mrb[0].mxu0
      %v1059 = vpop.f32.mrb[0].mxu0
      %v1060 = vadd.f32 0.0, %v1059
      %v1061 = vpop.f32.mrb[0].mxu0
      %1062 = vmatprep.mubr.bf16.mxu0 0
      %1063 = vmatmul.mubr.bf16.gmra.mrb[0].mxu0 %v993
      %v1064 = vpop.f32.mrb[0].mxu0
      %v1065 = vadd.f32 0.0, %v1064
      %v1066 = vpop.f32.mrb[0].mxu0
      %v1067 = vpop.f32.mrb[0].mxu0
      %v1068 = vadd.f32 0.0, %v1067
      %v1069 = vpop.f32.mrb[0].mxu0
      %1070 = vdwg.mxu0
      %v1071 = vadd.f32 %v885, %v1033
      %v1072 = vadd.f32 %v886, %v1036
      %v1073 = vadd.f32 %v887, %v1041
      %v1074 = vadd.f32 %v888, %v1044
      %v1075 = vadd.f32 %v889, %v1049
      %v1076 = vadd.f32 %v890, %v1052
      %v1077 = vadd.f32 %v891, %v1057
      %v1078 = vadd.f32 %v892, %v1060
      %v1079 = vadd.f32 %v893, %v1065
      %v1080 = vadd.f32 %v894, %v1068
      %v1081 = vld [vmem:[%s165 + $0x4] sm:$0xf]
      %v1082 = vld [vmem:[%s165 + $0x8] sm:$0xf]
      %v1083 = vld [vmem:[%s165 + $0xc] sm:$0xf]
      %v1084 = vld [vmem:[%s165 + $0x10] sm:$0xf]
      %v1085 = vld [vmem:[%s165 + $0x14] sm:$0xf]
      %v1086 = vld [vmem:[%s165 + $0x18] sm:$0xf]
      %v1087 = vld [vmem:[%s165 + $0x1c] sm:$0xf]
      %v1088 = vld [vmem:[%s165 + $0x20] sm:$0xf]
      %v1089 = vld [vmem:[%s165 + $0x24] sm:$0xf]
      %v1090 = vld [vmem:[%s165 + $0x28] sm:$0xf]
      %v1091 = vld [vmem:[%s165 + $0x2c] sm:$0x1]
      %s1092 = scalar_lea.vmem %s1, 24
      %v1093 = vld [vmem:[%s1092] sm:$0xf]
      %v1105 = vunpack.c.l.b16 %v1081
      %v1106 = vunpack.c.l.b16 %v1082
      %v1107 = vunpack.c.l.b16 %v1083
      %v1108 = vunpack.c.l.b16 %v1084
      %v1109 = vunpack.c.l.b16 %v1085
      %v1110 = vunpack.c.l.b16 %v1086
      %v1111 = vunpack.c.l.b16 %v1087
      %v1112 = vunpack.c.l.b16 %v1088
      %v1113 = vunpack.c.l.b16 %v1089
      %v1114 = vunpack.c.l.b16 %v1090
      %v1115 = vunpack.c.l.b16 %v1091
      %v1116 = vpack.c.b16 %v1106, %v1105
      %v1117 = vpack.c.b16 %v1108, %v1107
      %v1118 = vpack.c.b16 %v1110, %v1109
      %v1119 = vpack.c.b16 %v1112, %v1111
      %v1120 = vpack.c.b16 %v1114, %v1113
      %v1121 = vpack.c.b16 %v1115, %v1115
      %v1123 = vshrl.u32 %v1116, 16
      %v1125 = vshll.u32 %v1116, 16
      %v1127 = vrot.slane %v1125, 1
      %v1128 = vor.u32 %v1123, %v1127
      %v1130 = vshll.u32 %v1117, 16
      %v1132 = vrot.slane %v1130, 1
      %v1133 = vsel %vm471, %v1128, %v1132
      %v1134 = vshrl.u32 %v1117, 16
      %v1136 = vor.u32 %v1134, %v1132
      %v1138 = vshll.u32 %v1118, 16
      %v1140 = vrot.slane %v1138, 1
      %v1141 = vsel %vm471, %v1136, %v1140
      %v1142 = vshrl.u32 %v1118, 16
      %v1144 = vor.u32 %v1142, %v1140
      %v1146 = vshll.u32 %v1119, 16
      %v1148 = vrot.slane %v1146, 1
      %v1149 = vsel %vm471, %v1144, %v1148
      %v1150 = vshrl.u32 %v1119, 16
      %v1152 = vor.u32 %v1150, %v1148
      %v1154 = vshll.u32 %v1120, 16
      %v1156 = vrot.slane %v1154, 1
      %v1157 = vsel %vm471, %v1152, %v1156
      %v1158 = vshrl.u32 %v1120, 16
      %v1160 = vor.u32 %v1158, %v1156
      %v1162 = vshll.u32 %v1121, 16
      %v1164 = vrot.slane %v1162, 1
      %v1165 = vsel %vm471, %v1160, %v1164
      %v1167 = vsel %vm221, %v1133, 0
      %v1170 = vsel %vm221, %v1141, 0
      %v1173 = vsel %vm221, %v1149, 0
      %v1176 = vsel %vm221, %v1157, 0
      %v1179 = vsel %vm221, %v1165, 0
      %v1182 = vsel %vm237, %v1093, 0
      %1184 = vmatprep.subr.bf16.mxu0 0
      %1185 = vmatpush1.bf16.msra.mxu0 %v1182
      %1186 = vmatprep.subr.bf16.mxu0 0
      %1187 = vmatpush1.bf16.msra.mxu0 0
      %1188 = vmatprep.subr.bf16.mxu0 0
      %1189 = vmatpush1.bf16.msra.mxu0 0
      %1190 = vmatprep.subr.bf16.mxu0 0
      %1191 = vmatpush1.bf16.msra.mxu0 0
      %1192 = vmatprep.subr.bf16.mxu0 0
      %1193 = vmatpush1.bf16.msra.mxu0 0
      %1194 = vmatprep.subr.bf16.mxu0 0
      %1195 = vmatpush1.bf16.msra.mxu0 0
      %1196 = vmatprep.subr.bf16.mxu0 0
      %1197 = vmatpush1.bf16.msra.mxu0 0
      %1198 = vmatprep.subr.bf16.mxu0 0
      %1199 = vmatpush1.bf16.msra.mxu0 0
      %1200 = vmatprep.subr.bf16.mxu0 0
      %1201 = vmatpush1.bf16.msra.mxu0 0
      %1202 = vmatprep.subr.bf16.mxu0 0
      %1203 = vmatpush1.bf16.msra.mxu0 0
      %1204 = vmatprep.subr.bf16.mxu0 0
      %1205 = vmatpush1.bf16.msra.mxu0 0
      %1206 = vmatprep.subr.bf16.mxu0 0
      %1207 = vmatpush1.bf16.msra.mxu0 0
      %1208 = vmatprep.subr.bf16.mxu0 0
      %1209 = vmatpush1.bf16.msra.mxu0 0
      %1210 = vmatprep.subr.bf16.mxu0 0
      %1211 = vmatpush1.bf16.msra.mxu0 0
      %1212 = vmatprep.subr.bf16.mxu0 0
      %1213 = vmatpush1.bf16.msra.mxu0 0
      %1214 = vmatprep.subr.bf16.mxu0 0
      %1215 = vmatpush1.bf16.msra.mxu0 0
      %1216 = vmatprep.mubr.bf16.mxu0 0
      %1217 = vmatmul.mubr.bf16.gmra.mrb[0].mxu0 %v1167
      %v1218 = vpop.f32.mrb[0].mxu0
      %v1219 = vadd.f32 0.0, %v1218
      %v1220 = vpop.f32.mrb[0].mxu0
      %v1221 = vpop.f32.mrb[0].mxu0
      %v1222 = vadd.f32 0.0, %v1221
      %v1223 = vpop.f32.mrb[0].mxu0
      %1224 = vmatprep.mubr.bf16.mxu0 0
      %1225 = vmatmul.mubr.bf16.gmra.mrb[0].mxu0 %v1170
      %v1226 = vpop.f32.mrb[0].mxu0
      %v1227 = vadd.f32 0.0, %v1226
      %v1228 = vpop.f32.mrb[0].mxu0
      %v1229 = vpop.f32.mrb[0].mxu0
      %v1230 = vadd.f32 0.0, %v1229
      %v1231 = vpop.f32.mrb[0].mxu0
      %1232 = vmatprep.mubr.bf16.mxu0 0
      %1233 = vmatmul.mubr.bf16.gmra.mrb[0].mxu0 %v1173
      %v1234 = vpop.f32.mrb[0].mxu0
      %v1235 = vadd.f32 0.0, %v1234
      %v1236 = vpop.f32.mrb[0].mxu0
      %v1237 = vpop.f32.mrb[0].mxu0
      %v1238 = vadd.f32 0.0, %v1237
      %v1239 = vpop.f32.mrb[0].mxu0
      %1240 = vmatprep.mubr.bf16.mxu0 0
      %1241 = vmatmul.mubr.bf16.gmra.mrb[0].mxu0 %v1176
      %v1242 = vpop.f32.mrb[0].mxu0
      %v1243 = vadd.f32 0.0, %v1242
      %v1244 = vpop.f32.mrb[0].mxu0
      %v1245 = vpop.f32.mrb[0].mxu0
      %v1246 = vadd.f32 0.0, %v1245
      %v1247 = vpop.f32.mrb[0].mxu0
      %1248 = vmatprep.mubr.bf16.mxu0 0
      %1249 = vmatmul.mubr.bf16.gmra.mrb[0].mxu0 %v1179
      %v1250 = vpop.f32.mrb[0].mxu0
      %v1251 = vadd.f32 0.0, %v1250
      %v1252 = vpop.f32.mrb[0].mxu0
      %v1253 = vpop.f32.mrb[0].mxu0
      %v1254 = vadd.f32 0.0, %v1253
      %v1255 = vpop.f32.mrb[0].mxu0
      %1256 = vdwg.mxu0
      %v1257 = vadd.f32 %v1071, %v1219
      %v1258 = vadd.f32 %v1072, %v1222
      %v1259 = vadd.f32 %v1073, %v1227
      %v1260 = vadd.f32 %v1074, %v1230
      %v1261 = vadd.f32 %v1075, %v1235
      %v1262 = vadd.f32 %v1076, %v1238
      %v1263 = vadd.f32 %v1077, %v1243
      %v1264 = vadd.f32 %v1078, %v1246
      %v1265 = vadd.f32 %v1079, %v1251
      %v1266 = vadd.f32 %v1080, %v1254
      %v1267 = vld [vmem:[%s183 + $0x4] sm:$0xf]
      %v1268 = vld [vmem:[%s183 + $0x8] sm:$0xf]
      %v1269 = vld [vmem:[%s183 + $0xc] sm:$0xf]
      %v1270 = vld [vmem:[%s183 + $0x10] sm:$0xf]
      %v1271 = vld [vmem:[%s183 + $0x14] sm:$0xf]
      %v1272 = vld [vmem:[%s183 + $0x18] sm:$0xf]
      %v1273 = vld [vmem:[%s183 + $0x1c] sm:$0xf]
      %v1274 = vld [vmem:[%s183 + $0x20] sm:$0xf]
      %v1275 = vld [vmem:[%s183 + $0x24] sm:$0xf]
      %v1276 = vld [vmem:[%s183 + $0x28] sm:$0xf]
      %v1277 = vld [vmem:[%s183 + $0x2c] sm:$0x1]
      %s1278 = scalar_lea.vmem %s1, 28
      %v1279 = vld [vmem:[%s1278] sm:$0xf]
      %v1291 = vunpack.c.l.b16 %v1267
      %v1292 = vunpack.c.l.b16 %v1268
      %v1293 = vunpack.c.l.b16 %v1269
      %v1294 = vunpack.c.l.b16 %v1270
      %v1295 = vunpack.c.l.b16 %v1271
      %v1296 = vunpack.c.l.b16 %v1272
      %v1297 = vunpack.c.l.b16 %v1273
      %v1298 = vunpack.c.l.b16 %v1274
      %v1299 = vunpack.c.l.b16 %v1275
      %v1300 = vunpack.c.l.b16 %v1276
      %v1301 = vunpack.c.l.b16 %v1277
      %v1302 = vpack.c.b16 %v1292, %v1291
      %v1303 = vpack.c.b16 %v1294, %v1293
      %v1304 = vpack.c.b16 %v1296, %v1295
      %v1305 = vpack.c.b16 %v1298, %v1297
      %v1306 = vpack.c.b16 %v1300, %v1299
      %v1307 = vpack.c.b16 %v1301, %v1301
      %v1309 = vshrl.u32 %v1302, 16
      %v1311 = vshll.u32 %v1302, 16
      %v1313 = vrot.slane %v1311, 1
      %v1314 = vor.u32 %v1309, %v1313
      %v1316 = vshll.u32 %v1303, 16
      %v1318 = vrot.slane %v1316, 1
      %v1319 = vsel %vm471, %v1314, %v1318
      %v1320 = vshrl.u32 %v1303, 16
      %v1322 = vor.u32 %v1320, %v1318
      %v1324 = vshll.u32 %v1304, 16
      %v1326 = vrot.slane %v1324, 1
      %v1327 = vsel %vm471, %v1322, %v1326
      %v1328 = vshrl.u32 %v1304, 16
      %v1330 = vor.u32 %v1328, %v1326
      %v1332 = vshll.u32 %v1305, 16
      %v1334 = vrot.slane %v1332, 1
      %v1335 = vsel %vm471, %v1330, %v1334
      %v1336 = vshrl.u32 %v1305, 16
      %v1338 = vor.u32 %v1336, %v1334
      %v1340 = vshll.u32 %v1306, 16
      %v1342 = vrot.slane %v1340, 1
      %v1343 = vsel %vm471, %v1338, %v1342
      %v1344 = vshrl.u32 %v1306, 16
      %v1346 = vor.u32 %v1344, %v1342
      %v1348 = vshll.u32 %v1307, 16
      %v1350 = vrot.slane %v1348, 1
      %v1351 = vsel %vm471, %v1346, %v1350
      %v1353 = vsel %vm221, %v1319, 0
      %v1356 = vsel %vm221, %v1327, 0
      %v1359 = vsel %vm221, %v1335, 0
      %v1362 = vsel %vm221, %v1343, 0
      %v1365 = vsel %vm221, %v1351, 0
      %v1368 = vsel %vm237, %v1279, 0
      %1370 = vmatprep.subr.bf16.mxu0 0
      %1371 = vmatpush1.bf16.msra.mxu0 %v1368
      %1372 = vmatprep.subr.bf16.mxu0 0
      %1373 = vmatpush1.bf16.msra.mxu0 0
      %1374 = vmatprep.subr.bf16.mxu0 0
      %1375 = vmatpush1.bf16.msra.mxu0 0
      %1376 = vmatprep.subr.bf16.mxu0 0
      %1377 = vmatpush1.bf16.msra.mxu0 0
      %1378 = vmatprep.subr.bf16.mxu0 0
      %1379 = vmatpush1.bf16.msra.mxu0 0
      %1380 = vmatprep.subr.bf16.mxu0 0
      %1381 = vmatpush1.bf16.msra.mxu0 0
      %1382 = vmatprep.subr.bf16.mxu0 0
      %1383 = vmatpush1.bf16.msra.mxu0 0
      %1384 = vmatprep.subr.bf16.mxu0 0
      %1385 = vmatpush1.bf16.msra.mxu0 0
      %1386 = vmatprep.subr.bf16.mxu0 0
      %1387 = vmatpush1.bf16.msra.mxu0 0
      %1388 = vmatprep.subr.bf16.mxu0 0
      %1389 = vmatpush1.bf16.msra.mxu0 0
      %1390 = vmatprep.subr.bf16.mxu0 0
      %1391 = vmatpush1.bf16.msra.mxu0 0
      %1392 = vmatprep.subr.bf16.mxu0 0
      %1393 = vmatpush1.bf16.msra.mxu0 0
      %1394 = vmatprep.subr.bf16.mxu0 0
      %1395 = vmatpush1.bf16.msra.mxu0 0
      %1396 = vmatprep.subr.bf16.mxu0 0
      %1397 = vmatpush1.bf16.msra.mxu0 0
      %1398 = vmatprep.subr.bf16.mxu0 0
      %1399 = vmatpush1.bf16.msra.mxu0 0
      %1400 = vmatprep.subr.bf16.mxu0 0
      %1401 = vmatpush1.bf16.msra.mxu0 0
      %1402 = vmatprep.mubr.bf16.mxu0 0
      %1403 = vmatmul.mubr.bf16.gmra.mrb[0].mxu0 %v1353
      %v1404 = vpop.f32.mrb[0].mxu0
      %v1405 = vadd.f32 0.0, %v1404
      %v1406 = vpop.f32.mrb[0].mxu0
      %v1407 = vpop.f32.mrb[0].mxu0
      %v1408 = vadd.f32 0.0, %v1407
      %v1409 = vpop.f32.mrb[0].mxu0
      %1410 = vmatprep.mubr.bf16.mxu0 0
      %1411 = vmatmul.mubr.bf16.gmra.mrb[0].mxu0 %v1356
      %v1412 = vpop.f32.mrb[0].mxu0
      %v1413 = vadd.f32 0.0, %v1412
      %v1414 = vpop.f32.mrb[0].mxu0
      %v1415 = vpop.f32.mrb[0].mxu0
      %v1416 = vadd.f32 0.0, %v1415
      %v1417 = vpop.f32.mrb[0].mxu0
      %1418 = vmatprep.mubr.bf16.mxu0 0
      %1419 = vmatmul.mubr.bf16.gmra.mrb[0].mxu0 %v1359
      %v1420 = vpop.f32.mrb[0].mxu0
      %v1421 = vadd.f32 0.0, %v1420
      %v1422 = vpop.f32.mrb[0].mxu0
      %v1423 = vpop.f32.mrb[0].mxu0
      %v1424 = vadd.f32 0.0, %v1423
      %v1425 = vpop.f32.mrb[0].mxu0
      %1426 = vmatprep.mubr.bf16.mxu0 0
      %1427 = vmatmul.mubr.bf16.gmra.mrb[0].mxu0 %v1362
      %v1428 = vpop.f32.mrb[0].mxu0
      %v1429 = vadd.f32 0.0, %v1428
      %v1430 = vpop.f32.mrb[0].mxu0
      %v1431 = vpop.f32.mrb[0].mxu0
      %v1432 = vadd.f32 0.0, %v1431
      %v1433 = vpop.f32.mrb[0].mxu0
      %1434 = vmatprep.mubr.bf16.mxu0 0
      %1435 = vmatmul.mubr.bf16.gmra.mrb[0].mxu0 %v1365
      %v1436 = vpop.f32.mrb[0].mxu0
      %v1437 = vadd.f32 0.0, %v1436
      %v1438 = vpop.f32.mrb[0].mxu0
      %v1439 = vpop.f32.mrb[0].mxu0
      %v1440 = vadd.f32 0.0, %v1439
      %v1441 = vpop.f32.mrb[0].mxu0
      %1442 = vdwg.mxu0
      %v1443 = vadd.f32 %v1257, %v1405
      %v1444 = vadd.f32 %v1258, %v1408
      %v1445 = vadd.f32 %v1259, %v1413
      %v1446 = vadd.f32 %v1260, %v1416
      %v1447 = vadd.f32 %v1261, %v1421
      %v1448 = vadd.f32 %v1262, %v1424
      %v1449 = vadd.f32 %v1263, %v1429
      %v1450 = vadd.f32 %v1264, %v1432
      %v1451 = vadd.f32 %v1265, %v1437
      %v1452 = vadd.f32 %v1266, %v1440
      %v1453 = vld [vmem:[%s165 + $0x4] sm:$0xe]
      %s1454 = scalar_lea.vmem %s1, 32
      %v1455 = vld [vmem:[%s1454] sm:$0xf]
      %v1457 = vunpack.c.l.b16 %v1453
      %v1458 = vpack.c.b16 %v1106, %v1457
      %vm1459 = vcmask 1046528
      %v1460 = vrot.slane %v1458, 1
      %v1461 = vrot.slane %v1117, 1
      %v1462 = vsel %vm1459, %v1460, %v1461
      %v1463 = vrot.slane %v1118, 1
      %v1464 = vsel %vm1459, %v1461, %v1463
      %v1465 = vrot.slane %v1119, 1
      %v1466 = vsel %vm1459, %v1463, %v1465
      %v1467 = vrot.slane %v1120, 1
      %v1468 = vsel %vm1459, %v1465, %v1467
      %v1469 = vrot.slane %v1121, 1
      %v1470 = vsel %vm1459, %v1467, %v1469
      %v1472 = vsel %vm221, %v1462, 0
      %v1475 = vsel %vm221, %v1464, 0
      %v1478 = vsel %vm221, %v1466, 0
      %v1481 = vsel %vm221, %v1468, 0
      %v1484 = vsel %vm221, %v1470, 0
      %v1487 = vsel %vm237, %v1455, 0
      %1489 = vmatprep.subr.bf16.mxu0 0
      %1490 = vmatpush1.bf16.msra.mxu0 %v1487
      %1491 = vmatprep.subr.bf16.mxu0 0
      %1492 = vmatpush1.bf16.msra.mxu0 0
      %1493 = vmatprep.subr.bf16.mxu0 0
      %1494 = vmatpush1.bf16.msra.mxu0 0
      %1495 = vmatprep.subr.bf16.mxu0 0
      %1496 = vmatpush1.bf16.msra.mxu0 0
      %1497 = vmatprep.subr.bf16.mxu0 0
      %1498 = vmatpush1.bf16.msra.mxu0 0
      %1499 = vmatprep.subr.bf16.mxu0 0
      %1500 = vmatpush1.bf16.msra.mxu0 0
      %1501 = vmatprep.subr.bf16.mxu0 0
      %1502 = vmatpush1.bf16.msra.mxu0 0
      %1503 = vmatprep.subr.bf16.mxu0 0
      %1504 = vmatpush1.bf16.msra.mxu0 0
      %1505 = vmatprep.subr.bf16.mxu0 0
      %1506 = vmatpush1.bf16.msra.mxu0 0
      %1507 = vmatprep.subr.bf16.mxu0 0
      %1508 = vmatpush1.bf16.msra.mxu0 0
      %1509 = vmatprep.subr.bf16.mxu0 0
      %1510 = vmatpush1.bf16.msra.mxu0 0
      %1511 = vmatprep.subr.bf16.mxu0 0
      %1512 = vmatpush1.bf16.msra.mxu0 0
      %1513 = vmatprep.subr.bf16.mxu0 0
      %1514 = vmatpush1.bf16.msra.mxu0 0
      %1515 = vmatprep.subr.bf16.mxu0 0
      %1516 = vmatpush1.bf16.msra.mxu0 0
      %1517 = vmatprep.subr.bf16.mxu0 0
      %1518 = vmatpush1.bf16.msra.mxu0 0
      %1519 = vmatprep.subr.bf16.mxu0 0
      %1520 = vmatpush1.bf16.msra.mxu0 0
      %1521 = vmatprep.mubr.bf16.mxu0 0
      %1522 = vmatmul.mubr.bf16.gmra.mrb[0].mxu0 %v1472
      %v1523 = vpop.f32.mrb[0].mxu0
      %v1524 = vadd.f32 0.0, %v1523
      %v1525 = vpop.f32.mrb[0].mxu0
      %v1526 = vpop.f32.mrb[0].mxu0
      %v1527 = vadd.f32 0.0, %v1526
      %v1528 = vpop.f32.mrb[0].mxu0
      %1529 = vmatprep.mubr.bf16.mxu0 0
      %1530 = vmatmul.mubr.bf16.gmra.mrb[0].mxu0 %v1475
      %v1531 = vpop.f32.mrb[0].mxu0
      %v1532 = vadd.f32 0.0, %v1531
      %v1533 = vpop.f32.mrb[0].mxu0
      %v1534 = vpop.f32.mrb[0].mxu0
      %v1535 = vadd.f32 0.0, %v1534
      %v1536 = vpop.f32.mrb[0].mxu0
      %1537 = vmatprep.mubr.bf16.mxu0 0
      %1538 = vmatmul.mubr.bf16.gmra.mrb[0].mxu0 %v1478
      %v1539 = vpop.f32.mrb[0].mxu0
      %v1540 = vadd.f32 0.0, %v1539
      %v1541 = vpop.f32.mrb[0].mxu0
      %v1542 = vpop.f32.mrb[0].mxu0
      %v1543 = vadd.f32 0.0, %v1542
      %v1544 = vpop.f32.mrb[0].mxu0
      %1545 = vmatprep.mubr.bf16.mxu0 0
      %1546 = vmatmul.mubr.bf16.gmra.mrb[0].mxu0 %v1481
      %v1547 = vpop.f32.mrb[0].mxu0
      %v1548 = vadd.f32 0.0, %v1547
      %v1549 = vpop.f32.mrb[0].mxu0
      %v1550 = vpop.f32.mrb[0].mxu0
      %v1551 = vadd.f32 0.0, %v1550
      %v1552 = vpop.f32.mrb[0].mxu0
      %1553 = vmatprep.mubr.bf16.mxu0 0
      %1554 = vmatmul.mubr.bf16.gmra.mrb[0].mxu0 %v1484
      %v1555 = vpop.f32.mrb[0].mxu0
      %v1556 = vadd.f32 0.0, %v1555
      %v1557 = vpop.f32.mrb[0].mxu0
      %v1558 = vpop.f32.mrb[0].mxu0
      %v1559 = vadd.f32 0.0, %v1558
      %v1560 = vpop.f32.mrb[0].mxu0
      %1561 = vdwg.mxu0
      %v1562 = vadd.f32 %v1443, %v1524
      %v1563 = vadd.f32 %v1444, %v1527
      %v1564 = vadd.f32 %v1445, %v1532
      %v1565 = vadd.f32 %v1446, %v1535
      %v1566 = vadd.f32 %v1447, %v1540
      %v1567 = vadd.f32 %v1448, %v1543
      %v1568 = vadd.f32 %v1449, %v1548
      %v1569 = vadd.f32 %v1450, %v1551
      %v1570 = vadd.f32 %v1451, %v1556
      %v1571 = vadd.f32 %v1452, %v1559
      %v1572 = vld [vmem:[%s2] sm:$0x3]
      %v1573 = vlaneseq
      %v1574 = vshrl.u32 %v1573, 7
      %v1575 = vsub.s32 0, %v1574
      %v1576 = vrot.slane %v1572, %v1575
      %v1577 = vmul.f32 %v1562, %v1576
      %v1578 = vmul.f32 %v1563, %v1576
      %v1579 = vmul.f32 %v1564, %v1576
      %v1580 = vmul.f32 %v1565, %v1576
      %v1581 = vmul.f32 %v1566, %v1576
      %v1582 = vmul.f32 %v1567, %v1576
      %v1583 = vmul.f32 %v1568, %v1576
      %v1584 = vmul.f32 %v1569, %v1576
      %v1585 = vmul.f32 %v1570, %v1576
      %v1586 = vmul.f32 %v1571, %v1576
      %v1587 = vlaneseq
      %v1588 = vshrl.u32 %v1587, 7
      %v1589 = vsub.s32 1, %v1588
      %v1590 = vrot.slane %v1572, %v1589
      %v1591 = vadd.f32 %v1577, %v1590
      %v1592 = vadd.f32 %v1578, %v1590
      %v1593 = vadd.f32 %v1579, %v1590
      %v1594 = vadd.f32 %v1580, %v1590
      %v1595 = vadd.f32 %v1581, %v1590
      %v1596 = vadd.f32 %v1582, %v1590
      %v1597 = vadd.f32 %v1583, %v1590
      %v1598 = vadd.f32 %v1584, %v1590
      %v1599 = vadd.f32 %v1585, %v1590
      %v1600 = vadd.f32 %v1586, %v1590
      %vm1601 = vcmp.gt.f32.partialorder %v1591, 0.0
      %vm1602 = vcmp.gt.f32.partialorder %v1592, 0.0
      %vm1603 = vcmp.gt.f32.partialorder %v1593, 0.0
      %vm1604 = vcmp.gt.f32.partialorder %v1594, 0.0
      %vm1605 = vcmp.gt.f32.partialorder %v1595, 0.0
      %vm1606 = vcmp.gt.f32.partialorder %v1596, 0.0
      %vm1607 = vcmp.gt.f32.partialorder %v1597, 0.0
      %vm1608 = vcmp.gt.f32.partialorder %v1598, 0.0
      %vm1609 = vcmp.gt.f32.partialorder %v1599, 0.0
      %vm1610 = vcmp.gt.f32.partialorder %v1600, 0.0
      %v1611 = vmul.f32 %v1591, 0.1
      %v1612 = vmul.f32 %v1592, 0.1
      %v1613 = vmul.f32 %v1593, 0.1
      %v1614 = vmul.f32 %v1594, 0.1
      %v1615 = vmul.f32 %v1595, 0.1
      %v1616 = vmul.f32 %v1596, 0.1
      %v1617 = vmul.f32 %v1597, 0.1
      %v1618 = vmul.f32 %v1598, 0.1
      %v1619 = vmul.f32 %v1599, 0.1
      %v1620 = vmul.f32 %v1600, 0.1
      %v1621 = vsel %vm1601, %v1591, %v1611
      %v1622 = vsel %vm1602, %v1592, %v1612
      %v1623 = vsel %vm1603, %v1593, %v1613
      %v1624 = vsel %vm1604, %v1594, %v1614
      %v1625 = vsel %vm1605, %v1595, %v1615
      %v1626 = vsel %vm1606, %v1596, %v1616
      %v1627 = vsel %vm1607, %v1597, %v1617
      %v1628 = vsel %vm1608, %v1598, %v1618
      %v1629 = vsel %vm1609, %v1599, %v1619
      %v1630 = vsel %vm1610, %v1600, %v1620
      %v1631 = vpack.c.bf16 %v1622, %v1621
      %v1632 = vpack.c.bf16 %v1624, %v1623
      %v1633 = vpack.c.bf16 %v1626, %v1625
      %v1634 = vpack.c.bf16 %v1628, %v1627
      %v1635 = vpack.c.bf16 %v1630, %v1629
      %v1641 = vunpack.c.l.b16 %v1631
      %v1642 = vunpack.c.h.b16 %v1631
      %v1643 = vunpack.c.l.b16 %v1632
      %v1644 = vunpack.c.h.b16 %v1632
      %v1645 = vunpack.c.l.b16 %v1633
      %v1646 = vunpack.c.h.b16 %v1633
      %v1647 = vunpack.c.l.b16 %v1634
      %v1648 = vunpack.c.h.b16 %v1634
      %v1649 = vunpack.c.l.b16 %v1635
      %v1650 = vunpack.c.h.b16 %v1635
      %v1651 = vpack.c.b16 %v1641, %v1641
      %v1652 = vpack.c.b16 %v1642, %v1642
      %v1653 = vpack.c.b16 %v1643, %v1643
      %v1654 = vpack.c.b16 %v1644, %v1644
      %v1655 = vpack.c.b16 %v1645, %v1645
      %v1656 = vpack.c.b16 %v1646, %v1646
      %v1657 = vpack.c.b16 %v1647, %v1647
      %v1658 = vpack.c.b16 %v1648, %v1648
      %v1659 = vpack.c.b16 %v1649, %v1649
      %v1660 = vpack.c.b16 %v1650, %v1650
      %1671 = vst [vmem:[%s170] sm:$0xf] %v1651
      %1672 = vst [vmem:[%s170 + $0x4] sm:$0xf] %v1652
      %1673 = vst [vmem:[%s170 + $0x8] sm:$0xf] %v1653
      %1674 = vst [vmem:[%s170 + $0xc] sm:$0xf] %v1654
      %1675 = vst [vmem:[%s170 + $0x10] sm:$0xf] %v1655
      %1676 = vst [vmem:[%s170 + $0x14] sm:$0xf] %v1656
      %1677 = vst [vmem:[%s170 + $0x18] sm:$0xf] %v1657
      %1678 = vst [vmem:[%s170 + $0x1c] sm:$0xf] %v1658
      %1679 = vst [vmem:[%s170 + $0x20] sm:$0xf] %v1659
      %1680 = vst [vmem:[%s170 + $0x24] sm:$0xf] %v1660
      %p1681 = scmp.lt.s32.totalorder %s14, 1
      %s1682 = scalar_select %p1681, %s14, 1
      %s1683 = smul.addr %s1682, 10
      %s1684 = smul.addr %s1683, 4
      %s1685 = scalar_lea.vmem %s3, %s1684
      // Predicated region
      $region33: #{block_forward.8} parent=31 // pred_check
        %p1686 = pneg %p100
      $region34: #{block_forward.8} parent=31 // pred_check_branch
        %1688 = sbr.rel (%p1686) target = $region36
      $region35: #{block_forward.8} parent=31 // pred_region
        _
      $region36: #{block_forward.8} parent=31 // pred_fallthru
        _
    $region32: #{block_forward.8} parent=5 // pred_fallthru
      _
    %p1689 = scmp.le.s32.totalorder 2, %s9
    // Predicated region
    $region37: #{block_forward.8} parent=5 // pred_check
      %p1690 = pneg %p1689
    $region38: #{block_forward.8} parent=5 // pred_check_branch
      %1692 = sbr.rel (%p1690) target = $region40
    $region39: #{block_forward.8} parent=5 // pred_region
      %s1693 = ssub.s32 %s9, 2
      // Predicated region
      $region41: #{block_forward.8} parent=39 // pred_check
        %p1694 = pneg %p106
      $region42: #{block_forward.8} parent=39 // pred_check_branch
        %1696 = sbr.rel (%p1694) target = $region44
      $region43: #{block_forward.8} parent=39 // pred_region
        %p1697 = scmp.lt.s32.totalorder %s15, 1
        %s1698 = scalar_select %p1697, %s15, 1
        %s1699 = smul.addr %s1698, 10
        %s1700 = smul.addr %s1699, 4
        %s1701 = scalar_lea.vmem %s3, %s1700
      $region44: #{block_forward.8} parent=39 // pred_fallthru
        _
    $region40: #{block_forward.8} parent=5 // pred_fallthru
      _
  $region6: #{block_forward.8} parent=0 // loop_footer
    %s13 = sadd.s32 1, %s9
  $region7: #{block_forward.8} parent=0 // loop_footer_branch
    %8 = sbr.rel target = $region3
  $region8: #{block_forward.8} parent=0 // loop_exit
    _

// kernel: block_forward.9
$region0: #{block_forward.9}
  #allocation0 [shape = 'u32[]', space=smem, size = 0x4, offset = 0x4, fixed_abs, tag = 'smem constant byte address 0x4 - core index']
  #allocation1 [shape = 'u32[144,128]{1,0:T(1,128)}', space=vmem, size = 0x12000, scoped, tag = 'internal scratch']
  %s0 = inlined_call_operand.vmem [shape: bf16[2,1,152,8], index: 0, kind: input, shape index: {}]
  %s1 = inlined_call_operand.vmem [shape: bf16[9,8,128], index: 1, kind: input, shape index: {}]
  %s2 = inlined_call_operand.vmem [shape: f32[2,128], index: 2, kind: input, shape index: {}]
  %s3 = inlined_call_operand.vmem [shape: bf16[2,96,128], index: 3, kind: output, shape index: {}]
  %s4 = sld [smem:[#allocation0]]
  $region45: #{block_forward.9} parent=0
    _
  %s6 = ssub.s32 1, %s4
  %s7 = scalar_select 0, %s6, %s4
  loop: start=0, step=1, limit=4
  $region2: #{block_forward.9} parent=0 // loop_pre_header
    _
  $region3: #{block_forward.9} parent=0 // loop_header
    %s9 = sphi 0, %s13
    %p10 = scmp.ge.s32.totalorder %s9, 4
    %s19 = sphi 0, %s21
    %s22 = sphi 0, %s19
    %s23 = sphi 0, %s22
    %s39 = sphi 0, %s23
    %s43 = sphi 0, %s43
    %s45 = sphi 0, %s43
    %s46 = sphi 0, %s45
    %s60 = sphi 0, %s46
    %s64 = sphi 0, %s64
    %s66 = sphi 0, %s64
    %s67 = sphi 0, %s66
    %s81 = sphi 0, %s67
    %s87 = sphi 0, %s89
    %s90 = sphi 0, %s87
    %s91 = sphi 0, %s90
    %s107 = sphi 0, %s91
  $region4: #{block_forward.9} parent=0 // loop_header_branch
    %12 = sbr.rel (%p10) target = $region8
  $region5: #{block_forward.9} parent=0 // loop_body
    %s14 = ssub.s32 %s9, 1
    %s15 = ssub.s32 %s9, 2
    %s16 = sadd.s32 %s9, 1
    %s17 = ssub.s32 %s9, %s16
    %p18 = scmp.eq.s32.totalorder %s17, 0
    %s20 = sadd.s32 %s19, 1
    %s21 = scalar_select %p18, %s19, %s20
    %p24 = pneg %p18
    %p25 = scmp.eq.s32.totalorder %s9, 1
    %p26 = por %p24, %p25
    %p27 = scmp.ne.s32.totalorder %s19, %s22
    %p28 = scmp.eq.s32.totalorder %s9, 0
    %p29 = por %p27, %p28
    %p30 = scmp.ne.s32.totalorder %s19, %s22
    %p31 = scmp.eq.s32.totalorder %s14, 1
    %p32 = por %p30, %p31
    %p33 = scmp.ne.s32.totalorder %s22, %s23
    %p34 = scmp.eq.s32.totalorder %s14, 0
    %p35 = por %p33, %p34
    %p36 = scmp.ne.s32.totalorder %s22, %s23
    %p37 = scmp.eq.s32.totalorder %s15, 1
    %p38 = por %p36, %p37
    %p40 = scmp.ne.s32.totalorder %s23, %s39
    %p41 = scmp.eq.s32.totalorder %s15, 0
    %p42 = por %p40, %p41
    %s44 = sadd.s32 %s43, 1
    %p47 = scmp.eq.s32.totalorder %s9, 1
    %p48 = scmp.ne.s32.totalorder %s43, %s45
    %p49 = scmp.eq.s32.totalorder %s9, 0
    %p50 = por %p48, %p49
    %p51 = scmp.ne.s32.totalorder %s43, %s45
    %p52 = scmp.eq.s32.totalorder %s14, 1
    %p53 = por %p51, %p52
    %p54 = scmp.ne.s32.totalorder %s45, %s46
    %p55 = scmp.eq.s32.totalorder %s14, 0
    %p56 = por %p54, %p55
    %p57 = scmp.ne.s32.totalorder %s45, %s46
    %p58 = scmp.eq.s32.totalorder %s15, 1
    %p59 = por %p57, %p58
    %p61 = scmp.ne.s32.totalorder %s46, %s60
    %p62 = scmp.eq.s32.totalorder %s15, 0
    %p63 = por %p61, %p62
    %s65 = sadd.s32 %s64, 1
    %p68 = scmp.eq.s32.totalorder %s9, 1
    %p69 = scmp.ne.s32.totalorder %s64, %s66
    %p70 = scmp.eq.s32.totalorder %s9, 0
    %p71 = por %p69, %p70
    %p72 = scmp.ne.s32.totalorder %s64, %s66
    %p73 = scmp.eq.s32.totalorder %s14, 1
    %p74 = por %p72, %p73
    %p75 = scmp.ne.s32.totalorder %s66, %s67
    %p76 = scmp.eq.s32.totalorder %s14, 0
    %p77 = por %p75, %p76
    %p78 = scmp.ne.s32.totalorder %s66, %s67
    %p79 = scmp.eq.s32.totalorder %s15, 1
    %p80 = por %p78, %p79
    %p82 = scmp.ne.s32.totalorder %s67, %s81
    %p83 = scmp.eq.s32.totalorder %s15, 0
    %p84 = por %p82, %p83
    %s85 = ssub.s32 %s9, %s16
    %p86 = scmp.eq.s32.totalorder %s85, 0
    %s88 = sadd.s32 %s87, 1
    %s89 = scalar_select %p86, %s87, %s88
    %p92 = pneg %p86
    %p93 = scmp.eq.s32.totalorder %s9, 1
    %p94 = por %p92, %p93
    %p95 = scmp.ne.s32.totalorder %s87, %s90
    %p96 = scmp.eq.s32.totalorder %s9, 0
    %p97 = por %p95, %p96
    %p98 = scmp.ne.s32.totalorder %s87, %s90
    %p99 = scmp.eq.s32.totalorder %s14, 1
    %p100 = por %p98, %p99
    %p101 = scmp.ne.s32.totalorder %s90, %s91
    %p102 = scmp.eq.s32.totalorder %s14, 0
    %p103 = por %p101, %p102
    %p104 = scmp.ne.s32.totalorder %s90, %s91
    %p105 = scmp.eq.s32.totalorder %s15, 1
    %p106 = por %p104, %p105
    %p108 = scmp.ne.s32.totalorder %s91, %s107
    %p109 = scmp.eq.s32.totalorder %s15, 0
    %p110 = por %p108, %p109
    %p111 = scmp.le.s32.totalorder 1, %s9
    %p112 = scmp.lt.s32.totalorder %s9, 3
    %p113 = pnand %p111, %p112
    %p114 = pneg %p113
    // Predicated region
    $region9: #{block_forward.9} parent=5 // pred_check
      _
    $region10: #{block_forward.9} parent=5 // pred_check_branch
      %116 = sbr.rel (%p113) target = $region12
    $region11: #{block_forward.9} parent=5 // pred_region
      %s117 = ssub.s32 %s9, 1
      // Predicated region
      $region13: #{block_forward.9} parent=11 // pred_check
        %p118 = pneg %p56
      $region14: #{block_forward.9} parent=11 // pred_check_branch
        %120 = sbr.rel (%p118) target = $region16
      $region15: #{block_forward.9} parent=11 // pred_region
        _
      $region16: #{block_forward.9} parent=11 // pred_fallthru
        _
      // Predicated region
      $region17: #{block_forward.9} parent=11 // pred_check
        %p121 = pneg %p77
      $region18: #{block_forward.9} parent=11 // pred_check_branch
        %123 = sbr.rel (%p121) target = $region20
      $region19: #{block_forward.9} parent=11 // pred_region
        _
      $region20: #{block_forward.9} parent=11 // pred_fallthru
        _
    $region12: #{block_forward.9} parent=5 // pred_fallthru
      _
    %p124 = scmp.lt.s32.totalorder %s9, 2
    // Predicated region
    $region21: #{block_forward.9} parent=5 // pred_check
      %p125 = pneg %p124
    $region22: #{block_forward.9} parent=5 // pred_check_branch
      %127 = sbr.rel (%p125) target = $region24
    $region23: #{block_forward.9} parent=5 // pred_region
      // Predicated region
      $region25: #{block_forward.9} parent=23 // pred_check
        %p128 = pneg %p29
      $region26: #{block_forward.9} parent=23 // pred_check_branch
        %130 = sbr.rel (%p128) target = $region28
      $region27: #{block_forward.9} parent=23 // pred_region
        %p131 = scmp.lt.s32.totalorder %s9, 1
        %s132 = scalar_select %p131, %s9, 1
        %s133 = smul.addr %s132, 19
        %s134 = smul.addr %s133, 4
        %s135 = scalar_lea.vmem %s0, %s134
      $region28: #{block_forward.9} parent=23 // pred_fallthru
        _
    $region24: #{block_forward.9} parent=5 // pred_fallthru
      _
    %p136 = scmp.le.s32.totalorder 1, %s9
    %p137 = scmp.lt.s32.totalorder %s9, 3
    %p138 = pnand %p136, %p137
    %p139 = pneg %p138
    // Predicated region
    $region29: #{block_forward.9} parent=5 // pred_check
      _
    $region30: #{block_forward.9} parent=5 // pred_check_branch
      %141 = sbr.rel (%p138) target = $region32
    $region31: #{block_forward.9} parent=5 // pred_region
      %s142 = ssub.s32 %s9, 1
      %p143 = scmp.lt.s32.totalorder %s14, 1
      %s144 = scalar_select %p143, %s14, 1
      %s145 = smul.addr %s144, 19
      %s146 = smul.addr %s145, 4
      %s147 = scalar_lea.vmem %s0, %s146
      %p148 = pneg %p35
      %p149 = pneg %p32
      %p150 = pneg %p56
      %p151 = pneg %p53
      %p152 = pneg %p77
      %p153 = pneg %p74
      %p154 = pneg %p103
      %p155 = pneg %p100
      %p156 = scmp.lt.s32.totalorder %s14, 1
      %s157 = scalar_select %p156, %s14, 1
      %s158 = smul.addr %s157, 12
      %s159 = smul.addr %s158, 4
      %s160 = scalar_lea.vmem %s3, %s159
      %p161 = scmp.lt.s32.totalorder %s14, 1
      %s162 = scalar_select %p161, %s14, 1
      %s163 = smul.addr %s162, 19
      %s164 = smul.addr %s163, 4
      %s165 = scalar_lea.vmem %s0, %s164
      %p166 = scmp.lt.s32.totalorder %s14, 1
      %s167 = scalar_select %p166, %s14, 1
      %s168 = smul.addr %s167, 12
      %s169 = smul.addr %s168, 4
      %s170 = scalar_lea.vmem %s3, %s169
      %v172 = vld [vmem:[%s165] sm:$0xf]
      %v173 = vld [vmem:[%s165 + $0x4] sm:$0xf]
      %v174 = vld [vmem:[%s165 + $0x8] sm:$0xf]
      %v175 = vld [vmem:[%s165 + $0xc] sm:$0xf]
      %v176 = vld [vmem:[%s165 + $0x10] sm:$0xf]
      %v177 = vld [vmem:[%s165 + $0x14] sm:$0xf]
      %v178 = vld [vmem:[%s165 + $0x18] sm:$0xf]
      %v179 = vld [vmem:[%s165 + $0x1c] sm:$0xf]
      %v180 = vld [vmem:[%s165 + $0x20] sm:$0xf]
      %v181 = vld [vmem:[%s165 + $0x24] sm:$0xf]
      %v182 = vld [vmem:[%s165 + $0x28] sm:$0xf]
      %v183 = vld [vmem:[%s165 + $0x2c] sm:$0xf]
      %v184 = vld [vmem:[%s1] sm:$0xf]
      %v185 = vld [vmem:[%s165] sm:$0xe]
      %v186 = vld [vmem:[%s165 + $0x30] sm:$0x1]
      %s187 = scalar_lea.vmem %s1, 4
      %v188 = vld [vmem:[%s187] sm:$0xf]
      %v202 = vunpack.c.l.b16 %v185
      %v203 = vunpack.c.l.b16 %v173
      %v204 = vunpack.c.l.b16 %v174
      %v205 = vunpack.c.l.b16 %v175
      %v206 = vunpack.c.l.b16 %v176
      %v207 = vunpack.c.l.b16 %v177
      %v208 = vunpack.c.l.b16 %v178
      %v209 = vunpack.c.l.b16 %v179
      %v210 = vunpack.c.l.b16 %v180
      %v211 = vunpack.c.l.b16 %v181
      %v212 = vunpack.c.l.b16 %v182
      %v213 = vunpack.c.l.b16 %v183
      %v214 = vunpack.c.l.b16 %v186
      %v215 = vpack.c.b16 %v203, %v202
      %v216 = vpack.c.b16 %v205, %v204
      %v217 = vpack.c.b16 %v207, %v206
      %v218 = vpack.c.b16 %v209, %v208
      %v219 = vpack.c.b16 %v211, %v210
      %v220 = vpack.c.b16 %v213, %v212
      %v221 = vpack.c.b16 %v214, %v214
      %vm222 = vcmask 1046528
      %v223 = vrot.slane %v215, 1
      %v224 = vrot.slane %v216, 1
      %v225 = vsel %vm222, %v223, %v224
      %v226 = vrot.slane %v217, 1
      %v227 = vsel %vm222, %v224, %v226
      %v228 = vrot.slane %v218, 1
      %v229 = vsel %vm222, %v226, %v228
      %v230 = vrot.slane %v219, 1
      %v231 = vsel %vm222, %v228, %v230
      %v232 = vrot.slane %v220, 1
      %v233 = vsel %vm222, %v230, %v232
      %v234 = vrot.slane %v221, 1
      %v235 = vsel %vm222, %v232, %v234
      %vm236 = vcmask 64512
      %v238 = vsel %vm236, %v225, 0
      %v241 = vsel %vm236, %v227, 0
      %v244 = vsel %vm236, %v229, 0
      %v247 = vsel %vm236, %v231, 0
      %v250 = vsel %vm236, %v233, 0
      %v253 = vsel %vm236, %v235, 0
      %vm255 = vcmask 1043456
      %v257 = vsel %vm255, %v188, 0
      %259 = vmatprep.subr.bf16.mxu0 0
      %260 = vmatpush1.bf16.msra.mxu0 %v257
      %261 = vmatprep.subr.bf16.mxu0 0
      %262 = vmatpush1.bf16.msra.mxu0 0
      %263 = vmatprep.subr.bf16.mxu0 0
      %264 = vmatpush1.bf16.msra.mxu0 0
      %265 = vmatprep.subr.bf16.mxu0 0
      %266 = vmatpush1.bf16.msra.mxu0 0
      %267 = vmatprep.subr.bf16.mxu0 0
      %268 = vmatpush1.bf16.msra.mxu0 0
      %269 = vmatprep.subr.bf16.mxu0 0
      %270 = vmatpush1.bf16.msra.mxu0 0
      %271 = vmatprep.subr.bf16.mxu0 0
      %272 = vmatpush1.bf16.msra.mxu0 0
      %273 = vmatprep.subr.bf16.mxu0 0
      %274 = vmatpush1.bf16.msra.mxu0 0
      %275 = vmatprep.subr.bf16.mxu0 0
      %276 = vmatpush1.bf16.msra.mxu0 0
      %277 = vmatprep.subr.bf16.mxu0 0
      %278 = vmatpush1.bf16.msra.mxu0 0
      %279 = vmatprep.subr.bf16.mxu0 0
      %280 = vmatpush1.bf16.msra.mxu0 0
      %281 = vmatprep.subr.bf16.mxu0 0
      %282 = vmatpush1.bf16.msra.mxu0 0
      %283 = vmatprep.subr.bf16.mxu0 0
      %284 = vmatpush1.bf16.msra.mxu0 0
      %285 = vmatprep.subr.bf16.mxu0 0
      %286 = vmatpush1.bf16.msra.mxu0 0
      %287 = vmatprep.subr.bf16.mxu0 0
      %288 = vmatpush1.bf16.msra.mxu0 0
      %289 = vmatprep.subr.bf16.mxu0 0
      %290 = vmatpush1.bf16.msra.mxu0 0
      %291 = vmatprep.mubr.bf16.mxu0 0
      %292 = vmatmul.mubr.bf16.gmra.mrb[0].mxu0 %v238
      %v293 = vpop.f32.mrb[0].mxu0
      %v294 = vadd.f32 0.0, %v293
      %v295 = vpop.f32.mrb[0].mxu0
      %v296 = vpop.f32.mrb[0].mxu0
      %v297 = vadd.f32 0.0, %v296
      %v298 = vpop.f32.mrb[0].mxu0
      %299 = vmatprep.mubr.bf16.mxu0 0
      %300 = vmatmul.mubr.bf16.gmra.mrb[0].mxu0 %v241
      %v301 = vpop.f32.mrb[0].mxu0
      %v302 = vadd.f32 0.0, %v301
      %v303 = vpop.f32.mrb[0].mxu0
      %v304 = vpop.f32.mrb[0].mxu0
      %v305 = vadd.f32 0.0, %v304
      %v306 = vpop.f32.mrb[0].mxu0
      %307 = vmatprep.mubr.bf16.mxu0 0
      %308 = vmatmul.mubr.bf16.gmra.mrb[0].mxu0 %v244
      %v309 = vpop.f32.mrb[0].mxu0
      %v310 = vadd.f32 0.0, %v309
      %v311 = vpop.f32.mrb[0].mxu0
      %v312 = vpop.f32.mrb[0].mxu0
      %v313 = vadd.f32 0.0, %v312
      %v314 = vpop.f32.mrb[0].mxu0
      %315 = vmatprep.mubr.bf16.mxu0 0
      %316 = vmatmul.mubr.bf16.gmra.mrb[0].mxu0 %v247
      %v317 = vpop.f32.mrb[0].mxu0
      %v318 = vadd.f32 0.0, %v317
      %v319 = vpop.f32.mrb[0].mxu0
      %v320 = vpop.f32.mrb[0].mxu0
      %v321 = vadd.f32 0.0, %v320
      %v322 = vpop.f32.mrb[0].mxu0
      %323 = vmatprep.mubr.bf16.mxu0 0
      %324 = vmatmul.mubr.bf16.gmra.mrb[0].mxu0 %v250
      %v325 = vpop.f32.mrb[0].mxu0
      %v326 = vadd.f32 0.0, %v325
      %v327 = vpop.f32.mrb[0].mxu0
      %v328 = vpop.f32.mrb[0].mxu0
      %v329 = vadd.f32 0.0, %v328
      %v330 = vpop.f32.mrb[0].mxu0
      %331 = vmatprep.mubr.bf16.mxu0 0
      %332 = vmatmul.mubr.bf16.gmra.mrb[0].mxu0 %v253
      %v333 = vpop.f32.mrb[0].mxu0
      %v334 = vadd.f32 0.0, %v333
      %v335 = vpop.f32.mrb[0].mxu0
      %v336 = vpop.f32.mrb[0].mxu0
      %v337 = vadd.f32 0.0, %v336
      %v338 = vpop.f32.mrb[0].mxu0
      %339 = vdwg.mxu0
      %v341 = vunpack.c.l.b16 %v172
      %v342 = vpack.c.b16 %v203, %v341
      %v344 = vsel %vm236, %v342, 0
      %v347 = vsel %vm236, %v216, 0
      %v350 = vsel %vm236, %v217, 0
      %v353 = vsel %vm236, %v218, 0
      %v356 = vsel %vm236, %v219, 0
      %v359 = vsel %vm236, %v220, 0
      %v362 = vsel %vm255, %v184, 0
      %364 = vmatprep.subr.bf16.mxu0 0
      %365 = vmatpush1.bf16.msra.mxu0 %v362
      %366 = vmatprep.subr.bf16.mxu0 0
      %367 = vmatpush1.bf16.msra.mxu0 0
      %368 = vmatprep.subr.bf16.mxu0 0
      %369 = vmatpush1.bf16.msra.mxu0 0
      %370 = vmatprep.subr.bf16.mxu0 0
      %371 = vmatpush1.bf16.msra.mxu0 0
      %372 = vmatprep.subr.bf16.mxu0 0
      %373 = vmatpush1.bf16.msra.mxu0 0
      %374 = vmatprep.subr.bf16.mxu0 0
      %375 = vmatpush1.bf16.msra.mxu0 0
      %376 = vmatprep.subr.bf16.mxu0 0
      %377 = vmatpush1.bf16.msra.mxu0 0
      %378 = vmatprep.subr.bf16.mxu0 0
      %379 = vmatpush1.bf16.msra.mxu0 0
      %380 = vmatprep.subr.bf16.mxu0 0
      %381 = vmatpush1.bf16.msra.mxu0 0
      %382 = vmatprep.subr.bf16.mxu0 0
      %383 = vmatpush1.bf16.msra.mxu0 0
      %384 = vmatprep.subr.bf16.mxu0 0
      %385 = vmatpush1.bf16.msra.mxu0 0
      %386 = vmatprep.subr.bf16.mxu0 0
      %387 = vmatpush1.bf16.msra.mxu0 0
      %388 = vmatprep.subr.bf16.mxu0 0
      %389 = vmatpush1.bf16.msra.mxu0 0
      %390 = vmatprep.subr.bf16.mxu0 0
      %391 = vmatpush1.bf16.msra.mxu0 0
      %392 = vmatprep.subr.bf16.mxu0 0
      %393 = vmatpush1.bf16.msra.mxu0 0
      %394 = vmatprep.subr.bf16.mxu0 0
      %395 = vmatpush1.bf16.msra.mxu0 0
      %396 = vmatprep.mubr.bf16.mxu0 0
      %397 = vmatmul.mubr.bf16.gmra.mrb[0].mxu0 %v344
      %v398 = vpop.f32.mrb[0].mxu0
      %v399 = vadd.f32 %v294, %v398
      %v400 = vpop.f32.mrb[0].mxu0
      %v401 = vpop.f32.mrb[0].mxu0
      %v402 = vadd.f32 %v297, %v401
      %v403 = vpop.f32.mrb[0].mxu0
      %404 = vmatprep.mubr.bf16.mxu0 0
      %405 = vmatmul.mubr.bf16.gmra.mrb[0].mxu0 %v347
      %v406 = vpop.f32.mrb[0].mxu0
      %v407 = vadd.f32 %v302, %v406
      %v408 = vpop.f32.mrb[0].mxu0
      %v409 = vpop.f32.mrb[0].mxu0
      %v410 = vadd.f32 %v305, %v409
      %v411 = vpop.f32.mrb[0].mxu0
      %412 = vmatprep.mubr.bf16.mxu0 0
      %413 = vmatmul.mubr.bf16.gmra.mrb[0].mxu0 %v350
      %v414 = vpop.f32.mrb[0].mxu0
      %v415 = vadd.f32 %v310, %v414
      %v416 = vpop.f32.mrb[0].mxu0
      %v417 = vpop.f32.mrb[0].mxu0
      %v418 = vadd.f32 %v313, %v417
      %v419 = vpop.f32.mrb[0].mxu0
      %420 = vmatprep.mubr.bf16.mxu0 0
      %421 = vmatmul.mubr.bf16.gmra.mrb[0].mxu0 %v353
      %v422 = vpop.f32.mrb[0].mxu0
      %v423 = vadd.f32 %v318, %v422
      %v424 = vpop.f32.mrb[0].mxu0
      %v425 = vpop.f32.mrb[0].mxu0
      %v426 = vadd.f32 %v321, %v425
      %v427 = vpop.f32.mrb[0].mxu0
      %428 = vmatprep.mubr.bf16.mxu0 0
      %429 = vmatmul.mubr.bf16.gmra.mrb[0].mxu0 %v356
      %v430 = vpop.f32.mrb[0].mxu0
      %v431 = vadd.f32 %v326, %v430
      %v432 = vpop.f32.mrb[0].mxu0
      %v433 = vpop.f32.mrb[0].mxu0
      %v434 = vadd.f32 %v329, %v433
      %v435 = vpop.f32.mrb[0].mxu0
      %436 = vmatprep.mubr.bf16.mxu0 0
      %437 = vmatmul.mubr.bf16.gmra.mrb[0].mxu0 %v359
      %v438 = vpop.f32.mrb[0].mxu0
      %v439 = vadd.f32 %v334, %v438
      %v440 = vpop.f32.mrb[0].mxu0
      %v441 = vpop.f32.mrb[0].mxu0
      %v442 = vadd.f32 %v337, %v441
      %v443 = vpop.f32.mrb[0].mxu0
      %444 = vdwg.mxu0
      %v445 = vld [vmem:[%s165] sm:$0xc]
      %v446 = vld [vmem:[%s165 + $0x30] sm:$0x3]
      %s447 = scalar_lea.vmem %s1, 8
      %v448 = vld [vmem:[%s447] sm:$0xf]
      %v451 = vunpack.c.l.b16 %v445
      %v452 = vunpack.c.l.b16 %v446
      %v453 = vpack.c.b16 %v203, %v451
      %v454 = vpack.c.b16 %v452, %v452
      %vm455 = vcmask 1045504
      %v456 = vrot.slane %v453, 2
      %v457 = vrot.slane %v216, 2
      %v458 = vsel %vm455, %v456, %v457
      %v459 = vrot.slane %v217, 2
      %v460 = vsel %vm455, %v457, %v459
      %v461 = vrot.slane %v218, 2
      %v462 = vsel %vm455, %v459, %v461
      %v463 = vrot.slane %v219, 2
      %v464 = vsel %vm455, %v461, %v463
      %v465 = vrot.slane %v220, 2
      %v466 = vsel %vm455, %v463, %v465
      %v467 = vrot.slane %v454, 2
      %v468 = vsel %vm455, %v465, %v467
      %v470 = vsel %vm236, %v458, 0
      %v473 = vsel %vm236, %v460, 0
      %v476 = vsel %vm236, %v462, 0
      %v479 = vsel %vm236, %v464, 0
      %v482 = vsel %vm236, %v466, 0
      %v485 = vsel %vm236, %v468, 0
      %v488 = vsel %vm255, %v448, 0
      %490 = vmatprep.subr.bf16.mxu0 0
      %491 = vmatpush1.bf16.msra.mxu0 %v488
      %492 = vmatprep.subr.bf16.mxu0 0
      %493 = vmatpush1.bf16.msra.mxu0 0
      %494 = vmatprep.subr.bf16.mxu0 0
      %495 = vmatpush1.bf16.msra.mxu0 0
      %496 = vmatprep.subr.bf16.mxu0 0
      %497 = vmatpush1.bf16.msra.mxu0 0
      %498 = vmatprep.subr.bf16.mxu0 0
      %499 = vmatpush1.bf16.msra.mxu0 0
      %500 = vmatprep.subr.bf16.mxu0 0
      %501 = vmatpush1.bf16.msra.mxu0 0
      %502 = vmatprep.subr.bf16.mxu0 0
      %503 = vmatpush1.bf16.msra.mxu0 0
      %504 = vmatprep.subr.bf16.mxu0 0
      %505 = vmatpush1.bf16.msra.mxu0 0
      %506 = vmatprep.subr.bf16.mxu0 0
      %507 = vmatpush1.bf16.msra.mxu0 0
      %508 = vmatprep.subr.bf16.mxu0 0
      %509 = vmatpush1.bf16.msra.mxu0 0
      %510 = vmatprep.subr.bf16.mxu0 0
      %511 = vmatpush1.bf16.msra.mxu0 0
      %512 = vmatprep.subr.bf16.mxu0 0
      %513 = vmatpush1.bf16.msra.mxu0 0
      %514 = vmatprep.subr.bf16.mxu0 0
      %515 = vmatpush1.bf16.msra.mxu0 0
      %516 = vmatprep.subr.bf16.mxu0 0
      %517 = vmatpush1.bf16.msra.mxu0 0
      %518 = vmatprep.subr.bf16.mxu0 0
      %519 = vmatpush1.bf16.msra.mxu0 0
      %520 = vmatprep.subr.bf16.mxu0 0
      %521 = vmatpush1.bf16.msra.mxu0 0
      %522 = vmatprep.mubr.bf16.mxu0 0
      %523 = vmatmul.mubr.bf16.gmra.mrb[0].mxu0 %v470
      %v524 = vpop.f32.mrb[0].mxu0
      %v525 = vadd.f32 0.0, %v524
      %v526 = vpop.f32.mrb[0].mxu0
      %v527 = vpop.f32.mrb[0].mxu0
      %v528 = vadd.f32 0.0, %v527
      %v529 = vpop.f32.mrb[0].mxu0
      %530 = vmatprep.mubr.bf16.mxu0 0
      %531 = vmatmul.mubr.bf16.gmra.mrb[0].mxu0 %v473
      %v532 = vpop.f32.mrb[0].mxu0
      %v533 = vadd.f32 0.0, %v532
      %v534 = vpop.f32.mrb[0].mxu0
      %v535 = vpop.f32.mrb[0].mxu0
      %v536 = vadd.f32 0.0, %v535
      %v537 = vpop.f32.mrb[0].mxu0
      %538 = vmatprep.mubr.bf16.mxu0 0
      %539 = vmatmul.mubr.bf16.gmra.mrb[0].mxu0 %v476
      %v540 = vpop.f32.mrb[0].mxu0
      %v541 = vadd.f32 0.0, %v540
      %v542 = vpop.f32.mrb[0].mxu0
      %v543 = vpop.f32.mrb[0].mxu0
      %v544 = vadd.f32 0.0, %v543
      %v545 = vpop.f32.mrb[0].mxu0
      %546 = vmatprep.mubr.bf16.mxu0 0
      %547 = vmatmul.mubr.bf16.gmra.mrb[0].mxu0 %v479
      %v548 = vpop.f32.mrb[0].mxu0
      %v549 = vadd.f32 0.0, %v548
      %v550 = vpop.f32.mrb[0].mxu0
      %v551 = vpop.f32.mrb[0].mxu0
      %v552 = vadd.f32 0.0, %v551
      %v553 = vpop.f32.mrb[0].mxu0
      %554 = vmatprep.mubr.bf16.mxu0 0
      %555 = vmatmul.mubr.bf16.gmra.mrb[0].mxu0 %v482
      %v556 = vpop.f32.mrb[0].mxu0
      %v557 = vadd.f32 0.0, %v556
      %v558 = vpop.f32.mrb[0].mxu0
      %v559 = vpop.f32.mrb[0].mxu0
      %v560 = vadd.f32 0.0, %v559
      %v561 = vpop.f32.mrb[0].mxu0
      %562 = vmatprep.mubr.bf16.mxu0 0
      %563 = vmatmul.mubr.bf16.gmra.mrb[0].mxu0 %v485
      %v564 = vpop.f32.mrb[0].mxu0
      %v565 = vadd.f32 0.0, %v564
      %v566 = vpop.f32.mrb[0].mxu0
      %v567 = vpop.f32.mrb[0].mxu0
      %v568 = vadd.f32 0.0, %v567
      %v569 = vpop.f32.mrb[0].mxu0
      %570 = vdwg.mxu0
      %v571 = vadd.f32 %v399, %v525
      %v572 = vadd.f32 %v402, %v528
      %v573 = vadd.f32 %v407, %v533
      %v574 = vadd.f32 %v410, %v536
      %v575 = vadd.f32 %v415, %v541
      %v576 = vadd.f32 %v418, %v544
      %v577 = vadd.f32 %v423, %v549
      %v578 = vadd.f32 %v426, %v552
      %v579 = vadd.f32 %v431, %v557
      %v580 = vadd.f32 %v434, %v560
      %v581 = vadd.f32 %v439, %v565
      %v582 = vadd.f32 %v442, %v568
      %v583 = vld [vmem:[%s165 + $0xc] sm:$0xf]
      %v584 = vld [vmem:[%s165 + $0x10] sm:$0xf]
      %v585 = vld [vmem:[%s165 + $0x14] sm:$0xf]
      %v586 = vld [vmem:[%s165 + $0x18] sm:$0xf]
      %v587 = vld [vmem:[%s165 + $0x1c] sm:$0xf]
      %v588 = vld [vmem:[%s165 + $0x20] sm:$0xf]
      %v589 = vld [vmem:[%s165 + $0x24] sm:$0xf]
      %v590 = vld [vmem:[%s165 + $0x28] sm:$0xf]
      %v591 = vld [vmem:[%s165 + $0x2c] sm:$0xf]
      %v592 = vld [vmem:[%s165 + $0x30] sm:$0xf]
      %v593 = vld [vmem:[%s165 + $0x34] sm:$0xf]
      %v594 = vld [vmem:[%s165 + $0x38] sm:$0xf]
      %s595 = scalar_lea.vmem %s1, 12
      %v596 = vld [vmem:[%s595] sm:$0xf]
      %v609 = vunpack.c.l.b16 %v583
      %v610 = vunpack.c.l.b16 %v584
      %v611 = vunpack.c.l.b16 %v585
      %v612 = vunpack.c.l.b16 %v586
      %v613 = vunpack.c.l.b16 %v587
      %v614 = vunpack.c.l.b16 %v588
      %v615 = vunpack.c.l.b16 %v589
      %v616 = vunpack.c.l.b16 %v590
      %v617 = vunpack.c.l.b16 %v591
      %v618 = vunpack.c.l.b16 %v592
      %v619 = vunpack.c.l.b16 %v593
      %v620 = vunpack.c.l.b16 %v594
      %v621 = vpack.c.b16 %v610, %v609
      %v622 = vpack.c.b16 %v612, %v611
      %v623 = vpack.c.b16 %v614, %v613
      %v624 = vpack.c.b16 %v616, %v615
      %v625 = vpack.c.b16 %v618, %v617
      %v626 = vpack.c.b16 %v620, %v619
      %v628 = vsel %vm236, %v621, 0
      %v631 = vsel %vm236, %v622, 0
      %v634 = vsel %vm236, %v623, 0
      %v637 = vsel %vm236, %v624, 0
      %v640 = vsel %vm236, %v625, 0
      %v643 = vsel %vm236, %v626, 0
      %v646 = vsel %vm255, %v596, 0
      %648 = vmatprep.subr.bf16.mxu0 0
      %649 = vmatpush1.bf16.msra.mxu0 %v646
      %650 = vmatprep.subr.bf16.mxu0 0
      %651 = vmatpush1.bf16.msra.mxu0 0
      %652 = vmatprep.subr.bf16.mxu0 0
      %653 = vmatpush1.bf16.msra.mxu0 0
      %654 = vmatprep.subr.bf16.mxu0 0
      %655 = vmatpush1.bf16.msra.mxu0 0
      %656 = vmatprep.subr.bf16.mxu0 0
      %657 = vmatpush1.bf16.msra.mxu0 0
      %658 = vmatprep.subr.bf16.mxu0 0
      %659 = vmatpush1.bf16.msra.mxu0 0
      %660 = vmatprep.subr.bf16.mxu0 0
      %661 = vmatpush1.bf16.msra.mxu0 0
      %662 = vmatprep.subr.bf16.mxu0 0
      %663 = vmatpush1.bf16.msra.mxu0 0
      %664 = vmatprep.subr.bf16.mxu0 0
      %665 = vmatpush1.bf16.msra.mxu0 0
      %666 = vmatprep.subr.bf16.mxu0 0
      %667 = vmatpush1.bf16.msra.mxu0 0
      %668 = vmatprep.subr.bf16.mxu0 0
      %669 = vmatpush1.bf16.msra.mxu0 0
      %670 = vmatprep.subr.bf16.mxu0 0
      %671 = vmatpush1.bf16.msra.mxu0 0
      %672 = vmatprep.subr.bf16.mxu0 0
      %673 = vmatpush1.bf16.msra.mxu0 0
      %674 = vmatprep.subr.bf16.mxu0 0
      %675 = vmatpush1.bf16.msra.mxu0 0
      %676 = vmatprep.subr.bf16.mxu0 0
      %677 = vmatpush1.bf16.msra.mxu0 0
      %678 = vmatprep.subr.bf16.mxu0 0
      %679 = vmatpush1.bf16.msra.mxu0 0
      %680 = vmatprep.mubr.bf16.mxu0 0
      %681 = vmatmul.mubr.bf16.gmra.mrb[0].mxu0 %v628
      %v682 = vpop.f32.mrb[0].mxu0
      %v683 = vadd.f32 0.0, %v682
      %v684 = vpop.f32.mrb[0].mxu0
      %v685 = vpop.f32.mrb[0].mxu0
      %v686 = vadd.f32 0.0, %v685
      %v687 = vpop.f32.mrb[0].mxu0
      %688 = vmatprep.mubr.bf16.mxu0 0
      %689 = vmatmul.mubr.bf16.gmra.mrb[0].mxu0 %v631
      %v690 = vpop.f32.mrb[0].mxu0
      %v691 = vadd.f32 0.0, %v690
      %v692 = vpop.f32.mrb[0].mxu0
      %v693 = vpop.f32.mrb[0].mxu0
      %v694 = vadd.f32 0.0, %v693
      %v695 = vpop.f32.mrb[0].mxu0
      %696 = vmatprep.mubr.bf16.mxu0 0
      %697 = vmatmul.mubr.bf16.gmra.mrb[0].mxu0 %v634
      %v698 = vpop.f32.mrb[0].mxu0
      %v699 = vadd.f32 0.0, %v698
      %v700 = vpop.f32.mrb[0].mxu0
      %v701 = vpop.f32.mrb[0].mxu0
      %v702 = vadd.f32 0.0, %v701
      %v703 = vpop.f32.mrb[0].mxu0
      %704 = vmatprep.mubr.bf16.mxu0 0
      %705 = vmatmul.mubr.bf16.gmra.mrb[0].mxu0 %v637
      %v706 = vpop.f32.mrb[0].mxu0
      %v707 = vadd.f32 0.0, %v706
      %v708 = vpop.f32.mrb[0].mxu0
      %v709 = vpop.f32.mrb[0].mxu0
      %v710 = vadd.f32 0.0, %v709
      %v711 = vpop.f32.mrb[0].mxu0
      %712 = vmatprep.mubr.bf16.mxu0 0
      %713 = vmatmul.mubr.bf16.gmra.mrb[0].mxu0 %v640
      %v714 = vpop.f32.mrb[0].mxu0
      %v715 = vadd.f32 0.0, %v714
      %v716 = vpop.f32.mrb[0].mxu0
      %v717 = vpop.f32.mrb[0].mxu0
      %v718 = vadd.f32 0.0, %v717
      %v719 = vpop.f32.mrb[0].mxu0
      %720 = vmatprep.mubr.bf16.mxu0 0
      %721 = vmatmul.mubr.bf16.gmra.mrb[0].mxu0 %v643
      %v722 = vpop.f32.mrb[0].mxu0
      %v723 = vadd.f32 0.0, %v722
      %v724 = vpop.f32.mrb[0].mxu0
      %v725 = vpop.f32.mrb[0].mxu0
      %v726 = vadd.f32 0.0, %v725
      %v727 = vpop.f32.mrb[0].mxu0
      %728 = vdwg.mxu0
      %v729 = vadd.f32 %v571, %v683
      %v730 = vadd.f32 %v572, %v686
      %v731 = vadd.f32 %v573, %v691
      %v732 = vadd.f32 %v574, %v694
      %v733 = vadd.f32 %v575, %v699
      %v734 = vadd.f32 %v576, %v702
      %v735 = vadd.f32 %v577, %v707
      %v736 = vadd.f32 %v578, %v710
      %v737 = vadd.f32 %v579, %v715
      %v738 = vadd.f32 %v580, %v718
      %v739 = vadd.f32 %v581, %v723
      %v740 = vadd.f32 %v582, %v726
      %v741 = vld [vmem:[%s165 + $0xc] sm:$0xe]
      %v742 = vld [vmem:[%s165 + $0x10] sm:$0xf]
      %v743 = vld [vmem:[%s165 + $0x14] sm:$0xf]
      %v744 = vld [vmem:[%s165 + $0x18] sm:$0xf]
      %v745 = vld [vmem:[%s165 + $0x1c] sm:$0xf]
      %v746 = vld [vmem:[%s165 + $0x20] sm:$0xf]
      %v747 = vld [vmem:[%s165 + $0x24] sm:$0xf]
      %v748 = vld [vmem:[%s165 + $0x28] sm:$0xf]
      %v749 = vld [vmem:[%s165 + $0x2c] sm:$0xf]
      %v750 = vld [vmem:[%s165 + $0x30] sm:$0xf]
      %v751 = vld [vmem:[%s165 + $0x34] sm:$0xf]
      %v752 = vld [vmem:[%s165 + $0x38] sm:$0xf]
      %v753 = vld [vmem:[%s165 + $0x3c] sm:$0x1]
      %s754 = scalar_lea.vmem %s1, 16
      %v755 = vld [vmem:[%s754] sm:$0xf]
      %v769 = vunpack.c.l.b16 %v741
      %v770 = vunpack.c.l.b16 %v742
      %v771 = vunpack.c.l.b16 %v743
      %v772 = vunpack.c.l.b16 %v744
      %v773 = vunpack.c.l.b16 %v745
      %v774 = vunpack.c.l.b16 %v746
      %v775 = vunpack.c.l.b16 %v747
      %v776 = vunpack.c.l.b16 %v748
      %v777 = vunpack.c.l.b16 %v749
      %v778 = vunpack.c.l.b16 %v750
      %v779 = vunpack.c.l.b16 %v751
      %v780 = vunpack.c.l.b16 %v752
      %v781 = vunpack.c.l.b16 %v753
      %v782 = vpack.c.b16 %v770, %v769
      %v783 = vpack.c.b16 %v772, %v771
      %v784 = vpack.c.b16 %v774, %v773
      %v785 = vpack.c.b16 %v776, %v775
      %v786 = vpack.c.b16 %v778, %v777
      %v787 = vpack.c.b16 %v780, %v779
      %v788 = vpack.c.b16 %v781, %v781
      %v789 = vrot.slane %v782, 1
      %v790 = vrot.slane %v783, 1
      %v791 = vsel %vm222, %v789, %v790
      %v792 = vrot.slane %v784, 1
      %v793 = vsel %vm222, %v790, %v792
      %v794 = vrot.slane %v785, 1
      %v795 = vsel %vm222, %v792, %v794
      %v796 = vrot.slane %v786, 1
      %v797 = vsel %vm222, %v794, %v796
      %v798 = vrot.slane %v787, 1
      %v799 = vsel %vm222, %v796, %v798
      %v800 = vrot.slane %v788, 1
      %v801 = vsel %vm222, %v798, %v800
      %v803 = vsel %vm236, %v791, 0
      %v806 = vsel %vm236, %v793, 0
      %v809 = vsel %vm236, %v795, 0
      %v812 = vsel %vm236, %v797, 0
      %v815 = vsel %vm236, %v799, 0
      %v818 = vsel %vm236, %v801, 0
      %v821 = vsel %vm255, %v755, 0
      %823 = vmatprep.subr.bf16.mxu0 0
      %824 = vmatpush1.bf16.msra.mxu0 %v821
      %825 = vmatprep.subr.bf16.mxu0 0
      %826 = vmatpush1.bf16.msra.mxu0 0
      %827 = vmatprep.subr.bf16.mxu0 0
      %828 = vmatpush1.bf16.msra.mxu0 0
      %829 = vmatprep.subr.bf16.mxu0 0
      %830 = vmatpush1.bf16.msra.mxu0 0
      %831 = vmatprep.subr.bf16.mxu0 0
      %832 = vmatpush1.bf16.msra.mxu0 0
      %833 = vmatprep.subr.bf16.mxu0 0
      %834 = vmatpush1.bf16.msra.mxu0 0
      %835 = vmatprep.subr.bf16.mxu0 0
      %836 = vmatpush1.bf16.msra.mxu0 0
      %837 = vmatprep.subr.bf16.mxu0 0
      %838 = vmatpush1.bf16.msra.mxu0 0
      %839 = vmatprep.subr.bf16.mxu0 0
      %840 = vmatpush1.bf16.msra.mxu0 0
      %841 = vmatprep.subr.bf16.mxu0 0
      %842 = vmatpush1.bf16.msra.mxu0 0
      %843 = vmatprep.subr.bf16.mxu0 0
      %844 = vmatpush1.bf16.msra.mxu0 0
      %845 = vmatprep.subr.bf16.mxu0 0
      %846 = vmatpush1.bf16.msra.mxu0 0
      %847 = vmatprep.subr.bf16.mxu0 0
      %848 = vmatpush1.bf16.msra.mxu0 0
      %849 = vmatprep.subr.bf16.mxu0 0
      %850 = vmatpush1.bf16.msra.mxu0 0
      %851 = vmatprep.subr.bf16.mxu0 0
      %852 = vmatpush1.bf16.msra.mxu0 0
      %853 = vmatprep.subr.bf16.mxu0 0
      %854 = vmatpush1.bf16.msra.mxu0 0
      %855 = vmatprep.mubr.bf16.mxu0 0
      %856 = vmatmul.mubr.bf16.gmra.mrb[0].mxu0 %v803
      %v857 = vpop.f32.mrb[0].mxu0
      %v858 = vadd.f32 0.0, %v857
      %v859 = vpop.f32.mrb[0].mxu0
      %v860 = vpop.f32.mrb[0].mxu0
      %v861 = vadd.f32 0.0, %v860
      %v862 = vpop.f32.mrb[0].mxu0
      %863 = vmatprep.mubr.bf16.mxu0 0
      %864 = vmatmul.mubr.bf16.gmra.mrb[0].mxu0 %v806
      %v865 = vpop.f32.mrb[0].mxu0
      %v866 = vadd.f32 0.0, %v865
      %v867 = vpop.f32.mrb[0].mxu0
      %v868 = vpop.f32.mrb[0].mxu0
      %v869 = vadd.f32 0.0, %v868
      %v870 = vpop.f32.mrb[0].mxu0
      %871 = vmatprep.mubr.bf16.mxu0 0
      %872 = vmatmul.mubr.bf16.gmra.mrb[0].mxu0 %v809
      %v873 = vpop.f32.mrb[0].mxu0
      %v874 = vadd.f32 0.0, %v873
      %v875 = vpop.f32.mrb[0].mxu0
      %v876 = vpop.f32.mrb[0].mxu0
      %v877 = vadd.f32 0.0, %v876
      %v878 = vpop.f32.mrb[0].mxu0
      %879 = vmatprep.mubr.bf16.mxu0 0
      %880 = vmatmul.mubr.bf16.gmra.mrb[0].mxu0 %v812
      %v881 = vpop.f32.mrb[0].mxu0
      %v882 = vadd.f32 0.0, %v881
      %v883 = vpop.f32.mrb[0].mxu0
      %v884 = vpop.f32.mrb[0].mxu0
      %v885 = vadd.f32 0.0, %v884
      %v886 = vpop.f32.mrb[0].mxu0
      %887 = vmatprep.mubr.bf16.mxu0 0
      %888 = vmatmul.mubr.bf16.gmra.mrb[0].mxu0 %v815
      %v889 = vpop.f32.mrb[0].mxu0
      %v890 = vadd.f32 0.0, %v889
      %v891 = vpop.f32.mrb[0].mxu0
      %v892 = vpop.f32.mrb[0].mxu0
      %v893 = vadd.f32 0.0, %v892
      %v894 = vpop.f32.mrb[0].mxu0
      %895 = vmatprep.mubr.bf16.mxu0 0
      %896 = vmatmul.mubr.bf16.gmra.mrb[0].mxu0 %v818
      %v897 = vpop.f32.mrb[0].mxu0
      %v898 = vadd.f32 0.0, %v897
      %v899 = vpop.f32.mrb[0].mxu0
      %v900 = vpop.f32.mrb[0].mxu0
      %v901 = vadd.f32 0.0, %v900
      %v902 = vpop.f32.mrb[0].mxu0
      %903 = vdwg.mxu0
      %v904 = vadd.f32 %v729, %v858
      %v905 = vadd.f32 %v730, %v861
      %v906 = vadd.f32 %v731, %v866
      %v907 = vadd.f32 %v732, %v869
      %v908 = vadd.f32 %v733, %v874
      %v909 = vadd.f32 %v734, %v877
      %v910 = vadd.f32 %v735, %v882
      %v911 = vadd.f32 %v736, %v885
      %v912 = vadd.f32 %v737, %v890
      %v913 = vadd.f32 %v738, %v893
      %v914 = vadd.f32 %v739, %v898
      %v915 = vadd.f32 %v740, %v901
      %v916 = vld [vmem:[%s165 + $0xc] sm:$0xc]
      %v917 = vld [vmem:[%s165 + $0x3c] sm:$0x3]
      %s918 = scalar_lea.vmem %s1, 20
      %v919 = vld [vmem:[%s918] sm:$0xf]
      %v922 = vunpack.c.l.b16 %v916
      %v923 = vunpack.c.l.b16 %v917
      %v924 = vpack.c.b16 %v770, %v922
      %v925 = vpack.c.b16 %v923, %v923
      %v926 = vrot.slane %v924, 2
      %v927 = vrot.slane %v783, 2
      %v928 = vsel %vm455, %v926, %v927
      %v929 = vrot.slane %v784, 2
      %v930 = vsel %vm455, %v927, %v929
      %v931 = vrot.slane %v785, 2
      %v932 = vsel %vm455, %v929, %v931
      %v933 = vrot.slane %v786, 2
      %v934 = vsel %vm455, %v931, %v933
      %v935 = vrot.slane %v787, 2
      %v936 = vsel %vm455, %v933, %v935
      %v937 = vrot.slane %v925, 2
      %v938 = vsel %vm455, %v935, %v937
      %v940 = vsel %vm236, %v928, 0
      %v943 = vsel %vm236, %v930, 0
      %v946 = vsel %vm236, %v932, 0
      %v949 = vsel %vm236, %v934, 0
      %v952 = vsel %vm236, %v936, 0
      %v955 = vsel %vm236, %v938, 0
      %v958 = vsel %vm255, %v919, 0
      %960 = vmatprep.subr.bf16.mxu0 0
      %961 = vmatpush1.bf16.msra.mxu0 %v958
      %962 = vmatprep.subr.bf16.mxu0 0
      %963 = vmatpush1.bf16.msra.mxu0 0
      %964 = vmatprep.subr.bf16.mxu0 0
      %965 = vmatpush1.bf16.msra.mxu0 0
      %966 = vmatprep.subr.bf16.mxu0 0
      %967 = vmatpush1.bf16.msra.mxu0 0
      %968 = vmatprep.subr.bf16.mxu0 0
      %969 = vmatpush1.bf16.msra.mxu0 0
      %970 = vmatprep.subr.bf16.mxu0 0
      %971 = vmatpush1.bf16.msra.mxu0 0
      %972 = vmatprep.subr.bf16.mxu0 0
      %973 = vmatpush1.bf16.msra.mxu0 0
      %974 = vmatprep.subr.bf16.mxu0 0
      %975 = vmatpush1.bf16.msra.mxu0 0
      %976 = vmatprep.subr.bf16.mxu0 0
      %977 = vmatpush1.bf16.msra.mxu0 0
      %978 = vmatprep.subr.bf16.mxu0 0
      %979 = vmatpush1.bf16.msra.mxu0 0
      %980 = vmatprep.subr.bf16.mxu0 0
      %981 = vmatpush1.bf16.msra.mxu0 0
      %982 = vmatprep.subr.bf16.mxu0 0
      %983 = vmatpush1.bf16.msra.mxu0 0
      %984 = vmatprep.subr.bf16.mxu0 0
      %985 = vmatpush1.bf16.msra.mxu0 0
      %986 = vmatprep.subr.bf16.mxu0 0
      %987 = vmatpush1.bf16.msra.mxu0 0
      %988 = vmatprep.subr.bf16.mxu0 0
      %989 = vmatpush1.bf16.msra.mxu0 0
      %990 = vmatprep.subr.bf16.mxu0 0
      %991 = vmatpush1.bf16.msra.mxu0 0
      %992 = vmatprep.mubr.bf16.mxu0 0
      %993 = vmatmul.mubr.bf16.gmra.mrb[0].mxu0 %v940
      %v994 = vpop.f32.mrb[0].mxu0
      %v995 = vadd.f32 0.0, %v994
      %v996 = vpop.f32.mrb[0].mxu0
      %v997 = vpop.f32.mrb[0].mxu0
      %v998 = vadd.f32 0.0, %v997
      %v999 = vpop.f32.mrb[0].mxu0
      %1000 = vmatprep.mubr.bf16.mxu0 0
      %1001 = vmatmul.mubr.bf16.gmra.mrb[0].mxu0 %v943
      %v1002 = vpop.f32.mrb[0].mxu0
      %v1003 = vadd.f32 0.0, %v1002
      %v1004 = vpop.f32.mrb[0].mxu0
      %v1005 = vpop.f32.mrb[0].mxu0
      %v1006 = vadd.f32 0.0, %v1005
      %v1007 = vpop.f32.mrb[0].mxu0
      %1008 = vmatprep.mubr.bf16.mxu0 0
      %1009 = vmatmul.mubr.bf16.gmra.mrb[0].mxu0 %v946
      %v1010 = vpop.f32.mrb[0].mxu0
      %v1011 = vadd.f32 0.0, %v1010
      %v1012 = vpop.f32.mrb[0].mxu0
      %v1013 = vpop.f32.mrb[0].mxu0
      %v1014 = vadd.f32 0.0, %v1013
      %v1015 = vpop.f32.mrb[0].mxu0
      %1016 = vmatprep.mubr.bf16.mxu0 0
      %1017 = vmatmul.mubr.bf16.gmra.mrb[0].mxu0 %v949
      %v1018 = vpop.f32.mrb[0].mxu0
      %v1019 = vadd.f32 0.0, %v1018
      %v1020 = vpop.f32.mrb[0].mxu0
      %v1021 = vpop.f32.mrb[0].mxu0
      %v1022 = vadd.f32 0.0, %v1021
      %v1023 = vpop.f32.mrb[0].mxu0
      %1024 = vmatprep.mubr.bf16.mxu0 0
      %1025 = vmatmul.mubr.bf16.gmra.mrb[0].mxu0 %v952
      %v1026 = vpop.f32.mrb[0].mxu0
      %v1027 = vadd.f32 0.0, %v1026
      %v1028 = vpop.f32.mrb[0].mxu0
      %v1029 = vpop.f32.mrb[0].mxu0
      %v1030 = vadd.f32 0.0, %v1029
      %v1031 = vpop.f32.mrb[0].mxu0
      %1032 = vmatprep.mubr.bf16.mxu0 0
      %1033 = vmatmul.mubr.bf16.gmra.mrb[0].mxu0 %v955
      %v1034 = vpop.f32.mrb[0].mxu0
      %v1035 = vadd.f32 0.0, %v1034
      %v1036 = vpop.f32.mrb[0].mxu0
      %v1037 = vpop.f32.mrb[0].mxu0
      %v1038 = vadd.f32 0.0, %v1037
      %v1039 = vpop.f32.mrb[0].mxu0
      %1040 = vdwg.mxu0
      %v1041 = vadd.f32 %v904, %v995
      %v1042 = vadd.f32 %v905, %v998
      %v1043 = vadd.f32 %v906, %v1003
      %v1044 = vadd.f32 %v907, %v1006
      %v1045 = vadd.f32 %v908, %v1011
      %v1046 = vadd.f32 %v909, %v1014
      %v1047 = vadd.f32 %v910, %v1019
      %v1048 = vadd.f32 %v911, %v1022
      %v1049 = vadd.f32 %v912, %v1027
      %v1050 = vadd.f32 %v913, %v1030
      %v1051 = vadd.f32 %v914, %v1035
      %v1052 = vadd.f32 %v915, %v1038
      %v1053 = vld [vmem:[%s165 + $0x18] sm:$0xf]
      %v1054 = vld [vmem:[%s165 + $0x1c] sm:$0xf]
      %v1055 = vld [vmem:[%s165 + $0x20] sm:$0xf]
      %v1056 = vld [vmem:[%s165 + $0x24] sm:$0xf]
      %v1057 = vld [vmem:[%s165 + $0x28] sm:$0xf]
      %v1058 = vld [vmem:[%s165 + $0x2c] sm:$0xf]
      %v1059 = vld [vmem:[%s165 + $0x30] sm:$0xf]
      %v1060 = vld [vmem:[%s165 + $0x34] sm:$0xf]
      %v1061 = vld [vmem:[%s165 + $0x38] sm:$0xf]
      %v1062 = vld [vmem:[%s165 + $0x3c] sm:$0xf]
      %v1063 = vld [vmem:[%s165 + $0x40] sm:$0xf]
      %v1064 = vld [vmem:[%s165 + $0x44] sm:$0xf]
      %s1065 = scalar_lea.vmem %s1, 24
      %v1066 = vld [vmem:[%s1065] sm:$0xf]
      %v1079 = vunpack.c.l.b16 %v1053
      %v1080 = vunpack.c.l.b16 %v1054
      %v1081 = vunpack.c.l.b16 %v1055
      %v1082 = vunpack.c.l.b16 %v1056
      %v1083 = vunpack.c.l.b16 %v1057
      %v1084 = vunpack.c.l.b16 %v1058
      %v1085 = vunpack.c.l.b16 %v1059
      %v1086 = vunpack.c.l.b16 %v1060
      %v1087 = vunpack.c.l.b16 %v1061
      %v1088 = vunpack.c.l.b16 %v1062
      %v1089 = vunpack.c.l.b16 %v1063
      %v1090 = vunpack.c.l.b16 %v1064
      %v1091 = vpack.c.b16 %v1080, %v1079
      %v1092 = vpack.c.b16 %v1082, %v1081
      %v1093 = vpack.c.b16 %v1084, %v1083
      %v1094 = vpack.c.b16 %v1086, %v1085
      %v1095 = vpack.c.b16 %v1088, %v1087
      %v1096 = vpack.c.b16 %v1090, %v1089
      %v1098 = vsel %vm236, %v1091, 0
      %v1101 = vsel %vm236, %v1092, 0
      %v1104 = vsel %vm236, %v1093, 0
      %v1107 = vsel %vm236, %v1094, 0
      %v1110 = vsel %vm236, %v1095, 0
      %v1113 = vsel %vm236, %v1096, 0
      %v1116 = vsel %vm255, %v1066, 0
      %1118 = vmatprep.subr.bf16.mxu0 0
      %1119 = vmatpush1.bf16.msra.mxu0 %v1116
      %1120 = vmatprep.subr.bf16.mxu0 0
      %1121 = vmatpush1.bf16.msra.mxu0 0
      %1122 = vmatprep.subr.bf16.mxu0 0
      %1123 = vmatpush1.bf16.msra.mxu0 0
      %1124 = vmatprep.subr.bf16.mxu0 0
      %1125 = vmatpush1.bf16.msra.mxu0 0
      %1126 = vmatprep.subr.bf16.mxu0 0
      %1127 = vmatpush1.bf16.msra.mxu0 0
      %1128 = vmatprep.subr.bf16.mxu0 0
      %1129 = vmatpush1.bf16.msra.mxu0 0
      %1130 = vmatprep.subr.bf16.mxu0 0
      %1131 = vmatpush1.bf16.msra.mxu0 0
      %1132 = vmatprep.subr.bf16.mxu0 0
      %1133 = vmatpush1.bf16.msra.mxu0 0
      %1134 = vmatprep.subr.bf16.mxu0 0
      %1135 = vmatpush1.bf16.msra.mxu0 0
      %1136 = vmatprep.subr.bf16.mxu0 0
      %1137 = vmatpush1.bf16.msra.mxu0 0
      %1138 = vmatprep.subr.bf16.mxu0 0
      %1139 = vmatpush1.bf16.msra.mxu0 0
      %1140 = vmatprep.subr.bf16.mxu0 0
      %1141 = vmatpush1.bf16.msra.mxu0 0
      %1142 = vmatprep.subr.bf16.mxu0 0
      %1143 = vmatpush1.bf16.msra.mxu0 0
      %1144 = vmatprep.subr.bf16.mxu0 0
      %1145 = vmatpush1.bf16.msra.mxu0 0
      %1146 = vmatprep.subr.bf16.mxu0 0
      %1147 = vmatpush1.bf16.msra.mxu0 0
      %1148 = vmatprep.subr.bf16.mxu0 0
      %1149 = vmatpush1.bf16.msra.mxu0 0
      %1150 = vmatprep.mubr.bf16.mxu0 0
      %1151 = vmatmul.mubr.bf16.gmra.mrb[0].mxu0 %v1098
      %v1152 = vpop.f32.mrb[0].mxu0
      %v1153 = vadd.f32 0.0, %v1152
      %v1154 = vpop.f32.mrb[0].mxu0
      %v1155 = vpop.f32.mrb[0].mxu0
      %v1156 = vadd.f32 0.0, %v1155
      %v1157 = vpop.f32.mrb[0].mxu0
      %1158 = vmatprep.mubr.bf16.mxu0 0
      %1159 = vmatmul.mubr.bf16.gmra.mrb[0].mxu0 %v1101
      %v1160 = vpop.f32.mrb[0].mxu0
      %v1161 = vadd.f32 0.0, %v1160
      %v1162 = vpop.f32.mrb[0].mxu0
      %v1163 = vpop.f32.mrb[0].mxu0
      %v1164 = vadd.f32 0.0, %v1163
      %v1165 = vpop.f32.mrb[0].mxu0
      %1166 = vmatprep.mubr.bf16.mxu0 0
      %1167 = vmatmul.mubr.bf16.gmra.mrb[0].mxu0 %v1104
      %v1168 = vpop.f32.mrb[0].mxu0
      %v1169 = vadd.f32 0.0, %v1168
      %v1170 = vpop.f32.mrb[0].mxu0
      %v1171 = vpop.f32.mrb[0].mxu0
      %v1172 = vadd.f32 0.0, %v1171
      %v1173 = vpop.f32.mrb[0].mxu0
      %1174 = vmatprep.mubr.bf16.mxu0 0
      %1175 = vmatmul.mubr.bf16.gmra.mrb[0].mxu0 %v1107
      %v1176 = vpop.f32.mrb[0].mxu0
      %v1177 = vadd.f32 0.0, %v1176
      %v1178 = vpop.f32.mrb[0].mxu0
      %v1179 = vpop.f32.mrb[0].mxu0
      %v1180 = vadd.f32 0.0, %v1179
      %v1181 = vpop.f32.mrb[0].mxu0
      %1182 = vmatprep.mubr.bf16.mxu0 0
      %1183 = vmatmul.mubr.bf16.gmra.mrb[0].mxu0 %v1110
      %v1184 = vpop.f32.mrb[0].mxu0
      %v1185 = vadd.f32 0.0, %v1184
      %v1186 = vpop.f32.mrb[0].mxu0
      %v1187 = vpop.f32.mrb[0].mxu0
      %v1188 = vadd.f32 0.0, %v1187
      %v1189 = vpop.f32.mrb[0].mxu0
      %1190 = vmatprep.mubr.bf16.mxu0 0
      %1191 = vmatmul.mubr.bf16.gmra.mrb[0].mxu0 %v1113
      %v1192 = vpop.f32.mrb[0].mxu0
      %v1193 = vadd.f32 0.0, %v1192
      %v1194 = vpop.f32.mrb[0].mxu0
      %v1195 = vpop.f32.mrb[0].mxu0
      %v1196 = vadd.f32 0.0, %v1195
      %v1197 = vpop.f32.mrb[0].mxu0
      %1198 = vdwg.mxu0
      %v1199 = vadd.f32 %v1041, %v1153
      %v1200 = vadd.f32 %v1042, %v1156
      %v1201 = vadd.f32 %v1043, %v1161
      %v1202 = vadd.f32 %v1044, %v1164
      %v1203 = vadd.f32 %v1045, %v1169
      %v1204 = vadd.f32 %v1046, %v1172
      %v1205 = vadd.f32 %v1047, %v1177
      %v1206 = vadd.f32 %v1048, %v1180
      %v1207 = vadd.f32 %v1049, %v1185
      %v1208 = vadd.f32 %v1050, %v1188
      %v1209 = vadd.f32 %v1051, %v1193
      %v1210 = vadd.f32 %v1052, %v1196
      %v1211 = vld [vmem:[%s165 + $0x18] sm:$0xe]
      %v1212 = vld [vmem:[%s165 + $0x1c] sm:$0xf]
      %v1213 = vld [vmem:[%s165 + $0x20] sm:$0xf]
      %v1214 = vld [vmem:[%s165 + $0x24] sm:$0xf]
      %v1215 = vld [vmem:[%s165 + $0x28] sm:$0xf]
      %v1216 = vld [vmem:[%s165 + $0x2c] sm:$0xf]
      %v1217 = vld [vmem:[%s165 + $0x30] sm:$0xf]
      %v1218 = vld [vmem:[%s165 + $0x34] sm:$0xf]
      %v1219 = vld [vmem:[%s165 + $0x38] sm:$0xf]
      %v1220 = vld [vmem:[%s165 + $0x3c] sm:$0xf]
      %v1221 = vld [vmem:[%s165 + $0x40] sm:$0xf]
      %v1222 = vld [vmem:[%s165 + $0x44] sm:$0xf]
      %v1223 = vld [vmem:[%s165 + $0x48] sm:$0x1]
      %s1224 = scalar_lea.vmem %s1, 28
      %v1225 = vld [vmem:[%s1224] sm:$0xf]
      %v1239 = vunpack.c.l.b16 %v1211
      %v1240 = vunpack.c.l.b16 %v1212
      %v1241 = vunpack.c.l.b16 %v1213
      %v1242 = vunpack.c.l.b16 %v1214
      %v1243 = vunpack.c.l.b16 %v1215
      %v1244 = vunpack.c.l.b16 %v1216
      %v1245 = vunpack.c.l.b16 %v1217
      %v1246 = vunpack.c.l.b16 %v1218
      %v1247 = vunpack.c.l.b16 %v1219
      %v1248 = vunpack.c.l.b16 %v1220
      %v1249 = vunpack.c.l.b16 %v1221
      %v1250 = vunpack.c.l.b16 %v1222
      %v1251 = vunpack.c.l.b16 %v1223
      %v1252 = vpack.c.b16 %v1240, %v1239
      %v1253 = vpack.c.b16 %v1242, %v1241
      %v1254 = vpack.c.b16 %v1244, %v1243
      %v1255 = vpack.c.b16 %v1246, %v1245
      %v1256 = vpack.c.b16 %v1248, %v1247
      %v1257 = vpack.c.b16 %v1250, %v1249
      %v1258 = vpack.c.b16 %v1251, %v1251
      %v1259 = vrot.slane %v1252, 1
      %v1260 = vrot.slane %v1253, 1
      %v1261 = vsel %vm222, %v1259, %v1260
      %v1262 = vrot.slane %v1254, 1
      %v1263 = vsel %vm222, %v1260, %v1262
      %v1264 = vrot.slane %v1255, 1
      %v1265 = vsel %vm222, %v1262, %v1264
      %v1266 = vrot.slane %v1256, 1
      %v1267 = vsel %vm222, %v1264, %v1266
      %v1268 = vrot.slane %v1257, 1
      %v1269 = vsel %vm222, %v1266, %v1268
      %v1270 = vrot.slane %v1258, 1
      %v1271 = vsel %vm222, %v1268, %v1270
      %v1273 = vsel %vm236, %v1261, 0
      %v1276 = vsel %vm236, %v1263, 0
      %v1279 = vsel %vm236, %v1265, 0
      %v1282 = vsel %vm236, %v1267, 0
      %v1285 = vsel %vm236, %v1269, 0
      %v1288 = vsel %vm236, %v1271, 0
      %v1291 = vsel %vm255, %v1225, 0
      %1293 = vmatprep.subr.bf16.mxu0 0
      %1294 = vmatpush1.bf16.msra.mxu0 %v1291
      %1295 = vmatprep.subr.bf16.mxu0 0
      %1296 = vmatpush1.bf16.msra.mxu0 0
      %1297 = vmatprep.subr.bf16.mxu0 0
      %1298 = vmatpush1.bf16.msra.mxu0 0
      %1299 = vmatprep.subr.bf16.mxu0 0
      %1300 = vmatpush1.bf16.msra.mxu0 0
      %1301 = vmatprep.subr.bf16.mxu0 0
      %1302 = vmatpush1.bf16.msra.mxu0 0
      %1303 = vmatprep.subr.bf16.mxu0 0
      %1304 = vmatpush1.bf16.msra.mxu0 0
      %1305 = vmatprep.subr.bf16.mxu0 0
      %1306 = vmatpush1.bf16.msra.mxu0 0
      %1307 = vmatprep.subr.bf16.mxu0 0
      %1308 = vmatpush1.bf16.msra.mxu0 0
      %1309 = vmatprep.subr.bf16.mxu0 0
      %1310 = vmatpush1.bf16.msra.mxu0 0
      %1311 = vmatprep.subr.bf16.mxu0 0
      %1312 = vmatpush1.bf16.msra.mxu0 0
      %1313 = vmatprep.subr.bf16.mxu0 0
      %1314 = vmatpush1.bf16.msra.mxu0 0
      %1315 = vmatprep.subr.bf16.mxu0 0
      %1316 = vmatpush1.bf16.msra.mxu0 0
      %1317 = vmatprep.subr.bf16.mxu0 0
      %1318 = vmatpush1.bf16.msra.mxu0 0
      %1319 = vmatprep.subr.bf16.mxu0 0
      %1320 = vmatpush1.bf16.msra.mxu0 0
      %1321 = vmatprep.subr.bf16.mxu0 0
      %1322 = vmatpush1.bf16.msra.mxu0 0
      %1323 = vmatprep.subr.bf16.mxu0 0
      %1324 = vmatpush1.bf16.msra.mxu0 0
      %1325 = vmatprep.mubr.bf16.mxu0 0
      %1326 = vmatmul.mubr.bf16.gmra.mrb[0].mxu0 %v1273
      %v1327 = vpop.f32.mrb[0].mxu0
      %v1328 = vadd.f32 0.0, %v1327
      %v1329 = vpop.f32.mrb[0].mxu0
      %v1330 = vpop.f32.mrb[0].mxu0
      %v1331 = vadd.f32 0.0, %v1330
      %v1332 = vpop.f32.mrb[0].mxu0
      %1333 = vmatprep.mubr.bf16.mxu0 0
      %1334 = vmatmul.mubr.bf16.gmra.mrb[0].mxu0 %v1276
      %v1335 = vpop.f32.mrb[0].mxu0
      %v1336 = vadd.f32 0.0, %v1335
      %v1337 = vpop.f32.mrb[0].mxu0
      %v1338 = vpop.f32.mrb[0].mxu0
      %v1339 = vadd.f32 0.0, %v1338
      %v1340 = vpop.f32.mrb[0].mxu0
      %1341 = vmatprep.mubr.bf16.mxu0 0
      %1342 = vmatmul.mubr.bf16.gmra.mrb[0].mxu0 %v1279
      %v1343 = vpop.f32.mrb[0].mxu0
      %v1344 = vadd.f32 0.0, %v1343
      %v1345 = vpop.f32.mrb[0].mxu0
      %v1346 = vpop.f32.mrb[0].mxu0
      %v1347 = vadd.f32 0.0, %v1346
      %v1348 = vpop.f32.mrb[0].mxu0
      %1349 = vmatprep.mubr.bf16.mxu0 0
      %1350 = vmatmul.mubr.bf16.gmra.mrb[0].mxu0 %v1282
      %v1351 = vpop.f32.mrb[0].mxu0
      %v1352 = vadd.f32 0.0, %v1351
      %v1353 = vpop.f32.mrb[0].mxu0
      %v1354 = vpop.f32.mrb[0].mxu0
      %v1355 = vadd.f32 0.0, %v1354
      %v1356 = vpop.f32.mrb[0].mxu0
      %1357 = vmatprep.mubr.bf16.mxu0 0
      %1358 = vmatmul.mubr.bf16.gmra.mrb[0].mxu0 %v1285
      %v1359 = vpop.f32.mrb[0].mxu0
      %v1360 = vadd.f32 0.0, %v1359
      %v1361 = vpop.f32.mrb[0].mxu0
      %v1362 = vpop.f32.mrb[0].mxu0
      %v1363 = vadd.f32 0.0, %v1362
      %v1364 = vpop.f32.mrb[0].mxu0
      %1365 = vmatprep.mubr.bf16.mxu0 0
      %1366 = vmatmul.mubr.bf16.gmra.mrb[0].mxu0 %v1288
      %v1367 = vpop.f32.mrb[0].mxu0
      %v1368 = vadd.f32 0.0, %v1367
      %v1369 = vpop.f32.mrb[0].mxu0
      %v1370 = vpop.f32.mrb[0].mxu0
      %v1371 = vadd.f32 0.0, %v1370
      %v1372 = vpop.f32.mrb[0].mxu0
      %1373 = vdwg.mxu0
      %v1374 = vadd.f32 %v1199, %v1328
      %v1375 = vadd.f32 %v1200, %v1331
      %v1376 = vadd.f32 %v1201, %v1336
      %v1377 = vadd.f32 %v1202, %v1339
      %v1378 = vadd.f32 %v1203, %v1344
      %v1379 = vadd.f32 %v1204, %v1347
      %v1380 = vadd.f32 %v1205, %v1352
      %v1381 = vadd.f32 %v1206, %v1355
      %v1382 = vadd.f32 %v1207, %v1360
      %v1383 = vadd.f32 %v1208, %v1363
      %v1384 = vadd.f32 %v1209, %v1368
      %v1385 = vadd.f32 %v1210, %v1371
      %v1386 = vld [vmem:[%s165 + $0x18] sm:$0xc]
      %v1387 = vld [vmem:[%s165 + $0x48] sm:$0x3]
      %s1388 = scalar_lea.vmem %s1, 32
      %v1389 = vld [vmem:[%s1388] sm:$0xf]
      %v1392 = vunpack.c.l.b16 %v1386
      %v1393 = vunpack.c.l.b16 %v1387
      %v1394 = vpack.c.b16 %v1240, %v1392
      %v1395 = vpack.c.b16 %v1393, %v1393
      %v1396 = vrot.slane %v1394, 2
      %v1397 = vrot.slane %v1253, 2
      %v1398 = vsel %vm455, %v1396, %v1397
      %v1399 = vrot.slane %v1254, 2
      %v1400 = vsel %vm455, %v1397, %v1399
      %v1401 = vrot.slane %v1255, 2
      %v1402 = vsel %vm455, %v1399, %v1401
      %v1403 = vrot.slane %v1256, 2
      %v1404 = vsel %vm455, %v1401, %v1403
      %v1405 = vrot.slane %v1257, 2
      %v1406 = vsel %vm455, %v1403, %v1405
      %v1407 = vrot.slane %v1395, 2
      %v1408 = vsel %vm455, %v1405, %v1407
      %v1410 = vsel %vm236, %v1398, 0
      %v1413 = vsel %vm236, %v1400, 0
      %v1416 = vsel %vm236, %v1402, 0
      %v1419 = vsel %vm236, %v1404, 0
      %v1422 = vsel %vm236, %v1406, 0
      %v1425 = vsel %vm236, %v1408, 0
      %v1428 = vsel %vm255, %v1389, 0
      %1430 = vmatprep.subr.bf16.mxu0 0
      %1431 = vmatpush1.bf16.msra.mxu0 %v1428
      %1432 = vmatprep.subr.bf16.mxu0 0
      %1433 = vmatpush1.bf16.msra.mxu0 0
      %1434 = vmatprep.subr.bf16.mxu0 0
      %1435 = vmatpush1.bf16.msra.mxu0 0
      %1436 = vmatprep.subr.bf16.mxu0 0
      %1437 = vmatpush1.bf16.msra.mxu0 0
      %1438 = vmatprep.subr.bf16.mxu0 0
      %1439 = vmatpush1.bf16.msra.mxu0 0
      %1440 = vmatprep.subr.bf16.mxu0 0
      %1441 = vmatpush1.bf16.msra.mxu0 0
      %1442 = vmatprep.subr.bf16.mxu0 0
      %1443 = vmatpush1.bf16.msra.mxu0 0
      %1444 = vmatprep.subr.bf16.mxu0 0
      %1445 = vmatpush1.bf16.msra.mxu0 0
      %1446 = vmatprep.subr.bf16.mxu0 0
      %1447 = vmatpush1.bf16.msra.mxu0 0
      %1448 = vmatprep.subr.bf16.mxu0 0
      %1449 = vmatpush1.bf16.msra.mxu0 0
      %1450 = vmatprep.subr.bf16.mxu0 0
      %1451 = vmatpush1.bf16.msra.mxu0 0
      %1452 = vmatprep.subr.bf16.mxu0 0
      %1453 = vmatpush1.bf16.msra.mxu0 0
      %1454 = vmatprep.subr.bf16.mxu0 0
      %1455 = vmatpush1.bf16.msra.mxu0 0
      %1456 = vmatprep.subr.bf16.mxu0 0
      %1457 = vmatpush1.bf16.msra.mxu0 0
      %1458 = vmatprep.subr.bf16.mxu0 0
      %1459 = vmatpush1.bf16.msra.mxu0 0
      %1460 = vmatprep.subr.bf16.mxu0 0
      %1461 = vmatpush1.bf16.msra.mxu0 0
      %1462 = vmatprep.mubr.bf16.mxu0 0
      %1463 = vmatmul.mubr.bf16.gmra.mrb[0].mxu0 %v1410
      %v1464 = vpop.f32.mrb[0].mxu0
      %v1465 = vadd.f32 0.0, %v1464
      %v1466 = vpop.f32.mrb[0].mxu0
      %v1467 = vpop.f32.mrb[0].mxu0
      %v1468 = vadd.f32 0.0, %v1467
      %v1469 = vpop.f32.mrb[0].mxu0
      %1470 = vmatprep.mubr.bf16.mxu0 0
      %1471 = vmatmul.mubr.bf16.gmra.mrb[0].mxu0 %v1413
      %v1472 = vpop.f32.mrb[0].mxu0
      %v1473 = vadd.f32 0.0, %v1472
      %v1474 = vpop.f32.mrb[0].mxu0
      %v1475 = vpop.f32.mrb[0].mxu0
      %v1476 = vadd.f32 0.0, %v1475
      %v1477 = vpop.f32.mrb[0].mxu0
      %1478 = vmatprep.mubr.bf16.mxu0 0
      %1479 = vmatmul.mubr.bf16.gmra.mrb[0].mxu0 %v1416
      %v1480 = vpop.f32.mrb[0].mxu0
      %v1481 = vadd.f32 0.0, %v1480
      %v1482 = vpop.f32.mrb[0].mxu0
      %v1483 = vpop.f32.mrb[0].mxu0
      %v1484 = vadd.f32 0.0, %v1483
      %v1485 = vpop.f32.mrb[0].mxu0
      %1486 = vmatprep.mubr.bf16.mxu0 0
      %1487 = vmatmul.mubr.bf16.gmra.mrb[0].mxu0 %v1419
      %v1488 = vpop.f32.mrb[0].mxu0
      %v1489 = vadd.f32 0.0, %v1488
      %v1490 = vpop.f32.mrb[0].mxu0
      %v1491 = vpop.f32.mrb[0].mxu0
      %v1492 = vadd.f32 0.0, %v1491
      %v1493 = vpop.f32.mrb[0].mxu0
      %1494 = vmatprep.mubr.bf16.mxu0 0
      %1495 = vmatmul.mubr.bf16.gmra.mrb[0].mxu0 %v1422
      %v1496 = vpop.f32.mrb[0].mxu0
      %v1497 = vadd.f32 0.0, %v1496
      %v1498 = vpop.f32.mrb[0].mxu0
      %v1499 = vpop.f32.mrb[0].mxu0
      %v1500 = vadd.f32 0.0, %v1499
      %v1501 = vpop.f32.mrb[0].mxu0
      %1502 = vmatprep.mubr.bf16.mxu0 0
      %1503 = vmatmul.mubr.bf16.gmra.mrb[0].mxu0 %v1425
      %v1504 = vpop.f32.mrb[0].mxu0
      %v1505 = vadd.f32 0.0, %v1504
      %v1506 = vpop.f32.mrb[0].mxu0
      %v1507 = vpop.f32.mrb[0].mxu0
      %v1508 = vadd.f32 0.0, %v1507
      %v1509 = vpop.f32.mrb[0].mxu0
      %1510 = vdwg.mxu0
      %v1511 = vadd.f32 %v1374, %v1465
      %v1512 = vadd.f32 %v1375, %v1468
      %v1513 = vadd.f32 %v1376, %v1473
      %v1514 = vadd.f32 %v1377, %v1476
      %v1515 = vadd.f32 %v1378, %v1481
      %v1516 = vadd.f32 %v1379, %v1484
      %v1517 = vadd.f32 %v1380, %v1489
      %v1518 = vadd.f32 %v1381, %v1492
      %v1519 = vadd.f32 %v1382, %v1497
      %v1520 = vadd.f32 %v1383, %v1500
      %v1521 = vadd.f32 %v1384, %v1505
      %v1522 = vadd.f32 %v1385, %v1508
      %v1523 = vld [vmem:[%s2] sm:$0x3]
      %v1524 = vlaneseq
      %v1525 = vshrl.u32 %v1524, 7
      %v1526 = vsub.s32 0, %v1525
      %v1527 = vrot.slane %v1523, %v1526
      %v1528 = vmul.f32 %v1511, %v1527
      %v1529 = vmul.f32 %v1512, %v1527
      %v1530 = vmul.f32 %v1513, %v1527
      %v1531 = vmul.f32 %v1514, %v1527
      %v1532 = vmul.f32 %v1515, %v1527
      %v1533 = vmul.f32 %v1516, %v1527
      %v1534 = vmul.f32 %v1517, %v1527
      %v1535 = vmul.f32 %v1518, %v1527
      %v1536 = vmul.f32 %v1519, %v1527
      %v1537 = vmul.f32 %v1520, %v1527
      %v1538 = vmul.f32 %v1521, %v1527
      %v1539 = vmul.f32 %v1522, %v1527
      %v1540 = vlaneseq
      %v1541 = vshrl.u32 %v1540, 7
      %v1542 = vsub.s32 1, %v1541
      %v1543 = vrot.slane %v1523, %v1542
      %v1544 = vadd.f32 %v1528, %v1543
      %v1545 = vadd.f32 %v1529, %v1543
      %v1546 = vadd.f32 %v1530, %v1543
      %v1547 = vadd.f32 %v1531, %v1543
      %v1548 = vadd.f32 %v1532, %v1543
      %v1549 = vadd.f32 %v1533, %v1543
      %v1550 = vadd.f32 %v1534, %v1543
      %v1551 = vadd.f32 %v1535, %v1543
      %v1552 = vadd.f32 %v1536, %v1543
      %v1553 = vadd.f32 %v1537, %v1543
      %v1554 = vadd.f32 %v1538, %v1543
      %v1555 = vadd.f32 %v1539, %v1543
      %vm1556 = vcmp.gt.f32.partialorder %v1544, 0.0
      %vm1557 = vcmp.gt.f32.partialorder %v1545, 0.0
      %vm1558 = vcmp.gt.f32.partialorder %v1546, 0.0
      %vm1559 = vcmp.gt.f32.partialorder %v1547, 0.0
      %vm1560 = vcmp.gt.f32.partialorder %v1548, 0.0
      %vm1561 = vcmp.gt.f32.partialorder %v1549, 0.0
      %vm1562 = vcmp.gt.f32.partialorder %v1550, 0.0
      %vm1563 = vcmp.gt.f32.partialorder %v1551, 0.0
      %vm1564 = vcmp.gt.f32.partialorder %v1552, 0.0
      %vm1565 = vcmp.gt.f32.partialorder %v1553, 0.0
      %vm1566 = vcmp.gt.f32.partialorder %v1554, 0.0
      %vm1567 = vcmp.gt.f32.partialorder %v1555, 0.0
      %v1568 = vmul.f32 %v1544, 0.1
      %v1569 = vmul.f32 %v1545, 0.1
      %v1570 = vmul.f32 %v1546, 0.1
      %v1571 = vmul.f32 %v1547, 0.1
      %v1572 = vmul.f32 %v1548, 0.1
      %v1573 = vmul.f32 %v1549, 0.1
      %v1574 = vmul.f32 %v1550, 0.1
      %v1575 = vmul.f32 %v1551, 0.1
      %v1576 = vmul.f32 %v1552, 0.1
      %v1577 = vmul.f32 %v1553, 0.1
      %v1578 = vmul.f32 %v1554, 0.1
      %v1579 = vmul.f32 %v1555, 0.1
      %v1580 = vsel %vm1556, %v1544, %v1568
      %v1581 = vsel %vm1557, %v1545, %v1569
      %v1582 = vsel %vm1558, %v1546, %v1570
      %v1583 = vsel %vm1559, %v1547, %v1571
      %v1584 = vsel %vm1560, %v1548, %v1572
      %v1585 = vsel %vm1561, %v1549, %v1573
      %v1586 = vsel %vm1562, %v1550, %v1574
      %v1587 = vsel %vm1563, %v1551, %v1575
      %v1588 = vsel %vm1564, %v1552, %v1576
      %v1589 = vsel %vm1565, %v1553, %v1577
      %v1590 = vsel %vm1566, %v1554, %v1578
      %v1591 = vsel %vm1567, %v1555, %v1579
      %v1592 = vpack.c.bf16 %v1581, %v1580
      %v1593 = vpack.c.bf16 %v1583, %v1582
      %v1594 = vpack.c.bf16 %v1585, %v1584
      %v1595 = vpack.c.bf16 %v1587, %v1586
      %v1596 = vpack.c.bf16 %v1589, %v1588
      %v1597 = vpack.c.bf16 %v1591, %v1590
      %v1604 = vunpack.c.l.b16 %v1592
      %v1605 = vunpack.c.h.b16 %v1592
      %v1606 = vunpack.c.l.b16 %v1593
      %v1607 = vunpack.c.h.b16 %v1593
      %v1608 = vunpack.c.l.b16 %v1594
      %v1609 = vunpack.c.h.b16 %v1594
      %v1610 = vunpack.c.l.b16 %v1595
      %v1611 = vunpack.c.h.b16 %v1595
      %v1612 = vunpack.c.l.b16 %v1596
      %v1613 = vunpack.c.h.b16 %v1596
      %v1614 = vunpack.c.l.b16 %v1597
      %v1615 = vunpack.c.h.b16 %v1597
      %v1616 = vpack.c.b16 %v1604, %v1604
      %v1617 = vpack.c.b16 %v1605, %v1605
      %v1618 = vpack.c.b16 %v1606, %v1606
      %v1619 = vpack.c.b16 %v1607, %v1607
      %v1620 = vpack.c.b16 %v1608, %v1608
      %v1621 = vpack.c.b16 %v1609, %v1609
      %v1622 = vpack.c.b16 %v1610, %v1610
      %v1623 = vpack.c.b16 %v1611, %v1611
      %v1624 = vpack.c.b16 %v1612, %v1612
      %v1625 = vpack.c.b16 %v1613, %v1613
      %v1626 = vpack.c.b16 %v1614, %v1614
      %v1627 = vpack.c.b16 %v1615, %v1615
      %1640 = vst [vmem:[%s170] sm:$0xf] %v1616
      %1641 = vst [vmem:[%s170 + $0x4] sm:$0xf] %v1617
      %1642 = vst [vmem:[%s170 + $0x8] sm:$0xf] %v1618
      %1643 = vst [vmem:[%s170 + $0xc] sm:$0xf] %v1619
      %1644 = vst [vmem:[%s170 + $0x10] sm:$0xf] %v1620
      %1645 = vst [vmem:[%s170 + $0x14] sm:$0xf] %v1621
      %1646 = vst [vmem:[%s170 + $0x18] sm:$0xf] %v1622
      %1647 = vst [vmem:[%s170 + $0x1c] sm:$0xf] %v1623
      %1648 = vst [vmem:[%s170 + $0x20] sm:$0xf] %v1624
      %1649 = vst [vmem:[%s170 + $0x24] sm:$0xf] %v1625
      %1650 = vst [vmem:[%s170 + $0x28] sm:$0xf] %v1626
      %1651 = vst [vmem:[%s170 + $0x2c] sm:$0xf] %v1627
      %p1652 = scmp.lt.s32.totalorder %s14, 1
      %s1653 = scalar_select %p1652, %s14, 1
      %s1654 = smul.addr %s1653, 12
      %s1655 = smul.addr %s1654, 4
      %s1656 = scalar_lea.vmem %s3, %s1655
      // Predicated region
      $region33: #{block_forward.9} parent=31 // pred_check
        %p1657 = pneg %p100
      $region34: #{block_forward.9} parent=31 // pred_check_branch
        %1659 = sbr.rel (%p1657) target = $region36
      $region35: #{block_forward.9} parent=31 // pred_region
        _
      $region36: #{block_forward.9} parent=31 // pred_fallthru
        _
    $region32: #{block_forward.9} parent=5 // pred_fallthru
      _
    %p1660 = scmp.le.s32.totalorder 2, %s9
    // Predicated region
    $region37: #{block_forward.9} parent=5 // pred_check
      %p1661 = pneg %p1660
    $region38: #{block_forward.9} parent=5 // pred_check_branch
      %1663 = sbr.rel (%p1661) target = $region40
    $region39: #{block_forward.9} parent=5 // pred_region
      %s1664 = ssub.s32 %s9, 2
      // Predicated region
      $region41: #{block_forward.9} parent=39 // pred_check
        %p1665 = pneg %p106
      $region42: #{block_forward.9} parent=39 // pred_check_branch
        %1667 = sbr.rel (%p1665) target = $region44
      $region43: #{block_forward.9} parent=39 // pred_region
        %p1668 = scmp.lt.s32.totalorder %s15, 1
        %s1669 = scalar_select %p1668, %s15, 1
        %s1670 = smul.addr %s1669, 12
        %s1671 = smul.addr %s1670, 4
        %s1672 = scalar_lea.vmem %s3, %s1671
      $region44: #{block_forward.9} parent=39 // pred_fallthru
        _
    $region40: #{block_forward.9} parent=5 // pred_fallthru
      _
  $region6: #{block_forward.9} parent=0 // loop_footer
    %s13 = sadd.s32 1, %s9
  $region7: #{block_forward.9} parent=0 // loop_footer_branch
    %8 = sbr.rel target = $region3
  $region8: #{block_forward.9} parent=0 // loop_exit
    _

// kernel: block_forward.10
$region0: #{block_forward.10}
  #allocation0 [shape = 'u32[]', space=smem, size = 0x4, offset = 0x4, fixed_abs, tag = 'smem constant byte address 0x4 - core index']
  #allocation1 [shape = 'u32[144,128]{1,0:T(1,128)}', space=vmem, size = 0x12000, scoped, tag = 'internal scratch']
  %s0 = inlined_call_operand.vmem [shape: bf16[2,4,40,8], index: 0, kind: input, shape index: {}]
  %s1 = inlined_call_operand.vmem [shape: bf16[9,8,128], index: 1, kind: input, shape index: {}]
  %s2 = inlined_call_operand.vmem [shape: f32[2,128], index: 2, kind: input, shape index: {}]
  %s3 = inlined_call_operand.vmem [shape: bf16[2,32,128], index: 3, kind: output, shape index: {}]
  %s4 = sld [smem:[#allocation0]]
  $region45: #{block_forward.10} parent=0
    _
  %s6 = ssub.s32 1, %s4
  %s7 = scalar_select 0, %s6, %s4
  loop: start=0, step=1, limit=4
  $region2: #{block_forward.10} parent=0 // loop_pre_header
    _
  $region3: #{block_forward.10} parent=0 // loop_header
    %s9 = sphi 0, %s13
    %p10 = scmp.ge.s32.totalorder %s9, 4
    %s19 = sphi 0, %s21
    %s22 = sphi 0, %s19
    %s23 = sphi 0, %s22
    %s39 = sphi 0, %s23
    %s43 = sphi 0, %s43
    %s45 = sphi 0, %s43
    %s46 = sphi 0, %s45
    %s60 = sphi 0, %s46
    %s64 = sphi 0, %s64
    %s66 = sphi 0, %s64
    %s67 = sphi 0, %s66
    %s81 = sphi 0, %s67
    %s87 = sphi 0, %s89
    %s90 = sphi 0, %s87
    %s91 = sphi 0, %s90
    %s107 = sphi 0, %s91
  $region4: #{block_forward.10} parent=0 // loop_header_branch
    %12 = sbr.rel (%p10) target = $region8
  $region5: #{block_forward.10} parent=0 // loop_body
    %s14 = ssub.s32 %s9, 1
    %s15 = ssub.s32 %s9, 2
    %s16 = sadd.s32 %s9, 1
    %s17 = ssub.s32 %s9, %s16
    %p18 = scmp.eq.s32.totalorder %s17, 0
    %s20 = sadd.s32 %s19, 1
    %s21 = scalar_select %p18, %s19, %s20
    %p24 = pneg %p18
    %p25 = scmp.eq.s32.totalorder %s9, 1
    %p26 = por %p24, %p25
    %p27 = scmp.ne.s32.totalorder %s19, %s22
    %p28 = scmp.eq.s32.totalorder %s9, 0
    %p29 = por %p27, %p28
    %p30 = scmp.ne.s32.totalorder %s19, %s22
    %p31 = scmp.eq.s32.totalorder %s14, 1
    %p32 = por %p30, %p31
    %p33 = scmp.ne.s32.totalorder %s22, %s23
    %p34 = scmp.eq.s32.totalorder %s14, 0
    %p35 = por %p33, %p34
    %p36 = scmp.ne.s32.totalorder %s22, %s23
    %p37 = scmp.eq.s32.totalorder %s15, 1
    %p38 = por %p36, %p37
    %p40 = scmp.ne.s32.totalorder %s23, %s39
    %p41 = scmp.eq.s32.totalorder %s15, 0
    %p42 = por %p40, %p41
    %s44 = sadd.s32 %s43, 1
    %p47 = scmp.eq.s32.totalorder %s9, 1
    %p48 = scmp.ne.s32.totalorder %s43, %s45
    %p49 = scmp.eq.s32.totalorder %s9, 0
    %p50 = por %p48, %p49
    %p51 = scmp.ne.s32.totalorder %s43, %s45
    %p52 = scmp.eq.s32.totalorder %s14, 1
    %p53 = por %p51, %p52
    %p54 = scmp.ne.s32.totalorder %s45, %s46
    %p55 = scmp.eq.s32.totalorder %s14, 0
    %p56 = por %p54, %p55
    %p57 = scmp.ne.s32.totalorder %s45, %s46
    %p58 = scmp.eq.s32.totalorder %s15, 1
    %p59 = por %p57, %p58
    %p61 = scmp.ne.s32.totalorder %s46, %s60
    %p62 = scmp.eq.s32.totalorder %s15, 0
    %p63 = por %p61, %p62
    %s65 = sadd.s32 %s64, 1
    %p68 = scmp.eq.s32.totalorder %s9, 1
    %p69 = scmp.ne.s32.totalorder %s64, %s66
    %p70 = scmp.eq.s32.totalorder %s9, 0
    %p71 = por %p69, %p70
    %p72 = scmp.ne.s32.totalorder %s64, %s66
    %p73 = scmp.eq.s32.totalorder %s14, 1
    %p74 = por %p72, %p73
    %p75 = scmp.ne.s32.totalorder %s66, %s67
    %p76 = scmp.eq.s32.totalorder %s14, 0
    %p77 = por %p75, %p76
    %p78 = scmp.ne.s32.totalorder %s66, %s67
    %p79 = scmp.eq.s32.totalorder %s15, 1
    %p80 = por %p78, %p79
    %p82 = scmp.ne.s32.totalorder %s67, %s81
    %p83 = scmp.eq.s32.totalorder %s15, 0
    %p84 = por %p82, %p83
    %s85 = ssub.s32 %s9, %s16
    %p86 = scmp.eq.s32.totalorder %s85, 0
    %s88 = sadd.s32 %s87, 1
    %s89 = scalar_select %p86, %s87, %s88
    %p92 = pneg %p86
    %p93 = scmp.eq.s32.totalorder %s9, 1
    %p94 = por %p92, %p93
    %p95 = scmp.ne.s32.totalorder %s87, %s90
    %p96 = scmp.eq.s32.totalorder %s9, 0
    %p97 = por %p95, %p96
    %p98 = scmp.ne.s32.totalorder %s87, %s90
    %p99 = scmp.eq.s32.totalorder %s14, 1
    %p100 = por %p98, %p99
    %p101 = scmp.ne.s32.totalorder %s90, %s91
    %p102 = scmp.eq.s32.totalorder %s14, 0
    %p103 = por %p101, %p102
    %p104 = scmp.ne.s32.totalorder %s90, %s91
    %p105 = scmp.eq.s32.totalorder %s15, 1
    %p106 = por %p104, %p105
    %p108 = scmp.ne.s32.totalorder %s91, %s107
    %p109 = scmp.eq.s32.totalorder %s15, 0
    %p110 = por %p108, %p109
    %p111 = scmp.le.s32.totalorder 1, %s9
    %p112 = scmp.lt.s32.totalorder %s9, 3
    %p113 = pnand %p111, %p112
    %p114 = pneg %p113
    // Predicated region
    $region9: #{block_forward.10} parent=5 // pred_check
      _
    $region10: #{block_forward.10} parent=5 // pred_check_branch
      %116 = sbr.rel (%p113) target = $region12
    $region11: #{block_forward.10} parent=5 // pred_region
      %s117 = ssub.s32 %s9, 1
      // Predicated region
      $region13: #{block_forward.10} parent=11 // pred_check
        %p118 = pneg %p56
      $region14: #{block_forward.10} parent=11 // pred_check_branch
        %120 = sbr.rel (%p118) target = $region16
      $region15: #{block_forward.10} parent=11 // pred_region
        _
      $region16: #{block_forward.10} parent=11 // pred_fallthru
        _
      // Predicated region
      $region17: #{block_forward.10} parent=11 // pred_check
        %p121 = pneg %p77
      $region18: #{block_forward.10} parent=11 // pred_check_branch
        %123 = sbr.rel (%p121) target = $region20
      $region19: #{block_forward.10} parent=11 // pred_region
        _
      $region20: #{block_forward.10} parent=11 // pred_fallthru
        _
    $region12: #{block_forward.10} parent=5 // pred_fallthru
      _
    %p124 = scmp.lt.s32.totalorder %s9, 2
    // Predicated region
    $region21: #{block_forward.10} parent=5 // pred_check
      %p125 = pneg %p124
    $region22: #{block_forward.10} parent=5 // pred_check_branch
      %127 = sbr.rel (%p125) target = $region24
    $region23: #{block_forward.10} parent=5 // pred_region
      // Predicated region
      $region25: #{block_forward.10} parent=23 // pred_check
        %p128 = pneg %p29
      $region26: #{block_forward.10} parent=23 // pred_check_branch
        %130 = sbr.rel (%p128) target = $region28
      $region27: #{block_forward.10} parent=23 // pred_region
        %p131 = scmp.lt.s32.totalorder %s9, 1
        %s132 = scalar_select %p131, %s9, 1
        %s133 = smul.addr %s132, 20
        %s134 = smul.addr %s133, 4
        %s135 = scalar_lea.vmem %s0, %s134
      $region28: #{block_forward.10} parent=23 // pred_fallthru
        _
    $region24: #{block_forward.10} parent=5 // pred_fallthru
      _
    %p136 = scmp.le.s32.totalorder 1, %s9
    %p137 = scmp.lt.s32.totalorder %s9, 3
    %p138 = pnand %p136, %p137
    %p139 = pneg %p138
    // Predicated region
    $region29: #{block_forward.10} parent=5 // pred_check
      _
    $region30: #{block_forward.10} parent=5 // pred_check_branch
      %141 = sbr.rel (%p138) target = $region32
    $region31: #{block_forward.10} parent=5 // pred_region
      %s142 = ssub.s32 %s9, 1
      %p143 = scmp.lt.s32.totalorder %s14, 1
      %s144 = scalar_select %p143, %s14, 1
      %s145 = smul.addr %s144, 20
      %s146 = smul.addr %s145, 4
      %s147 = scalar_lea.vmem %s0, %s146
      %p148 = pneg %p35
      %p149 = pneg %p32
      %p150 = pneg %p56
      %p151 = pneg %p53
      %p152 = pneg %p77
      %p153 = pneg %p74
      %p154 = pneg %p103
      %p155 = pneg %p100
      %p156 = scmp.lt.s32.totalorder %s14, 1
      %s157 = scalar_select %p156, %s14, 1
      %s158 = smul.addr %s157, 4
      %s159 = smul.addr %s158, 4
      %s160 = scalar_lea.vmem %s3, %s159
      %p161 = scmp.lt.s32.totalorder %s14, 1
      %s162 = scalar_select %p161, %s14, 1
      %s163 = smul.addr %s162, 20
      %s164 = smul.addr %s163, 4
      %s165 = scalar_lea.vmem %s0, %s164
      %p166 = scmp.lt.s32.totalorder %s14, 1
      %s167 = scalar_select %p166, %s14, 1
      %s168 = smul.addr %s167, 4
      %s169 = smul.addr %s168, 4
      %s170 = scalar_lea.vmem %s3, %s169
      %v172 = vld [vmem:[%s165] sm:$0xf]
      %v173 = vld [vmem:[%s165 + $0x4] sm:$0xf]
      %v174 = vld [vmem:[%s165 + $0x8] sm:$0xf]
      %v175 = vld [vmem:[%s165 + $0xc] sm:$0xf]
      %v176 = vld [vmem:[%s1] sm:$0xf]
      %s177 = scalar_lea.vmem %s165, 20
      %v178 = vld [vmem:[%s177] sm:$0xf]
      %v179 = vld [vmem:[%s177 + $0x4] sm:$0xf]
      %v180 = vld [vmem:[%s177 + $0x8] sm:$0xf]
      %v181 = vld [vmem:[%s177 + $0xc] sm:$0xf]
      %s182 = scalar_lea.vmem %s1, 4
      %v183 = vld [vmem:[%s182] sm:$0xf]
      %v188 = vunpack.c.l.b16 %v178
      %v189 = vunpack.c.l.b16 %v179
      %v190 = vunpack.c.l.b16 %v180
      %v191 = vunpack.c.l.b16 %v181
      %v192 = vpack.c.b16 %v189, %v188
      %v193 = vpack.c.b16 %v191, %v190
      %vm194 = vcmask 64512
      %v196 = vsel %vm194, %v192, 0
      %v199 = vsel %vm194, %v193, 0
      %vm201 = vcmask 1043456
      %v203 = vsel %vm201, %v183, 0
      %205 = vmatprep.subr.bf16.mxu0 0
      %206 = vmatpush1.bf16.msra.mxu0 %v203
      %207 = vmatprep.subr.bf16.mxu0 0
      %208 = vmatpush1.bf16.msra.mxu0 0
      %209 = vmatprep.subr.bf16.mxu0 0
      %210 = vmatpush1.bf16.msra.mxu0 0
      %211 = vmatprep.subr.bf16.mxu0 0
      %212 = vmatpush1.bf16.msra.mxu0 0
      %213 = vmatprep.subr.bf16.mxu0 0
      %214 = vmatpush1.bf16.msra.mxu0 0
      %215 = vmatprep.subr.bf16.mxu0 0
      %216 = vmatpush1.bf16.msra.mxu0 0
      %217 = vmatprep.subr.bf16.mxu0 0
      %218 = vmatpush1.bf16.msra.mxu0 0
      %219 = vmatprep.subr.bf16.mxu0 0
      %220 = vmatpush1.bf16.msra.mxu0 0
      %221 = vmatprep.subr.bf16.mxu0 0
      %222 = vmatpush1.bf16.msra.mxu0 0
      %223 = vmatprep.subr.bf16.mxu0 0
      %224 = vmatpush1.bf16.msra.mxu0 0
      %225 = vmatprep.subr.bf16.mxu0 0
      %226 = vmatpush1.bf16.msra.mxu0 0
      %227 = vmatprep.subr.bf16.mxu0 0
      %228 = vmatpush1.bf16.msra.mxu0 0
      %229 = vmatprep.subr.bf16.mxu0 0
      %230 = vmatpush1.bf16.msra.mxu0 0
      %231 = vmatprep.subr.bf16.mxu0 0
      %232 = vmatpush1.bf16.msra.mxu0 0
      %233 = vmatprep.subr.bf16.mxu0 0
      %234 = vmatpush1.bf16.msra.mxu0 0
      %235 = vmatprep.subr.bf16.mxu0 0
      %236 = vmatpush1.bf16.msra.mxu0 0
      %237 = vmatprep.mubr.bf16.mxu0 0
      %238 = vmatmul.mubr.bf16.gmra.mrb[0].mxu0 %v196
      %v239 = vpop.f32.mrb[0].mxu0
      %v240 = vadd.f32 0.0, %v239
      %v241 = vpop.f32.mrb[0].mxu0
      %v242 = vpop.f32.mrb[0].mxu0
      %v243 = vadd.f32 0.0, %v242
      %v244 = vpop.f32.mrb[0].mxu0
      %245 = vmatprep.mubr.bf16.mxu0 0
      %246 = vmatmul.mubr.bf16.gmra.mrb[0].mxu0 %v199
      %v247 = vpop.f32.mrb[0].mxu0
      %v248 = vadd.f32 0.0, %v247
      %v249 = vpop.f32.mrb[0].mxu0
      %v250 = vpop.f32.mrb[0].mxu0
      %v251 = vadd.f32 0.0, %v250
      %v252 = vpop.f32.mrb[0].mxu0
      %253 = vdwg.mxu0
      %v258 = vunpack.c.l.b16 %v172
      %v259 = vunpack.c.l.b16 %v173
      %v260 = vunpack.c.l.b16 %v174
      %v261 = vunpack.c.l.b16 %v175
      %v262 = vpack.c.b16 %v259, %v258
      %v263 = vpack.c.b16 %v261, %v260
      %v265 = vsel %vm194, %v262, 0
      %v268 = vsel %vm194, %v263, 0
      %v271 = vsel %vm201, %v176, 0
      %273 = vmatprep.subr.bf16.mxu0 0
      %274 = vmatpush1.bf16.msra.mxu0 %v271
      %275 = vmatprep.subr.bf16.mxu0 0
      %276 = vmatpush1.bf16.msra.mxu0 0
      %277 = vmatprep.subr.bf16.mxu0 0
      %278 = vmatpush1.bf16.msra.mxu0 0
      %279 = vmatprep.subr.bf16.mxu0 0
      %280 = vmatpush1.bf16.msra.mxu0 0
      %281 = vmatprep.subr.bf16.mxu0 0
      %282 = vmatpush1.bf16.msra.mxu0 0
      %283 = vmatprep.subr.bf16.mxu0 0
      %284 = vmatpush1.bf16.msra.mxu0 0
      %285 = vmatprep.subr.bf16.mxu0 0
      %286 = vmatpush1.bf16.msra.mxu0 0
      %287 = vmatprep.subr.bf16.mxu0 0
      %288 = vmatpush1.bf16.msra.mxu0 0
      %289 = vmatprep.subr.bf16.mxu0 0
      %290 = vmatpush1.bf16.msra.mxu0 0
      %291 = vmatprep.subr.bf16.mxu0 0
      %292 = vmatpush1.bf16.msra.mxu0 0
      %293 = vmatprep.subr.bf16.mxu0 0
      %294 = vmatpush1.bf16.msra.mxu0 0
      %295 = vmatprep.subr.bf16.mxu0 0
      %296 = vmatpush1.bf16.msra.mxu0 0
      %297 = vmatprep.subr.bf16.mxu0 0
      %298 = vmatpush1.bf16.msra.mxu0 0
      %299 = vmatprep.subr.bf16.mxu0 0
      %300 = vmatpush1.bf16.msra.mxu0 0
      %301 = vmatprep.subr.bf16.mxu0 0
      %302 = vmatpush1.bf16.msra.mxu0 0
      %303 = vmatprep.subr.bf16.mxu0 0
      %304 = vmatpush1.bf16.msra.mxu0 0
      %305 = vmatprep.mubr.bf16.mxu0 0
      %306 = vmatmul.mubr.bf16.gmra.mrb[0].mxu0 %v265
      %v307 = vpop.f32.mrb[0].mxu0
      %v308 = vadd.f32 %v240, %v307
      %v309 = vpop.f32.mrb[0].mxu0
      %v310 = vpop.f32.mrb[0].mxu0
      %v311 = vadd.f32 %v243, %v310
      %v312 = vpop.f32.mrb[0].mxu0
      %313 = vmatprep.mubr.bf16.mxu0 0
      %314 = vmatmul.mubr.bf16.gmra.mrb[0].mxu0 %v268
      %v315 = vpop.f32.mrb[0].mxu0
      %v316 = vadd.f32 %v248, %v315
      %v317 = vpop.f32.mrb[0].mxu0
      %v318 = vpop.f32.mrb[0].mxu0
      %v319 = vadd.f32 %v251, %v318
      %v320 = vpop.f32.mrb[0].mxu0
      %321 = vdwg.mxu0
      %v322 = vld [vmem:[%s165] sm:$0xf]
      %v323 = vld [vmem:[%s165 + $0x4] sm:$0xf]
      %v324 = vld [vmem:[%s165 + $0x8] sm:$0xf]
      %v325 = vld [vmem:[%s165 + $0xc] sm:$0xf]
      %v326 = vld [vmem:[%s165 + $0x10] sm:$0x1]
      %s327 = scalar_lea.vmem %s1, 8
      %v328 = vld [vmem:[%s327] sm:$0xf]
      %v334 = vunpack.c.l.b16 %v322
      %v335 = vunpack.c.l.b16 %v323
      %v336 = vunpack.c.l.b16 %v324
      %v337 = vunpack.c.l.b16 %v325
      %v338 = vunpack.c.l.b16 %v326
      %v339 = vpack.c.b16 %v335, %v334
      %v340 = vpack.c.b16 %v337, %v336
      %v341 = vpack.c.b16 %v338, %v338
      %vm342 = vsmask.f32 7424
      %v344 = vshrl.u32 %v339, 16
      %v346 = vshll.u32 %v339, 16
      %v348 = vrot.slane %v346, 1
      %v349 = vor.u32 %v344, %v348
      %v351 = vshll.u32 %v340, 16
      %v353 = vrot.slane %v351, 1
      %v354 = vsel %vm342, %v349, %v353
      %v355 = vshrl.u32 %v340, 16
      %v357 = vor.u32 %v355, %v353
      %v359 = vshll.u32 %v341, 16
      %v361 = vrot.slane %v359, 1
      %v362 = vsel %vm342, %v357, %v361
      %v364 = vsel %vm194, %v354, 0
      %v367 = vsel %vm194, %v362, 0
      %v370 = vsel %vm201, %v328, 0
      %372 = vmatprep.subr.bf16.mxu0 0
      %373 = vmatpush1.bf16.msra.mxu0 %v370
      %374 = vmatprep.subr.bf16.mxu0 0
      %375 = vmatpush1.bf16.msra.mxu0 0
      %376 = vmatprep.subr.bf16.mxu0 0
      %377 = vmatpush1.bf16.msra.mxu0 0
      %378 = vmatprep.subr.bf16.mxu0 0
      %379 = vmatpush1.bf16.msra.mxu0 0
      %380 = vmatprep.subr.bf16.mxu0 0
      %381 = vmatpush1.bf16.msra.mxu0 0
      %382 = vmatprep.subr.bf16.mxu0 0
      %383 = vmatpush1.bf16.msra.mxu0 0
      %384 = vmatprep.subr.bf16.mxu0 0
      %385 = vmatpush1.bf16.msra.mxu0 0
      %386 = vmatprep.subr.bf16.mxu0 0
      %387 = vmatpush1.bf16.msra.mxu0 0
      %388 = vmatprep.subr.bf16.mxu0 0
      %389 = vmatpush1.bf16.msra.mxu0 0
      %390 = vmatprep.subr.bf16.mxu0 0
      %391 = vmatpush1.bf16.msra.mxu0 0
      %392 = vmatprep.subr.bf16.mxu0 0
      %393 = vmatpush1.bf16.msra.mxu0 0
      %394 = vmatprep.subr.bf16.mxu0 0
      %395 = vmatpush1.bf16.msra.mxu0 0
      %396 = vmatprep.subr.bf16.mxu0 0
      %397 = vmatpush1.bf16.msra.mxu0 0
      %398 = vmatprep.subr.bf16.mxu0 0
      %399 = vmatpush1.bf16.msra.mxu0 0
      %400 = vmatprep.subr.bf16.mxu0 0
      %401 = vmatpush1.bf16.msra.mxu0 0
      %402 = vmatprep.subr.bf16.mxu0 0
      %403 = vmatpush1.bf16.msra.mxu0 0
      %404 = vmatprep.mubr.bf16.mxu0 0
      %405 = vmatmul.mubr.bf16.gmra.mrb[0].mxu0 %v364
      %v406 = vpop.f32.mrb[0].mxu0
      %v407 = vadd.f32 0.0, %v406
      %v408 = vpop.f32.mrb[0].mxu0
      %v409 = vpop.f32.mrb[0].mxu0
      %v410 = vadd.f32 0.0, %v409
      %v411 = vpop.f32.mrb[0].mxu0
      %412 = vmatprep.mubr.bf16.mxu0 0
      %413 = vmatmul.mubr.bf16.gmra.mrb[0].mxu0 %v367
      %v414 = vpop.f32.mrb[0].mxu0
      %v415 = vadd.f32 0.0, %v414
      %v416 = vpop.f32.mrb[0].mxu0
      %v417 = vpop.f32.mrb[0].mxu0
      %v418 = vadd.f32 0.0, %v417
      %v419 = vpop.f32.mrb[0].mxu0
      %420 = vdwg.mxu0
      %v421 = vadd.f32 %v308, %v407
      %v422 = vadd.f32 %v311, %v410
      %v423 = vadd.f32 %v316, %v415
      %v424 = vadd.f32 %v319, %v418
      %s425 = scalar_lea.vmem %s165, 40
      %v426 = vld [vmem:[%s425] sm:$0xf]
      %v427 = vld [vmem:[%s425 + $0x4] sm:$0xf]
      %v428 = vld [vmem:[%s425 + $0x8] sm:$0xf]
      %v429 = vld [vmem:[%s425 + $0xc] sm:$0xf]
      %s430 = scalar_lea.vmem %s1, 12
      %v431 = vld [vmem:[%s430] sm:$0xf]
      %v436 = vunpack.c.l.b16 %v426
      %v437 = vunpack.c.l.b16 %v427
      %v438 = vunpack.c.l.b16 %v428
      %v439 = vunpack.c.l.b16 %v429
      %v440 = vpack.c.b16 %v437, %v436
      %v441 = vpack.c.b16 %v439, %v438
      %v443 = vsel %vm194, %v440, 0
      %v446 = vsel %vm194, %v441, 0
      %v449 = vsel %vm201, %v431, 0
      %451 = vmatprep.subr.bf16.mxu0 0
      %452 = vmatpush1.bf16.msra.mxu0 %v449
      %453 = vmatprep.subr.bf16.mxu0 0
      %454 = vmatpush1.bf16.msra.mxu0 0
      %455 = vmatprep.subr.bf16.mxu0 0
      %456 = vmatpush1.bf16.msra.mxu0 0
      %457 = vmatprep.subr.bf16.mxu0 0
      %458 = vmatpush1.bf16.msra.mxu0 0
      %459 = vmatprep.subr.bf16.mxu0 0
      %460 = vmatpush1.bf16.msra.mxu0 0
      %461 = vmatprep.subr.bf16.mxu0 0
      %462 = vmatpush1.bf16.msra.mxu0 0
      %463 = vmatprep.subr.bf16.mxu0 0
      %464 = vmatpush1.bf16.msra.mxu0 0
      %465 = vmatprep.subr.bf16.mxu0 0
      %466 = vmatpush1.bf16.msra.mxu0 0
      %467 = vmatprep.subr.bf16.mxu0 0
      %468 = vmatpush1.bf16.msra.mxu0 0
      %469 = vmatprep.subr.bf16.mxu0 0
      %470 = vmatpush1.bf16.msra.mxu0 0
      %471 = vmatprep.subr.bf16.mxu0 0
      %472 = vmatpush1.bf16.msra.mxu0 0
      %473 = vmatprep.subr.bf16.mxu0 0
      %474 = vmatpush1.bf16.msra.mxu0 0
      %475 = vmatprep.subr.bf16.mxu0 0
      %476 = vmatpush1.bf16.msra.mxu0 0
      %477 = vmatprep.subr.bf16.mxu0 0
      %478 = vmatpush1.bf16.msra.mxu0 0
      %479 = vmatprep.subr.bf16.mxu0 0
      %480 = vmatpush1.bf16.msra.mxu0 0
      %481 = vmatprep.subr.bf16.mxu0 0
      %482 = vmatpush1.bf16.msra.mxu0 0
      %483 = vmatprep.mubr.bf16.mxu0 0
      %484 = vmatmul.mubr.bf16.gmra.mrb[0].mxu0 %v443
      %v485 = vpop.f32.mrb[0].mxu0
      %v486 = vadd.f32 0.0, %v485
      %v487 = vpop.f32.mrb[0].mxu0
      %v488 = vpop.f32.mrb[0].mxu0
      %v489 = vadd.f32 0.0, %v488
      %v490 = vpop.f32.mrb[0].mxu0
      %491 = vmatprep.mubr.bf16.mxu0 0
      %492 = vmatmul.mubr.bf16.gmra.mrb[0].mxu0 %v446
      %v493 = vpop.f32.mrb[0].mxu0
      %v494 = vadd.f32 0.0, %v493
      %v495 = vpop.f32.mrb[0].mxu0
      %v496 = vpop.f32.mrb[0].mxu0
      %v497 = vadd.f32 0.0, %v496
      %v498 = vpop.f32.mrb[0].mxu0
      %499 = vdwg.mxu0
      %v500 = vadd.f32 %v421, %v486
      %v501 = vadd.f32 %v422, %v489
      %v502 = vadd.f32 %v423, %v494
      %v503 = vadd.f32 %v424, %v497
      %s504 = scalar_lea.vmem %s165, 60
      %v505 = vld [vmem:[%s504] sm:$0xf]
      %v506 = vld [vmem:[%s504 + $0x4] sm:$0xf]
      %v507 = vld [vmem:[%s504 + $0x8] sm:$0xf]
      %v508 = vld [vmem:[%s504 + $0xc] sm:$0xf]
      %s509 = scalar_lea.vmem %s1, 16
      %v510 = vld [vmem:[%s509] sm:$0xf]
      %v515 = vunpack.c.l.b16 %v505
      %v516 = vunpack.c.l.b16 %v506
      %v517 = vunpack.c.l.b16 %v507
      %v518 = vunpack.c.l.b16 %v508
      %v519 = vpack.c.b16 %v516, %v515
      %v520 = vpack.c.b16 %v518, %v517
      %v522 = vsel %vm194, %v519, 0
      %v525 = vsel %vm194, %v520, 0
      %v528 = vsel %vm201, %v510, 0
      %530 = vmatprep.subr.bf16.mxu0 0
      %531 = vmatpush1.bf16.msra.mxu0 %v528
      %532 = vmatprep.subr.bf16.mxu0 0
      %533 = vmatpush1.bf16.msra.mxu0 0
      %534 = vmatprep.subr.bf16.mxu0 0
      %535 = vmatpush1.bf16.msra.mxu0 0
      %536 = vmatprep.subr.bf16.mxu0 0
      %537 = vmatpush1.bf16.msra.mxu0 0
      %538 = vmatprep.subr.bf16.mxu0 0
      %539 = vmatpush1.bf16.msra.mxu0 0
      %540 = vmatprep.subr.bf16.mxu0 0
      %541 = vmatpush1.bf16.msra.mxu0 0
      %542 = vmatprep.subr.bf16.mxu0 0
      %543 = vmatpush1.bf16.msra.mxu0 0
      %544 = vmatprep.subr.bf16.mxu0 0
      %545 = vmatpush1.bf16.msra.mxu0 0
      %546 = vmatprep.subr.bf16.mxu0 0
      %547 = vmatpush1.bf16.msra.mxu0 0
      %548 = vmatprep.subr.bf16.mxu0 0
      %549 = vmatpush1.bf16.msra.mxu0 0
      %550 = vmatprep.subr.bf16.mxu0 0
      %551 = vmatpush1.bf16.msra.mxu0 0
      %552 = vmatprep.subr.bf16.mxu0 0
      %553 = vmatpush1.bf16.msra.mxu0 0
      %554 = vmatprep.subr.bf16.mxu0 0
      %555 = vmatpush1.bf16.msra.mxu0 0
      %556 = vmatprep.subr.bf16.mxu0 0
      %557 = vmatpush1.bf16.msra.mxu0 0
      %558 = vmatprep.subr.bf16.mxu0 0
      %559 = vmatpush1.bf16.msra.mxu0 0
      %560 = vmatprep.subr.bf16.mxu0 0
      %561 = vmatpush1.bf16.msra.mxu0 0
      %562 = vmatprep.mubr.bf16.mxu0 0
      %563 = vmatmul.mubr.bf16.gmra.mrb[0].mxu0 %v522
      %v564 = vpop.f32.mrb[0].mxu0
      %v565 = vadd.f32 0.0, %v564
      %v566 = vpop.f32.mrb[0].mxu0
      %v567 = vpop.f32.mrb[0].mxu0
      %v568 = vadd.f32 0.0, %v567
      %v569 = vpop.f32.mrb[0].mxu0
      %570 = vmatprep.mubr.bf16.mxu0 0
      %571 = vmatmul.mubr.bf16.gmra.mrb[0].mxu0 %v525
      %v572 = vpop.f32.mrb[0].mxu0
      %v573 = vadd.f32 0.0, %v572
      %v574 = vpop.f32.mrb[0].mxu0
      %v575 = vpop.f32.mrb[0].mxu0
      %v576 = vadd.f32 0.0, %v575
      %v577 = vpop.f32.mrb[0].mxu0
      %578 = vdwg.mxu0
      %v579 = vadd.f32 %v500, %v565
      %v580 = vadd.f32 %v501, %v568
      %v581 = vadd.f32 %v502, %v573
      %v582 = vadd.f32 %v503, %v576
      %v583 = vld [vmem:[%s425] sm:$0xf]
      %v584 = vld [vmem:[%s425 + $0x4] sm:$0xf]
      %v585 = vld [vmem:[%s425 + $0x8] sm:$0xf]
      %v586 = vld [vmem:[%s425 + $0xc] sm:$0xf]
      %v587 = vld [vmem:[%s425 + $0x10] sm:$0x1]
      %s588 = scalar_lea.vmem %s1, 20
      %v589 = vld [vmem:[%s588] sm:$0xf]
      %v595 = vunpack.c.l.b16 %v583
      %v596 = vunpack.c.l.b16 %v584
      %v597 = vunpack.c.l.b16 %v585
      %v598 = vunpack.c.l.b16 %v586
      %v599 = vunpack.c.l.b16 %v587
      %v600 = vpack.c.b16 %v596, %v595
      %v601 = vpack.c.b16 %v598, %v597
      %v602 = vpack.c.b16 %v599, %v599
      %v604 = vshrl.u32 %v600, 16
      %v606 = vshll.u32 %v600, 16
      %v608 = vrot.slane %v606, 1
      %v609 = vor.u32 %v604, %v608
      %v611 = vshll.u32 %v601, 16
      %v613 = vrot.slane %v611, 1
      %v614 = vsel %vm342, %v609, %v613
      %v615 = vshrl.u32 %v601, 16
      %v617 = vor.u32 %v615, %v613
      %v619 = vshll.u32 %v602, 16
      %v621 = vrot.slane %v619, 1
      %v622 = vsel %vm342, %v617, %v621
      %v624 = vsel %vm194, %v614, 0
      %v627 = vsel %vm194, %v622, 0
      %v630 = vsel %vm201, %v589, 0
      %632 = vmatprep.subr.bf16.mxu0 0
      %633 = vmatpush1.bf16.msra.mxu0 %v630
      %634 = vmatprep.subr.bf16.mxu0 0
      %635 = vmatpush1.bf16.msra.mxu0 0
      %636 = vmatprep.subr.bf16.mxu0 0
      %637 = vmatpush1.bf16.msra.mxu0 0
      %638 = vmatprep.subr.bf16.mxu0 0
      %639 = vmatpush1.bf16.msra.mxu0 0
      %640 = vmatprep.subr.bf16.mxu0 0
      %641 = vmatpush1.bf16.msra.mxu0 0
      %642 = vmatprep.subr.bf16.mxu0 0
      %643 = vmatpush1.bf16.msra.mxu0 0
      %644 = vmatprep.subr.bf16.mxu0 0
      %645 = vmatpush1.bf16.msra.mxu0 0
      %646 = vmatprep.subr.bf16.mxu0 0
      %647 = vmatpush1.bf16.msra.mxu0 0
      %648 = vmatprep.subr.bf16.mxu0 0
      %649 = vmatpush1.bf16.msra.mxu0 0
      %650 = vmatprep.subr.bf16.mxu0 0
      %651 = vmatpush1.bf16.msra.mxu0 0
      %652 = vmatprep.subr.bf16.mxu0 0
      %653 = vmatpush1.bf16.msra.mxu0 0
      %654 = vmatprep.subr.bf16.mxu0 0
      %655 = vmatpush1.bf16.msra.mxu0 0
      %656 = vmatprep.subr.bf16.mxu0 0
      %657 = vmatpush1.bf16.msra.mxu0 0
      %658 = vmatprep.subr.bf16.mxu0 0
      %659 = vmatpush1.bf16.msra.mxu0 0
      %660 = vmatprep.subr.bf16.mxu0 0
      %661 = vmatpush1.bf16.msra.mxu0 0
      %662 = vmatprep.subr.bf16.mxu0 0
      %663 = vmatpush1.bf16.msra.mxu0 0
      %664 = vmatprep.mubr.bf16.mxu0 0
      %665 = vmatmul.mubr.bf16.gmra.mrb[0].mxu0 %v624
      %v666 = vpop.f32.mrb[0].mxu0
      %v667 = vadd.f32 0.0, %v666
      %v668 = vpop.f32.mrb[0].mxu0
      %v669 = vpop.f32.mrb[0].mxu0
      %v670 = vadd.f32 0.0, %v669
      %v671 = vpop.f32.mrb[0].mxu0
      %672 = vmatprep.mubr.bf16.mxu0 0
      %673 = vmatmul.mubr.bf16.gmra.mrb[0].mxu0 %v627
      %v674 = vpop.f32.mrb[0].mxu0
      %v675 = vadd.f32 0.0, %v674
      %v676 = vpop.f32.mrb[0].mxu0
      %v677 = vpop.f32.mrb[0].mxu0
      %v678 = vadd.f32 0.0, %v677
      %v679 = vpop.f32.mrb[0].mxu0
      %680 = vdwg.mxu0
      %v681 = vadd.f32 %v579, %v667
      %v682 = vadd.f32 %v580, %v670
      %v683 = vadd.f32 %v581, %v675
      %v684 = vadd.f32 %v582, %v678
      %v685 = vld [vmem:[%s165] sm:$0xc]
      %v686 = vld [vmem:[%s165 + $0x10] sm:$0x7]
      %s687 = scalar_lea.vmem %s1, 24
      %v688 = vld [vmem:[%s687] sm:$0xf]
      %v691 = vunpack.c.l.b16 %v685
      %v692 = vunpack.c.l.b16 %v686
      %v693 = vpack.c.b16 %v335, %v691
      %v694 = vpack.c.b16 %v692, %v692
      %vm695 = vsmask.f32 5376
      %v697 = vshrl.u32 %v693, 16
      %v699 = vrot.slane %v697, 2
      %v700 = vshll.u32 %v693, 16
      %v702 = vrot.slane %v700, 3
      %v703 = vor.u32 %v699, %v702
      %v704 = vrot.slane %v355, 2
      %v705 = vrot.slane %v351, 3
      %v706 = vor.u32 %v704, %v705
      %v707 = vsel %vm695, %v703, %v706
      %v709 = vshrl.u32 %v694, 16
      %v711 = vrot.slane %v709, 2
      %v712 = vshll.u32 %v694, 16
      %v714 = vrot.slane %v712, 3
      %v715 = vor.u32 %v711, %v714
      %v716 = vsel %vm695, %v706, %v715
      %v718 = vsel %vm194, %v707, 0
      %v721 = vsel %vm194, %v716, 0
      %v724 = vsel %vm201, %v688, 0
      %726 = vmatprep.subr.bf16.mxu0 0
      %727 = vmatpush1.bf16.msra.mxu0 %v724
      %728 = vmatprep.subr.bf16.mxu0 0
      %729 = vmatpush1.bf16.msra.mxu0 0
      %730 = vmatprep.subr.bf16.mxu0 0
      %731 = vmatpush1.bf16.msra.mxu0 0
      %732 = vmatprep.subr.bf16.mxu0 0
      %733 = vmatpush1.bf16.msra.mxu0 0
      %734 = vmatprep.subr.bf16.mxu0 0
      %735 = vmatpush1.bf16.msra.mxu0 0
      %736 = vmatprep.subr.bf16.mxu0 0
      %737 = vmatpush1.bf16.msra.mxu0 0
      %738 = vmatprep.subr.bf16.mxu0 0
      %739 = vmatpush1.bf16.msra.mxu0 0
      %740 = vmatprep.subr.bf16.mxu0 0
      %741 = vmatpush1.bf16.msra.mxu0 0
      %742 = vmatprep.subr.bf16.mxu0 0
      %743 = vmatpush1.bf16.msra.mxu0 0
      %744 = vmatprep.subr.bf16.mxu0 0
      %745 = vmatpush1.bf16.msra.mxu0 0
      %746 = vmatprep.subr.bf16.mxu0 0
      %747 = vmatpush1.bf16.msra.mxu0 0
      %748 = vmatprep.subr.bf16.mxu0 0
      %749 = vmatpush1.bf16.msra.mxu0 0
      %750 = vmatprep.subr.bf16.mxu0 0
      %751 = vmatpush1.bf16.msra.mxu0 0
      %752 = vmatprep.subr.bf16.mxu0 0
      %753 = vmatpush1.bf16.msra.mxu0 0
      %754 = vmatprep.subr.bf16.mxu0 0
      %755 = vmatpush1.bf16.msra.mxu0 0
      %756 = vmatprep.subr.bf16.mxu0 0
      %757 = vmatpush1.bf16.msra.mxu0 0
      %758 = vmatprep.mubr.bf16.mxu0 0
      %759 = vmatmul.mubr.bf16.gmra.mrb[0].mxu0 %v718
      %v760 = vpop.f32.mrb[0].mxu0
      %v761 = vadd.f32 0.0, %v760
      %v762 = vpop.f32.mrb[0].mxu0
      %v763 = vpop.f32.mrb[0].mxu0
      %v764 = vadd.f32 0.0, %v763
      %v765 = vpop.f32.mrb[0].mxu0
      %766 = vmatprep.mubr.bf16.mxu0 0
      %767 = vmatmul.mubr.bf16.gmra.mrb[0].mxu0 %v721
      %v768 = vpop.f32.mrb[0].mxu0
      %v769 = vadd.f32 0.0, %v768
      %v770 = vpop.f32.mrb[0].mxu0
      %v771 = vpop.f32.mrb[0].mxu0
      %v772 = vadd.f32 0.0, %v771
      %v773 = vpop.f32.mrb[0].mxu0
      %774 = vdwg.mxu0
      %v775 = vadd.f32 %v681, %v761
      %v776 = vadd.f32 %v682, %v764
      %v777 = vadd.f32 %v683, %v769
      %v778 = vadd.f32 %v684, %v772
      %v779 = vld [vmem:[%s177] sm:$0xc]
      %v780 = vld [vmem:[%s177 + $0x4] sm:$0xf]
      %v781 = vld [vmem:[%s177 + $0x8] sm:$0xf]
      %v782 = vld [vmem:[%s177 + $0xc] sm:$0xf]
      %v783 = vld [vmem:[%s177 + $0x10] sm:$0x7]
      %s784 = scalar_lea.vmem %s1, 28
      %v785 = vld [vmem:[%s784] sm:$0xf]
      %v791 = vunpack.c.l.b16 %v779
      %v792 = vunpack.c.l.b16 %v780
      %v793 = vunpack.c.l.b16 %v781
      %v794 = vunpack.c.l.b16 %v782
      %v795 = vunpack.c.l.b16 %v783
      %v796 = vpack.c.b16 %v792, %v791
      %v797 = vpack.c.b16 %v794, %v793
      %v798 = vpack.c.b16 %v795, %v795
      %v800 = vshrl.u32 %v796, 16
      %v802 = vrot.slane %v800, 2
      %v803 = vshll.u32 %v796, 16
      %v805 = vrot.slane %v803, 3
      %v806 = vor.u32 %v802, %v805
      %v808 = vshrl.u32 %v797, 16
      %v810 = vrot.slane %v808, 2
      %v811 = vshll.u32 %v797, 16
      %v813 = vrot.slane %v811, 3
      %v814 = vor.u32 %v810, %v813
      %v815 = vsel %vm695, %v806, %v814
      %v817 = vshrl.u32 %v798, 16
      %v819 = vrot.slane %v817, 2
      %v820 = vshll.u32 %v798, 16
      %v822 = vrot.slane %v820, 3
      %v823 = vor.u32 %v819, %v822
      %v824 = vsel %vm695, %v814, %v823
      %v826 = vsel %vm194, %v815, 0
      %v829 = vsel %vm194, %v824, 0
      %v832 = vsel %vm201, %v785, 0
      %834 = vmatprep.subr.bf16.mxu0 0
      %835 = vmatpush1.bf16.msra.mxu0 %v832
      %836 = vmatprep.subr.bf16.mxu0 0
      %837 = vmatpush1.bf16.msra.mxu0 0
      %838 = vmatprep.subr.bf16.mxu0 0
      %839 = vmatpush1.bf16.msra.mxu0 0
      %840 = vmatprep.subr.bf16.mxu0 0
      %841 = vmatpush1.bf16.msra.mxu0 0
      %842 = vmatprep.subr.bf16.mxu0 0
      %843 = vmatpush1.bf16.msra.mxu0 0
      %844 = vmatprep.subr.bf16.mxu0 0
      %845 = vmatpush1.bf16.msra.mxu0 0
      %846 = vmatprep.subr.bf16.mxu0 0
      %847 = vmatpush1.bf16.msra.mxu0 0
      %848 = vmatprep.subr.bf16.mxu0 0
      %849 = vmatpush1.bf16.msra.mxu0 0
      %850 = vmatprep.subr.bf16.mxu0 0
      %851 = vmatpush1.bf16.msra.mxu0 0
      %852 = vmatprep.subr.bf16.mxu0 0
      %853 = vmatpush1.bf16.msra.mxu0 0
      %854 = vmatprep.subr.bf16.mxu0 0
      %855 = vmatpush1.bf16.msra.mxu0 0
      %856 = vmatprep.subr.bf16.mxu0 0
      %857 = vmatpush1.bf16.msra.mxu0 0
      %858 = vmatprep.subr.bf16.mxu0 0
      %859 = vmatpush1.bf16.msra.mxu0 0
      %860 = vmatprep.subr.bf16.mxu0 0
      %861 = vmatpush1.bf16.msra.mxu0 0
      %862 = vmatprep.subr.bf16.mxu0 0
      %863 = vmatpush1.bf16.msra.mxu0 0
      %864 = vmatprep.subr.bf16.mxu0 0
      %865 = vmatpush1.bf16.msra.mxu0 0
      %866 = vmatprep.mubr.bf16.mxu0 0
      %867 = vmatmul.mubr.bf16.gmra.mrb[0].mxu0 %v826
      %v868 = vpop.f32.mrb[0].mxu0
      %v869 = vadd.f32 0.0, %v868
      %v870 = vpop.f32.mrb[0].mxu0
      %v871 = vpop.f32.mrb[0].mxu0
      %v872 = vadd.f32 0.0, %v871
      %v873 = vpop.f32.mrb[0].mxu0
      %874 = vmatprep.mubr.bf16.mxu0 0
      %875 = vmatmul.mubr.bf16.gmra.mrb[0].mxu0 %v829
      %v876 = vpop.f32.mrb[0].mxu0
      %v877 = vadd.f32 0.0, %v876
      %v878 = vpop.f32.mrb[0].mxu0
      %v879 = vpop.f32.mrb[0].mxu0
      %v880 = vadd.f32 0.0, %v879
      %v881 = vpop.f32.mrb[0].mxu0
      %882 = vdwg.mxu0
      %v883 = vadd.f32 %v775, %v869
      %v884 = vadd.f32 %v776, %v872
      %v885 = vadd.f32 %v777, %v877
      %v886 = vadd.f32 %v778, %v880
      %v887 = vld [vmem:[%s165] sm:$0x8]
      %s888 = scalar_lea.vmem %s1, 32
      %v889 = vld [vmem:[%s888] sm:$0xf]
      %v891 = vunpack.c.l.b16 %v887
      %v892 = vpack.c.b16 %v335, %v891
      %vm893 = vcmask 1044480
      %v894 = vrot.slane %v892, 3
      %v895 = vrot.slane %v340, 3
      %v896 = vsel %vm893, %v894, %v895
      %v897 = vrot.slane %v694, 3
      %v898 = vsel %vm893, %v895, %v897
      %v900 = vsel %vm194, %v896, 0
      %v903 = vsel %vm194, %v898, 0
      %v906 = vsel %vm201, %v889, 0
      %908 = vmatprep.subr.bf16.mxu0 0
      %909 = vmatpush1.bf16.msra.mxu0 %v906
      %910 = vmatprep.subr.bf16.mxu0 0
      %911 = vmatpush1.bf16.msra.mxu0 0
      %912 = vmatprep.subr.bf16.mxu0 0
      %913 = vmatpush1.bf16.msra.mxu0 0
      %914 = vmatprep.subr.bf16.mxu0 0
      %915 = vmatpush1.bf16.msra.mxu0 0
      %916 = vmatprep.subr.bf16.mxu0 0
      %917 = vmatpush1.bf16.msra.mxu0 0
      %918 = vmatprep.subr.bf16.mxu0 0
      %919 = vmatpush1.bf16.msra.mxu0 0
      %920 = vmatprep.subr.bf16.mxu0 0
      %921 = vmatpush1.bf16.msra.mxu0 0
      %922 = vmatprep.subr.bf16.mxu0 0
      %923 = vmatpush1.bf16.msra.mxu0 0
      %924 = vmatprep.subr.bf16.mxu0 0
      %925 = vmatpush1.bf16.msra.mxu0 0
      %926 = vmatprep.subr.bf16.mxu0 0
      %927 = vmatpush1.bf16.msra.mxu0 0
      %928 = vmatprep.subr.bf16.mxu0 0
      %929 = vmatpush1.bf16.msra.mxu0 0
      %930 = vmatprep.subr.bf16.mxu0 0
      %931 = vmatpush1.bf16.msra.mxu0 0
      %932 = vmatprep.subr.bf16.mxu0 0
      %933 = vmatpush1.bf16.msra.mxu0 0
      %934 = vmatprep.subr.bf16.mxu0 0
      %935 = vmatpush1.bf16.msra.mxu0 0
      %936 = vmatprep.subr.bf16.mxu0 0
      %937 = vmatpush1.bf16.msra.mxu0 0
      %938 = vmatprep.subr.bf16.mxu0 0
      %939 = vmatpush1.bf16.msra.mxu0 0
      %940 = vmatprep.mubr.bf16.mxu0 0
      %941 = vmatmul.mubr.bf16.gmra.mrb[0].mxu0 %v900
      %v942 = vpop.f32.mrb[0].mxu0
      %v943 = vadd.f32 0.0, %v942
      %v944 = vpop.f32.mrb[0].mxu0
      %v945 = vpop.f32.mrb[0].mxu0
      %v946 = vadd.f32 0.0, %v945
      %v947 = vpop.f32.mrb[0].mxu0
      %948 = vmatprep.mubr.bf16.mxu0 0
      %949 = vmatmul.mubr.bf16.gmra.mrb[0].mxu0 %v903
      %v950 = vpop.f32.mrb[0].mxu0
      %v951 = vadd.f32 0.0, %v950
      %v952 = vpop.f32.mrb[0].mxu0
      %v953 = vpop.f32.mrb[0].mxu0
      %v954 = vadd.f32 0.0, %v953
      %v955 = vpop.f32.mrb[0].mxu0
      %956 = vdwg.mxu0
      %v957 = vadd.f32 %v883, %v943
      %v958 = vadd.f32 %v884, %v946
      %v959 = vadd.f32 %v885, %v951
      %v960 = vadd.f32 %v886, %v954
      %v961 = vld [vmem:[%s2] sm:$0x3]
      %v962 = vlaneseq
      %v963 = vshrl.u32 %v962, 7
      %v964 = vsub.s32 0, %v963
      %v965 = vrot.slane %v961, %v964
      %v966 = vmul.f32 %v957, %v965
      %v967 = vmul.f32 %v958, %v965
      %v968 = vmul.f32 %v959, %v965
      %v969 = vmul.f32 %v960, %v965
      %v970 = vlaneseq
      %v971 = vshrl.u32 %v970, 7
      %v972 = vsub.s32 1, %v971
      %v973 = vrot.slane %v961, %v972
      %v974 = vadd.f32 %v966, %v973
      %v975 = vadd.f32 %v967, %v973
      %v976 = vadd.f32 %v968, %v973
      %v977 = vadd.f32 %v969, %v973
      %vm978 = vcmp.gt.f32.partialorder %v974, 0.0
      %vm979 = vcmp.gt.f32.partialorder %v975, 0.0
      %vm980 = vcmp.gt.f32.partialorder %v976, 0.0
      %vm981 = vcmp.gt.f32.partialorder %v977, 0.0
      %v982 = vmul.f32 %v974, 0.1
      %v983 = vmul.f32 %v975, 0.1
      %v984 = vmul.f32 %v976, 0.1
      %v985 = vmul.f32 %v977, 0.1
      %v986 = vsel %vm978, %v974, %v982
      %v987 = vsel %vm979, %v975, %v983
      %v988 = vsel %vm980, %v976, %v984
      %v989 = vsel %vm981, %v977, %v985
      %v990 = vpack.c.bf16 %v987, %v986
      %v991 = vpack.c.bf16 %v989, %v988
      %v994 = vunpack.c.l.b16 %v990
      %v995 = vunpack.c.h.b16 %v990
      %v996 = vunpack.c.l.b16 %v991
      %v997 = vunpack.c.h.b16 %v991
      %v998 = vpack.c.b16 %v994, %v994
      %v999 = vpack.c.b16 %v995, %v995
      %v1000 = vpack.c.b16 %v996, %v996
      %v1001 = vpack.c.b16 %v997, %v997
      %1006 = vst [vmem:[%s170] sm:$0xf] %v998
      %1007 = vst [vmem:[%s170 + $0x4] sm:$0xf] %v999
      %1008 = vst [vmem:[%s170 + $0x8] sm:$0xf] %v1000
      %1009 = vst [vmem:[%s170 + $0xc] sm:$0xf] %v1001
      %p1010 = scmp.lt.s32.totalorder %s14, 1
      %s1011 = scalar_select %p1010, %s14, 1
      %s1012 = smul.addr %s1011, 4
      %s1013 = smul.addr %s1012, 4
      %s1014 = scalar_lea.vmem %s3, %s1013
      // Predicated region
      $region33: #{block_forward.10} parent=31 // pred_check
        %p1015 = pneg %p100
      $region34: #{block_forward.10} parent=31 // pred_check_branch
        %1017 = sbr.rel (%p1015) target = $region36
      $region35: #{block_forward.10} parent=31 // pred_region
        _
      $region36: #{block_forward.10} parent=31 // pred_fallthru
        _
    $region32: #{block_forward.10} parent=5 // pred_fallthru
      _
    %p1018 = scmp.le.s32.totalorder 2, %s9
    // Predicated region
    $region37: #{block_forward.10} parent=5 // pred_check
      %p1019 = pneg %p1018
    $region38: #{block_forward.10} parent=5 // pred_check_branch
      %1021 = sbr.rel (%p1019) target = $region40
    $region39: #{block_forward.10} parent=5 // pred_region
      %s1022 = ssub.s32 %s9, 2
      // Predicated region
      $region41: #{block_forward.10} parent=39 // pred_check
        %p1023 = pneg %p106
      $region42: #{block_forward.10} parent=39 // pred_check_branch
        %1025 = sbr.rel (%p1023) target = $region44
      $region43: #{block_forward.10} parent=39 // pred_region
        %p1026 = scmp.lt.s32.totalorder %s15, 1
        %s1027 = scalar_select %p1026, %s15, 1
        %s1028 = smul.addr %s1027, 4
        %s1029 = smul.addr %s1028, 4
        %s1030 = scalar_lea.vmem %s3, %s1029
      $region44: #{block_forward.10} parent=39 // pred_fallthru
        _
    $region40: #{block_forward.10} parent=5 // pred_fallthru
      _
  $region6: #{block_forward.10} parent=0 // loop_footer
    %s13 = sadd.s32 1, %s9
  $region7: #{block_forward.10} parent=0 // loop_footer_branch
    %8 = sbr.rel target = $region3
  $region8: #{block_forward.10} parent=0 // loop_exit
    _

// kernel: block_forward.6
$region0: #{block_forward.6}
  #allocation0 [shape = 'u32[]', space=smem, size = 0x4, offset = 0x4, fixed_abs, tag = 'smem constant byte address 0x4 - core index']
  #allocation1 [shape = 'u32[144,128]{1,0:T(1,128)}', space=vmem, size = 0x12000, scoped, tag = 'internal scratch']
  %s0 = inlined_call_operand.vmem [shape: bf16[2,1,256,8], index: 0, kind: input, shape index: {}]
  %s1 = inlined_call_operand.vmem [shape: bf16[1,8,128], index: 1, kind: input, shape index: {}]
  %s2 = inlined_call_operand.vmem [shape: f32[2,128], index: 2, kind: input, shape index: {}]
  %s3 = inlined_call_operand.vmem [shape: bf16[2,256,128], index: 3, kind: output, shape index: {}]
  %s4 = sld [smem:[#allocation0]]
  $region45: #{block_forward.6} parent=0
    _
  %s6 = ssub.s32 1, %s4
  %s7 = scalar_select 0, %s6, %s4
  loop: start=0, step=1, limit=4
  $region2: #{block_forward.6} parent=0 // loop_pre_header
    _
  $region3: #{block_forward.6} parent=0 // loop_header
    %s9 = sphi 0, %s13
    %p10 = scmp.ge.s32.totalorder %s9, 4
    %s19 = sphi 0, %s21
    %s22 = sphi 0, %s19
    %s23 = sphi 0, %s22
    %s39 = sphi 0, %s23
    %s43 = sphi 0, %s43
    %s45 = sphi 0, %s43
    %s46 = sphi 0, %s45
    %s60 = sphi 0, %s46
    %s64 = sphi 0, %s64
    %s66 = sphi 0, %s64
    %s67 = sphi 0, %s66
    %s81 = sphi 0, %s67
    %s87 = sphi 0, %s89
    %s90 = sphi 0, %s87
    %s91 = sphi 0, %s90
    %s107 = sphi 0, %s91
  $region4: #{block_forward.6} parent=0 // loop_header_branch
    %12 = sbr.rel (%p10) target = $region8
  $region5: #{block_forward.6} parent=0 // loop_body
    %s14 = ssub.s32 %s9, 1
    %s15 = ssub.s32 %s9, 2
    %s16 = sadd.s32 %s9, 1
    %s17 = ssub.s32 %s9, %s16
    %p18 = scmp.eq.s32.totalorder %s17, 0
    %s20 = sadd.s32 %s19, 1
    %s21 = scalar_select %p18, %s19, %s20
    %p24 = pneg %p18
    %p25 = scmp.eq.s32.totalorder %s9, 1
    %p26 = por %p24, %p25
    %p27 = scmp.ne.s32.totalorder %s19, %s22
    %p28 = scmp.eq.s32.totalorder %s9, 0
    %p29 = por %p27, %p28
    %p30 = scmp.ne.s32.totalorder %s19, %s22
    %p31 = scmp.eq.s32.totalorder %s14, 1
    %p32 = por %p30, %p31
    %p33 = scmp.ne.s32.totalorder %s22, %s23
    %p34 = scmp.eq.s32.totalorder %s14, 0
    %p35 = por %p33, %p34
    %p36 = scmp.ne.s32.totalorder %s22, %s23
    %p37 = scmp.eq.s32.totalorder %s15, 1
    %p38 = por %p36, %p37
    %p40 = scmp.ne.s32.totalorder %s23, %s39
    %p41 = scmp.eq.s32.totalorder %s15, 0
    %p42 = por %p40, %p41
    %s44 = sadd.s32 %s43, 1
    %p47 = scmp.eq.s32.totalorder %s9, 1
    %p48 = scmp.ne.s32.totalorder %s43, %s45
    %p49 = scmp.eq.s32.totalorder %s9, 0
    %p50 = por %p48, %p49
    %p51 = scmp.ne.s32.totalorder %s43, %s45
    %p52 = scmp.eq.s32.totalorder %s14, 1
    %p53 = por %p51, %p52
    %p54 = scmp.ne.s32.totalorder %s45, %s46
    %p55 = scmp.eq.s32.totalorder %s14, 0
    %p56 = por %p54, %p55
    %p57 = scmp.ne.s32.totalorder %s45, %s46
    %p58 = scmp.eq.s32.totalorder %s15, 1
    %p59 = por %p57, %p58
    %p61 = scmp.ne.s32.totalorder %s46, %s60
    %p62 = scmp.eq.s32.totalorder %s15, 0
    %p63 = por %p61, %p62
    %s65 = sadd.s32 %s64, 1
    %p68 = scmp.eq.s32.totalorder %s9, 1
    %p69 = scmp.ne.s32.totalorder %s64, %s66
    %p70 = scmp.eq.s32.totalorder %s9, 0
    %p71 = por %p69, %p70
    %p72 = scmp.ne.s32.totalorder %s64, %s66
    %p73 = scmp.eq.s32.totalorder %s14, 1
    %p74 = por %p72, %p73
    %p75 = scmp.ne.s32.totalorder %s66, %s67
    %p76 = scmp.eq.s32.totalorder %s14, 0
    %p77 = por %p75, %p76
    %p78 = scmp.ne.s32.totalorder %s66, %s67
    %p79 = scmp.eq.s32.totalorder %s15, 1
    %p80 = por %p78, %p79
    %p82 = scmp.ne.s32.totalorder %s67, %s81
    %p83 = scmp.eq.s32.totalorder %s15, 0
    %p84 = por %p82, %p83
    %s85 = ssub.s32 %s9, %s16
    %p86 = scmp.eq.s32.totalorder %s85, 0
    %s88 = sadd.s32 %s87, 1
    %s89 = scalar_select %p86, %s87, %s88
    %p92 = pneg %p86
    %p93 = scmp.eq.s32.totalorder %s9, 1
    %p94 = por %p92, %p93
    %p95 = scmp.ne.s32.totalorder %s87, %s90
    %p96 = scmp.eq.s32.totalorder %s9, 0
    %p97 = por %p95, %p96
    %p98 = scmp.ne.s32.totalorder %s87, %s90
    %p99 = scmp.eq.s32.totalorder %s14, 1
    %p100 = por %p98, %p99
    %p101 = scmp.ne.s32.totalorder %s90, %s91
    %p102 = scmp.eq.s32.totalorder %s14, 0
    %p103 = por %p101, %p102
    %p104 = scmp.ne.s32.totalorder %s90, %s91
    %p105 = scmp.eq.s32.totalorder %s15, 1
    %p106 = por %p104, %p105
    %p108 = scmp.ne.s32.totalorder %s91, %s107
    %p109 = scmp.eq.s32.totalorder %s15, 0
    %p110 = por %p108, %p109
    %p111 = scmp.le.s32.totalorder 1, %s9
    %p112 = scmp.lt.s32.totalorder %s9, 3
    %p113 = pnand %p111, %p112
    %p114 = pneg %p113
    // Predicated region
    $region9: #{block_forward.6} parent=5 // pred_check
      _
    $region10: #{block_forward.6} parent=5 // pred_check_branch
      %116 = sbr.rel (%p113) target = $region12
    $region11: #{block_forward.6} parent=5 // pred_region
      %s117 = ssub.s32 %s9, 1
      // Predicated region
      $region13: #{block_forward.6} parent=11 // pred_check
        %p118 = pneg %p56
      $region14: #{block_forward.6} parent=11 // pred_check_branch
        %120 = sbr.rel (%p118) target = $region16
      $region15: #{block_forward.6} parent=11 // pred_region
        _
      $region16: #{block_forward.6} parent=11 // pred_fallthru
        _
      // Predicated region
      $region17: #{block_forward.6} parent=11 // pred_check
        %p121 = pneg %p77
      $region18: #{block_forward.6} parent=11 // pred_check_branch
        %123 = sbr.rel (%p121) target = $region20
      $region19: #{block_forward.6} parent=11 // pred_region
        _
      $region20: #{block_forward.6} parent=11 // pred_fallthru
        _
    $region12: #{block_forward.6} parent=5 // pred_fallthru
      _
    %p124 = scmp.lt.s32.totalorder %s9, 2
    // Predicated region
    $region21: #{block_forward.6} parent=5 // pred_check
      %p125 = pneg %p124
    $region22: #{block_forward.6} parent=5 // pred_check_branch
      %127 = sbr.rel (%p125) target = $region24
    $region23: #{block_forward.6} parent=5 // pred_region
      // Predicated region
      $region25: #{block_forward.6} parent=23 // pred_check
        %p128 = pneg %p29
      $region26: #{block_forward.6} parent=23 // pred_check_branch
        %130 = sbr.rel (%p128) target = $region28
      $region27: #{block_forward.6} parent=23 // pred_region
        %p131 = scmp.lt.s32.totalorder %s9, 1
        %s132 = scalar_select %p131, %s9, 1
        %s133 = smul.addr %s132, 32
        %s134 = smul.addr %s133, 4
        %s135 = scalar_lea.vmem %s0, %s134
      $region28: #{block_forward.6} parent=23 // pred_fallthru
        _
    $region24: #{block_forward.6} parent=5 // pred_fallthru
      _
    %p136 = scmp.le.s32.totalorder 1, %s9
    %p137 = scmp.lt.s32.totalorder %s9, 3
    %p138 = pnand %p136, %p137
    %p139 = pneg %p138
    // Predicated region
    $region29: #{block_forward.6} parent=5 // pred_check
      _
    $region30: #{block_forward.6} parent=5 // pred_check_branch
      %141 = sbr.rel (%p138) target = $region32
    $region31: #{block_forward.6} parent=5 // pred_region
      %s142 = ssub.s32 %s9, 1
      %p143 = scmp.lt.s32.totalorder %s14, 1
      %s144 = scalar_select %p143, %s14, 1
      %s145 = smul.addr %s144, 32
      %s146 = smul.addr %s145, 4
      %s147 = scalar_lea.vmem %s0, %s146
      %p148 = pneg %p35
      %p149 = pneg %p32
      %p150 = pneg %p56
      %p151 = pneg %p53
      %p152 = pneg %p77
      %p153 = pneg %p74
      %p154 = pneg %p103
      %p155 = pneg %p100
      %p156 = scmp.lt.s32.totalorder %s14, 1
      %s157 = scalar_select %p156, %s14, 1
      %s158 = smul.addr %s157, 32
      %s159 = smul.addr %s158, 4
      %s160 = scalar_lea.vmem %s3, %s159
      %p161 = scmp.lt.s32.totalorder %s14, 1
      %s162 = scalar_select %p161, %s14, 1
      %s163 = smul.addr %s162, 32
      %s164 = smul.addr %s163, 4
      %s165 = scalar_lea.vmem %s0, %s164
      %p166 = scmp.lt.s32.totalorder %s14, 1
      %s167 = scalar_select %p166, %s14, 1
      %s168 = smul.addr %s167, 32
      %s169 = smul.addr %s168, 4
      %s170 = scalar_lea.vmem %s3, %s169
      %v172 = vld [vmem:[%s165] sm:$0xf]
      %v173 = vld [vmem:[%s165 + $0x4] sm:$0xf]
      %v174 = vld [vmem:[%s165 + $0x8] sm:$0xf]
      %v175 = vld [vmem:[%s165 + $0xc] sm:$0xf]
      %v176 = vld [vmem:[%s165 + $0x10] sm:$0xf]
      %v177 = vld [vmem:[%s165 + $0x14] sm:$0xf]
      %v178 = vld [vmem:[%s165 + $0x18] sm:$0xf]
      %v179 = vld [vmem:[%s165 + $0x1c] sm:$0xf]
      %v180 = vld [vmem:[%s165 + $0x20] sm:$0xf]
      %v181 = vld [vmem:[%s165 + $0x24] sm:$0xf]
      %v182 = vld [vmem:[%s165 + $0x28] sm:$0xf]
      %v183 = vld [vmem:[%s165 + $0x2c] sm:$0xf]
      %v184 = vld [vmem:[%s165 + $0x30] sm:$0xf]
      %v185 = vld [vmem:[%s165 + $0x34] sm:$0xf]
      %v186 = vld [vmem:[%s165 + $0x38] sm:$0xf]
      %v187 = vld [vmem:[%s165 + $0x3c] sm:$0xf]
      %v188 = vld [vmem:[%s165 + $0x40] sm:$0xf]
      %v189 = vld [vmem:[%s165 + $0x44] sm:$0xf]
      %v190 = vld [vmem:[%s165 + $0x48] sm:$0xf]
      %v191 = vld [vmem:[%s165 + $0x4c] sm:$0xf]
      %v192 = vld [vmem:[%s165 + $0x50] sm:$0xf]
      %v193 = vld [vmem:[%s165 + $0x54] sm:$0xf]
      %v194 = vld [vmem:[%s165 + $0x58] sm:$0xf]
      %v195 = vld [vmem:[%s165 + $0x5c] sm:$0xf]
      %v196 = vld [vmem:[%s165 + $0x60] sm:$0xf]
      %v197 = vld [vmem:[%s165 + $0x64] sm:$0xf]
      %v198 = vld [vmem:[%s165 + $0x68] sm:$0xf]
      %v199 = vld [vmem:[%s165 + $0x6c] sm:$0xf]
      %v200 = vld [vmem:[%s165 + $0x70] sm:$0xf]
      %v201 = vld [vmem:[%s165 + $0x74] sm:$0xf]
      %v202 = vld [vmem:[%s165 + $0x78] sm:$0xf]
      %v203 = vld [vmem:[%s165 + $0x7c] sm:$0xf]
      %v204 = vld [vmem:[%s1] sm:$0xf]
      %v237 = vunpack.c.l.b16 %v172
      %v238 = vunpack.c.l.b16 %v173
      %v239 = vunpack.c.l.b16 %v174
      %v240 = vunpack.c.l.b16 %v175
      %v241 = vunpack.c.l.b16 %v176
      %v242 = vunpack.c.l.b16 %v177
      %v243 = vunpack.c.l.b16 %v178
      %v244 = vunpack.c.l.b16 %v179
      %v245 = vunpack.c.l.b16 %v180
      %v246 = vunpack.c.l.b16 %v181
      %v247 = vunpack.c.l.b16 %v182
      %v248 = vunpack.c.l.b16 %v183
      %v249 = vunpack.c.l.b16 %v184
      %v250 = vunpack.c.l.b16 %v185
      %v251 = vunpack.c.l.b16 %v186
      %v252 = vunpack.c.l.b16 %v187
      %v253 = vunpack.c.l.b16 %v188
      %v254 = vunpack.c.l.b16 %v189
      %v255 = vunpack.c.l.b16 %v190
      %v256 = vunpack.c.l.b16 %v191
      %v257 = vunpack.c.l.b16 %v192
      %v258 = vunpack.c.l.b16 %v193
      %v259 = vunpack.c.l.b16 %v194
      %v260 = vunpack.c.l.b16 %v195
      %v261 = vunpack.c.l.b16 %v196
      %v262 = vunpack.c.l.b16 %v197
      %v263 = vunpack.c.l.b16 %v198
      %v264 = vunpack.c.l.b16 %v199
      %v265 = vunpack.c.l.b16 %v200
      %v266 = vunpack.c.l.b16 %v201
      %v267 = vunpack.c.l.b16 %v202
      %v268 = vunpack.c.l.b16 %v203
      %v269 = vpack.c.b16 %v238, %v237
      %v270 = vpack.c.b16 %v240, %v239
      %v271 = vpack.c.b16 %v242, %v241
      %v272 = vpack.c.b16 %v244, %v243
      %v273 = vpack.c.b16 %v246, %v245
      %v274 = vpack.c.b16 %v248, %v247
      %v275 = vpack.c.b16 %v250, %v249
      %v276 = vpack.c.b16 %v252, %v251
      %v277 = vpack.c.b16 %v254, %v253
      %v278 = vpack.c.b16 %v256, %v255
      %v279 = vpack.c.b16 %v258, %v257
      %v280 = vpack.c.b16 %v260, %v259
      %v281 = vpack.c.b16 %v262, %v261
      %v282 = vpack.c.b16 %v264, %v263
      %v283 = vpack.c.b16 %v266, %v265
      %v284 = vpack.c.b16 %v268, %v267
      %vm285 = vcmask 64512
      %v287 = vsel %vm285, %v269, 0
      %v290 = vsel %vm285, %v270, 0
      %v293 = vsel %vm285, %v271, 0
      %v296 = vsel %vm285, %v272, 0
      %v299 = vsel %vm285, %v273, 0
      %v302 = vsel %vm285, %v274, 0
      %v305 = vsel %vm285, %v275, 0
      %v308 = vsel %vm285, %v276, 0
      %v311 = vsel %vm285, %v277, 0
      %v314 = vsel %vm285, %v278, 0
      %v317 = vsel %vm285, %v279, 0
      %v320 = vsel %vm285, %v280, 0
      %v323 = vsel %vm285, %v281, 0
      %v326 = vsel %vm285, %v282, 0
      %v329 = vsel %vm285, %v283, 0
      %v332 = vsel %vm285, %v284, 0
      %vm334 = vcmask 1043456
      %v336 = vsel %vm334, %v204, 0
      %338 = vmatprep.subr.bf16.mxu0 0
      %339 = vmatpush1.bf16.msra.mxu0 %v336
      %340 = vmatprep.subr.bf16.mxu0 0
      %341 = vmatpush1.bf16.msra.mxu0 0
      %342 = vmatprep.subr.bf16.mxu0 0
      %343 = vmatpush1.bf16.msra.mxu0 0
      %344 = vmatprep.subr.bf16.mxu0 0
      %345 = vmatpush1.bf16.msra.mxu0 0
      %346 = vmatprep.subr.bf16.mxu0 0
      %347 = vmatpush1.bf16.msra.mxu0 0
      %348 = vmatprep.subr.bf16.mxu0 0
      %349 = vmatpush1.bf16.msra.mxu0 0
      %350 = vmatprep.subr.bf16.mxu0 0
      %351 = vmatpush1.bf16.msra.mxu0 0
      %352 = vmatprep.subr.bf16.mxu0 0
      %353 = vmatpush1.bf16.msra.mxu0 0
      %354 = vmatprep.subr.bf16.mxu0 0
      %355 = vmatpush1.bf16.msra.mxu0 0
      %356 = vmatprep.subr.bf16.mxu0 0
      %357 = vmatpush1.bf16.msra.mxu0 0
      %358 = vmatprep.subr.bf16.mxu0 0
      %359 = vmatpush1.bf16.msra.mxu0 0
      %360 = vmatprep.subr.bf16.mxu0 0
      %361 = vmatpush1.bf16.msra.mxu0 0
      %362 = vmatprep.subr.bf16.mxu0 0
      %363 = vmatpush1.bf16.msra.mxu0 0
      %364 = vmatprep.subr.bf16.mxu0 0
      %365 = vmatpush1.bf16.msra.mxu0 0
      %366 = vmatprep.subr.bf16.mxu0 0
      %367 = vmatpush1.bf16.msra.mxu0 0
      %368 = vmatprep.subr.bf16.mxu0 0
      %369 = vmatpush1.bf16.msra.mxu0 0
      %370 = vmatprep.mubr.bf16.mxu0 0
      %371 = vmatmul.mubr.bf16.gmra.mrb[0].mxu0 %v287
      %v372 = vpop.f32.mrb[0].mxu0
      %v373 = vadd.f32 0.0, %v372
      %v374 = vpop.f32.mrb[0].mxu0
      %v375 = vpop.f32.mrb[0].mxu0
      %v376 = vadd.f32 0.0, %v375
      %v377 = vpop.f32.mrb[0].mxu0
      %378 = vmatprep.mubr.bf16.mxu0 0
      %379 = vmatmul.mubr.bf16.gmra.mrb[0].mxu0 %v290
      %v380 = vpop.f32.mrb[0].mxu0
      %v381 = vadd.f32 0.0, %v380
      %v382 = vpop.f32.mrb[0].mxu0
      %v383 = vpop.f32.mrb[0].mxu0
      %v384 = vadd.f32 0.0, %v383
      %v385 = vpop.f32.mrb[0].mxu0
      %386 = vmatprep.mubr.bf16.mxu0 0
      %387 = vmatmul.mubr.bf16.gmra.mrb[0].mxu0 %v293
      %v388 = vpop.f32.mrb[0].mxu0
      %v389 = vadd.f32 0.0, %v388
      %v390 = vpop.f32.mrb[0].mxu0
      %v391 = vpop.f32.mrb[0].mxu0
      %v392 = vadd.f32 0.0, %v391
      %v393 = vpop.f32.mrb[0].mxu0
      %394 = vmatprep.mubr.bf16.mxu0 0
      %395 = vmatmul.mubr.bf16.gmra.mrb[0].mxu0 %v296
      %v396 = vpop.f32.mrb[0].mxu0
      %v397 = vadd.f32 0.0, %v396
      %v398 = vpop.f32.mrb[0].mxu0
      %v399 = vpop.f32.mrb[0].mxu0
      %v400 = vadd.f32 0.0, %v399
      %v401 = vpop.f32.mrb[0].mxu0
      %402 = vmatprep.mubr.bf16.mxu0 0
      %403 = vmatmul.mubr.bf16.gmra.mrb[0].mxu0 %v299
      %v404 = vpop.f32.mrb[0].mxu0
      %v405 = vadd.f32 0.0, %v404
      %v406 = vpop.f32.mrb[0].mxu0
      %v407 = vpop.f32.mrb[0].mxu0
      %v408 = vadd.f32 0.0, %v407
      %v409 = vpop.f32.mrb[0].mxu0
      %410 = vmatprep.mubr.bf16.mxu0 0
      %411 = vmatmul.mubr.bf16.gmra.mrb[0].mxu0 %v302
      %v412 = vpop.f32.mrb[0].mxu0
      %v413 = vadd.f32 0.0, %v412
      %v414 = vpop.f32.mrb[0].mxu0
      %v415 = vpop.f32.mrb[0].mxu0
      %v416 = vadd.f32 0.0, %v415
      %v417 = vpop.f32.mrb[0].mxu0
      %418 = vmatprep.mubr.bf16.mxu0 0
      %419 = vmatmul.mubr.bf16.gmra.mrb[0].mxu0 %v305
      %v420 = vpop.f32.mrb[0].mxu0
      %v421 = vadd.f32 0.0, %v420
      %v422 = vpop.f32.mrb[0].mxu0
      %v423 = vpop.f32.mrb[0].mxu0
      %v424 = vadd.f32 0.0, %v423
      %v425 = vpop.f32.mrb[0].mxu0
      %426 = vmatprep.mubr.bf16.mxu0 0
      %427 = vmatmul.mubr.bf16.gmra.mrb[0].mxu0 %v308
      %v428 = vpop.f32.mrb[0].mxu0
      %v429 = vadd.f32 0.0, %v428
      %v430 = vpop.f32.mrb[0].mxu0
      %v431 = vpop.f32.mrb[0].mxu0
      %v432 = vadd.f32 0.0, %v431
      %v433 = vpop.f32.mrb[0].mxu0
      %434 = vmatprep.mubr.bf16.mxu0 0
      %435 = vmatmul.mubr.bf16.gmra.mrb[0].mxu0 %v311
      %v436 = vpop.f32.mrb[0].mxu0
      %v437 = vadd.f32 0.0, %v436
      %v438 = vpop.f32.mrb[0].mxu0
      %v439 = vpop.f32.mrb[0].mxu0
      %v440 = vadd.f32 0.0, %v439
      %v441 = vpop.f32.mrb[0].mxu0
      %442 = vmatprep.mubr.bf16.mxu0 0
      %443 = vmatmul.mubr.bf16.gmra.mrb[0].mxu0 %v314
      %v444 = vpop.f32.mrb[0].mxu0
      %v445 = vadd.f32 0.0, %v444
      %v446 = vpop.f32.mrb[0].mxu0
      %v447 = vpop.f32.mrb[0].mxu0
      %v448 = vadd.f32 0.0, %v447
      %v449 = vpop.f32.mrb[0].mxu0
      %450 = vmatprep.mubr.bf16.mxu0 0
      %451 = vmatmul.mubr.bf16.gmra.mrb[0].mxu0 %v317
      %v452 = vpop.f32.mrb[0].mxu0
      %v453 = vadd.f32 0.0, %v452
      %v454 = vpop.f32.mrb[0].mxu0
      %v455 = vpop.f32.mrb[0].mxu0
      %v456 = vadd.f32 0.0, %v455
      %v457 = vpop.f32.mrb[0].mxu0
      %458 = vmatprep.mubr.bf16.mxu0 0
      %459 = vmatmul.mubr.bf16.gmra.mrb[0].mxu0 %v320
      %v460 = vpop.f32.mrb[0].mxu0
      %v461 = vadd.f32 0.0, %v460
      %v462 = vpop.f32.mrb[0].mxu0
      %v463 = vpop.f32.mrb[0].mxu0
      %v464 = vadd.f32 0.0, %v463
      %v465 = vpop.f32.mrb[0].mxu0
      %466 = vmatprep.mubr.bf16.mxu0 0
      %467 = vmatmul.mubr.bf16.gmra.mrb[0].mxu0 %v323
      %v468 = vpop.f32.mrb[0].mxu0
      %v469 = vadd.f32 0.0, %v468
      %v470 = vpop.f32.mrb[0].mxu0
      %v471 = vpop.f32.mrb[0].mxu0
      %v472 = vadd.f32 0.0, %v471
      %v473 = vpop.f32.mrb[0].mxu0
      %474 = vmatprep.mubr.bf16.mxu0 0
      %475 = vmatmul.mubr.bf16.gmra.mrb[0].mxu0 %v326
      %v476 = vpop.f32.mrb[0].mxu0
      %v477 = vadd.f32 0.0, %v476
      %v478 = vpop.f32.mrb[0].mxu0
      %v479 = vpop.f32.mrb[0].mxu0
      %v480 = vadd.f32 0.0, %v479
      %v481 = vpop.f32.mrb[0].mxu0
      %482 = vmatprep.mubr.bf16.mxu0 0
      %483 = vmatmul.mubr.bf16.gmra.mrb[0].mxu0 %v329
      %v484 = vpop.f32.mrb[0].mxu0
      %v485 = vadd.f32 0.0, %v484
      %v486 = vpop.f32.mrb[0].mxu0
      %v487 = vpop.f32.mrb[0].mxu0
      %v488 = vadd.f32 0.0, %v487
      %v489 = vpop.f32.mrb[0].mxu0
      %490 = vmatprep.mubr.bf16.mxu0 0
      %491 = vmatmul.mubr.bf16.gmra.mrb[0].mxu0 %v332
      %v492 = vpop.f32.mrb[0].mxu0
      %v493 = vadd.f32 0.0, %v492
      %v494 = vpop.f32.mrb[0].mxu0
      %v495 = vpop.f32.mrb[0].mxu0
      %v496 = vadd.f32 0.0, %v495
      %v497 = vpop.f32.mrb[0].mxu0
      %498 = vdwg.mxu0
      %v499 = vld [vmem:[%s2] sm:$0x3]
      %v500 = vlaneseq
      %v501 = vshrl.u32 %v500, 7
      %v502 = vsub.s32 0, %v501
      %v503 = vrot.slane %v499, %v502
      %v504 = vmul.f32 %v373, %v503
      %v505 = vmul.f32 %v376, %v503
      %v506 = vmul.f32 %v381, %v503
      %v507 = vmul.f32 %v384, %v503
      %v508 = vmul.f32 %v389, %v503
      %v509 = vmul.f32 %v392, %v503
      %v510 = vmul.f32 %v397, %v503
      %v511 = vmul.f32 %v400, %v503
      %v512 = vmul.f32 %v405, %v503
      %v513 = vmul.f32 %v408, %v503
      %v514 = vmul.f32 %v413, %v503
      %v515 = vmul.f32 %v416, %v503
      %v516 = vmul.f32 %v421, %v503
      %v517 = vmul.f32 %v424, %v503
      %v518 = vmul.f32 %v429, %v503
      %v519 = vmul.f32 %v432, %v503
      %v520 = vmul.f32 %v437, %v503
      %v521 = vmul.f32 %v440, %v503
      %v522 = vmul.f32 %v445, %v503
      %v523 = vmul.f32 %v448, %v503
      %v524 = vmul.f32 %v453, %v503
      %v525 = vmul.f32 %v456, %v503
      %v526 = vmul.f32 %v461, %v503
      %v527 = vmul.f32 %v464, %v503
      %v528 = vmul.f32 %v469, %v503
      %v529 = vmul.f32 %v472, %v503
      %v530 = vmul.f32 %v477, %v503
      %v531 = vmul.f32 %v480, %v503
      %v532 = vmul.f32 %v485, %v503
      %v533 = vmul.f32 %v488, %v503
      %v534 = vmul.f32 %v493, %v503
      %v535 = vmul.f32 %v496, %v503
      %v536 = vlaneseq
      %v537 = vshrl.u32 %v536, 7
      %v538 = vsub.s32 1, %v537
      %v539 = vrot.slane %v499, %v538
      %v540 = vadd.f32 %v504, %v539
      %v541 = vadd.f32 %v505, %v539
      %v542 = vadd.f32 %v506, %v539
      %v543 = vadd.f32 %v507, %v539
      %v544 = vadd.f32 %v508, %v539
      %v545 = vadd.f32 %v509, %v539
      %v546 = vadd.f32 %v510, %v539
      %v547 = vadd.f32 %v511, %v539
      %v548 = vadd.f32 %v512, %v539
      %v549 = vadd.f32 %v513, %v539
      %v550 = vadd.f32 %v514, %v539
      %v551 = vadd.f32 %v515, %v539
      %v552 = vadd.f32 %v516, %v539
      %v553 = vadd.f32 %v517, %v539
      %v554 = vadd.f32 %v518, %v539
      %v555 = vadd.f32 %v519, %v539
      %v556 = vadd.f32 %v520, %v539
      %v557 = vadd.f32 %v521, %v539
      %v558 = vadd.f32 %v522, %v539
      %v559 = vadd.f32 %v523, %v539
      %v560 = vadd.f32 %v524, %v539
      %v561 = vadd.f32 %v525, %v539
      %v562 = vadd.f32 %v526, %v539
      %v563 = vadd.f32 %v527, %v539
      %v564 = vadd.f32 %v528, %v539
      %v565 = vadd.f32 %v529, %v539
      %v566 = vadd.f32 %v530, %v539
      %v567 = vadd.f32 %v531, %v539
      %v568 = vadd.f32 %v532, %v539
      %v569 = vadd.f32 %v533, %v539
      %v570 = vadd.f32 %v534, %v539
      %v571 = vadd.f32 %v535, %v539
      %vm572 = vcmp.gt.f32.partialorder %v540, 0.0
      %vm573 = vcmp.gt.f32.partialorder %v541, 0.0
      %vm574 = vcmp.gt.f32.partialorder %v542, 0.0
      %vm575 = vcmp.gt.f32.partialorder %v543, 0.0
      %vm576 = vcmp.gt.f32.partialorder %v544, 0.0
      %vm577 = vcmp.gt.f32.partialorder %v545, 0.0
      %vm578 = vcmp.gt.f32.partialorder %v546, 0.0
      %vm579 = vcmp.gt.f32.partialorder %v547, 0.0
      %vm580 = vcmp.gt.f32.partialorder %v548, 0.0
      %vm581 = vcmp.gt.f32.partialorder %v549, 0.0
      %vm582 = vcmp.gt.f32.partialorder %v550, 0.0
      %vm583 = vcmp.gt.f32.partialorder %v551, 0.0
      %vm584 = vcmp.gt.f32.partialorder %v552, 0.0
      %vm585 = vcmp.gt.f32.partialorder %v553, 0.0
      %vm586 = vcmp.gt.f32.partialorder %v554, 0.0
      %vm587 = vcmp.gt.f32.partialorder %v555, 0.0
      %vm588 = vcmp.gt.f32.partialorder %v556, 0.0
      %vm589 = vcmp.gt.f32.partialorder %v557, 0.0
      %vm590 = vcmp.gt.f32.partialorder %v558, 0.0
      %vm591 = vcmp.gt.f32.partialorder %v559, 0.0
      %vm592 = vcmp.gt.f32.partialorder %v560, 0.0
      %vm593 = vcmp.gt.f32.partialorder %v561, 0.0
      %vm594 = vcmp.gt.f32.partialorder %v562, 0.0
      %vm595 = vcmp.gt.f32.partialorder %v563, 0.0
      %vm596 = vcmp.gt.f32.partialorder %v564, 0.0
      %vm597 = vcmp.gt.f32.partialorder %v565, 0.0
      %vm598 = vcmp.gt.f32.partialorder %v566, 0.0
      %vm599 = vcmp.gt.f32.partialorder %v567, 0.0
      %vm600 = vcmp.gt.f32.partialorder %v568, 0.0
      %vm601 = vcmp.gt.f32.partialorder %v569, 0.0
      %vm602 = vcmp.gt.f32.partialorder %v570, 0.0
      %vm603 = vcmp.gt.f32.partialorder %v571, 0.0
      %v604 = vmul.f32 %v540, 0.1
      %v605 = vmul.f32 %v541, 0.1
      %v606 = vmul.f32 %v542, 0.1
      %v607 = vmul.f32 %v543, 0.1
      %v608 = vmul.f32 %v544, 0.1
      %v609 = vmul.f32 %v545, 0.1
      %v610 = vmul.f32 %v546, 0.1
      %v611 = vmul.f32 %v547, 0.1
      %v612 = vmul.f32 %v548, 0.1
      %v613 = vmul.f32 %v549, 0.1
      %v614 = vmul.f32 %v550, 0.1
      %v615 = vmul.f32 %v551, 0.1
      %v616 = vmul.f32 %v552, 0.1
      %v617 = vmul.f32 %v553, 0.1
      %v618 = vmul.f32 %v554, 0.1
      %v619 = vmul.f32 %v555, 0.1
      %v620 = vmul.f32 %v556, 0.1
      %v621 = vmul.f32 %v557, 0.1
      %v622 = vmul.f32 %v558, 0.1
      %v623 = vmul.f32 %v559, 0.1
      %v624 = vmul.f32 %v560, 0.1
      %v625 = vmul.f32 %v561, 0.1
      %v626 = vmul.f32 %v562, 0.1
      %v627 = vmul.f32 %v563, 0.1
      %v628 = vmul.f32 %v564, 0.1
      %v629 = vmul.f32 %v565, 0.1
      %v630 = vmul.f32 %v566, 0.1
      %v631 = vmul.f32 %v567, 0.1
      %v632 = vmul.f32 %v568, 0.1
      %v633 = vmul.f32 %v569, 0.1
      %v634 = vmul.f32 %v570, 0.1
      %v635 = vmul.f32 %v571, 0.1
      %v636 = vsel %vm572, %v540, %v604
      %v637 = vsel %vm573, %v541, %v605
      %v638 = vsel %vm574, %v542, %v606
      %v639 = vsel %vm575, %v543, %v607
      %v640 = vsel %vm576, %v544, %v608
      %v641 = vsel %vm577, %v545, %v609
      %v642 = vsel %vm578, %v546, %v610
      %v643 = vsel %vm579, %v547, %v611
      %v644 = vsel %vm580, %v548, %v612
      %v645 = vsel %vm581, %v549, %v613
      %v646 = vsel %vm582, %v550, %v614
      %v647 = vsel %vm583, %v551, %v615
      %v648 = vsel %vm584, %v552, %v616
      %v649 = vsel %vm585, %v553, %v617
      %v650 = vsel %vm586, %v554, %v618
      %v651 = vsel %vm587, %v555, %v619
      %v652 = vsel %vm588, %v556, %v620
      %v653 = vsel %vm589, %v557, %v621
      %v654 = vsel %vm590, %v558, %v622
      %v655 = vsel %vm591, %v559, %v623
      %v656 = vsel %vm592, %v560, %v624
      %v657 = vsel %vm593, %v561, %v625
      %v658 = vsel %vm594, %v562, %v626
      %v659 = vsel %vm595, %v563, %v627
      %v660 = vsel %vm596, %v564, %v628
      %v661 = vsel %vm597, %v565, %v629
      %v662 = vsel %vm598, %v566, %v630
      %v663 = vsel %vm599, %v567, %v631
      %v664 = vsel %vm600, %v568, %v632
      %v665 = vsel %vm601, %v569, %v633
      %v666 = vsel %vm602, %v570, %v634
      %v667 = vsel %vm603, %v571, %v635
      %v668 = vpack.c.bf16 %v637, %v636
      %v669 = vpack.c.bf16 %v639, %v638
      %v670 = vpack.c.bf16 %v641, %v640
      %v671 = vpack.c.bf16 %v643, %v642
      %v672 = vpack.c.bf16 %v645, %v644
      %v673 = vpack.c.bf16 %v647, %v646
      %v674 = vpack.c.bf16 %v649, %v648
      %v675 = vpack.c.bf16 %v651, %v650
      %v676 = vpack.c.bf16 %v653, %v652
      %v677 = vpack.c.bf16 %v655, %v654
      %v678 = vpack.c.bf16 %v657, %v656
      %v679 = vpack.c.bf16 %v659, %v658
      %v680 = vpack.c.bf16 %v661, %v660
      %v681 = vpack.c.bf16 %v663, %v662
      %v682 = vpack.c.bf16 %v665, %v664
      %v683 = vpack.c.bf16 %v667, %v666
      %v700 = vunpack.c.l.b16 %v668
      %v701 = vunpack.c.h.b16 %v668
      %v702 = vunpack.c.l.b16 %v669
      %v703 = vunpack.c.h.b16 %v669
      %v704 = vunpack.c.l.b16 %v670
      %v705 = vunpack.c.h.b16 %v670
      %v706 = vunpack.c.l.b16 %v671
      %v707 = vunpack.c.h.b16 %v671
      %v708 = vunpack.c.l.b16 %v672
      %v709 = vunpack.c.h.b16 %v672
      %v710 = vunpack.c.l.b16 %v673
      %v711 = vunpack.c.h.b16 %v673
      %v712 = vunpack.c.l.b16 %v674
      %v713 = vunpack.c.h.b16 %v674
      %v714 = vunpack.c.l.b16 %v675
      %v715 = vunpack.c.h.b16 %v675
      %v716 = vunpack.c.l.b16 %v676
      %v717 = vunpack.c.h.b16 %v676
      %v718 = vunpack.c.l.b16 %v677
      %v719 = vunpack.c.h.b16 %v677
      %v720 = vunpack.c.l.b16 %v678
      %v721 = vunpack.c.h.b16 %v678
      %v722 = vunpack.c.l.b16 %v679
      %v723 = vunpack.c.h.b16 %v679
      %v724 = vunpack.c.l.b16 %v680
      %v725 = vunpack.c.h.b16 %v680
      %v726 = vunpack.c.l.b16 %v681
      %v727 = vunpack.c.h.b16 %v681
      %v728 = vunpack.c.l.b16 %v682
      %v729 = vunpack.c.h.b16 %v682
      %v730 = vunpack.c.l.b16 %v683
      %v731 = vunpack.c.h.b16 %v683
      %v732 = vpack.c.b16 %v700, %v700
      %v733 = vpack.c.b16 %v701, %v701
      %v734 = vpack.c.b16 %v702, %v702
      %v735 = vpack.c.b16 %v703, %v703
      %v736 = vpack.c.b16 %v704, %v704
      %v737 = vpack.c.b16 %v705, %v705
      %v738 = vpack.c.b16 %v706, %v706
      %v739 = vpack.c.b16 %v707, %v707
      %v740 = vpack.c.b16 %v708, %v708
      %v741 = vpack.c.b16 %v709, %v709
      %v742 = vpack.c.b16 %v710, %v710
      %v743 = vpack.c.b16 %v711, %v711
      %v744 = vpack.c.b16 %v712, %v712
      %v745 = vpack.c.b16 %v713, %v713
      %v746 = vpack.c.b16 %v714, %v714
      %v747 = vpack.c.b16 %v715, %v715
      %v748 = vpack.c.b16 %v716, %v716
      %v749 = vpack.c.b16 %v717, %v717
      %v750 = vpack.c.b16 %v718, %v718
      %v751 = vpack.c.b16 %v719, %v719
      %v752 = vpack.c.b16 %v720, %v720
      %v753 = vpack.c.b16 %v721, %v721
      %v754 = vpack.c.b16 %v722, %v722
      %v755 = vpack.c.b16 %v723, %v723
      %v756 = vpack.c.b16 %v724, %v724
      %v757 = vpack.c.b16 %v725, %v725
      %v758 = vpack.c.b16 %v726, %v726
      %v759 = vpack.c.b16 %v727, %v727
      %v760 = vpack.c.b16 %v728, %v728
      %v761 = vpack.c.b16 %v729, %v729
      %v762 = vpack.c.b16 %v730, %v730
      %v763 = vpack.c.b16 %v731, %v731
      %796 = vst [vmem:[%s170] sm:$0xf] %v732
      %797 = vst [vmem:[%s170 + $0x4] sm:$0xf] %v733
      %798 = vst [vmem:[%s170 + $0x8] sm:$0xf] %v734
      %799 = vst [vmem:[%s170 + $0xc] sm:$0xf] %v735
      %800 = vst [vmem:[%s170 + $0x10] sm:$0xf] %v736
      %801 = vst [vmem:[%s170 + $0x14] sm:$0xf] %v737
      %802 = vst [vmem:[%s170 + $0x18] sm:$0xf] %v738
      %803 = vst [vmem:[%s170 + $0x1c] sm:$0xf] %v739
      %804 = vst [vmem:[%s170 + $0x20] sm:$0xf] %v740
      %805 = vst [vmem:[%s170 + $0x24] sm:$0xf] %v741
      %806 = vst [vmem:[%s170 + $0x28] sm:$0xf] %v742
      %807 = vst [vmem:[%s170 + $0x2c] sm:$0xf] %v743
      %808 = vst [vmem:[%s170 + $0x30] sm:$0xf] %v744
      %809 = vst [vmem:[%s170 + $0x34] sm:$0xf] %v745
      %810 = vst [vmem:[%s170 + $0x38] sm:$0xf] %v746
      %811 = vst [vmem:[%s170 + $0x3c] sm:$0xf] %v747
      %812 = vst [vmem:[%s170 + $0x40] sm:$0xf] %v748
      %813 = vst [vmem:[%s170 + $0x44] sm:$0xf] %v749
      %814 = vst [vmem:[%s170 + $0x48] sm:$0xf] %v750
      %815 = vst [vmem:[%s170 + $0x4c] sm:$0xf] %v751
      %816 = vst [vmem:[%s170 + $0x50] sm:$0xf] %v752
      %817 = vst [vmem:[%s170 + $0x54] sm:$0xf] %v753
      %818 = vst [vmem:[%s170 + $0x58] sm:$0xf] %v754
      %819 = vst [vmem:[%s170 + $0x5c] sm:$0xf] %v755
      %820 = vst [vmem:[%s170 + $0x60] sm:$0xf] %v756
      %821 = vst [vmem:[%s170 + $0x64] sm:$0xf] %v757
      %822 = vst [vmem:[%s170 + $0x68] sm:$0xf] %v758
      %823 = vst [vmem:[%s170 + $0x6c] sm:$0xf] %v759
      %824 = vst [vmem:[%s170 + $0x70] sm:$0xf] %v760
      %825 = vst [vmem:[%s170 + $0x74] sm:$0xf] %v761
      %826 = vst [vmem:[%s170 + $0x78] sm:$0xf] %v762
      %827 = vst [vmem:[%s170 + $0x7c] sm:$0xf] %v763
      %p828 = scmp.lt.s32.totalorder %s14, 1
      %s829 = scalar_select %p828, %s14, 1
      %s830 = smul.addr %s829, 32
      %s831 = smul.addr %s830, 4
      %s832 = scalar_lea.vmem %s3, %s831
      // Predicated region
      $region33: #{block_forward.6} parent=31 // pred_check
        %p833 = pneg %p100
      $region34: #{block_forward.6} parent=31 // pred_check_branch
        %835 = sbr.rel (%p833) target = $region36
      $region35: #{block_forward.6} parent=31 // pred_region
        _
      $region36: #{block_forward.6} parent=31 // pred_fallthru
        _
    $region32: #{block_forward.6} parent=5 // pred_fallthru
      _
    %p836 = scmp.le.s32.totalorder 2, %s9
    // Predicated region
    $region37: #{block_forward.6} parent=5 // pred_check
      %p837 = pneg %p836
    $region38: #{block_forward.6} parent=5 // pred_check_branch
      %839 = sbr.rel (%p837) target = $region40
    $region39: #{block_forward.6} parent=5 // pred_region
      %s840 = ssub.s32 %s9, 2
      // Predicated region
      $region41: #{block_forward.6} parent=39 // pred_check
        %p841 = pneg %p106
      $region42: #{block_forward.6} parent=39 // pred_check_branch
        %843 = sbr.rel (%p841) target = $region44
      $region43: #{block_forward.6} parent=39 // pred_region
        %p844 = scmp.lt.s32.totalorder %s15, 1
        %s845 = scalar_select %p844, %s15, 1
        %s846 = smul.addr %s845, 32
        %s847 = smul.addr %s846, 4
        %s848 = scalar_lea.vmem %s3, %s847
      $region44: #{block_forward.6} parent=39 // pred_fallthru
        _
    $region40: #{block_forward.6} parent=5 // pred_fallthru
      _
  $region6: #{block_forward.6} parent=0 // loop_footer
    %s13 = sadd.s32 1, %s9
  $region7: #{block_forward.6} parent=0 // loop_footer_branch
    %8 = sbr.rel target = $region3
  $region8: #{block_forward.6} parent=0 // loop_exit
    _

// kernel: block_forward.7
$region0: #{block_forward.7}
  #allocation0 [shape = 'u32[]', space=smem, size = 0x4, offset = 0x4, fixed_abs, tag = 'smem constant byte address 0x4 - core index']
  #allocation1 [shape = 'u32[144,128]{1,0:T(1,128)}', space=vmem, size = 0x12000, scoped, tag = 'internal scratch']
  %s0 = inlined_call_operand.vmem [shape: bf16[2,16,32,8], index: 0, kind: input, shape index: {}]
  %s1 = inlined_call_operand.vmem [shape: bf16[9,8,128], index: 1, kind: input, shape index: {}]
  %s2 = inlined_call_operand.vmem [shape: f32[2,128], index: 2, kind: input, shape index: {}]
  %s3 = inlined_call_operand.vmem [shape: bf16[2,32,128], index: 3, kind: output, shape index: {}]
  %s4 = sld [smem:[#allocation0]]
  $region45: #{block_forward.7} parent=0
    _
  %s6 = ssub.s32 1, %s4
  %s7 = scalar_select 0, %s6, %s4
  loop: start=0, step=1, limit=4
  $region2: #{block_forward.7} parent=0 // loop_pre_header
    _
  $region3: #{block_forward.7} parent=0 // loop_header
    %s9 = sphi 0, %s13
    %p10 = scmp.ge.s32.totalorder %s9, 4
    %s19 = sphi 0, %s21
    %s22 = sphi 0, %s19
    %s23 = sphi 0, %s22
    %s39 = sphi 0, %s23
    %s43 = sphi 0, %s43
    %s45 = sphi 0, %s43
    %s46 = sphi 0, %s45
    %s60 = sphi 0, %s46
    %s64 = sphi 0, %s64
    %s66 = sphi 0, %s64
    %s67 = sphi 0, %s66
    %s81 = sphi 0, %s67
    %s87 = sphi 0, %s89
    %s90 = sphi 0, %s87
    %s91 = sphi 0, %s90
    %s107 = sphi 0, %s91
  $region4: #{block_forward.7} parent=0 // loop_header_branch
    %12 = sbr.rel (%p10) target = $region8
  $region5: #{block_forward.7} parent=0 // loop_body
    %s14 = ssub.s32 %s9, 1
    %s15 = ssub.s32 %s9, 2
    %s16 = sadd.s32 %s9, 1
    %s17 = ssub.s32 %s9, %s16
    %p18 = scmp.eq.s32.totalorder %s17, 0
    %s20 = sadd.s32 %s19, 1
    %s21 = scalar_select %p18, %s19, %s20
    %p24 = pneg %p18
    %p25 = scmp.eq.s32.totalorder %s9, 1
    %p26 = por %p24, %p25
    %p27 = scmp.ne.s32.totalorder %s19, %s22
    %p28 = scmp.eq.s32.totalorder %s9, 0
    %p29 = por %p27, %p28
    %p30 = scmp.ne.s32.totalorder %s19, %s22
    %p31 = scmp.eq.s32.totalorder %s14, 1
    %p32 = por %p30, %p31
    %p33 = scmp.ne.s32.totalorder %s22, %s23
    %p34 = scmp.eq.s32.totalorder %s14, 0
    %p35 = por %p33, %p34
    %p36 = scmp.ne.s32.totalorder %s22, %s23
    %p37 = scmp.eq.s32.totalorder %s15, 1
    %p38 = por %p36, %p37
    %p40 = scmp.ne.s32.totalorder %s23, %s39
    %p41 = scmp.eq.s32.totalorder %s15, 0
    %p42 = por %p40, %p41
    %s44 = sadd.s32 %s43, 1
    %p47 = scmp.eq.s32.totalorder %s9, 1
    %p48 = scmp.ne.s32.totalorder %s43, %s45
    %p49 = scmp.eq.s32.totalorder %s9, 0
    %p50 = por %p48, %p49
    %p51 = scmp.ne.s32.totalorder %s43, %s45
    %p52 = scmp.eq.s32.totalorder %s14, 1
    %p53 = por %p51, %p52
    %p54 = scmp.ne.s32.totalorder %s45, %s46
    %p55 = scmp.eq.s32.totalorder %s14, 0
    %p56 = por %p54, %p55
    %p57 = scmp.ne.s32.totalorder %s45, %s46
    %p58 = scmp.eq.s32.totalorder %s15, 1
    %p59 = por %p57, %p58
    %p61 = scmp.ne.s32.totalorder %s46, %s60
    %p62 = scmp.eq.s32.totalorder %s15, 0
    %p63 = por %p61, %p62
    %s65 = sadd.s32 %s64, 1
    %p68 = scmp.eq.s32.totalorder %s9, 1
    %p69 = scmp.ne.s32.totalorder %s64, %s66
    %p70 = scmp.eq.s32.totalorder %s9, 0
    %p71 = por %p69, %p70
    %p72 = scmp.ne.s32.totalorder %s64, %s66
    %p73 = scmp.eq.s32.totalorder %s14, 1
    %p74 = por %p72, %p73
    %p75 = scmp.ne.s32.totalorder %s66, %s67
    %p76 = scmp.eq.s32.totalorder %s14, 0
    %p77 = por %p75, %p76
    %p78 = scmp.ne.s32.totalorder %s66, %s67
    %p79 = scmp.eq.s32.totalorder %s15, 1
    %p80 = por %p78, %p79
    %p82 = scmp.ne.s32.totalorder %s67, %s81
    %p83 = scmp.eq.s32.totalorder %s15, 0
    %p84 = por %p82, %p83
    %s85 = ssub.s32 %s9, %s16
    %p86 = scmp.eq.s32.totalorder %s85, 0
    %s88 = sadd.s32 %s87, 1
    %s89 = scalar_select %p86, %s87, %s88
    %p92 = pneg %p86
    %p93 = scmp.eq.s32.totalorder %s9, 1
    %p94 = por %p92, %p93
    %p95 = scmp.ne.s32.totalorder %s87, %s90
    %p96 = scmp.eq.s32.totalorder %s9, 0
    %p97 = por %p95, %p96
    %p98 = scmp.ne.s32.totalorder %s87, %s90
    %p99 = scmp.eq.s32.totalorder %s14, 1
    %p100 = por %p98, %p99
    %p101 = scmp.ne.s32.totalorder %s90, %s91
    %p102 = scmp.eq.s32.totalorder %s14, 0
    %p103 = por %p101, %p102
    %p104 = scmp.ne.s32.totalorder %s90, %s91
    %p105 = scmp.eq.s32.totalorder %s15, 1
    %p106 = por %p104, %p105
    %p108 = scmp.ne.s32.totalorder %s91, %s107
    %p109 = scmp.eq.s32.totalorder %s15, 0
    %p110 = por %p108, %p109
    %p111 = scmp.le.s32.totalorder 1, %s9
    %p112 = scmp.lt.s32.totalorder %s9, 3
    %p113 = pnand %p111, %p112
    %p114 = pneg %p113
    // Predicated region
    $region9: #{block_forward.7} parent=5 // pred_check
      _
    $region10: #{block_forward.7} parent=5 // pred_check_branch
      %116 = sbr.rel (%p113) target = $region12
    $region11: #{block_forward.7} parent=5 // pred_region
      %s117 = ssub.s32 %s9, 1
      // Predicated region
      $region13: #{block_forward.7} parent=11 // pred_check
        %p118 = pneg %p56
      $region14: #{block_forward.7} parent=11 // pred_check_branch
        %120 = sbr.rel (%p118) target = $region16
      $region15: #{block_forward.7} parent=11 // pred_region
        _
      $region16: #{block_forward.7} parent=11 // pred_fallthru
        _
      // Predicated region
      $region17: #{block_forward.7} parent=11 // pred_check
        %p121 = pneg %p77
      $region18: #{block_forward.7} parent=11 // pred_check_branch
        %123 = sbr.rel (%p121) target = $region20
      $region19: #{block_forward.7} parent=11 // pred_region
        _
      $region20: #{block_forward.7} parent=11 // pred_fallthru
        _
    $region12: #{block_forward.7} parent=5 // pred_fallthru
      _
    %p124 = scmp.lt.s32.totalorder %s9, 2
    // Predicated region
    $region21: #{block_forward.7} parent=5 // pred_check
      %p125 = pneg %p124
    $region22: #{block_forward.7} parent=5 // pred_check_branch
      %127 = sbr.rel (%p125) target = $region24
    $region23: #{block_forward.7} parent=5 // pred_region
      // Predicated region
      $region25: #{block_forward.7} parent=23 // pred_check
        %p128 = pneg %p29
      $region26: #{block_forward.7} parent=23 // pred_check_branch
        %130 = sbr.rel (%p128) target = $region28
      $region27: #{block_forward.7} parent=23 // pred_region
        %p131 = scmp.lt.s32.totalorder %s9, 1
        %s132 = scalar_select %p131, %s9, 1
        %s133 = smul.addr %s132, 64
        %s134 = smul.addr %s133, 4
        %s135 = scalar_lea.vmem %s0, %s134
      $region28: #{block_forward.7} parent=23 // pred_fallthru
        _
    $region24: #{block_forward.7} parent=5 // pred_fallthru
      _
    %p136 = scmp.le.s32.totalorder 1, %s9
    %p137 = scmp.lt.s32.totalorder %s9, 3
    %p138 = pnand %p136, %p137
    %p139 = pneg %p138
    // Predicated region
    $region29: #{block_forward.7} parent=5 // pred_check
      _
    $region30: #{block_forward.7} parent=5 // pred_check_branch
      %141 = sbr.rel (%p138) target = $region32
    $region31: #{block_forward.7} parent=5 // pred_region
      %s142 = ssub.s32 %s9, 1
      %p143 = scmp.lt.s32.totalorder %s14, 1
      %s144 = scalar_select %p143, %s14, 1
      %s145 = smul.addr %s144, 64
      %s146 = smul.addr %s145, 4
      %s147 = scalar_lea.vmem %s0, %s146
      %p148 = pneg %p35
      %p149 = pneg %p32
      %p150 = pneg %p56
      %p151 = pneg %p53
      %p152 = pneg %p77
      %p153 = pneg %p74
      %p154 = pneg %p103
      %p155 = pneg %p100
      %p156 = scmp.lt.s32.totalorder %s14, 1
      %s157 = scalar_select %p156, %s14, 1
      %s158 = smul.addr %s157, 4
      %s159 = smul.addr %s158, 4
      %s160 = scalar_lea.vmem %s3, %s159
      %p161 = scmp.lt.s32.totalorder %s14, 1
      %s162 = scalar_select %p161, %s14, 1
      %s163 = smul.addr %s162, 64
      %s164 = smul.addr %s163, 4
      %s165 = scalar_lea.vmem %s0, %s164
      %p166 = scmp.lt.s32.totalorder %s14, 1
      %s167 = scalar_select %p166, %s14, 1
      %s168 = smul.addr %s167, 4
      %s169 = smul.addr %s168, 4
      %s170 = scalar_lea.vmem %s3, %s169
      %v172 = vld [vmem:[%s165] sm:$0xf]
      %v173 = vld [vmem:[%s165 + $0x4] sm:$0xf]
      %v174 = vld [vmem:[%s165 + $0x8] sm:$0xf]
      %v175 = vld [vmem:[%s165 + $0xc] sm:$0xf]
      %v176 = vld [vmem:[%s1] sm:$0xf]
      %s177 = scalar_lea.vmem %s165, 16
      %v178 = vld [vmem:[%s177] sm:$0xf]
      %v179 = vld [vmem:[%s177 + $0x4] sm:$0xf]
      %v180 = vld [vmem:[%s177 + $0x8] sm:$0xf]
      %v181 = vld [vmem:[%s177 + $0xc] sm:$0xf]
      %s182 = scalar_lea.vmem %s1, 4
      %v183 = vld [vmem:[%s182] sm:$0xf]
      %v188 = vunpack.c.l.b16 %v178
      %v189 = vunpack.c.l.b16 %v179
      %v190 = vunpack.c.l.b16 %v180
      %v191 = vunpack.c.l.b16 %v181
      %v192 = vpack.c.b16 %v189, %v188
      %v193 = vpack.c.b16 %v191, %v190
      %vm194 = vcmask 64512
      %v196 = vsel %vm194, %v192, 0
      %v199 = vsel %vm194, %v193, 0
      %vm201 = vcmask 1043456
      %v203 = vsel %vm201, %v183, 0
      %205 = vmatprep.subr.bf16.mxu0 0
      %206 = vmatpush1.bf16.msra.mxu0 %v203
      %207 = vmatprep.subr.bf16.mxu0 0
      %208 = vmatpush1.bf16.msra.mxu0 0
      %209 = vmatprep.subr.bf16.mxu0 0
      %210 = vmatpush1.bf16.msra.mxu0 0
      %211 = vmatprep.subr.bf16.mxu0 0
      %212 = vmatpush1.bf16.msra.mxu0 0
      %213 = vmatprep.subr.bf16.mxu0 0
      %214 = vmatpush1.bf16.msra.mxu0 0
      %215 = vmatprep.subr.bf16.mxu0 0
      %216 = vmatpush1.bf16.msra.mxu0 0
      %217 = vmatprep.subr.bf16.mxu0 0
      %218 = vmatpush1.bf16.msra.mxu0 0
      %219 = vmatprep.subr.bf16.mxu0 0
      %220 = vmatpush1.bf16.msra.mxu0 0
      %221 = vmatprep.subr.bf16.mxu0 0
      %222 = vmatpush1.bf16.msra.mxu0 0
      %223 = vmatprep.subr.bf16.mxu0 0
      %224 = vmatpush1.bf16.msra.mxu0 0
      %225 = vmatprep.subr.bf16.mxu0 0
      %226 = vmatpush1.bf16.msra.mxu0 0
      %227 = vmatprep.subr.bf16.mxu0 0
      %228 = vmatpush1.bf16.msra.mxu0 0
      %229 = vmatprep.subr.bf16.mxu0 0
      %230 = vmatpush1.bf16.msra.mxu0 0
      %231 = vmatprep.subr.bf16.mxu0 0
      %232 = vmatpush1.bf16.msra.mxu0 0
      %233 = vmatprep.subr.bf16.mxu0 0
      %234 = vmatpush1.bf16.msra.mxu0 0
      %235 = vmatprep.subr.bf16.mxu0 0
      %236 = vmatpush1.bf16.msra.mxu0 0
      %237 = vmatprep.mubr.bf16.mxu0 0
      %238 = vmatmul.mubr.bf16.gmra.mrb[0].mxu0 %v196
      %v239 = vpop.f32.mrb[0].mxu0
      %v240 = vadd.f32 0.0, %v239
      %v241 = vpop.f32.mrb[0].mxu0
      %v242 = vpop.f32.mrb[0].mxu0
      %v243 = vadd.f32 0.0, %v242
      %v244 = vpop.f32.mrb[0].mxu0
      %245 = vmatprep.mubr.bf16.mxu0 0
      %246 = vmatmul.mubr.bf16.gmra.mrb[0].mxu0 %v199
      %v247 = vpop.f32.mrb[0].mxu0
      %v248 = vadd.f32 0.0, %v247
      %v249 = vpop.f32.mrb[0].mxu0
      %v250 = vpop.f32.mrb[0].mxu0
      %v251 = vadd.f32 0.0, %v250
      %v252 = vpop.f32.mrb[0].mxu0
      %253 = vdwg.mxu0
      %v258 = vunpack.c.l.b16 %v172
      %v259 = vunpack.c.l.b16 %v173
      %v260 = vunpack.c.l.b16 %v174
      %v261 = vunpack.c.l.b16 %v175
      %v262 = vpack.c.b16 %v259, %v258
      %v263 = vpack.c.b16 %v261, %v260
      %v265 = vsel %vm194, %v262, 0
      %v268 = vsel %vm194, %v263, 0
      %v271 = vsel %vm201, %v176, 0
      %273 = vmatprep.subr.bf16.mxu0 0
      %274 = vmatpush1.bf16.msra.mxu0 %v271
      %275 = vmatprep.subr.bf16.mxu0 0
      %276 = vmatpush1.bf16.msra.mxu0 0
      %277 = vmatprep.subr.bf16.mxu0 0
      %278 = vmatpush1.bf16.msra.mxu0 0
      %279 = vmatprep.subr.bf16.mxu0 0
      %280 = vmatpush1.bf16.msra.mxu0 0
      %281 = vmatprep.subr.bf16.mxu0 0
      %282 = vmatpush1.bf16.msra.mxu0 0
      %283 = vmatprep.subr.bf16.mxu0 0
      %284 = vmatpush1.bf16.msra.mxu0 0
      %285 = vmatprep.subr.bf16.mxu0 0
      %286 = vmatpush1.bf16.msra.mxu0 0
      %287 = vmatprep.subr.bf16.mxu0 0
      %288 = vmatpush1.bf16.msra.mxu0 0
      %289 = vmatprep.subr.bf16.mxu0 0
      %290 = vmatpush1.bf16.msra.mxu0 0
      %291 = vmatprep.subr.bf16.mxu0 0
      %292 = vmatpush1.bf16.msra.mxu0 0
      %293 = vmatprep.subr.bf16.mxu0 0
      %294 = vmatpush1.bf16.msra.mxu0 0
      %295 = vmatprep.subr.bf16.mxu0 0
      %296 = vmatpush1.bf16.msra.mxu0 0
      %297 = vmatprep.subr.bf16.mxu0 0
      %298 = vmatpush1.bf16.msra.mxu0 0
      %299 = vmatprep.subr.bf16.mxu0 0
      %300 = vmatpush1.bf16.msra.mxu0 0
      %301 = vmatprep.subr.bf16.mxu0 0
      %302 = vmatpush1.bf16.msra.mxu0 0
      %303 = vmatprep.subr.bf16.mxu0 0
      %304 = vmatpush1.bf16.msra.mxu0 0
      %305 = vmatprep.mubr.bf16.mxu0 0
      %306 = vmatmul.mubr.bf16.gmra.mrb[0].mxu0 %v265
      %v307 = vpop.f32.mrb[0].mxu0
      %v308 = vadd.f32 %v240, %v307
      %v309 = vpop.f32.mrb[0].mxu0
      %v310 = vpop.f32.mrb[0].mxu0
      %v311 = vadd.f32 %v243, %v310
      %v312 = vpop.f32.mrb[0].mxu0
      %313 = vmatprep.mubr.bf16.mxu0 0
      %314 = vmatmul.mubr.bf16.gmra.mrb[0].mxu0 %v268
      %v315 = vpop.f32.mrb[0].mxu0
      %v316 = vadd.f32 %v248, %v315
      %v317 = vpop.f32.mrb[0].mxu0
      %v318 = vpop.f32.mrb[0].mxu0
      %v319 = vadd.f32 %v251, %v318
      %v320 = vpop.f32.mrb[0].mxu0
      %321 = vdwg.mxu0
      %s322 = scalar_lea.vmem %s165, 32
      %v323 = vld [vmem:[%s322] sm:$0xf]
      %v324 = vld [vmem:[%s322 + $0x4] sm:$0xf]
      %v325 = vld [vmem:[%s322 + $0x8] sm:$0xf]
      %v326 = vld [vmem:[%s322 + $0xc] sm:$0xf]
      %s327 = scalar_lea.vmem %s1, 8
      %v328 = vld [vmem:[%s327] sm:$0xf]
      %v333 = vunpack.c.l.b16 %v323
      %v334 = vunpack.c.l.b16 %v324
      %v335 = vunpack.c.l.b16 %v325
      %v336 = vunpack.c.l.b16 %v326
      %v337 = vpack.c.b16 %v334, %v333
      %v338 = vpack.c.b16 %v336, %v335
      %v340 = vsel %vm194, %v337, 0
      %v343 = vsel %vm194, %v338, 0
      %v346 = vsel %vm201, %v328, 0
      %348 = vmatprep.subr.bf16.mxu0 0
      %349 = vmatpush1.bf16.msra.mxu0 %v346
      %350 = vmatprep.subr.bf16.mxu0 0
      %351 = vmatpush1.bf16.msra.mxu0 0
      %352 = vmatprep.subr.bf16.mxu0 0
      %353 = vmatpush1.bf16.msra.mxu0 0
      %354 = vmatprep.subr.bf16.mxu0 0
      %355 = vmatpush1.bf16.msra.mxu0 0
      %356 = vmatprep.subr.bf16.mxu0 0
      %357 = vmatpush1.bf16.msra.mxu0 0
      %358 = vmatprep.subr.bf16.mxu0 0
      %359 = vmatpush1.bf16.msra.mxu0 0
      %360 = vmatprep.subr.bf16.mxu0 0
      %361 = vmatpush1.bf16.msra.mxu0 0
      %362 = vmatprep.subr.bf16.mxu0 0
      %363 = vmatpush1.bf16.msra.mxu0 0
      %364 = vmatprep.subr.bf16.mxu0 0
      %365 = vmatpush1.bf16.msra.mxu0 0
      %366 = vmatprep.subr.bf16.mxu0 0
      %367 = vmatpush1.bf16.msra.mxu0 0
      %368 = vmatprep.subr.bf16.mxu0 0
      %369 = vmatpush1.bf16.msra.mxu0 0
      %370 = vmatprep.subr.bf16.mxu0 0
      %371 = vmatpush1.bf16.msra.mxu0 0
      %372 = vmatprep.subr.bf16.mxu0 0
      %373 = vmatpush1.bf16.msra.mxu0 0
      %374 = vmatprep.subr.bf16.mxu0 0
      %375 = vmatpush1.bf16.msra.mxu0 0
      %376 = vmatprep.subr.bf16.mxu0 0
      %377 = vmatpush1.bf16.msra.mxu0 0
      %378 = vmatprep.subr.bf16.mxu0 0
      %379 = vmatpush1.bf16.msra.mxu0 0
      %380 = vmatprep.mubr.bf16.mxu0 0
      %381 = vmatmul.mubr.bf16.gmra.mrb[0].mxu0 %v340
      %v382 = vpop.f32.mrb[0].mxu0
      %v383 = vadd.f32 0.0, %v382
      %v384 = vpop.f32.mrb[0].mxu0
      %v385 = vpop.f32.mrb[0].mxu0
      %v386 = vadd.f32 0.0, %v385
      %v387 = vpop.f32.mrb[0].mxu0
      %388 = vmatprep.mubr.bf16.mxu0 0
      %389 = vmatmul.mubr.bf16.gmra.mrb[0].mxu0 %v343
      %v390 = vpop.f32.mrb[0].mxu0
      %v391 = vadd.f32 0.0, %v390
      %v392 = vpop.f32.mrb[0].mxu0
      %v393 = vpop.f32.mrb[0].mxu0
      %v394 = vadd.f32 0.0, %v393
      %v395 = vpop.f32.mrb[0].mxu0
      %396 = vdwg.mxu0
      %v397 = vadd.f32 %v308, %v383
      %v398 = vadd.f32 %v311, %v386
      %v399 = vadd.f32 %v316, %v391
      %v400 = vadd.f32 %v319, %v394
      %s401 = scalar_lea.vmem %s165, 64
      %v402 = vld [vmem:[%s401] sm:$0xf]
      %v403 = vld [vmem:[%s401 + $0x4] sm:$0xf]
      %v404 = vld [vmem:[%s401 + $0x8] sm:$0xf]
      %v405 = vld [vmem:[%s401 + $0xc] sm:$0xf]
      %s406 = scalar_lea.vmem %s1, 12
      %v407 = vld [vmem:[%s406] sm:$0xf]
      %v412 = vunpack.c.l.b16 %v402
      %v413 = vunpack.c.l.b16 %v403
      %v414 = vunpack.c.l.b16 %v404
      %v415 = vunpack.c.l.b16 %v405
      %v416 = vpack.c.b16 %v413, %v412
      %v417 = vpack.c.b16 %v415, %v414
      %v419 = vsel %vm194, %v416, 0
      %v422 = vsel %vm194, %v417, 0
      %v425 = vsel %vm201, %v407, 0
      %427 = vmatprep.subr.bf16.mxu0 0
      %428 = vmatpush1.bf16.msra.mxu0 %v425
      %429 = vmatprep.subr.bf16.mxu0 0
      %430 = vmatpush1.bf16.msra.mxu0 0
      %431 = vmatprep.subr.bf16.mxu0 0
      %432 = vmatpush1.bf16.msra.mxu0 0
      %433 = vmatprep.subr.bf16.mxu0 0
      %434 = vmatpush1.bf16.msra.mxu0 0
      %435 = vmatprep.subr.bf16.mxu0 0
      %436 = vmatpush1.bf16.msra.mxu0 0
      %437 = vmatprep.subr.bf16.mxu0 0
      %438 = vmatpush1.bf16.msra.mxu0 0
      %439 = vmatprep.subr.bf16.mxu0 0
      %440 = vmatpush1.bf16.msra.mxu0 0
      %441 = vmatprep.subr.bf16.mxu0 0
      %442 = vmatpush1.bf16.msra.mxu0 0
      %443 = vmatprep.subr.bf16.mxu0 0
      %444 = vmatpush1.bf16.msra.mxu0 0
      %445 = vmatprep.subr.bf16.mxu0 0
      %446 = vmatpush1.bf16.msra.mxu0 0
      %447 = vmatprep.subr.bf16.mxu0 0
      %448 = vmatpush1.bf16.msra.mxu0 0
      %449 = vmatprep.subr.bf16.mxu0 0
      %450 = vmatpush1.bf16.msra.mxu0 0
      %451 = vmatprep.subr.bf16.mxu0 0
      %452 = vmatpush1.bf16.msra.mxu0 0
      %453 = vmatprep.subr.bf16.mxu0 0
      %454 = vmatpush1.bf16.msra.mxu0 0
      %455 = vmatprep.subr.bf16.mxu0 0
      %456 = vmatpush1.bf16.msra.mxu0 0
      %457 = vmatprep.subr.bf16.mxu0 0
      %458 = vmatpush1.bf16.msra.mxu0 0
      %459 = vmatprep.mubr.bf16.mxu0 0
      %460 = vmatmul.mubr.bf16.gmra.mrb[0].mxu0 %v419
      %v461 = vpop.f32.mrb[0].mxu0
      %v462 = vadd.f32 0.0, %v461
      %v463 = vpop.f32.mrb[0].mxu0
      %v464 = vpop.f32.mrb[0].mxu0
      %v465 = vadd.f32 0.0, %v464
      %v466 = vpop.f32.mrb[0].mxu0
      %467 = vmatprep.mubr.bf16.mxu0 0
      %468 = vmatmul.mubr.bf16.gmra.mrb[0].mxu0 %v422
      %v469 = vpop.f32.mrb[0].mxu0
      %v470 = vadd.f32 0.0, %v469
      %v471 = vpop.f32.mrb[0].mxu0
      %v472 = vpop.f32.mrb[0].mxu0
      %v473 = vadd.f32 0.0, %v472
      %v474 = vpop.f32.mrb[0].mxu0
      %475 = vdwg.mxu0
      %v476 = vadd.f32 %v397, %v462
      %v477 = vadd.f32 %v398, %v465
      %v478 = vadd.f32 %v399, %v470
      %v479 = vadd.f32 %v400, %v473
      %s480 = scalar_lea.vmem %s165, 80
      %v481 = vld [vmem:[%s480] sm:$0xf]
      %v482 = vld [vmem:[%s480 + $0x4] sm:$0xf]
      %v483 = vld [vmem:[%s480 + $0x8] sm:$0xf]
      %v484 = vld [vmem:[%s480 + $0xc] sm:$0xf]
      %s485 = scalar_lea.vmem %s1, 16
      %v486 = vld [vmem:[%s485] sm:$0xf]
      %v491 = vunpack.c.l.b16 %v481
      %v492 = vunpack.c.l.b16 %v482
      %v493 = vunpack.c.l.b16 %v483
      %v494 = vunpack.c.l.b16 %v484
      %v495 = vpack.c.b16 %v492, %v491
      %v496 = vpack.c.b16 %v494, %v493
      %v498 = vsel %vm194, %v495, 0
      %v501 = vsel %vm194, %v496, 0
      %v504 = vsel %vm201, %v486, 0
      %506 = vmatprep.subr.bf16.mxu0 0
      %507 = vmatpush1.bf16.msra.mxu0 %v504
      %508 = vmatprep.subr.bf16.mxu0 0
      %509 = vmatpush1.bf16.msra.mxu0 0
      %510 = vmatprep.subr.bf16.mxu0 0
      %511 = vmatpush1.bf16.msra.mxu0 0
      %512 = vmatprep.subr.bf16.mxu0 0
      %513 = vmatpush1.bf16.msra.mxu0 0
      %514 = vmatprep.subr.bf16.mxu0 0
      %515 = vmatpush1.bf16.msra.mxu0 0
      %516 = vmatprep.subr.bf16.mxu0 0
      %517 = vmatpush1.bf16.msra.mxu0 0
      %518 = vmatprep.subr.bf16.mxu0 0
      %519 = vmatpush1.bf16.msra.mxu0 0
      %520 = vmatprep.subr.bf16.mxu0 0
      %521 = vmatpush1.bf16.msra.mxu0 0
      %522 = vmatprep.subr.bf16.mxu0 0
      %523 = vmatpush1.bf16.msra.mxu0 0
      %524 = vmatprep.subr.bf16.mxu0 0
      %525 = vmatpush1.bf16.msra.mxu0 0
      %526 = vmatprep.subr.bf16.mxu0 0
      %527 = vmatpush1.bf16.msra.mxu0 0
      %528 = vmatprep.subr.bf16.mxu0 0
      %529 = vmatpush1.bf16.msra.mxu0 0
      %530 = vmatprep.subr.bf16.mxu0 0
      %531 = vmatpush1.bf16.msra.mxu0 0
      %532 = vmatprep.subr.bf16.mxu0 0
      %533 = vmatpush1.bf16.msra.mxu0 0
      %534 = vmatprep.subr.bf16.mxu0 0
      %535 = vmatpush1.bf16.msra.mxu0 0
      %536 = vmatprep.subr.bf16.mxu0 0
      %537 = vmatpush1.bf16.msra.mxu0 0
      %538 = vmatprep.mubr.bf16.mxu0 0
      %539 = vmatmul.mubr.bf16.gmra.mrb[0].mxu0 %v498
      %v540 = vpop.f32.mrb[0].mxu0
      %v541 = vadd.f32 0.0, %v540
      %v542 = vpop.f32.mrb[0].mxu0
      %v543 = vpop.f32.mrb[0].mxu0
      %v544 = vadd.f32 0.0, %v543
      %v545 = vpop.f32.mrb[0].mxu0
      %546 = vmatprep.mubr.bf16.mxu0 0
      %547 = vmatmul.mubr.bf16.gmra.mrb[0].mxu0 %v501
      %v548 = vpop.f32.mrb[0].mxu0
      %v549 = vadd.f32 0.0, %v548
      %v550 = vpop.f32.mrb[0].mxu0
      %v551 = vpop.f32.mrb[0].mxu0
      %v552 = vadd.f32 0.0, %v551
      %v553 = vpop.f32.mrb[0].mxu0
      %554 = vdwg.mxu0
      %v555 = vadd.f32 %v476, %v541
      %v556 = vadd.f32 %v477, %v544
      %v557 = vadd.f32 %v478, %v549
      %v558 = vadd.f32 %v479, %v552
      %s559 = scalar_lea.vmem %s165, 96
      %v560 = vld [vmem:[%s559] sm:$0xf]
      %v561 = vld [vmem:[%s559 + $0x4] sm:$0xf]
      %v562 = vld [vmem:[%s559 + $0x8] sm:$0xf]
      %v563 = vld [vmem:[%s559 + $0xc] sm:$0xf]
      %s564 = scalar_lea.vmem %s1, 20
      %v565 = vld [vmem:[%s564] sm:$0xf]
      %v570 = vunpack.c.l.b16 %v560
      %v571 = vunpack.c.l.b16 %v561
      %v572 = vunpack.c.l.b16 %v562
      %v573 = vunpack.c.l.b16 %v563
      %v574 = vpack.c.b16 %v571, %v570
      %v575 = vpack.c.b16 %v573, %v572
      %v577 = vsel %vm194, %v574, 0
      %v580 = vsel %vm194, %v575, 0
      %v583 = vsel %vm201, %v565, 0
      %585 = vmatprep.subr.bf16.mxu0 0
      %586 = vmatpush1.bf16.msra.mxu0 %v583
      %587 = vmatprep.subr.bf16.mxu0 0
      %588 = vmatpush1.bf16.msra.mxu0 0
      %589 = vmatprep.subr.bf16.mxu0 0
      %590 = vmatpush1.bf16.msra.mxu0 0
      %591 = vmatprep.subr.bf16.mxu0 0
      %592 = vmatpush1.bf16.msra.mxu0 0
      %593 = vmatprep.subr.bf16.mxu0 0
      %594 = vmatpush1.bf16.msra.mxu0 0
      %595 = vmatprep.subr.bf16.mxu0 0
      %596 = vmatpush1.bf16.msra.mxu0 0
      %597 = vmatprep.subr.bf16.mxu0 0
      %598 = vmatpush1.bf16.msra.mxu0 0
      %599 = vmatprep.subr.bf16.mxu0 0
      %600 = vmatpush1.bf16.msra.mxu0 0
      %601 = vmatprep.subr.bf16.mxu0 0
      %602 = vmatpush1.bf16.msra.mxu0 0
      %603 = vmatprep.subr.bf16.mxu0 0
      %604 = vmatpush1.bf16.msra.mxu0 0
      %605 = vmatprep.subr.bf16.mxu0 0
      %606 = vmatpush1.bf16.msra.mxu0 0
      %607 = vmatprep.subr.bf16.mxu0 0
      %608 = vmatpush1.bf16.msra.mxu0 0
      %609 = vmatprep.subr.bf16.mxu0 0
      %610 = vmatpush1.bf16.msra.mxu0 0
      %611 = vmatprep.subr.bf16.mxu0 0
      %612 = vmatpush1.bf16.msra.mxu0 0
      %613 = vmatprep.subr.bf16.mxu0 0
      %614 = vmatpush1.bf16.msra.mxu0 0
      %615 = vmatprep.subr.bf16.mxu0 0
      %616 = vmatpush1.bf16.msra.mxu0 0
      %617 = vmatprep.mubr.bf16.mxu0 0
      %618 = vmatmul.mubr.bf16.gmra.mrb[0].mxu0 %v577
      %v619 = vpop.f32.mrb[0].mxu0
      %v620 = vadd.f32 0.0, %v619
      %v621 = vpop.f32.mrb[0].mxu0
      %v622 = vpop.f32.mrb[0].mxu0
      %v623 = vadd.f32 0.0, %v622
      %v624 = vpop.f32.mrb[0].mxu0
      %625 = vmatprep.mubr.bf16.mxu0 0
      %626 = vmatmul.mubr.bf16.gmra.mrb[0].mxu0 %v580
      %v627 = vpop.f32.mrb[0].mxu0
      %v628 = vadd.f32 0.0, %v627
      %v629 = vpop.f32.mrb[0].mxu0
      %v630 = vpop.f32.mrb[0].mxu0
      %v631 = vadd.f32 0.0, %v630
      %v632 = vpop.f32.mrb[0].mxu0
      %633 = vdwg.mxu0
      %v634 = vadd.f32 %v555, %v620
      %v635 = vadd.f32 %v556, %v623
      %v636 = vadd.f32 %v557, %v628
      %v637 = vadd.f32 %v558, %v631
      %s638 = scalar_lea.vmem %s165, 128
      %v639 = vld [vmem:[%s638] sm:$0xf]
      %v640 = vld [vmem:[%s638 + $0x4] sm:$0xf]
      %v641 = vld [vmem:[%s638 + $0x8] sm:$0xf]
      %v642 = vld [vmem:[%s638 + $0xc] sm:$0xf]
      %s643 = scalar_lea.vmem %s1, 24
      %v644 = vld [vmem:[%s643] sm:$0xf]
      %v649 = vunpack.c.l.b16 %v639
      %v650 = vunpack.c.l.b16 %v640
      %v651 = vunpack.c.l.b16 %v641
      %v652 = vunpack.c.l.b16 %v642
      %v653 = vpack.c.b16 %v650, %v649
      %v654 = vpack.c.b16 %v652, %v651
      %v656 = vsel %vm194, %v653, 0
      %v659 = vsel %vm194, %v654, 0
      %v662 = vsel %vm201, %v644, 0
      %664 = vmatprep.subr.bf16.mxu0 0
      %665 = vmatpush1.bf16.msra.mxu0 %v662
      %666 = vmatprep.subr.bf16.mxu0 0
      %667 = vmatpush1.bf16.msra.mxu0 0
      %668 = vmatprep.subr.bf16.mxu0 0
      %669 = vmatpush1.bf16.msra.mxu0 0
      %670 = vmatprep.subr.bf16.mxu0 0
      %671 = vmatpush1.bf16.msra.mxu0 0
      %672 = vmatprep.subr.bf16.mxu0 0
      %673 = vmatpush1.bf16.msra.mxu0 0
      %674 = vmatprep.subr.bf16.mxu0 0
      %675 = vmatpush1.bf16.msra.mxu0 0
      %676 = vmatprep.subr.bf16.mxu0 0
      %677 = vmatpush1.bf16.msra.mxu0 0
      %678 = vmatprep.subr.bf16.mxu0 0
      %679 = vmatpush1.bf16.msra.mxu0 0
      %680 = vmatprep.subr.bf16.mxu0 0
      %681 = vmatpush1.bf16.msra.mxu0 0
      %682 = vmatprep.subr.bf16.mxu0 0
      %683 = vmatpush1.bf16.msra.mxu0 0
      %684 = vmatprep.subr.bf16.mxu0 0
      %685 = vmatpush1.bf16.msra.mxu0 0
      %686 = vmatprep.subr.bf16.mxu0 0
      %687 = vmatpush1.bf16.msra.mxu0 0
      %688 = vmatprep.subr.bf16.mxu0 0
      %689 = vmatpush1.bf16.msra.mxu0 0
      %690 = vmatprep.subr.bf16.mxu0 0
      %691 = vmatpush1.bf16.msra.mxu0 0
      %692 = vmatprep.subr.bf16.mxu0 0
      %693 = vmatpush1.bf16.msra.mxu0 0
      %694 = vmatprep.subr.bf16.mxu0 0
      %695 = vmatpush1.bf16.msra.mxu0 0
      %696 = vmatprep.mubr.bf16.mxu0 0
      %697 = vmatmul.mubr.bf16.gmra.mrb[0].mxu0 %v656
      %v698 = vpop.f32.mrb[0].mxu0
      %v699 = vadd.f32 0.0, %v698
      %v700 = vpop.f32.mrb[0].mxu0
      %v701 = vpop.f32.mrb[0].mxu0
      %v702 = vadd.f32 0.0, %v701
      %v703 = vpop.f32.mrb[0].mxu0
      %704 = vmatprep.mubr.bf16.mxu0 0
      %705 = vmatmul.mubr.bf16.gmra.mrb[0].mxu0 %v659
      %v706 = vpop.f32.mrb[0].mxu0
      %v707 = vadd.f32 0.0, %v706
      %v708 = vpop.f32.mrb[0].mxu0
      %v709 = vpop.f32.mrb[0].mxu0
      %v710 = vadd.f32 0.0, %v709
      %v711 = vpop.f32.mrb[0].mxu0
      %712 = vdwg.mxu0
      %v713 = vadd.f32 %v634, %v699
      %v714 = vadd.f32 %v635, %v702
      %v715 = vadd.f32 %v636, %v707
      %v716 = vadd.f32 %v637, %v710
      %s717 = scalar_lea.vmem %s165, 144
      %v718 = vld [vmem:[%s717] sm:$0xf]
      %v719 = vld [vmem:[%s717 + $0x4] sm:$0xf]
      %v720 = vld [vmem:[%s717 + $0x8] sm:$0xf]
      %v721 = vld [vmem:[%s717 + $0xc] sm:$0xf]
      %s722 = scalar_lea.vmem %s1, 28
      %v723 = vld [vmem:[%s722] sm:$0xf]
      %v728 = vunpack.c.l.b16 %v718
      %v729 = vunpack.c.l.b16 %v719
      %v730 = vunpack.c.l.b16 %v720
      %v731 = vunpack.c.l.b16 %v721
      %v732 = vpack.c.b16 %v729, %v728
      %v733 = vpack.c.b16 %v731, %v730
      %v735 = vsel %vm194, %v732, 0
      %v738 = vsel %vm194, %v733, 0
      %v741 = vsel %vm201, %v723, 0
      %743 = vmatprep.subr.bf16.mxu0 0
      %744 = vmatpush1.bf16.msra.mxu0 %v741
      %745 = vmatprep.subr.bf16.mxu0 0
      %746 = vmatpush1.bf16.msra.mxu0 0
      %747 = vmatprep.subr.bf16.mxu0 0
      %748 = vmatpush1.bf16.msra.mxu0 0
      %749 = vmatprep.subr.bf16.mxu0 0
      %750 = vmatpush1.bf16.msra.mxu0 0
      %751 = vmatprep.subr.bf16.mxu0 0
      %752 = vmatpush1.bf16.msra.mxu0 0
      %753 = vmatprep.subr.bf16.mxu0 0
      %754 = vmatpush1.bf16.msra.mxu0 0
      %755 = vmatprep.subr.bf16.mxu0 0
      %756 = vmatpush1.bf16.msra.mxu0 0
      %757 = vmatprep.subr.bf16.mxu0 0
      %758 = vmatpush1.bf16.msra.mxu0 0
      %759 = vmatprep.subr.bf16.mxu0 0
      %760 = vmatpush1.bf16.msra.mxu0 0
      %761 = vmatprep.subr.bf16.mxu0 0
      %762 = vmatpush1.bf16.msra.mxu0 0
      %763 = vmatprep.subr.bf16.mxu0 0
      %764 = vmatpush1.bf16.msra.mxu0 0
      %765 = vmatprep.subr.bf16.mxu0 0
      %766 = vmatpush1.bf16.msra.mxu0 0
      %767 = vmatprep.subr.bf16.mxu0 0
      %768 = vmatpush1.bf16.msra.mxu0 0
      %769 = vmatprep.subr.bf16.mxu0 0
      %770 = vmatpush1.bf16.msra.mxu0 0
      %771 = vmatprep.subr.bf16.mxu0 0
      %772 = vmatpush1.bf16.msra.mxu0 0
      %773 = vmatprep.subr.bf16.mxu0 0
      %774 = vmatpush1.bf16.msra.mxu0 0
      %775 = vmatprep.mubr.bf16.mxu0 0
      %776 = vmatmul.mubr.bf16.gmra.mrb[0].mxu0 %v735
      %v777 = vpop.f32.mrb[0].mxu0
      %v778 = vadd.f32 0.0, %v777
      %v779 = vpop.f32.mrb[0].mxu0
      %v780 = vpop.f32.mrb[0].mxu0
      %v781 = vadd.f32 0.0, %v780
      %v782 = vpop.f32.mrb[0].mxu0
      %783 = vmatprep.mubr.bf16.mxu0 0
      %784 = vmatmul.mubr.bf16.gmra.mrb[0].mxu0 %v738
      %v785 = vpop.f32.mrb[0].mxu0
      %v786 = vadd.f32 0.0, %v785
      %v787 = vpop.f32.mrb[0].mxu0
      %v788 = vpop.f32.mrb[0].mxu0
      %v789 = vadd.f32 0.0, %v788
      %v790 = vpop.f32.mrb[0].mxu0
      %791 = vdwg.mxu0
      %v792 = vadd.f32 %v713, %v778
      %v793 = vadd.f32 %v714, %v781
      %v794 = vadd.f32 %v715, %v786
      %v795 = vadd.f32 %v716, %v789
      %s796 = scalar_lea.vmem %s165, 160
      %v797 = vld [vmem:[%s796] sm:$0xf]
      %v798 = vld [vmem:[%s796 + $0x4] sm:$0xf]
      %v799 = vld [vmem:[%s796 + $0x8] sm:$0xf]
      %v800 = vld [vmem:[%s796 + $0xc] sm:$0xf]
      %s801 = scalar_lea.vmem %s1, 32
      %v802 = vld [vmem:[%s801] sm:$0xf]
      %v807 = vunpack.c.l.b16 %v797
      %v808 = vunpack.c.l.b16 %v798
      %v809 = vunpack.c.l.b16 %v799
      %v810 = vunpack.c.l.b16 %v800
      %v811 = vpack.c.b16 %v808, %v807
      %v812 = vpack.c.b16 %v810, %v809
      %v814 = vsel %vm194, %v811, 0
      %v817 = vsel %vm194, %v812, 0
      %v820 = vsel %vm201, %v802, 0
      %822 = vmatprep.subr.bf16.mxu0 0
      %823 = vmatpush1.bf16.msra.mxu0 %v820
      %824 = vmatprep.subr.bf16.mxu0 0
      %825 = vmatpush1.bf16.msra.mxu0 0
      %826 = vmatprep.subr.bf16.mxu0 0
      %827 = vmatpush1.bf16.msra.mxu0 0
      %828 = vmatprep.subr.bf16.mxu0 0
      %829 = vmatpush1.bf16.msra.mxu0 0
      %830 = vmatprep.subr.bf16.mxu0 0
      %831 = vmatpush1.bf16.msra.mxu0 0
      %832 = vmatprep.subr.bf16.mxu0 0
      %833 = vmatpush1.bf16.msra.mxu0 0
      %834 = vmatprep.subr.bf16.mxu0 0
      %835 = vmatpush1.bf16.msra.mxu0 0
      %836 = vmatprep.subr.bf16.mxu0 0
      %837 = vmatpush1.bf16.msra.mxu0 0
      %838 = vmatprep.subr.bf16.mxu0 0
      %839 = vmatpush1.bf16.msra.mxu0 0
      %840 = vmatprep.subr.bf16.mxu0 0
      %841 = vmatpush1.bf16.msra.mxu0 0
      %842 = vmatprep.subr.bf16.mxu0 0
      %843 = vmatpush1.bf16.msra.mxu0 0
      %844 = vmatprep.subr.bf16.mxu0 0
      %845 = vmatpush1.bf16.msra.mxu0 0
      %846 = vmatprep.subr.bf16.mxu0 0
      %847 = vmatpush1.bf16.msra.mxu0 0
      %848 = vmatprep.subr.bf16.mxu0 0
      %849 = vmatpush1.bf16.msra.mxu0 0
      %850 = vmatprep.subr.bf16.mxu0 0
      %851 = vmatpush1.bf16.msra.mxu0 0
      %852 = vmatprep.subr.bf16.mxu0 0
      %853 = vmatpush1.bf16.msra.mxu0 0
      %854 = vmatprep.mubr.bf16.mxu0 0
      %855 = vmatmul.mubr.bf16.gmra.mrb[0].mxu0 %v814
      %v856 = vpop.f32.mrb[0].mxu0
      %v857 = vadd.f32 0.0, %v856
      %v858 = vpop.f32.mrb[0].mxu0
      %v859 = vpop.f32.mrb[0].mxu0
      %v860 = vadd.f32 0.0, %v859
      %v861 = vpop.f32.mrb[0].mxu0
      %862 = vmatprep.mubr.bf16.mxu0 0
      %863 = vmatmul.mubr.bf16.gmra.mrb[0].mxu0 %v817
      %v864 = vpop.f32.mrb[0].mxu0
      %v865 = vadd.f32 0.0, %v864
      %v866 = vpop.f32.mrb[0].mxu0
      %v867 = vpop.f32.mrb[0].mxu0
      %v868 = vadd.f32 0.0, %v867
      %v869 = vpop.f32.mrb[0].mxu0
      %870 = vdwg.mxu0
      %v871 = vadd.f32 %v792, %v857
      %v872 = vadd.f32 %v793, %v860
      %v873 = vadd.f32 %v794, %v865
      %v874 = vadd.f32 %v795, %v868
      %v875 = vld [vmem:[%s2] sm:$0x3]
      %v876 = vlaneseq
      %v877 = vshrl.u32 %v876, 7
      %v878 = vsub.s32 0, %v877
      %v879 = vrot.slane %v875, %v878
      %v880 = vmul.f32 %v871, %v879
      %v881 = vmul.f32 %v872, %v879
      %v882 = vmul.f32 %v873, %v879
      %v883 = vmul.f32 %v874, %v879
      %v884 = vlaneseq
      %v885 = vshrl.u32 %v884, 7
      %v886 = vsub.s32 1, %v885
      %v887 = vrot.slane %v875, %v886
      %v888 = vadd.f32 %v880, %v887
      %v889 = vadd.f32 %v881, %v887
      %v890 = vadd.f32 %v882, %v887
      %v891 = vadd.f32 %v883, %v887
      %v892 = vpack.c.bf16 %v889, %v888
      %v893 = vpack.c.bf16 %v891, %v890
      %v896 = vunpack.c.l.b16 %v892
      %v897 = vunpack.c.h.b16 %v892
      %v898 = vunpack.c.l.b16 %v893
      %v899 = vunpack.c.h.b16 %v893
      %v900 = vpack.c.b16 %v896, %v896
      %v901 = vpack.c.b16 %v897, %v897
      %v902 = vpack.c.b16 %v898, %v898
      %v903 = vpack.c.b16 %v899, %v899
      %908 = vst [vmem:[%s170] sm:$0xf] %v900
      %909 = vst [vmem:[%s170 + $0x4] sm:$0xf] %v901
      %910 = vst [vmem:[%s170 + $0x8] sm:$0xf] %v902
      %911 = vst [vmem:[%s170 + $0xc] sm:$0xf] %v903
      %p912 = scmp.lt.s32.totalorder %s14, 1
      %s913 = scalar_select %p912, %s14, 1
      %s914 = smul.addr %s913, 4
      %s915 = smul.addr %s914, 4
      %s916 = scalar_lea.vmem %s3, %s915
      // Predicated region
      $region33: #{block_forward.7} parent=31 // pred_check
        %p917 = pneg %p100
      $region34: #{block_forward.7} parent=31 // pred_check_branch
        %919 = sbr.rel (%p917) target = $region36
      $region35: #{block_forward.7} parent=31 // pred_region
        _
      $region36: #{block_forward.7} parent=31 // pred_fallthru
        _
    $region32: #{block_forward.7} parent=5 // pred_fallthru
      _
    %p920 = scmp.le.s32.totalorder 2, %s9
    // Predicated region
    $region37: #{block_forward.7} parent=5 // pred_check
      %p921 = pneg %p920
    $region38: #{block_forward.7} parent=5 // pred_check_branch
      %923 = sbr.rel (%p921) target = $region40
    $region39: #{block_forward.7} parent=5 // pred_region
      %s924 = ssub.s32 %s9, 2
      // Predicated region
      $region41: #{block_forward.7} parent=39 // pred_check
        %p925 = pneg %p106
      $region42: #{block_forward.7} parent=39 // pred_check_branch
        %927 = sbr.rel (%p925) target = $region44
      $region43: #{block_forward.7} parent=39 // pred_region
        %p928 = scmp.lt.s32.totalorder %s15, 1
        %s929 = scalar_select %p928, %s15, 1
        %s930 = smul.addr %s929, 4
        %s931 = smul.addr %s930, 4
        %s932 = scalar_lea.vmem %s3, %s931
      $region44: #{block_forward.7} parent=39 // pred_fallthru
        _
    $region40: #{block_forward.7} parent=5 // pred_fallthru
      _
  $region6: #{block_forward.7} parent=0 // loop_footer
    %s13 = sadd.s32 1, %s9
  $region7: #{block_forward.7} parent=0 // loop_footer_branch
    %8 = sbr.rel target = $region3
  $region8: #{block_forward.7} parent=0 // loop_exit
    _

// kernel: block_forward.11
$region0: #{block_forward.11}
  #allocation0 [shape = 'u32[]', space=smem, size = 0x4, offset = 0x4, fixed_abs, tag = 'smem constant byte address 0x4 - core index']
  #allocation1 [shape = 'u32[144,128]{1,0:T(1,128)}', space=vmem, size = 0x12000, scoped, tag = 'internal scratch']
  %s0 = inlined_call_operand.vmem [shape: bf16[2,1,72,8], index: 0, kind: input, shape index: {}]
  %s1 = inlined_call_operand.vmem [shape: bf16[9,8,128], index: 1, kind: input, shape index: {}]
  %s2 = inlined_call_operand.vmem [shape: f32[2,128], index: 2, kind: input, shape index: {}]
  %s3 = inlined_call_operand.vmem [shape: bf16[2,32,128], index: 3, kind: input, shape index: {}]
  %s4 = inlined_call_operand.vmem [shape: f32[2,32,128], index: 4, kind: output, shape index: {}]
  %s5 = sld [smem:[#allocation0]]
  $region49: #{block_forward.11} parent=0
    _
  %s7 = ssub.s32 1, %s5
  %s8 = scalar_select 0, %s7, %s5
  loop: start=0, step=1, limit=4
  $region2: #{block_forward.11} parent=0 // loop_pre_header
    _
  $region3: #{block_forward.11} parent=0 // loop_header
    %s10 = sphi 0, %s14
    %p11 = scmp.ge.s32.totalorder %s10, 4
    %s20 = sphi 0, %s22
    %s23 = sphi 0, %s20
    %s24 = sphi 0, %s23
    %s40 = sphi 0, %s24
    %s44 = sphi 0, %s44
    %s46 = sphi 0, %s44
    %s47 = sphi 0, %s46
    %s61 = sphi 0, %s47
    %s65 = sphi 0, %s65
    %s67 = sphi 0, %s65
    %s68 = sphi 0, %s67
    %s82 = sphi 0, %s68
    %s88 = sphi 0, %s90
    %s91 = sphi 0, %s88
    %s92 = sphi 0, %s91
    %s108 = sphi 0, %s92
    %s114 = sphi 0, %s116
    %s117 = sphi 0, %s114
    %s118 = sphi 0, %s117
    %s134 = sphi 0, %s118
  $region4: #{block_forward.11} parent=0 // loop_header_branch
    %13 = sbr.rel (%p11) target = $region8
  $region5: #{block_forward.11} parent=0 // loop_body
    %s15 = ssub.s32 %s10, 1
    %s16 = ssub.s32 %s10, 2
    %s17 = sadd.s32 %s10, 1
    %s18 = ssub.s32 %s10, %s17
    %p19 = scmp.eq.s32.totalorder %s18, 0
    %s21 = sadd.s32 %s20, 1
    %s22 = scalar_select %p19, %s20, %s21
    %p25 = pneg %p19
    %p26 = scmp.eq.s32.totalorder %s10, 1
    %p27 = por %p25, %p26
    %p28 = scmp.ne.s32.totalorder %s20, %s23
    %p29 = scmp.eq.s32.totalorder %s10, 0
    %p30 = por %p28, %p29
    %p31 = scmp.ne.s32.totalorder %s20, %s23
    %p32 = scmp.eq.s32.totalorder %s15, 1
    %p33 = por %p31, %p32
    %p34 = scmp.ne.s32.totalorder %s23, %s24
    %p35 = scmp.eq.s32.totalorder %s15, 0
    %p36 = por %p34, %p35
    %p37 = scmp.ne.s32.totalorder %s23, %s24
    %p38 = scmp.eq.s32.totalorder %s16, 1
    %p39 = por %p37, %p38
    %p41 = scmp.ne.s32.totalorder %s24, %s40
    %p42 = scmp.eq.s32.totalorder %s16, 0
    %p43 = por %p41, %p42
    %s45 = sadd.s32 %s44, 1
    %p48 = scmp.eq.s32.totalorder %s10, 1
    %p49 = scmp.ne.s32.totalorder %s44, %s46
    %p50 = scmp.eq.s32.totalorder %s10, 0
    %p51 = por %p49, %p50
    %p52 = scmp.ne.s32.totalorder %s44, %s46
    %p53 = scmp.eq.s32.totalorder %s15, 1
    %p54 = por %p52, %p53
    %p55 = scmp.ne.s32.totalorder %s46, %s47
    %p56 = scmp.eq.s32.totalorder %s15, 0
    %p57 = por %p55, %p56
    %p58 = scmp.ne.s32.totalorder %s46, %s47
    %p59 = scmp.eq.s32.totalorder %s16, 1
    %p60 = por %p58, %p59
    %p62 = scmp.ne.s32.totalorder %s47, %s61
    %p63 = scmp.eq.s32.totalorder %s16, 0
    %p64 = por %p62, %p63
    %s66 = sadd.s32 %s65, 1
    %p69 = scmp.eq.s32.totalorder %s10, 1
    %p70 = scmp.ne.s32.totalorder %s65, %s67
    %p71 = scmp.eq.s32.totalorder %s10, 0
    %p72 = por %p70, %p71
    %p73 = scmp.ne.s32.totalorder %s65, %s67
    %p74 = scmp.eq.s32.totalorder %s15, 1
    %p75 = por %p73, %p74
    %p76 = scmp.ne.s32.totalorder %s67, %s68
    %p77 = scmp.eq.s32.totalorder %s15, 0
    %p78 = por %p76, %p77
    %p79 = scmp.ne.s32.totalorder %s67, %s68
    %p80 = scmp.eq.s32.totalorder %s16, 1
    %p81 = por %p79, %p80
    %p83 = scmp.ne.s32.totalorder %s68, %s82
    %p84 = scmp.eq.s32.totalorder %s16, 0
    %p85 = por %p83, %p84
    %s86 = ssub.s32 %s10, %s17
    %p87 = scmp.eq.s32.totalorder %s86, 0
    %s89 = sadd.s32 %s88, 1
    %s90 = scalar_select %p87, %s88, %s89
    %p93 = pneg %p87
    %p94 = scmp.eq.s32.totalorder %s10, 1
    %p95 = por %p93, %p94
    %p96 = scmp.ne.s32.totalorder %s88, %s91
    %p97 = scmp.eq.s32.totalorder %s10, 0
    %p98 = por %p96, %p97
    %p99 = scmp.ne.s32.totalorder %s88, %s91
    %p100 = scmp.eq.s32.totalorder %s15, 1
    %p101 = por %p99, %p100
    %p102 = scmp.ne.s32.totalorder %s91, %s92
    %p103 = scmp.eq.s32.totalorder %s15, 0
    %p104 = por %p102, %p103
    %p105 = scmp.ne.s32.totalorder %s91, %s92
    %p106 = scmp.eq.s32.totalorder %s16, 1
    %p107 = por %p105, %p106
    %p109 = scmp.ne.s32.totalorder %s92, %s108
    %p110 = scmp.eq.s32.totalorder %s16, 0
    %p111 = por %p109, %p110
    %s112 = ssub.s32 %s10, %s17
    %p113 = scmp.eq.s32.totalorder %s112, 0
    %s115 = sadd.s32 %s114, 1
    %s116 = scalar_select %p113, %s114, %s115
    %p119 = pneg %p113
    %p120 = scmp.eq.s32.totalorder %s10, 1
    %p121 = por %p119, %p120
    %p122 = scmp.ne.s32.totalorder %s114, %s117
    %p123 = scmp.eq.s32.totalorder %s10, 0
    %p124 = por %p122, %p123
    %p125 = scmp.ne.s32.totalorder %s114, %s117
    %p126 = scmp.eq.s32.totalorder %s15, 1
    %p127 = por %p125, %p126
    %p128 = scmp.ne.s32.totalorder %s117, %s118
    %p129 = scmp.eq.s32.totalorder %s15, 0
    %p130 = por %p128, %p129
    %p131 = scmp.ne.s32.totalorder %s117, %s118
    %p132 = scmp.eq.s32.totalorder %s16, 1
    %p133 = por %p131, %p132
    %p135 = scmp.ne.s32.totalorder %s118, %s134
    %p136 = scmp.eq.s32.totalorder %s16, 0
    %p137 = por %p135, %p136
    %p138 = scmp.le.s32.totalorder 1, %s10
    %p139 = scmp.lt.s32.totalorder %s10, 3
    %p140 = pnand %p138, %p139
    %p141 = pneg %p140
    // Predicated region
    $region9: #{block_forward.11} parent=5 // pred_check
      _
    $region10: #{block_forward.11} parent=5 // pred_check_branch
      %143 = sbr.rel (%p140) target = $region12
    $region11: #{block_forward.11} parent=5 // pred_region
      %s144 = ssub.s32 %s10, 1
      // Predicated region
      $region13: #{block_forward.11} parent=11 // pred_check
        %p145 = pneg %p57
      $region14: #{block_forward.11} parent=11 // pred_check_branch
        %147 = sbr.rel (%p145) target = $region16
      $region15: #{block_forward.11} parent=11 // pred_region
        _
      $region16: #{block_forward.11} parent=11 // pred_fallthru
        _
      // Predicated region
      $region17: #{block_forward.11} parent=11 // pred_check
        %p148 = pneg %p78
      $region18: #{block_forward.11} parent=11 // pred_check_branch
        %150 = sbr.rel (%p148) target = $region20
      $region19: #{block_forward.11} parent=11 // pred_region
        _
      $region20: #{block_forward.11} parent=11 // pred_fallthru
        _
    $region12: #{block_forward.11} parent=5 // pred_fallthru
      _
    %p151 = scmp.lt.s32.totalorder %s10, 2
    // Predicated region
    $region21: #{block_forward.11} parent=5 // pred_check
      %p152 = pneg %p151
    $region22: #{block_forward.11} parent=5 // pred_check_branch
      %154 = sbr.rel (%p152) target = $region24
    $region23: #{block_forward.11} parent=5 // pred_region
      // Predicated region
      $region25: #{block_forward.11} parent=23 // pred_check
        %p155 = pneg %p30
      $region26: #{block_forward.11} parent=23 // pred_check_branch
        %157 = sbr.rel (%p155) target = $region28
      $region27: #{block_forward.11} parent=23 // pred_region
        %p158 = scmp.lt.s32.totalorder %s10, 1
        %s159 = scalar_select %p158, %s10, 1
        %s160 = smul.addr %s159, 9
        %s161 = smul.addr %s160, 4
        %s162 = scalar_lea.vmem %s0, %s161
      $region28: #{block_forward.11} parent=23 // pred_fallthru
        _
      // Predicated region
      $region29: #{block_forward.11} parent=23 // pred_check
        %p163 = pneg %p98
      $region30: #{block_forward.11} parent=23 // pred_check_branch
        %165 = sbr.rel (%p163) target = $region32
      $region31: #{block_forward.11} parent=23 // pred_region
        %p166 = scmp.lt.s32.totalorder %s10, 1
        %s167 = scalar_select %p166, %s10, 1
        %s168 = smul.addr %s167, 4
        %s169 = smul.addr %s168, 4
        %s170 = scalar_lea.vmem %s3, %s169
      $region32: #{block_forward.11} parent=23 // pred_fallthru
        _
    $region24: #{block_forward.11} parent=5 // pred_fallthru
      _
    %p171 = scmp.le.s32.totalorder 1, %s10
    %p172 = scmp.lt.s32.totalorder %s10, 3
    %p173 = pnand %p171, %p172
    %p174 = pneg %p173
    // Predicated region
    $region33: #{block_forward.11} parent=5 // pred_check
      _
    $region34: #{block_forward.11} parent=5 // pred_check_branch
      %176 = sbr.rel (%p173) target = $region36
    $region35: #{block_forward.11} parent=5 // pred_region
      %s177 = ssub.s32 %s10, 1
      %p178 = scmp.lt.s32.totalorder %s15, 1
      %s179 = scalar_select %p178, %s15, 1
      %s180 = smul.addr %s179, 9
      %s181 = smul.addr %s180, 4
      %s182 = scalar_lea.vmem %s0, %s181
      %p183 = pneg %p36
      %p184 = pneg %p33
      %p185 = pneg %p57
      %p186 = pneg %p54
      %p187 = pneg %p78
      %p188 = pneg %p75
      %p189 = scmp.lt.s32.totalorder %s15, 1
      %s190 = scalar_select %p189, %s15, 1
      %s191 = smul.addr %s190, 4
      %s192 = smul.addr %s191, 4
      %s193 = scalar_lea.vmem %s3, %s192
      %p194 = pneg %p104
      %p195 = pneg %p101
      %p196 = pneg %p130
      %p197 = pneg %p127
      %p198 = scmp.lt.s32.totalorder %s15, 1
      %s199 = scalar_select %p198, %s15, 1
      %s200 = smul.addr %s199, 4
      %s201 = smul.addr %s200, 8
      %s202 = scalar_lea.vmem %s4, %s201
      %p203 = scmp.lt.s32.totalorder %s15, 1
      %s204 = scalar_select %p203, %s15, 1
      %s205 = smul.addr %s204, 9
      %s206 = smul.addr %s205, 4
      %s207 = scalar_lea.vmem %s0, %s206
      %p208 = scmp.lt.s32.totalorder %s15, 1
      %s209 = scalar_select %p208, %s15, 1
      %s210 = smul.addr %s209, 4
      %s211 = smul.addr %s210, 4
      %s212 = scalar_lea.vmem %s3, %s211
      %p213 = scmp.lt.s32.totalorder %s15, 1
      %s214 = scalar_select %p213, %s15, 1
      %s215 = smul.addr %s214, 4
      %s216 = smul.addr %s215, 8
      %s217 = scalar_lea.vmem %s4, %s216
      %v219 = vld [vmem:[%s207] sm:$0xf]
      %v220 = vld [vmem:[%s207 + $0x4] sm:$0xf]
      %v221 = vld [vmem:[%s207 + $0x8] sm:$0xf]
      %v222 = vld [vmem:[%s207 + $0xc] sm:$0xf]
      %v223 = vld [vmem:[%s1] sm:$0xf]
      %v224 = vld [vmem:[%s207] sm:$0xe]
      %v225 = vld [vmem:[%s207 + $0x10] sm:$0x1]
      %s226 = scalar_lea.vmem %s1, 4
      %v227 = vld [vmem:[%s226] sm:$0xf]
      %v233 = vunpack.c.l.b16 %v224
      %v234 = vunpack.c.l.b16 %v220
      %v235 = vunpack.c.l.b16 %v221
      %v236 = vunpack.c.l.b16 %v222
      %v237 = vunpack.c.l.b16 %v225
      %v238 = vpack.c.b16 %v234, %v233
      %v239 = vpack.c.b16 %v236, %v235
      %v240 = vpack.c.b16 %v237, %v237
      %vm241 = vcmask 1046528
      %v242 = vrot.slane %v238, 1
      %v243 = vrot.slane %v239, 1
      %v244 = vsel %vm241, %v242, %v243
      %v245 = vrot.slane %v240, 1
      %v246 = vsel %vm241, %v243, %v245
      %vm247 = vcmask 64512
      %v249 = vsel %vm247, %v244, 0
      %v252 = vsel %vm247, %v246, 0
      %vm254 = vcmask 1043456
      %v256 = vsel %vm254, %v227, 0
      %258 = vmatprep.subr.bf16.mxu0 0
      %259 = vmatpush1.bf16.msra.mxu0 %v256
      %260 = vmatprep.subr.bf16.mxu0 0
      %261 = vmatpush1.bf16.msra.mxu0 0
      %262 = vmatprep.subr.bf16.mxu0 0
      %263 = vmatpush1.bf16.msra.mxu0 0
      %264 = vmatprep.subr.bf16.mxu0 0
      %265 = vmatpush1.bf16.msra.mxu0 0
      %266 = vmatprep.subr.bf16.mxu0 0
      %267 = vmatpush1.bf16.msra.mxu0 0
      %268 = vmatprep.subr.bf16.mxu0 0
      %269 = vmatpush1.bf16.msra.mxu0 0
      %270 = vmatprep.subr.bf16.mxu0 0
      %271 = vmatpush1.bf16.msra.mxu0 0
      %272 = vmatprep.subr.bf16.mxu0 0
      %273 = vmatpush1.bf16.msra.mxu0 0
      %274 = vmatprep.subr.bf16.mxu0 0
      %275 = vmatpush1.bf16.msra.mxu0 0
      %276 = vmatprep.subr.bf16.mxu0 0
      %277 = vmatpush1.bf16.msra.mxu0 0
      %278 = vmatprep.subr.bf16.mxu0 0
      %279 = vmatpush1.bf16.msra.mxu0 0
      %280 = vmatprep.subr.bf16.mxu0 0
      %281 = vmatpush1.bf16.msra.mxu0 0
      %282 = vmatprep.subr.bf16.mxu0 0
      %283 = vmatpush1.bf16.msra.mxu0 0
      %284 = vmatprep.subr.bf16.mxu0 0
      %285 = vmatpush1.bf16.msra.mxu0 0
      %286 = vmatprep.subr.bf16.mxu0 0
      %287 = vmatpush1.bf16.msra.mxu0 0
      %288 = vmatprep.subr.bf16.mxu0 0
      %289 = vmatpush1.bf16.msra.mxu0 0
      %290 = vmatprep.mubr.bf16.mxu0 0
      %291 = vmatmul.mubr.bf16.gmra.mrb[0].mxu0 %v249
      %v292 = vpop.f32.mrb[0].mxu0
      %v293 = vadd.f32 0.0, %v292
      %v294 = vpop.f32.mrb[0].mxu0
      %v295 = vpop.f32.mrb[0].mxu0
      %v296 = vadd.f32 0.0, %v295
      %v297 = vpop.f32.mrb[0].mxu0
      %298 = vmatprep.mubr.bf16.mxu0 0
      %299 = vmatmul.mubr.bf16.gmra.mrb[0].mxu0 %v252
      %v300 = vpop.f32.mrb[0].mxu0
      %v301 = vadd.f32 0.0, %v300
      %v302 = vpop.f32.mrb[0].mxu0
      %v303 = vpop.f32.mrb[0].mxu0
      %v304 = vadd.f32 0.0, %v303
      %v305 = vpop.f32.mrb[0].mxu0
      %306 = vdwg.mxu0
      %v308 = vunpack.c.l.b16 %v219
      %v309 = vpack.c.b16 %v234, %v308
      %v311 = vsel %vm247, %v309, 0
      %v314 = vsel %vm247, %v239, 0
      %v317 = vsel %vm254, %v223, 0
      %319 = vmatprep.subr.bf16.mxu0 0
      %320 = vmatpush1.bf16.msra.mxu0 %v317
      %321 = vmatprep.subr.bf16.mxu0 0
      %322 = vmatpush1.bf16.msra.mxu0 0
      %323 = vmatprep.subr.bf16.mxu0 0
      %324 = vmatpush1.bf16.msra.mxu0 0
      %325 = vmatprep.subr.bf16.mxu0 0
      %326 = vmatpush1.bf16.msra.mxu0 0
      %327 = vmatprep.subr.bf16.mxu0 0
      %328 = vmatpush1.bf16.msra.mxu0 0
      %329 = vmatprep.subr.bf16.mxu0 0
      %330 = vmatpush1.bf16.msra.mxu0 0
      %331 = vmatprep.subr.bf16.mxu0 0
      %332 = vmatpush1.bf16.msra.mxu0 0
      %333 = vmatprep.subr.bf16.mxu0 0
      %334 = vmatpush1.bf16.msra.mxu0 0
      %335 = vmatprep.subr.bf16.mxu0 0
      %336 = vmatpush1.bf16.msra.mxu0 0
      %337 = vmatprep.subr.bf16.mxu0 0
      %338 = vmatpush1.bf16.msra.mxu0 0
      %339 = vmatprep.subr.bf16.mxu0 0
      %340 = vmatpush1.bf16.msra.mxu0 0
      %341 = vmatprep.subr.bf16.mxu0 0
      %342 = vmatpush1.bf16.msra.mxu0 0
      %343 = vmatprep.subr.bf16.mxu0 0
      %344 = vmatpush1.bf16.msra.mxu0 0
      %345 = vmatprep.subr.bf16.mxu0 0
      %346 = vmatpush1.bf16.msra.mxu0 0
      %347 = vmatprep.subr.bf16.mxu0 0
      %348 = vmatpush1.bf16.msra.mxu0 0
      %349 = vmatprep.subr.bf16.mxu0 0
      %350 = vmatpush1.bf16.msra.mxu0 0
      %351 = vmatprep.mubr.bf16.mxu0 0
      %352 = vmatmul.mubr.bf16.gmra.mrb[0].mxu0 %v311
      %v353 = vpop.f32.mrb[0].mxu0
      %v354 = vadd.f32 %v293, %v353
      %v355 = vpop.f32.mrb[0].mxu0
      %v356 = vpop.f32.mrb[0].mxu0
      %v357 = vadd.f32 %v296, %v356
      %v358 = vpop.f32.mrb[0].mxu0
      %359 = vmatprep.mubr.bf16.mxu0 0
      %360 = vmatmul.mubr.bf16.gmra.mrb[0].mxu0 %v314
      %v361 = vpop.f32.mrb[0].mxu0
      %v362 = vadd.f32 %v301, %v361
      %v363 = vpop.f32.mrb[0].mxu0
      %v364 = vpop.f32.mrb[0].mxu0
      %v365 = vadd.f32 %v304, %v364
      %v366 = vpop.f32.mrb[0].mxu0
      %367 = vdwg.mxu0
      %v368 = vld [vmem:[%s207] sm:$0xc]
      %v369 = vld [vmem:[%s207 + $0x10] sm:$0x3]
      %s370 = scalar_lea.vmem %s1, 8
      %v371 = vld [vmem:[%s370] sm:$0xf]
      %v374 = vunpack.c.l.b16 %v368
      %v375 = vunpack.c.l.b16 %v369
      %v376 = vpack.c.b16 %v234, %v374
      %v377 = vpack.c.b16 %v375, %v375
      %vm378 = vcmask 1045504
      %v379 = vrot.slane %v376, 2
      %v380 = vrot.slane %v239, 2
      %v381 = vsel %vm378, %v379, %v380
      %v382 = vrot.slane %v377, 2
      %v383 = vsel %vm378, %v380, %v382
      %v385 = vsel %vm247, %v381, 0
      %v388 = vsel %vm247, %v383, 0
      %v391 = vsel %vm254, %v371, 0
      %393 = vmatprep.subr.bf16.mxu0 0
      %394 = vmatpush1.bf16.msra.mxu0 %v391
      %395 = vmatprep.subr.bf16.mxu0 0
      %396 = vmatpush1.bf16.msra.mxu0 0
      %397 = vmatprep.subr.bf16.mxu0 0
      %398 = vmatpush1.bf16.msra.mxu0 0
      %399 = vmatprep.subr.bf16.mxu0 0
      %400 = vmatpush1.bf16.msra.mxu0 0
      %401 = vmatprep.subr.bf16.mxu0 0
      %402 = vmatpush1.bf16.msra.mxu0 0
      %403 = vmatprep.subr.bf16.mxu0 0
      %404 = vmatpush1.bf16.msra.mxu0 0
      %405 = vmatprep.subr.bf16.mxu0 0
      %406 = vmatpush1.bf16.msra.mxu0 0
      %407 = vmatprep.subr.bf16.mxu0 0
      %408 = vmatpush1.bf16.msra.mxu0 0
      %409 = vmatprep.subr.bf16.mxu0 0
      %410 = vmatpush1.bf16.msra.mxu0 0
      %411 = vmatprep.subr.bf16.mxu0 0
      %412 = vmatpush1.bf16.msra.mxu0 0
      %413 = vmatprep.subr.bf16.mxu0 0
      %414 = vmatpush1.bf16.msra.mxu0 0
      %415 = vmatprep.subr.bf16.mxu0 0
      %416 = vmatpush1.bf16.msra.mxu0 0
      %417 = vmatprep.subr.bf16.mxu0 0
      %418 = vmatpush1.bf16.msra.mxu0 0
      %419 = vmatprep.subr.bf16.mxu0 0
      %420 = vmatpush1.bf16.msra.mxu0 0
      %421 = vmatprep.subr.bf16.mxu0 0
      %422 = vmatpush1.bf16.msra.mxu0 0
      %423 = vmatprep.subr.bf16.mxu0 0
      %424 = vmatpush1.bf16.msra.mxu0 0
      %425 = vmatprep.mubr.bf16.mxu0 0
      %426 = vmatmul.mubr.bf16.gmra.mrb[0].mxu0 %v385
      %v427 = vpop.f32.mrb[0].mxu0
      %v428 = vadd.f32 0.0, %v427
      %v429 = vpop.f32.mrb[0].mxu0
      %v430 = vpop.f32.mrb[0].mxu0
      %v431 = vadd.f32 0.0, %v430
      %v432 = vpop.f32.mrb[0].mxu0
      %433 = vmatprep.mubr.bf16.mxu0 0
      %434 = vmatmul.mubr.bf16.gmra.mrb[0].mxu0 %v388
      %v435 = vpop.f32.mrb[0].mxu0
      %v436 = vadd.f32 0.0, %v435
      %v437 = vpop.f32.mrb[0].mxu0
      %v438 = vpop.f32.mrb[0].mxu0
      %v439 = vadd.f32 0.0, %v438
      %v440 = vpop.f32.mrb[0].mxu0
      %441 = vdwg.mxu0
      %v442 = vadd.f32 %v354, %v428
      %v443 = vadd.f32 %v357, %v431
      %v444 = vadd.f32 %v362, %v436
      %v445 = vadd.f32 %v365, %v439
      %v446 = vld [vmem:[%s207 + $0x8] sm:$0xf]
      %v447 = vld [vmem:[%s207 + $0xc] sm:$0xf]
      %v448 = vld [vmem:[%s207 + $0x10] sm:$0xf]
      %v449 = vld [vmem:[%s207 + $0x14] sm:$0xf]
      %s450 = scalar_lea.vmem %s1, 12
      %v451 = vld [vmem:[%s450] sm:$0xf]
      %v456 = vunpack.c.l.b16 %v446
      %v457 = vunpack.c.l.b16 %v447
      %v458 = vunpack.c.l.b16 %v448
      %v459 = vunpack.c.l.b16 %v449
      %v460 = vpack.c.b16 %v457, %v456
      %v461 = vpack.c.b16 %v459, %v458
      %v463 = vsel %vm247, %v460, 0
      %v466 = vsel %vm247, %v461, 0
      %v469 = vsel %vm254, %v451, 0
      %471 = vmatprep.subr.bf16.mxu0 0
      %472 = vmatpush1.bf16.msra.mxu0 %v469
      %473 = vmatprep.subr.bf16.mxu0 0
      %474 = vmatpush1.bf16.msra.mxu0 0
      %475 = vmatprep.subr.bf16.mxu0 0
      %476 = vmatpush1.bf16.msra.mxu0 0
      %477 = vmatprep.subr.bf16.mxu0 0
      %478 = vmatpush1.bf16.msra.mxu0 0
      %479 = vmatprep.subr.bf16.mxu0 0
      %480 = vmatpush1.bf16.msra.mxu0 0
      %481 = vmatprep.subr.bf16.mxu0 0
      %482 = vmatpush1.bf16.msra.mxu0 0
      %483 = vmatprep.subr.bf16.mxu0 0
      %484 = vmatpush1.bf16.msra.mxu0 0
      %485 = vmatprep.subr.bf16.mxu0 0
      %486 = vmatpush1.bf16.msra.mxu0 0
      %487 = vmatprep.subr.bf16.mxu0 0
      %488 = vmatpush1.bf16.msra.mxu0 0
      %489 = vmatprep.subr.bf16.mxu0 0
      %490 = vmatpush1.bf16.msra.mxu0 0
      %491 = vmatprep.subr.bf16.mxu0 0
      %492 = vmatpush1.bf16.msra.mxu0 0
      %493 = vmatprep.subr.bf16.mxu0 0
      %494 = vmatpush1.bf16.msra.mxu0 0
      %495 = vmatprep.subr.bf16.mxu0 0
      %496 = vmatpush1.bf16.msra.mxu0 0
      %497 = vmatprep.subr.bf16.mxu0 0
      %498 = vmatpush1.bf16.msra.mxu0 0
      %499 = vmatprep.subr.bf16.mxu0 0
      %500 = vmatpush1.bf16.msra.mxu0 0
      %501 = vmatprep.subr.bf16.mxu0 0
      %502 = vmatpush1.bf16.msra.mxu0 0
      %503 = vmatprep.mubr.bf16.mxu0 0
      %504 = vmatmul.mubr.bf16.gmra.mrb[0].mxu0 %v463
      %v505 = vpop.f32.mrb[0].mxu0
      %v506 = vadd.f32 0.0, %v505
      %v507 = vpop.f32.mrb[0].mxu0
      %v508 = vpop.f32.mrb[0].mxu0
      %v509 = vadd.f32 0.0, %v508
      %v510 = vpop.f32.mrb[0].mxu0
      %511 = vmatprep.mubr.bf16.mxu0 0
      %512 = vmatmul.mubr.bf16.gmra.mrb[0].mxu0 %v466
      %v513 = vpop.f32.mrb[0].mxu0
      %v514 = vadd.f32 0.0, %v513
      %v515 = vpop.f32.mrb[0].mxu0
      %v516 = vpop.f32.mrb[0].mxu0
      %v517 = vadd.f32 0.0, %v516
      %v518 = vpop.f32.mrb[0].mxu0
      %519 = vdwg.mxu0
      %v520 = vadd.f32 %v442, %v506
      %v521 = vadd.f32 %v443, %v509
      %v522 = vadd.f32 %v444, %v514
      %v523 = vadd.f32 %v445, %v517
      %v524 = vld [vmem:[%s207 + $0x8] sm:$0xe]
      %v525 = vld [vmem:[%s207 + $0xc] sm:$0xf]
      %v526 = vld [vmem:[%s207 + $0x10] sm:$0xf]
      %v527 = vld [vmem:[%s207 + $0x14] sm:$0xf]
      %v528 = vld [vmem:[%s207 + $0x18] sm:$0x1]
      %s529 = scalar_lea.vmem %s1, 16
      %v530 = vld [vmem:[%s529] sm:$0xf]
      %v536 = vunpack.c.l.b16 %v524
      %v537 = vunpack.c.l.b16 %v525
      %v538 = vunpack.c.l.b16 %v526
      %v539 = vunpack.c.l.b16 %v527
      %v540 = vunpack.c.l.b16 %v528
      %v541 = vpack.c.b16 %v537, %v536
      %v542 = vpack.c.b16 %v539, %v538
      %v543 = vpack.c.b16 %v540, %v540
      %v544 = vrot.slane %v541, 1
      %v545 = vrot.slane %v542, 1
      %v546 = vsel %vm241, %v544, %v545
      %v547 = vrot.slane %v543, 1
      %v548 = vsel %vm241, %v545, %v547
      %v550 = vsel %vm247, %v546, 0
      %v553 = vsel %vm247, %v548, 0
      %v556 = vsel %vm254, %v530, 0
      %558 = vmatprep.subr.bf16.mxu0 0
      %559 = vmatpush1.bf16.msra.mxu0 %v556
      %560 = vmatprep.subr.bf16.mxu0 0
      %561 = vmatpush1.bf16.msra.mxu0 0
      %562 = vmatprep.subr.bf16.mxu0 0
      %563 = vmatpush1.bf16.msra.mxu0 0
      %564 = vmatprep.subr.bf16.mxu0 0
      %565 = vmatpush1.bf16.msra.mxu0 0
      %566 = vmatprep.subr.bf16.mxu0 0
      %567 = vmatpush1.bf16.msra.mxu0 0
      %568 = vmatprep.subr.bf16.mxu0 0
      %569 = vmatpush1.bf16.msra.mxu0 0
      %570 = vmatprep.subr.bf16.mxu0 0
      %571 = vmatpush1.bf16.msra.mxu0 0
      %572 = vmatprep.subr.bf16.mxu0 0
      %573 = vmatpush1.bf16.msra.mxu0 0
      %574 = vmatprep.subr.bf16.mxu0 0
      %575 = vmatpush1.bf16.msra.mxu0 0
      %576 = vmatprep.subr.bf16.mxu0 0
      %577 = vmatpush1.bf16.msra.mxu0 0
      %578 = vmatprep.subr.bf16.mxu0 0
      %579 = vmatpush1.bf16.msra.mxu0 0
      %580 = vmatprep.subr.bf16.mxu0 0
      %581 = vmatpush1.bf16.msra.mxu0 0
      %582 = vmatprep.subr.bf16.mxu0 0
      %583 = vmatpush1.bf16.msra.mxu0 0
      %584 = vmatprep.subr.bf16.mxu0 0
      %585 = vmatpush1.bf16.msra.mxu0 0
      %586 = vmatprep.subr.bf16.mxu0 0
      %587 = vmatpush1.bf16.msra.mxu0 0
      %588 = vmatprep.subr.bf16.mxu0 0
      %589 = vmatpush1.bf16.msra.mxu0 0
      %590 = vmatprep.mubr.bf16.mxu0 0
      %591 = vmatmul.mubr.bf16.gmra.mrb[0].mxu0 %v550
      %v592 = vpop.f32.mrb[0].mxu0
      %v593 = vadd.f32 0.0, %v592
      %v594 = vpop.f32.mrb[0].mxu0
      %v595 = vpop.f32.mrb[0].mxu0
      %v596 = vadd.f32 0.0, %v595
      %v597 = vpop.f32.mrb[0].mxu0
      %598 = vmatprep.mubr.bf16.mxu0 0
      %599 = vmatmul.mubr.bf16.gmra.mrb[0].mxu0 %v553
      %v600 = vpop.f32.mrb[0].mxu0
      %v601 = vadd.f32 0.0, %v600
      %v602 = vpop.f32.mrb[0].mxu0
      %v603 = vpop.f32.mrb[0].mxu0
      %v604 = vadd.f32 0.0, %v603
      %v605 = vpop.f32.mrb[0].mxu0
      %606 = vdwg.mxu0
      %v607 = vadd.f32 %v520, %v593
      %v608 = vadd.f32 %v521, %v596
      %v609 = vadd.f32 %v522, %v601
      %v610 = vadd.f32 %v523, %v604
      %v611 = vld [vmem:[%s207 + $0x8] sm:$0xc]
      %v612 = vld [vmem:[%s207 + $0x18] sm:$0x3]
      %s613 = scalar_lea.vmem %s1, 20
      %v614 = vld [vmem:[%s613] sm:$0xf]
      %v617 = vunpack.c.l.b16 %v611
      %v618 = vunpack.c.l.b16 %v612
      %v619 = vpack.c.b16 %v537, %v617
      %v620 = vpack.c.b16 %v618, %v618
      %v621 = vrot.slane %v619, 2
      %v622 = vrot.slane %v542, 2
      %v623 = vsel %vm378, %v621, %v622
      %v624 = vrot.slane %v620, 2
      %v625 = vsel %vm378, %v622, %v624
      %v627 = vsel %vm247, %v623, 0
      %v630 = vsel %vm247, %v625, 0
      %v633 = vsel %vm254, %v614, 0
      %635 = vmatprep.subr.bf16.mxu0 0
      %636 = vmatpush1.bf16.msra.mxu0 %v633
      %637 = vmatprep.subr.bf16.mxu0 0
      %638 = vmatpush1.bf16.msra.mxu0 0
      %639 = vmatprep.subr.bf16.mxu0 0
      %640 = vmatpush1.bf16.msra.mxu0 0
      %641 = vmatprep.subr.bf16.mxu0 0
      %642 = vmatpush1.bf16.msra.mxu0 0
      %643 = vmatprep.subr.bf16.mxu0 0
      %644 = vmatpush1.bf16.msra.mxu0 0
      %645 = vmatprep.subr.bf16.mxu0 0
      %646 = vmatpush1.bf16.msra.mxu0 0
      %647 = vmatprep.subr.bf16.mxu0 0
      %648 = vmatpush1.bf16.msra.mxu0 0
      %649 = vmatprep.subr.bf16.mxu0 0
      %650 = vmatpush1.bf16.msra.mxu0 0
      %651 = vmatprep.subr.bf16.mxu0 0
      %652 = vmatpush1.bf16.msra.mxu0 0
      %653 = vmatprep.subr.bf16.mxu0 0
      %654 = vmatpush1.bf16.msra.mxu0 0
      %655 = vmatprep.subr.bf16.mxu0 0
      %656 = vmatpush1.bf16.msra.mxu0 0
      %657 = vmatprep.subr.bf16.mxu0 0
      %658 = vmatpush1.bf16.msra.mxu0 0
      %659 = vmatprep.subr.bf16.mxu0 0
      %660 = vmatpush1.bf16.msra.mxu0 0
      %661 = vmatprep.subr.bf16.mxu0 0
      %662 = vmatpush1.bf16.msra.mxu0 0
      %663 = vmatprep.subr.bf16.mxu0 0
      %664 = vmatpush1.bf16.msra.mxu0 0
      %665 = vmatprep.subr.bf16.mxu0 0
      %666 = vmatpush1.bf16.msra.mxu0 0
      %667 = vmatprep.mubr.bf16.mxu0 0
      %668 = vmatmul.mubr.bf16.gmra.mrb[0].mxu0 %v627
      %v669 = vpop.f32.mrb[0].mxu0
      %v670 = vadd.f32 0.0, %v669
      %v671 = vpop.f32.mrb[0].mxu0
      %v672 = vpop.f32.mrb[0].mxu0
      %v673 = vadd.f32 0.0, %v672
      %v674 = vpop.f32.mrb[0].mxu0
      %675 = vmatprep.mubr.bf16.mxu0 0
      %676 = vmatmul.mubr.bf16.gmra.mrb[0].mxu0 %v630
      %v677 = vpop.f32.mrb[0].mxu0
      %v678 = vadd.f32 0.0, %v677
      %v679 = vpop.f32.mrb[0].mxu0
      %v680 = vpop.f32.mrb[0].mxu0
      %v681 = vadd.f32 0.0, %v680
      %v682 = vpop.f32.mrb[0].mxu0
      %683 = vdwg.mxu0
      %v684 = vadd.f32 %v607, %v670
      %v685 = vadd.f32 %v608, %v673
      %v686 = vadd.f32 %v609, %v678
      %v687 = vadd.f32 %v610, %v681
      %v688 = vld [vmem:[%s207 + $0x10] sm:$0xf]
      %v689 = vld [vmem:[%s207 + $0x14] sm:$0xf]
      %v690 = vld [vmem:[%s207 + $0x18] sm:$0xf]
      %v691 = vld [vmem:[%s207 + $0x1c] sm:$0xf]
      %s692 = scalar_lea.vmem %s1, 24
      %v693 = vld [vmem:[%s692] sm:$0xf]
      %v698 = vunpack.c.l.b16 %v688
      %v699 = vunpack.c.l.b16 %v689
      %v700 = vunpack.c.l.b16 %v690
      %v701 = vunpack.c.l.b16 %v691
      %v702 = vpack.c.b16 %v699, %v698
      %v703 = vpack.c.b16 %v701, %v700
      %v705 = vsel %vm247, %v702, 0
      %v708 = vsel %vm247, %v703, 0
      %v711 = vsel %vm254, %v693, 0
      %713 = vmatprep.subr.bf16.mxu0 0
      %714 = vmatpush1.bf16.msra.mxu0 %v711
      %715 = vmatprep.subr.bf16.mxu0 0
      %716 = vmatpush1.bf16.msra.mxu0 0
      %717 = vmatprep.subr.bf16.mxu0 0
      %718 = vmatpush1.bf16.msra.mxu0 0
      %719 = vmatprep.subr.bf16.mxu0 0
      %720 = vmatpush1.bf16.msra.mxu0 0
      %721 = vmatprep.subr.bf16.mxu0 0
      %722 = vmatpush1.bf16.msra.mxu0 0
      %723 = vmatprep.subr.bf16.mxu0 0
      %724 = vmatpush1.bf16.msra.mxu0 0
      %725 = vmatprep.subr.bf16.mxu0 0
      %726 = vmatpush1.bf16.msra.mxu0 0
      %727 = vmatprep.subr.bf16.mxu0 0
      %728 = vmatpush1.bf16.msra.mxu0 0
      %729 = vmatprep.subr.bf16.mxu0 0
      %730 = vmatpush1.bf16.msra.mxu0 0
      %731 = vmatprep.subr.bf16.mxu0 0
      %732 = vmatpush1.bf16.msra.mxu0 0
      %733 = vmatprep.subr.bf16.mxu0 0
      %734 = vmatpush1.bf16.msra.mxu0 0
      %735 = vmatprep.subr.bf16.mxu0 0
      %736 = vmatpush1.bf16.msra.mxu0 0
      %737 = vmatprep.subr.bf16.mxu0 0
      %738 = vmatpush1.bf16.msra.mxu0 0
      %739 = vmatprep.subr.bf16.mxu0 0
      %740 = vmatpush1.bf16.msra.mxu0 0
      %741 = vmatprep.subr.bf16.mxu0 0
      %742 = vmatpush1.bf16.msra.mxu0 0
      %743 = vmatprep.subr.bf16.mxu0 0
      %744 = vmatpush1.bf16.msra.mxu0 0
      %745 = vmatprep.mubr.bf16.mxu0 0
      %746 = vmatmul.mubr.bf16.gmra.mrb[0].mxu0 %v705
      %v747 = vpop.f32.mrb[0].mxu0
      %v748 = vadd.f32 0.0, %v747
      %v749 = vpop.f32.mrb[0].mxu0
      %v750 = vpop.f32.mrb[0].mxu0
      %v751 = vadd.f32 0.0, %v750
      %v752 = vpop.f32.mrb[0].mxu0
      %753 = vmatprep.mubr.bf16.mxu0 0
      %754 = vmatmul.mubr.bf16.gmra.mrb[0].mxu0 %v708
      %v755 = vpop.f32.mrb[0].mxu0
      %v756 = vadd.f32 0.0, %v755
      %v757 = vpop.f32.mrb[0].mxu0
      %v758 = vpop.f32.mrb[0].mxu0
      %v759 = vadd.f32 0.0, %v758
      %v760 = vpop.f32.mrb[0].mxu0
      %761 = vdwg.mxu0
      %v762 = vadd.f32 %v684, %v748
      %v763 = vadd.f32 %v685, %v751
      %v764 = vadd.f32 %v686, %v756
      %v765 = vadd.f32 %v687, %v759
      %v766 = vld [vmem:[%s207 + $0x10] sm:$0xe]
      %v767 = vld [vmem:[%s207 + $0x14] sm:$0xf]
      %v768 = vld [vmem:[%s207 + $0x18] sm:$0xf]
      %v769 = vld [vmem:[%s207 + $0x1c] sm:$0xf]
      %v770 = vld [vmem:[%s207 + $0x20] sm:$0x1]
      %s771 = scalar_lea.vmem %s1, 28
      %v772 = vld [vmem:[%s771] sm:$0xf]
      %v778 = vunpack.c.l.b16 %v766
      %v779 = vunpack.c.l.b16 %v767
      %v780 = vunpack.c.l.b16 %v768
      %v781 = vunpack.c.l.b16 %v769
      %v782 = vunpack.c.l.b16 %v770
      %v783 = vpack.c.b16 %v779, %v778
      %v784 = vpack.c.b16 %v781, %v780
      %v785 = vpack.c.b16 %v782, %v782
      %v786 = vrot.slane %v783, 1
      %v787 = vrot.slane %v784, 1
      %v788 = vsel %vm241, %v786, %v787
      %v789 = vrot.slane %v785, 1
      %v790 = vsel %vm241, %v787, %v789
      %v792 = vsel %vm247, %v788, 0
      %v795 = vsel %vm247, %v790, 0
      %v798 = vsel %vm254, %v772, 0
      %800 = vmatprep.subr.bf16.mxu0 0
      %801 = vmatpush1.bf16.msra.mxu0 %v798
      %802 = vmatprep.subr.bf16.mxu0 0
      %803 = vmatpush1.bf16.msra.mxu0 0
      %804 = vmatprep.subr.bf16.mxu0 0
      %805 = vmatpush1.bf16.msra.mxu0 0
      %806 = vmatprep.subr.bf16.mxu0 0
      %807 = vmatpush1.bf16.msra.mxu0 0
      %808 = vmatprep.subr.bf16.mxu0 0
      %809 = vmatpush1.bf16.msra.mxu0 0
      %810 = vmatprep.subr.bf16.mxu0 0
      %811 = vmatpush1.bf16.msra.mxu0 0
      %812 = vmatprep.subr.bf16.mxu0 0
      %813 = vmatpush1.bf16.msra.mxu0 0
      %814 = vmatprep.subr.bf16.mxu0 0
      %815 = vmatpush1.bf16.msra.mxu0 0
      %816 = vmatprep.subr.bf16.mxu0 0
      %817 = vmatpush1.bf16.msra.mxu0 0
      %818 = vmatprep.subr.bf16.mxu0 0
      %819 = vmatpush1.bf16.msra.mxu0 0
      %820 = vmatprep.subr.bf16.mxu0 0
      %821 = vmatpush1.bf16.msra.mxu0 0
      %822 = vmatprep.subr.bf16.mxu0 0
      %823 = vmatpush1.bf16.msra.mxu0 0
      %824 = vmatprep.subr.bf16.mxu0 0
      %825 = vmatpush1.bf16.msra.mxu0 0
      %826 = vmatprep.subr.bf16.mxu0 0
      %827 = vmatpush1.bf16.msra.mxu0 0
      %828 = vmatprep.subr.bf16.mxu0 0
      %829 = vmatpush1.bf16.msra.mxu0 0
      %830 = vmatprep.subr.bf16.mxu0 0
      %831 = vmatpush1.bf16.msra.mxu0 0
      %832 = vmatprep.mubr.bf16.mxu0 0
      %833 = vmatmul.mubr.bf16.gmra.mrb[0].mxu0 %v792
      %v834 = vpop.f32.mrb[0].mxu0
      %v835 = vadd.f32 0.0, %v834
      %v836 = vpop.f32.mrb[0].mxu0
      %v837 = vpop.f32.mrb[0].mxu0
      %v838 = vadd.f32 0.0, %v837
      %v839 = vpop.f32.mrb[0].mxu0
      %840 = vmatprep.mubr.bf16.mxu0 0
      %841 = vmatmul.mubr.bf16.gmra.mrb[0].mxu0 %v795
      %v842 = vpop.f32.mrb[0].mxu0
      %v843 = vadd.f32 0.0, %v842
      %v844 = vpop.f32.mrb[0].mxu0
      %v845 = vpop.f32.mrb[0].mxu0
      %v846 = vadd.f32 0.0, %v845
      %v847 = vpop.f32.mrb[0].mxu0
      %848 = vdwg.mxu0
      %v849 = vadd.f32 %v762, %v835
      %v850 = vadd.f32 %v763, %v838
      %v851 = vadd.f32 %v764, %v843
      %v852 = vadd.f32 %v765, %v846
      %v853 = vld [vmem:[%s207 + $0x10] sm:$0xc]
      %v854 = vld [vmem:[%s207 + $0x20] sm:$0x3]
      %s855 = scalar_lea.vmem %s1, 32
      %v856 = vld [vmem:[%s855] sm:$0xf]
      %v859 = vunpack.c.l.b16 %v853
      %v860 = vunpack.c.l.b16 %v854
      %v861 = vpack.c.b16 %v779, %v859
      %v862 = vpack.c.b16 %v860, %v860
      %v863 = vrot.slane %v861, 2
      %v864 = vrot.slane %v784, 2
      %v865 = vsel %vm378, %v863, %v864
      %v866 = vrot.slane %v862, 2
      %v867 = vsel %vm378, %v864, %v866
      %v869 = vsel %vm247, %v865, 0
      %v872 = vsel %vm247, %v867, 0
      %v875 = vsel %vm254, %v856, 0
      %877 = vmatprep.subr.bf16.mxu0 0
      %878 = vmatpush1.bf16.msra.mxu0 %v875
      %879 = vmatprep.subr.bf16.mxu0 0
      %880 = vmatpush1.bf16.msra.mxu0 0
      %881 = vmatprep.subr.bf16.mxu0 0
      %882 = vmatpush1.bf16.msra.mxu0 0
      %883 = vmatprep.subr.bf16.mxu0 0
      %884 = vmatpush1.bf16.msra.mxu0 0
      %885 = vmatprep.subr.bf16.mxu0 0
      %886 = vmatpush1.bf16.msra.mxu0 0
      %887 = vmatprep.subr.bf16.mxu0 0
      %888 = vmatpush1.bf16.msra.mxu0 0
      %889 = vmatprep.subr.bf16.mxu0 0
      %890 = vmatpush1.bf16.msra.mxu0 0
      %891 = vmatprep.subr.bf16.mxu0 0
      %892 = vmatpush1.bf16.msra.mxu0 0
      %893 = vmatprep.subr.bf16.mxu0 0
      %894 = vmatpush1.bf16.msra.mxu0 0
      %895 = vmatprep.subr.bf16.mxu0 0
      %896 = vmatpush1.bf16.msra.mxu0 0
      %897 = vmatprep.subr.bf16.mxu0 0
      %898 = vmatpush1.bf16.msra.mxu0 0
      %899 = vmatprep.subr.bf16.mxu0 0
      %900 = vmatpush1.bf16.msra.mxu0 0
      %901 = vmatprep.subr.bf16.mxu0 0
      %902 = vmatpush1.bf16.msra.mxu0 0
      %903 = vmatprep.subr.bf16.mxu0 0
      %904 = vmatpush1.bf16.msra.mxu0 0
      %905 = vmatprep.subr.bf16.mxu0 0
      %906 = vmatpush1.bf16.msra.mxu0 0
      %907 = vmatprep.subr.bf16.mxu0 0
      %908 = vmatpush1.bf16.msra.mxu0 0
      %909 = vmatprep.mubr.bf16.mxu0 0
      %910 = vmatmul.mubr.bf16.gmra.mrb[0].mxu0 %v869
      %v911 = vpop.f32.mrb[0].mxu0
      %v912 = vadd.f32 0.0, %v911
      %v913 = vpop.f32.mrb[0].mxu0
      %v914 = vpop.f32.mrb[0].mxu0
      %v915 = vadd.f32 0.0, %v914
      %v916 = vpop.f32.mrb[0].mxu0
      %917 = vmatprep.mubr.bf16.mxu0 0
      %918 = vmatmul.mubr.bf16.gmra.mrb[0].mxu0 %v872
      %v919 = vpop.f32.mrb[0].mxu0
      %v920 = vadd.f32 0.0, %v919
      %v921 = vpop.f32.mrb[0].mxu0
      %v922 = vpop.f32.mrb[0].mxu0
      %v923 = vadd.f32 0.0, %v922
      %v924 = vpop.f32.mrb[0].mxu0
      %925 = vdwg.mxu0
      %v926 = vadd.f32 %v849, %v912
      %v927 = vadd.f32 %v850, %v915
      %v928 = vadd.f32 %v851, %v920
      %v929 = vadd.f32 %v852, %v923
      %v930 = vld [vmem:[%s2] sm:$0x3]
      %v931 = vlaneseq
      %v932 = vshrl.u32 %v931, 7
      %v933 = vsub.s32 0, %v932
      %v934 = vrot.slane %v930, %v933
      %v935 = vmul.f32 %v926, %v934
      %v936 = vmul.f32 %v927, %v934
      %v937 = vmul.f32 %v928, %v934
      %v938 = vmul.f32 %v929, %v934
      %v939 = vlaneseq
      %v940 = vshrl.u32 %v939, 7
      %v941 = vsub.s32 1, %v940
      %v942 = vrot.slane %v930, %v941
      %v943 = vadd.f32 %v935, %v942
      %v944 = vadd.f32 %v936, %v942
      %v945 = vadd.f32 %v937, %v942
      %v946 = vadd.f32 %v938, %v942
      %vm947 = vcmp.gt.f32.partialorder %v943, 0.0
      %vm948 = vcmp.gt.f32.partialorder %v944, 0.0
      %vm949 = vcmp.gt.f32.partialorder %v945, 0.0
      %vm950 = vcmp.gt.f32.partialorder %v946, 0.0
      %v951 = vmul.f32 %v943, 0.1
      %v952 = vmul.f32 %v944, 0.1
      %v953 = vmul.f32 %v945, 0.1
      %v954 = vmul.f32 %v946, 0.1
      %v955 = vsel %vm947, %v943, %v951
      %v956 = vsel %vm948, %v944, %v952
      %v957 = vsel %vm949, %v945, %v953
      %v958 = vsel %vm950, %v946, %v954
      %v959 = vld [vmem:[%s212] sm:$0xf]
      %v960 = vld [vmem:[%s212 + $0x4] sm:$0xf]
      %v961 = vld [vmem:[%s212 + $0x8] sm:$0xf]
      %v962 = vld [vmem:[%s212 + $0xc] sm:$0xf]
      %v963 = vunpack.c.l.bf16 %v959
      %v964 = vunpack.c.l.bf16 %v960
      %v965 = vunpack.c.l.bf16 %v961
      %v966 = vunpack.c.l.bf16 %v962
      %v967 = vadd.f32 %v955, %v963
      %v968 = vadd.f32 %v956, %v964
      %v969 = vadd.f32 %v957, %v965
      %v970 = vadd.f32 %v958, %v966
      %971 = vst [vmem:[%s217] sm:$0xff] %v967
      %972 = vst [vmem:[%s217 + $0x8] sm:$0xff] %v968
      %973 = vst [vmem:[%s217 + $0x10] sm:$0xff] %v969
      %974 = vst [vmem:[%s217 + $0x18] sm:$0xff] %v970
      %p975 = scmp.lt.s32.totalorder %s15, 1
      %s976 = scalar_select %p975, %s15, 1
      %s977 = smul.addr %s976, 4
      %s978 = smul.addr %s977, 8
      %s979 = scalar_lea.vmem %s4, %s978
      // Predicated region
      $region37: #{block_forward.11} parent=35 // pred_check
        %p980 = pneg %p127
      $region38: #{block_forward.11} parent=35 // pred_check_branch
        %982 = sbr.rel (%p980) target = $region40
      $region39: #{block_forward.11} parent=35 // pred_region
        _
      $region40: #{block_forward.11} parent=35 // pred_fallthru
        _
    $region36: #{block_forward.11} parent=5 // pred_fallthru
      _
    %p983 = scmp.le.s32.totalorder 2, %s10
    // Predicated region
    $region41: #{block_forward.11} parent=5 // pred_check
      %p984 = pneg %p983
    $region42: #{block_forward.11} parent=5 // pred_check_branch
      %986 = sbr.rel (%p984) target = $region44
    $region43: #{block_forward.11} parent=5 // pred_region
      %s987 = ssub.s32 %s10, 2
      // Predicated region
      $region45: #{block_forward.11} parent=43 // pred_check
        %p988 = pneg %p133
      $region46: #{block_forward.11} parent=43 // pred_check_branch
        %990 = sbr.rel (%p988) target = $region48
      $region47: #{block_forward.11} parent=43 // pred_region
        %p991 = scmp.lt.s32.totalorder %s16, 1
        %s992 = scalar_select %p991, %s16, 1
        %s993 = smul.addr %s992, 4
        %s994 = smul.addr %s993, 8
        %s995 = scalar_lea.vmem %s4, %s994
      $region48: #{block_forward.11} parent=43 // pred_fallthru
        _
    $region44: #{block_forward.11} parent=5 // pred_fallthru
      _
  $region6: #{block_forward.11} parent=0 // loop_footer
    %s14 = sadd.s32 1, %s10
  $region7: #{block_forward.11} parent=0 // loop_footer_branch
    %9 = sbr.rel target = $region3
  $region8: #{block_forward.11} parent=0 // loop_exit
    _

</llo_original>
